<compile_context>
chip_gen: v7x
topology: tpu7x:2x2x1
jax: 0.10.0
libtpu: 0.0.40
codegen_flags: <defaults>
</compile_context>

<pallas_src>
import functools

import jax
import jax.numpy as jnp
from jax.experimental import pallas as pl
from jax.experimental.pallas import tpu as pltpu


V_THRESH = 1.0      # firing threshold for the spiking layers
HIDDEN_SIZE = 32
OUTPUT_SIZE = 10
NUM_LAYERS = 1

IMG = 28            # spatial size is fixed by the module (16*28*28 recurrent input)
CIN = 1
COUT = 16
KH = KW = 3
REC_N = 256         # SpikingRecurrent hidden size
TN = 128            # width of one contiguous weight slab (output half)
NN = REC_N // TN    # = 2 grid steps over the big weight


# --------------------------------------------------------------------------
# Fused kernel: conv prologue -> per-half big spiking linear -> tail epilogue
# --------------------------------------------------------------------------
def _mamba_spike_kernel(xcol_ref, cw_ref, cb_ref, wih_ref, rb_ref,
                        ifw_ref, ifb_ref, mbw_ref, mbb_ref, ow_ref, ob_ref,
                        o_ref, spk_ref, h_ref, *, thresh):
    # xcol_ref : (B, Cin*KH*KW, H*W) f32   im2col patches (resident, ~56 KB)
    # cw_ref   : (Cout, Cin*KH*KW)   f32   flattened OIHW conv weight
    # cb_ref   : (Cout, 1)           f32
    # wih_ref  : (Cout, H*W, TN)     bf16  contiguous weight slab for this N-half
    # rb_ref   : (1, TN)             f32   b_ih + b_hh slice for this N-half
    # ifw_ref  : (NN, TN, Hd)        f32   InterfaceLayer weight split per half
    # ifb_ref  : (1, Hd)             f32
    # mbw_ref  : (L, Hd, Hd)         f32   MambaBackbone Linear+SiLU weights
    # mbb_ref  : (L, 1, Hd)          f32
    # ow_ref   : (Hd, Nout) f32 / ob_ref : (1, Nout) f32
    # o_ref    : (B, Nout)           f32   output spike train
    # spk_ref  : VMEM (B, Cout, H*W) bf16  conv spikes (0/1, lossless in bf16)
    # h_ref    : VMEM (NN, B, TN)    f32   recurrent spikes, one slot per N-half
    n = pl.program_id(0)
    nn = pl.num_programs(0)
    batch = xcol_ref.shape[0]
    cout = spk_ref.shape[1]
    num_layers = mbw_ref.shape[0]

    # -------- Prologue (first grid step only): SpikingConv2d + spike ---------
    # im2col matmul on the MXU, lane-dense (Cout, 784) per image; torch.heaviside
    # of (membrane - v_thresh) with values=0  ==  strict (v > thresh).
    @pl.when(n == 0)
    def _():
        for b in range(batch):
            z = jnp.dot(cw_ref[...], xcol_ref[b],
                        preferred_element_type=jnp.float32)       # (Cout, H*W)
            z = z + cb_ref[...]
            spk_ref[b] = (z > thresh).astype(spk_ref.dtype)

    # -------- Main: this N-half of the 12544 -> 256 spiking linear -----------
    # Flatten order of .view(B,-1) on NCHW is (c, h*w); we keep spikes as
    # (B, Cout, H*W) and contract per channel to avoid any in-kernel reshape.
    spk = spk_ref[...]                                            # ~50 KB bf16
    acc = jnp.zeros((batch, wih_ref.shape[-1]), jnp.float32)
    for c in range(cout):
        acc = acc + jnp.dot(spk[:, c, :], wih_ref[c],
                            preferred_element_type=jnp.float32)   # (B, TN)
    y = acc + rb_ref[...]
    h_ref[n] = (y > thresh).astype(h_ref.dtype)                   # recurrent spikes

    # -------- Epilogue (last grid step): Interface + Mamba + output ----------
    @pl.when(n == nn - 1)
    def _():
        hd = ifw_ref.shape[2]
        z = jnp.zeros((batch, hd), jnp.float32)
        for i in range(h_ref.shape[0]):                           # InterfaceLayer
            z = z + jnp.dot(h_ref[i], ifw_ref[i],
                            preferred_element_type=jnp.float32)
        z = z + ifb_ref[...]
        for l in range(num_layers):                               # Linear + SiLU
            z = jnp.dot(z, mbw_ref[l],
                        preferred_element_type=jnp.float32) + mbb_ref[l]
            z = z * jax.nn.sigmoid(z)
        out = jnp.dot(z, ow_ref[...],
                      preferred_element_type=jnp.float32) + ob_ref[...]
        o_ref[...] = (out > 0.0).astype(o_ref.dtype)              # heaviside(x)


# --------------------------------------------------------------------------
# Wrapper: im2col (tiny, wrapper-side layout plumbing) + single pallas_call
# --------------------------------------------------------------------------
def mamba_spike_forward(params, x):
    """x: (B, 1, 28, 28) NCHW float32  ->  output spikes (B, output_size)."""
    B, Cin, H, W = x.shape
    pad = (KH - 1) // 2
    x_pad = jnp.pad(x, ((0, 0), (0, 0), (pad, pad), (pad, pad)))
    # im2col ordered (ci, dy, dx) to match the OIHW weight flatten: (B, 9, 784)
    cols = [
        x_pad[:, ci, dy:dy + H, dx:dx + W].reshape(B, H * W)
        for ci in range(Cin) for dy in range(KH) for dx in range(KW)
    ]
    x_col = jnp.stack(cols, axis=1)

    w_ih = params["rec_w_ih"]                 # (NN, Cout, H*W, TN) bf16
    nn, cout, hw, tn = w_ih.shape
    hd = params["if_w"].shape[2]
    L = params["mb_w"].shape[0]
    nout = params["out_w"].shape[1]
    kkw = Cin * KH * KW

    kernel = functools.partial(_mamba_spike_kernel, thresh=V_THRESH)
    return pl.pallas_call(
        kernel,
        out_shape=jax.ShapeDtypeStruct((B, nout), jnp.float32),
        grid_spec=pltpu.PrefetchScalarGridSpec(
            num_scalar_prefetch=0,
            grid=(nn,),
            in_specs=[
                pl.BlockSpec((B, kkw, hw), lambda n: (0, 0, 0)),        # im2col
                pl.BlockSpec((cout, kkw), lambda n: (0, 0)),            # conv W
                pl.BlockSpec((cout, 1), lambda n: (0, 0)),              # conv b
                # one contiguous 3.2 MB weight slab per grid step (leading dim
                # squeezed away so the kernel sees (Cout, H*W, TN)):
                pl.BlockSpec((None, cout, hw, tn), lambda n: (n, 0, 0, 0)),
                pl.BlockSpec((1, tn), lambda n: (0, n)),                # rec bias
                pl.BlockSpec((nn, tn, hd), lambda n: (0, 0, 0)),        # if W
                pl.BlockSpec((1, hd), lambda n: (0, 0)),                # if b
                pl.BlockSpec((L, hd, hd), lambda n: (0, 0, 0)),         # mamba W
                pl.BlockSpec((L, 1, hd), lambda n: (0, 0, 0)),          # mamba b
                pl.BlockSpec((hd, nout), lambda n: (0, 0)),             # out W
                pl.BlockSpec((1, nout), lambda n: (0, 0)),              # out b
            ],
            out_specs=pl.BlockSpec((B, nout), lambda n: (0, 0)),
            scratch_shapes=[
                pltpu.VMEM((B, cout, hw), jnp.bfloat16),   # conv spikes (never hit HBM)
                pltpu.VMEM((nn, B, tn), jnp.float32),      # recurrent spikes per half
            ],
        ),
        # N-halves share the spike scratch + tail epilogue -> sequential axis.
        compiler_params=pltpu.CompilerParams(
            dimension_semantics=("arbitrary",)),
    )(x_col, params["conv_w2d"], params["conv_b2d"], w_ih, params["rec_bias"],
      params["if_w"], params["if_b"], params["mb_w"], params["mb_b"],
      params["out_w"], params["out_b"])


# --------------------------------------------------------------------------
# Parameter construction (deterministic, synthetic), stored kernel-ready.
# --------------------------------------------------------------------------
def init_params(key, hidden_size, output_size, num_layers):
    ks = jax.random.split(key, 12 + 2 * num_layers)
    hw = IMG * IMG

    conv_w = 0.1 * jax.random.normal(ks[0], (COUT, CIN, KH, KW), jnp.float32)
    conv_b = 0.1 * jax.random.normal(ks[1], (COUT,), jnp.float32)

    # SpikingRecurrent input weight, nominal (16*784, 256).  Stored bf16 (halves
    # the dominant HBM stream) and repacked to (NN, Cout, H*W, TN): one fully
    # contiguous slab per output half -> contiguous DMA per grid step.
    w_ih = 0.02 * jax.random.normal(ks[2], (COUT * hw, REC_N), jnp.float32)
    w_ih_r = jnp.moveaxis(w_ih.reshape(COUT, hw, NN, TN), 2, 0).astype(jnp.bfloat16)
    b_ih = 0.02 * jax.random.normal(ks[3], (REC_N,), jnp.float32)
    # W_hh multiplies the zero initial hidden state (single step, h0 = 0), so it
    # contributes nothing to the forward pass and is not allocated; b_hh still
    # enters the pre-activation.
    b_hh = 0.02 * jax.random.normal(ks[5], (REC_N,), jnp.float32)

    if_w = 0.1 * jax.random.normal(ks[6], (REC_N, hidden_size), jnp.float32)
    if_b = 0.1 * jax.random.normal(ks[7], (hidden_size,), jnp.float32)
    out_w = 0.1 * jax.random.normal(ks[8], (hidden_size, output_size), jnp.float32)
    out_b = 0.1 * jax.random.normal(ks[9], (output_size,), jnp.float32)

    mb_w = [0.1 * jax.random.normal(ks[10 + 2 * l], (hidden_size, hidden_size),
                                    jnp.float32) for l in range(num_layers)]
    mb_b = [0.1 * jax.random.normal(ks[11 + 2 * l], (hidden_size,),
                                    jnp.float32) for l in range(num_layers)]

    return {
        "conv_w2d": conv_w.reshape(COUT, CIN * KH * KW),
        "conv_b2d": conv_b.reshape(COUT, 1),
        "rec_w_ih": w_ih_r,                                   # (NN, 16, 784, 128) bf16
        "rec_bias": (b_ih + b_hh).reshape(1, REC_N),
        "if_w": if_w.reshape(NN, TN, hidden_size),            # split per N-half
        "if_b": if_b.reshape(1, hidden_size),
        "mb_w": jnp.stack(mb_w, axis=0),                      # (L, H, H)
        "mb_b": jnp.stack(mb_b, axis=0).reshape(num_layers, 1, hidden_size),
        "out_w": out_w,
        "out_b": out_b.reshape(1, output_size),
    }


if __name__ == "__main__":
    key = jax.random.PRNGKey(0)
    pkey, xkey = jax.random.split(key)

    params = init_params(pkey, HIDDEN_SIZE, OUTPUT_SIZE, NUM_LAYERS)

    # Spatial size is fixed to 28x28 by the module (16*28*28 recurrent input).
    x = jax.random.normal(xkey, (2, 1, IMG, IMG), jnp.float32)

    fwd = jax.jit(mamba_spike_forward)
    out = jax.block_until_ready(fwd(params, x))

    assert out.shape == (2, OUTPUT_SIZE), out.shape
    assert bool(jnp.all((out == 0.0) | (out == 1.0)))  # spike train is binary
    print("KERNEL_OK")
</pallas_src>

<mosaic_0001>
module attributes {stable_mosaic.version = 11 : i64} {
  func.func @_mamba_spike_kernel(%arg0: i32, %arg1: memref<2x9x784xf32, #tpu.memory_space<vmem>>, %arg2: memref<16x9xf32, #tpu.memory_space<vmem>>, %arg3: memref<16x1xf32, #tpu.memory_space<vmem>>, %arg4: memref<1x16x784x128xbf16, #tpu.memory_space<vmem>>, %arg5: memref<1x128xf32, #tpu.memory_space<vmem>>, %arg6: memref<2x128x32xf32, #tpu.memory_space<vmem>>, %arg7: memref<1x32xf32, #tpu.memory_space<vmem>>, %arg8: memref<1x32x32xf32, #tpu.memory_space<vmem>>, %arg9: memref<1x1x32xf32, #tpu.memory_space<vmem>>, %arg10: memref<32x10xf32, #tpu.memory_space<vmem>>, %arg11: memref<1x10xf32, #tpu.memory_space<vmem>>, %arg12: memref<2x10xf32, #tpu.memory_space<vmem>>, %arg13: memref<2x16x784xbf16, #tpu.memory_space<vmem>>, %arg14: memref<2x2x128xf32, #tpu.memory_space<vmem>>) attributes {dimension_semantics = [#tpu.dimension_semantics<arbitrary>], iteration_bounds = array<i64: 2>, scalar_prefetch = 0 : i64, scratch_operands = 2 : i64, tpu.core_type = #tpu.core_type<tc>, window_params = [{pipeline_mode = #tpu.pipeline_mode<synchronous>, transform_indices = @transform_0, window_bounds = array<i64: 2, 9, 784>}, {pipeline_mode = #tpu.pipeline_mode<synchronous>, transform_indices = @transform_1, window_bounds = array<i64: 16, 9>}, {pipeline_mode = #tpu.pipeline_mode<synchronous>, transform_indices = @transform_2, window_bounds = array<i64: 16, 1>}, {transform_indices = @transform_3, window_bounds = array<i64: 1, 16, 784, 128>}, {transform_indices = @transform_4, window_bounds = array<i64: 1, 128>}, {pipeline_mode = #tpu.pipeline_mode<synchronous>, transform_indices = @transform_5, window_bounds = array<i64: 2, 128, 32>}, {pipeline_mode = #tpu.pipeline_mode<synchronous>, transform_indices = @transform_6, window_bounds = array<i64: 1, 32>}, {pipeline_mode = #tpu.pipeline_mode<synchronous>, transform_indices = @transform_7, window_bounds = array<i64: 1, 32, 32>}, {pipeline_mode = #tpu.pipeline_mode<synchronous>, transform_indices = @transform_8, window_bounds = array<i64: 1, 1, 32>}, {pipeline_mode = #tpu.pipeline_mode<synchronous>, transform_indices = @transform_9, window_bounds = array<i64: 32, 10>}, {pipeline_mode = #tpu.pipeline_mode<synchronous>, transform_indices = @transform_10, window_bounds = array<i64: 1, 10>}, {pipeline_mode = #tpu.pipeline_mode<synchronous>, transform_indices = @transform_11, window_bounds = array<i64: 2, 10>}]} {
    %c0_i32 = arith.constant 0 : i32
    %0 = arith.cmpi eq, %arg0, %c0_i32 : i32
    %1 = arith.extui %0 : i1 to i32
    %c0_i32_0 = arith.constant 0 : i32
    %2 = arith.cmpi ne, %1, %c0_i32_0 : i32
    scf.if %2 {
      %c0_74 = arith.constant 0 : index
      %c0_75 = arith.constant 0 : index
      %115 = vector.load %arg2[%c0_74, %c0_75] : memref<16x9xf32, #tpu.memory_space<vmem>>, vector<16x9xf32>
      %c0_76 = arith.constant 0 : index
      %c0_77 = arith.constant 0 : index
      %c0_78 = arith.constant 0 : index
      %116 = vector.load %arg1[%c0_76, %c0_77, %c0_78] : memref<2x9x784xf32, #tpu.memory_space<vmem>>, vector<1x9x784xf32>
      %117 = vector.shape_cast %116 : vector<1x9x784xf32> to vector<9x784xf32>
      %cst_79 = arith.constant dense<0.000000e+00> : vector<16x784xf32>
      %118 = tpu.matmul %115, %117, %cst_79 {dimension_numbers = #tpu.dot_dimension_numbers<[1], [0], [0], [1], [0, 0, 1, 1], [], []>} : vector<16x9xf32>, vector<9x784xf32>, vector<16x784xf32> -> vector<16x784xf32>
      %c0_80 = arith.constant 0 : index
      %c0_81 = arith.constant 0 : index
      %119 = vector.load %arg3[%c0_80, %c0_81] : memref<16x1xf32, #tpu.memory_space<vmem>>, vector<16x1xf32>
      %120 = vector.broadcast %119 : vector<16x1xf32> to vector<16x784xf32>
      %121 = arith.addf %118, %120 : vector<16x784xf32>
      %cst_82 = arith.constant 1.000000e+00 : f32
      %122 = vector.broadcast %cst_82 : f32 to vector<16x784xf32>
      %123 = arith.cmpf ogt, %121, %122 : vector<16x784xf32>
      %124 = arith.extui %123 : vector<16x784xi1> to vector<16x784xi32>
      %125 = arith.sitofp %124 : vector<16x784xi32> to vector<16x784xf32>
      %126 = arith.truncf %125 : vector<16x784xf32> to vector<16x784xbf16>
      %c0_83 = arith.constant 0 : index
      %c0_84 = arith.constant 0 : index
      %c0_85 = arith.constant 0 : index
      %127 = vector.load %arg13[%c0_83, %c0_84, %c0_85] : memref<2x16x784xbf16, #tpu.memory_space<vmem>>, vector<1x16x784xbf16>
      %128 = vector.shape_cast %127 : vector<1x16x784xbf16> to vector<16x784xbf16>
      %129 = vector.shape_cast %126 : vector<16x784xbf16> to vector<1x16x784xbf16>
      tpu.vector_store %arg13[%c0_83, %c0_84, %c0_85], %129 {strides = array<i32>} : memref<2x16x784xbf16, #tpu.memory_space<vmem>>, vector<1x16x784xbf16>,
      %c0_86 = arith.constant 0 : index
      %c0_87 = arith.constant 0 : index
      %130 = vector.load %arg2[%c0_86, %c0_87] : memref<16x9xf32, #tpu.memory_space<vmem>>, vector<16x9xf32>
      %c1_88 = arith.constant 1 : index
      %c0_89 = arith.constant 0 : index
      %c0_90 = arith.constant 0 : index
      %131 = vector.load %arg1[%c1_88, %c0_89, %c0_90] : memref<2x9x784xf32, #tpu.memory_space<vmem>>, vector<1x9x784xf32>
      %132 = vector.shape_cast %131 : vector<1x9x784xf32> to vector<9x784xf32>
      %cst_91 = arith.constant dense<0.000000e+00> : vector<16x784xf32>
      %133 = tpu.matmul %130, %132, %cst_91 {dimension_numbers = #tpu.dot_dimension_numbers<[1], [0], [0], [1], [0, 0, 1, 1], [], []>} : vector<16x9xf32>, vector<9x784xf32>, vector<16x784xf32> -> vector<16x784xf32>
      %c0_92 = arith.constant 0 : index
      %c0_93 = arith.constant 0 : index
      %134 = vector.load %arg3[%c0_92, %c0_93] : memref<16x1xf32, #tpu.memory_space<vmem>>, vector<16x1xf32>
      %135 = vector.broadcast %134 : vector<16x1xf32> to vector<16x784xf32>
      %136 = arith.addf %133, %135 : vector<16x784xf32>
      %cst_94 = arith.constant 1.000000e+00 : f32
      %137 = vector.broadcast %cst_94 : f32 to vector<16x784xf32>
      %138 = arith.cmpf ogt, %136, %137 : vector<16x784xf32>
      %139 = arith.extui %138 : vector<16x784xi1> to vector<16x784xi32>
      %140 = arith.sitofp %139 : vector<16x784xi32> to vector<16x784xf32>
      %141 = arith.truncf %140 : vector<16x784xf32> to vector<16x784xbf16>
      %c1_95 = arith.constant 1 : index
      %c0_96 = arith.constant 0 : index
      %c0_97 = arith.constant 0 : index
      %142 = vector.load %arg13[%c1_95, %c0_96, %c0_97] : memref<2x16x784xbf16, #tpu.memory_space<vmem>>, vector<1x16x784xbf16>
      %143 = vector.shape_cast %142 : vector<1x16x784xbf16> to vector<16x784xbf16>
      %144 = vector.shape_cast %141 : vector<16x784xbf16> to vector<1x16x784xbf16>
      tpu.vector_store %arg13[%c1_95, %c0_96, %c0_97], %144 {strides = array<i32>} : memref<2x16x784xbf16, #tpu.memory_space<vmem>>, vector<1x16x784xbf16>,
    } else {
    }
    %c0 = arith.constant 0 : index
    %c0_1 = arith.constant 0 : index
    %c0_2 = arith.constant 0 : index
    %3 = vector.load %arg13[%c0, %c0_1, %c0_2] : memref<2x16x784xbf16, #tpu.memory_space<vmem>>, vector<2x16x784xbf16>
    %cst = arith.constant 0.000000e+00 : f32
    %4 = vector.broadcast %cst : f32 to vector<2x128xf32>
    %5 = vector.extract_strided_slice %3 {offsets = [0, 0, 0], sizes = [2, 1, 784], strides = [1, 1, 1]} : vector<2x16x784xbf16> to vector<2x1x784xbf16>
    %6 = vector.shape_cast %5 : vector<2x1x784xbf16> to vector<2x784xbf16>
    %c0_3 = arith.constant 0 : index
    %c0_4 = arith.constant 0 : index
    %c0_5 = arith.constant 0 : index
    %c0_6 = arith.constant 0 : index
    %7 = vector.load %arg4[%c0_3, %c0_4, %c0_5, %c0_6] : memref<1x16x784x128xbf16, #tpu.memory_space<vmem>>, vector<1x1x784x128xbf16>
    %8 = vector.shape_cast %7 : vector<1x1x784x128xbf16> to vector<784x128xbf16>
    %cst_7 = arith.constant dense<0.000000e+00> : vector<2x128xf32>
    %9 = tpu.matmul %6, %8, %cst_7 {dimension_numbers = #tpu.dot_dimension_numbers<[1], [0], [0], [1], [0, 0, 1, 1], [], []>} : vector<2x784xbf16>, vector<784x128xbf16>, vector<2x128xf32> -> vector<2x128xf32>
    %10 = arith.addf %4, %9 : vector<2x128xf32>
    %11 = vector.extract_strided_slice %3 {offsets = [0, 1, 0], sizes = [2, 1, 784], strides = [1, 1, 1]} : vector<2x16x784xbf16> to vector<2x1x784xbf16>
    %12 = vector.shape_cast %11 : vector<2x1x784xbf16> to vector<2x784xbf16>
    %c0_8 = arith.constant 0 : index
    %c1 = arith.constant 1 : index
    %c0_9 = arith.constant 0 : index
    %c0_10 = arith.constant 0 : index
    %13 = vector.load %arg4[%c0_8, %c1, %c0_9, %c0_10] : memref<1x16x784x128xbf16, #tpu.memory_space<vmem>>, vector<1x1x784x128xbf16>
    %14 = vector.shape_cast %13 : vector<1x1x784x128xbf16> to vector<784x128xbf16>
    %cst_11 = arith.constant dense<0.000000e+00> : vector<2x128xf32>
    %15 = tpu.matmul %12, %14, %cst_11 {dimension_numbers = #tpu.dot_dimension_numbers<[1], [0], [0], [1], [0, 0, 1, 1], [], []>} : vector<2x784xbf16>, vector<784x128xbf16>, vector<2x128xf32> -> vector<2x128xf32>
    %16 = arith.addf %10, %15 : vector<2x128xf32>
    %17 = vector.extract_strided_slice %3 {offsets = [0, 2, 0], sizes = [2, 1, 784], strides = [1, 1, 1]} : vector<2x16x784xbf16> to vector<2x1x784xbf16>
    %18 = vector.shape_cast %17 : vector<2x1x784xbf16> to vector<2x784xbf16>
    %c0_12 = arith.constant 0 : index
    %c2 = arith.constant 2 : index
    %c0_13 = arith.constant 0 : index
    %c0_14 = arith.constant 0 : index
    %19 = vector.load %arg4[%c0_12, %c2, %c0_13, %c0_14] : memref<1x16x784x128xbf16, #tpu.memory_space<vmem>>, vector<1x1x784x128xbf16>
    %20 = vector.shape_cast %19 : vector<1x1x784x128xbf16> to vector<784x128xbf16>
    %cst_15 = arith.constant dense<0.000000e+00> : vector<2x128xf32>
    %21 = tpu.matmul %18, %20, %cst_15 {dimension_numbers = #tpu.dot_dimension_numbers<[1], [0], [0], [1], [0, 0, 1, 1], [], []>} : vector<2x784xbf16>, vector<784x128xbf16>, vector<2x128xf32> -> vector<2x128xf32>
    %22 = arith.addf %16, %21 : vector<2x128xf32>
    %23 = vector.extract_strided_slice %3 {offsets = [0, 3, 0], sizes = [2, 1, 784], strides = [1, 1, 1]} : vector<2x16x784xbf16> to vector<2x1x784xbf16>
    %24 = vector.shape_cast %23 : vector<2x1x784xbf16> to vector<2x784xbf16>
    %c0_16 = arith.constant 0 : index
    %c3 = arith.constant 3 : index
    %c0_17 = arith.constant 0 : index
    %c0_18 = arith.constant 0 : index
    %25 = vector.load %arg4[%c0_16, %c3, %c0_17, %c0_18] : memref<1x16x784x128xbf16, #tpu.memory_space<vmem>>, vector<1x1x784x128xbf16>
    %26 = vector.shape_cast %25 : vector<1x1x784x128xbf16> to vector<784x128xbf16>
    %cst_19 = arith.constant dense<0.000000e+00> : vector<2x128xf32>
    %27 = tpu.matmul %24, %26, %cst_19 {dimension_numbers = #tpu.dot_dimension_numbers<[1], [0], [0], [1], [0, 0, 1, 1], [], []>} : vector<2x784xbf16>, vector<784x128xbf16>, vector<2x128xf32> -> vector<2x128xf32>
    %28 = arith.addf %22, %27 : vector<2x128xf32>
    %29 = vector.extract_strided_slice %3 {offsets = [0, 4, 0], sizes = [2, 1, 784], strides = [1, 1, 1]} : vector<2x16x784xbf16> to vector<2x1x784xbf16>
    %30 = vector.shape_cast %29 : vector<2x1x784xbf16> to vector<2x784xbf16>
    %c0_20 = arith.constant 0 : index
    %c4 = arith.constant 4 : index
    %c0_21 = arith.constant 0 : index
    %c0_22 = arith.constant 0 : index
    %31 = vector.load %arg4[%c0_20, %c4, %c0_21, %c0_22] : memref<1x16x784x128xbf16, #tpu.memory_space<vmem>>, vector<1x1x784x128xbf16>
    %32 = vector.shape_cast %31 : vector<1x1x784x128xbf16> to vector<784x128xbf16>
    %cst_23 = arith.constant dense<0.000000e+00> : vector<2x128xf32>
    %33 = tpu.matmul %30, %32, %cst_23 {dimension_numbers = #tpu.dot_dimension_numbers<[1], [0], [0], [1], [0, 0, 1, 1], [], []>} : vector<2x784xbf16>, vector<784x128xbf16>, vector<2x128xf32> -> vector<2x128xf32>
    %34 = arith.addf %28, %33 : vector<2x128xf32>
    %35 = vector.extract_strided_slice %3 {offsets = [0, 5, 0], sizes = [2, 1, 784], strides = [1, 1, 1]} : vector<2x16x784xbf16> to vector<2x1x784xbf16>
    %36 = vector.shape_cast %35 : vector<2x1x784xbf16> to vector<2x784xbf16>
    %c0_24 = arith.constant 0 : index
    %c5 = arith.constant 5 : index
    %c0_25 = arith.constant 0 : index
    %c0_26 = arith.constant 0 : index
    %37 = vector.load %arg4[%c0_24, %c5, %c0_25, %c0_26] : memref<1x16x784x128xbf16, #tpu.memory_space<vmem>>, vector<1x1x784x128xbf16>
    %38 = vector.shape_cast %37 : vector<1x1x784x128xbf16> to vector<784x128xbf16>
    %cst_27 = arith.constant dense<0.000000e+00> : vector<2x128xf32>
    %39 = tpu.matmul %36, %38, %cst_27 {dimension_numbers = #tpu.dot_dimension_numbers<[1], [0], [0], [1], [0, 0, 1, 1], [], []>} : vector<2x784xbf16>, vector<784x128xbf16>, vector<2x128xf32> -> vector<2x128xf32>
    %40 = arith.addf %34, %39 : vector<2x128xf32>
    %41 = vector.extract_strided_slice %3 {offsets = [0, 6, 0], sizes = [2, 1, 784], strides = [1, 1, 1]} : vector<2x16x784xbf16> to vector<2x1x784xbf16>
    %42 = vector.shape_cast %41 : vector<2x1x784xbf16> to vector<2x784xbf16>
    %c0_28 = arith.constant 0 : index
    %c6 = arith.constant 6 : index
    %c0_29 = arith.constant 0 : index
    %c0_30 = arith.constant 0 : index
    %43 = vector.load %arg4[%c0_28, %c6, %c0_29, %c0_30] : memref<1x16x784x128xbf16, #tpu.memory_space<vmem>>, vector<1x1x784x128xbf16>
    %44 = vector.shape_cast %43 : vector<1x1x784x128xbf16> to vector<784x128xbf16>
    %cst_31 = arith.constant dense<0.000000e+00> : vector<2x128xf32>
    %45 = tpu.matmul %42, %44, %cst_31 {dimension_numbers = #tpu.dot_dimension_numbers<[1], [0], [0], [1], [0, 0, 1, 1], [], []>} : vector<2x784xbf16>, vector<784x128xbf16>, vector<2x128xf32> -> vector<2x128xf32>
    %46 = arith.addf %40, %45 : vector<2x128xf32>
    %47 = vector.extract_strided_slice %3 {offsets = [0, 7, 0], sizes = [2, 1, 784], strides = [1, 1, 1]} : vector<2x16x784xbf16> to vector<2x1x784xbf16>
    %48 = vector.shape_cast %47 : vector<2x1x784xbf16> to vector<2x784xbf16>
    %c0_32 = arith.constant 0 : index
    %c7 = arith.constant 7 : index
    %c0_33 = arith.constant 0 : index
    %c0_34 = arith.constant 0 : index
    %49 = vector.load %arg4[%c0_32, %c7, %c0_33, %c0_34] : memref<1x16x784x128xbf16, #tpu.memory_space<vmem>>, vector<1x1x784x128xbf16>
    %50 = vector.shape_cast %49 : vector<1x1x784x128xbf16> to vector<784x128xbf16>
    %cst_35 = arith.constant dense<0.000000e+00> : vector<2x128xf32>
    %51 = tpu.matmul %48, %50, %cst_35 {dimension_numbers = #tpu.dot_dimension_numbers<[1], [0], [0], [1], [0, 0, 1, 1], [], []>} : vector<2x784xbf16>, vector<784x128xbf16>, vector<2x128xf32> -> vector<2x128xf32>
    %52 = arith.addf %46, %51 : vector<2x128xf32>
    %53 = vector.extract_strided_slice %3 {offsets = [0, 8, 0], sizes = [2, 1, 784], strides = [1, 1, 1]} : vector<2x16x784xbf16> to vector<2x1x784xbf16>
    %54 = vector.shape_cast %53 : vector<2x1x784xbf16> to vector<2x784xbf16>
    %c0_36 = arith.constant 0 : index
    %c8 = arith.constant 8 : index
    %c0_37 = arith.constant 0 : index
    %c0_38 = arith.constant 0 : index
    %55 = vector.load %arg4[%c0_36, %c8, %c0_37, %c0_38] : memref<1x16x784x128xbf16, #tpu.memory_space<vmem>>, vector<1x1x784x128xbf16>
    %56 = vector.shape_cast %55 : vector<1x1x784x128xbf16> to vector<784x128xbf16>
    %cst_39 = arith.constant dense<0.000000e+00> : vector<2x128xf32>
    %57 = tpu.matmul %54, %56, %cst_39 {dimension_numbers = #tpu.dot_dimension_numbers<[1], [0], [0], [1], [0, 0, 1, 1], [], []>} : vector<2x784xbf16>, vector<784x128xbf16>, vector<2x128xf32> -> vector<2x128xf32>
    %58 = arith.addf %52, %57 : vector<2x128xf32>
    %59 = vector.extract_strided_slice %3 {offsets = [0, 9, 0], sizes = [2, 1, 784], strides = [1, 1, 1]} : vector<2x16x784xbf16> to vector<2x1x784xbf16>
    %60 = vector.shape_cast %59 : vector<2x1x784xbf16> to vector<2x784xbf16>
    %c0_40 = arith.constant 0 : index
    %c9 = arith.constant 9 : index
    %c0_41 = arith.constant 0 : index
    %c0_42 = arith.constant 0 : index
    %61 = vector.load %arg4[%c0_40, %c9, %c0_41, %c0_42] : memref<1x16x784x128xbf16, #tpu.memory_space<vmem>>, vector<1x1x784x128xbf16>
    %62 = vector.shape_cast %61 : vector<1x1x784x128xbf16> to vector<784x128xbf16>
    %cst_43 = arith.constant dense<0.000000e+00> : vector<2x128xf32>
    %63 = tpu.matmul %60, %62, %cst_43 {dimension_numbers = #tpu.dot_dimension_numbers<[1], [0], [0], [1], [0, 0, 1, 1], [], []>} : vector<2x784xbf16>, vector<784x128xbf16>, vector<2x128xf32> -> vector<2x128xf32>
    %64 = arith.addf %58, %63 : vector<2x128xf32>
    %65 = vector.extract_strided_slice %3 {offsets = [0, 10, 0], sizes = [2, 1, 784], strides = [1, 1, 1]} : vector<2x16x784xbf16> to vector<2x1x784xbf16>
    %66 = vector.shape_cast %65 : vector<2x1x784xbf16> to vector<2x784xbf16>
    %c0_44 = arith.constant 0 : index
    %c10 = arith.constant 10 : index
    %c0_45 = arith.constant 0 : index
    %c0_46 = arith.constant 0 : index
    %67 = vector.load %arg4[%c0_44, %c10, %c0_45, %c0_46] : memref<1x16x784x128xbf16, #tpu.memory_space<vmem>>, vector<1x1x784x128xbf16>
    %68 = vector.shape_cast %67 : vector<1x1x784x128xbf16> to vector<784x128xbf16>
    %cst_47 = arith.constant dense<0.000000e+00> : vector<2x128xf32>
    %69 = tpu.matmul %66, %68, %cst_47 {dimension_numbers = #tpu.dot_dimension_numbers<[1], [0], [0], [1], [0, 0, 1, 1], [], []>} : vector<2x784xbf16>, vector<784x128xbf16>, vector<2x128xf32> -> vector<2x128xf32>
    %70 = arith.addf %64, %69 : vector<2x128xf32>
    %71 = vector.extract_strided_slice %3 {offsets = [0, 11, 0], sizes = [2, 1, 784], strides = [1, 1, 1]} : vector<2x16x784xbf16> to vector<2x1x784xbf16>
    %72 = vector.shape_cast %71 : vector<2x1x784xbf16> to vector<2x784xbf16>
    %c0_48 = arith.constant 0 : index
    %c11 = arith.constant 11 : index
    %c0_49 = arith.constant 0 : index
    %c0_50 = arith.constant 0 : index
    %73 = vector.load %arg4[%c0_48, %c11, %c0_49, %c0_50] : memref<1x16x784x128xbf16, #tpu.memory_space<vmem>>, vector<1x1x784x128xbf16>
    %74 = vector.shape_cast %73 : vector<1x1x784x128xbf16> to vector<784x128xbf16>
    %cst_51 = arith.constant dense<0.000000e+00> : vector<2x128xf32>
    %75 = tpu.matmul %72, %74, %cst_51 {dimension_numbers = #tpu.dot_dimension_numbers<[1], [0], [0], [1], [0, 0, 1, 1], [], []>} : vector<2x784xbf16>, vector<784x128xbf16>, vector<2x128xf32> -> vector<2x128xf32>
    %76 = arith.addf %70, %75 : vector<2x128xf32>
    %77 = vector.extract_strided_slice %3 {offsets = [0, 12, 0], sizes = [2, 1, 784], strides = [1, 1, 1]} : vector<2x16x784xbf16> to vector<2x1x784xbf16>
    %78 = vector.shape_cast %77 : vector<2x1x784xbf16> to vector<2x784xbf16>
    %c0_52 = arith.constant 0 : index
    %c12 = arith.constant 12 : index
    %c0_53 = arith.constant 0 : index
    %c0_54 = arith.constant 0 : index
    %79 = vector.load %arg4[%c0_52, %c12, %c0_53, %c0_54] : memref<1x16x784x128xbf16, #tpu.memory_space<vmem>>, vector<1x1x784x128xbf16>
    %80 = vector.shape_cast %79 : vector<1x1x784x128xbf16> to vector<784x128xbf16>
    %cst_55 = arith.constant dense<0.000000e+00> : vector<2x128xf32>
    %81 = tpu.matmul %78, %80, %cst_55 {dimension_numbers = #tpu.dot_dimension_numbers<[1], [0], [0], [1], [0, 0, 1, 1], [], []>} : vector<2x784xbf16>, vector<784x128xbf16>, vector<2x128xf32> -> vector<2x128xf32>
    %82 = arith.addf %76, %81 : vector<2x128xf32>
    %83 = vector.extract_strided_slice %3 {offsets = [0, 13, 0], sizes = [2, 1, 784], strides = [1, 1, 1]} : vector<2x16x784xbf16> to vector<2x1x784xbf16>
    %84 = vector.shape_cast %83 : vector<2x1x784xbf16> to vector<2x784xbf16>
    %c0_56 = arith.constant 0 : index
    %c13 = arith.constant 13 : index
    %c0_57 = arith.constant 0 : index
    %c0_58 = arith.constant 0 : index
    %85 = vector.load %arg4[%c0_56, %c13, %c0_57, %c0_58] : memref<1x16x784x128xbf16, #tpu.memory_space<vmem>>, vector<1x1x784x128xbf16>
    %86 = vector.shape_cast %85 : vector<1x1x784x128xbf16> to vector<784x128xbf16>
    %cst_59 = arith.constant dense<0.000000e+00> : vector<2x128xf32>
    %87 = tpu.matmul %84, %86, %cst_59 {dimension_numbers = #tpu.dot_dimension_numbers<[1], [0], [0], [1], [0, 0, 1, 1], [], []>} : vector<2x784xbf16>, vector<784x128xbf16>, vector<2x128xf32> -> vector<2x128xf32>
    %88 = arith.addf %82, %87 : vector<2x128xf32>
    %89 = vector.extract_strided_slice %3 {offsets = [0, 14, 0], sizes = [2, 1, 784], strides = [1, 1, 1]} : vector<2x16x784xbf16> to vector<2x1x784xbf16>
    %90 = vector.shape_cast %89 : vector<2x1x784xbf16> to vector<2x784xbf16>
    %c0_60 = arith.constant 0 : index
    %c14 = arith.constant 14 : index
    %c0_61 = arith.constant 0 : index
    %c0_62 = arith.constant 0 : index
    %91 = vector.load %arg4[%c0_60, %c14, %c0_61, %c0_62] : memref<1x16x784x128xbf16, #tpu.memory_space<vmem>>, vector<1x1x784x128xbf16>
    %92 = vector.shape_cast %91 : vector<1x1x784x128xbf16> to vector<784x128xbf16>
    %cst_63 = arith.constant dense<0.000000e+00> : vector<2x128xf32>
    %93 = tpu.matmul %90, %92, %cst_63 {dimension_numbers = #tpu.dot_dimension_numbers<[1], [0], [0], [1], [0, 0, 1, 1], [], []>} : vector<2x784xbf16>, vector<784x128xbf16>, vector<2x128xf32> -> vector<2x128xf32>
    %94 = arith.addf %88, %93 : vector<2x128xf32>
    %95 = vector.extract_strided_slice %3 {offsets = [0, 15, 0], sizes = [2, 1, 784], strides = [1, 1, 1]} : vector<2x16x784xbf16> to vector<2x1x784xbf16>
    %96 = vector.shape_cast %95 : vector<2x1x784xbf16> to vector<2x784xbf16>
    %c0_64 = arith.constant 0 : index
    %c15 = arith.constant 15 : index
    %c0_65 = arith.constant 0 : index
    %c0_66 = arith.constant 0 : index
    %97 = vector.load %arg4[%c0_64, %c15, %c0_65, %c0_66] : memref<1x16x784x128xbf16, #tpu.memory_space<vmem>>, vector<1x1x784x128xbf16>
    %98 = vector.shape_cast %97 : vector<1x1x784x128xbf16> to vector<784x128xbf16>
    %cst_67 = arith.constant dense<0.000000e+00> : vector<2x128xf32>
    %99 = tpu.matmul %96, %98, %cst_67 {dimension_numbers = #tpu.dot_dimension_numbers<[1], [0], [0], [1], [0, 0, 1, 1], [], []>} : vector<2x784xbf16>, vector<784x128xbf16>, vector<2x128xf32> -> vector<2x128xf32>
    %100 = arith.addf %94, %99 : vector<2x128xf32>
    %c0_68 = arith.constant 0 : index
    %c0_69 = arith.constant 0 : index
    %101 = vector.load %arg5[%c0_68, %c0_69] : memref<1x128xf32, #tpu.memory_space<vmem>>, vector<1x128xf32>
    %102 = vector.broadcast %101 : vector<1x128xf32> to vector<2x128xf32>
    %103 = arith.addf %100, %102 : vector<2x128xf32>
    %cst_70 = arith.constant 1.000000e+00 : f32
    %104 = vector.broadcast %cst_70 : f32 to vector<2x128xf32>
    %105 = arith.cmpf ogt, %103, %104 : vector<2x128xf32>
    %106 = arith.extui %105 : vector<2x128xi1> to vector<2x128xi32>
    %107 = arith.sitofp %106 : vector<2x128xi32> to vector<2x128xf32>
    %108 = arith.index_cast %arg0 : i32 to index
    %c0_71 = arith.constant 0 : index
    %c0_72 = arith.constant 0 : index
    %109 = vector.load %arg14[%108, %c0_71, %c0_72] : memref<2x2x128xf32, #tpu.memory_space<vmem>>, vector<1x2x128xf32>
    %110 = vector.shape_cast %109 : vector<1x2x128xf32> to vector<2x128xf32>
    %111 = vector.shape_cast %107 : vector<2x128xf32> to vector<1x2x128xf32>
    tpu.vector_store %arg14[%108, %c0_71, %c0_72], %111 {strides = array<i32>} : memref<2x2x128xf32, #tpu.memory_space<vmem>>, vector<1x2x128xf32>,
    %c1_i32 = arith.constant 1 : i32
    %112 = arith.cmpi eq, %arg0, %c1_i32 : i32
    %113 = arith.extui %112 : i1 to i32
    %c0_i32_73 = arith.constant 0 : i32
    %114 = arith.cmpi ne, %113, %c0_i32_73 : i32
    scf.if %114 {
      %cst_74 = arith.constant 0.000000e+00 : f32
      %115 = vector.broadcast %cst_74 : f32 to vector<2x32xf32>
      %c0_75 = arith.constant 0 : index
      %c0_76 = arith.constant 0 : index
      %c0_77 = arith.constant 0 : index
      %116 = vector.load %arg14[%c0_75, %c0_76, %c0_77] : memref<2x2x128xf32, #tpu.memory_space<vmem>>, vector<1x2x128xf32>
      %117 = vector.shape_cast %116 : vector<1x2x128xf32> to vector<2x128xf32>
      %c0_78 = arith.constant 0 : index
      %c0_79 = arith.constant 0 : index
      %c0_80 = arith.constant 0 : index
      %118 = vector.load %arg6[%c0_78, %c0_79, %c0_80] : memref<2x128x32xf32, #tpu.memory_space<vmem>>, vector<1x128x32xf32>
      %119 = vector.shape_cast %118 : vector<1x128x32xf32> to vector<128x32xf32>
      %cst_81 = arith.constant dense<0.000000e+00> : vector<2x32xf32>
      %120 = tpu.matmul %117, %119, %cst_81 {dimension_numbers = #tpu.dot_dimension_numbers<[1], [0], [0], [1], [0, 0, 1, 1], [], []>} : vector<2x128xf32>, vector<128x32xf32>, vector<2x32xf32> -> vector<2x32xf32>
      %121 = arith.addf %115, %120 : vector<2x32xf32>
      %c1_82 = arith.constant 1 : index
      %c0_83 = arith.constant 0 : index
      %c0_84 = arith.constant 0 : index
      %122 = vector.load %arg14[%c1_82, %c0_83, %c0_84] : memref<2x2x128xf32, #tpu.memory_space<vmem>>, vector<1x2x128xf32>
      %123 = vector.shape_cast %122 : vector<1x2x128xf32> to vector<2x128xf32>
      %c1_85 = arith.constant 1 : index
      %c0_86 = arith.constant 0 : index
      %c0_87 = arith.constant 0 : index
      %124 = vector.load %arg6[%c1_85, %c0_86, %c0_87] : memref<2x128x32xf32, #tpu.memory_space<vmem>>, vector<1x128x32xf32>
      %125 = vector.shape_cast %124 : vector<1x128x32xf32> to vector<128x32xf32>
      %cst_88 = arith.constant dense<0.000000e+00> : vector<2x32xf32>
      %126 = tpu.matmul %123, %125, %cst_88 {dimension_numbers = #tpu.dot_dimension_numbers<[1], [0], [0], [1], [0, 0, 1, 1], [], []>} : vector<2x128xf32>, vector<128x32xf32>, vector<2x32xf32> -> vector<2x32xf32>
      %127 = arith.addf %121, %126 : vector<2x32xf32>
      %c0_89 = arith.constant 0 : index
      %c0_90 = arith.constant 0 : index
      %128 = vector.load %arg7[%c0_89, %c0_90] : memref<1x32xf32, #tpu.memory_space<vmem>>, vector<1x32xf32>
      %129 = vector.broadcast %128 : vector<1x32xf32> to vector<2x32xf32>
      %130 = arith.addf %127, %129 : vector<2x32xf32>
      %c0_91 = arith.constant 0 : index
      %c0_92 = arith.constant 0 : index
      %c0_93 = arith.constant 0 : index
      %131 = vector.load %arg8[%c0_91, %c0_92, %c0_93] : memref<1x32x32xf32, #tpu.memory_space<vmem>>, vector<1x32x32xf32>
      %132 = vector.shape_cast %131 : vector<1x32x32xf32> to vector<32x32xf32>
      %cst_94 = arith.constant dense<0.000000e+00> : vector<2x32xf32>
      %133 = tpu.matmul %130, %132, %cst_94 {dimension_numbers = #tpu.dot_dimension_numbers<[1], [0], [0], [1], [0, 0, 1, 1], [], []>} : vector<2x32xf32>, vector<32x32xf32>, vector<2x32xf32> -> vector<2x32xf32>
      %c0_95 = arith.constant 0 : index
      %c0_96 = arith.constant 0 : index
      %c0_97 = arith.constant 0 : index
      %134 = vector.load %arg9[%c0_95, %c0_96, %c0_97] : memref<1x1x32xf32, #tpu.memory_space<vmem>>, vector<1x1x32xf32>
      %135 = vector.shape_cast %134 : vector<1x1x32xf32> to vector<1x32xf32>
      %136 = vector.broadcast %135 : vector<1x32xf32> to vector<2x32xf32>
      %137 = arith.addf %133, %136 : vector<2x32xf32>
      %138 = arith.negf %137 : vector<2x32xf32>
      %139 = math.exp %138 : vector<2x32xf32>
      %cst_98 = arith.constant 1.000000e+00 : f32
      %140 = vector.broadcast %cst_98 : f32 to vector<2x32xf32>
      %141 = arith.addf %140, %139 : vector<2x32xf32>
      %142 = arith.divf %140, %141 : vector<2x32xf32>
      %143 = arith.mulf %137, %142 : vector<2x32xf32>
      %c0_99 = arith.constant 0 : index
      %c0_100 = arith.constant 0 : index
      %144 = vector.load %arg10[%c0_99, %c0_100] : memref<32x10xf32, #tpu.memory_space<vmem>>, vector<32x10xf32>
      %cst_101 = arith.constant dense<0.000000e+00> : vector<2x10xf32>
      %145 = tpu.matmul %143, %144, %cst_101 {dimension_numbers = #tpu.dot_dimension_numbers<[1], [0], [0], [1], [0, 0, 1, 1], [], []>} : vector<2x32xf32>, vector<32x10xf32>, vector<2x10xf32> -> vector<2x10xf32>
      %c0_102 = arith.constant 0 : index
      %c0_103 = arith.constant 0 : index
      %146 = vector.load %arg11[%c0_102, %c0_103] : memref<1x10xf32, #tpu.memory_space<vmem>>, vector<1x10xf32>
      %147 = vector.broadcast %146 : vector<1x10xf32> to vector<2x10xf32>
      %148 = arith.addf %145, %147 : vector<2x10xf32>
      %cst_104 = arith.constant 0.000000e+00 : f32
      %149 = vector.broadcast %cst_104 : f32 to vector<2x10xf32>
      %150 = arith.cmpf ogt, %148, %149 : vector<2x10xf32>
      %151 = arith.extui %150 : vector<2x10xi1> to vector<2x10xi32>
      %152 = arith.sitofp %151 : vector<2x10xi32> to vector<2x10xf32>
      %c0_105 = arith.constant 0 : index
      %c0_106 = arith.constant 0 : index
      %153 = vector.load %arg12[%c0_105, %c0_106] : memref<2x10xf32, #tpu.memory_space<vmem>>, vector<2x10xf32>
      tpu.vector_store %arg12[%c0_105, %c0_106], %152 {strides = array<i32>} : memref<2x10xf32, #tpu.memory_space<vmem>>, vector<2x10xf32>,
    } else {
    }
    return
  }
  func.func @transform_0(%arg0: i32) -> (i32, i32, i32) {
    %c0_i32 = arith.constant 0 : i32
    %c0_i32_0 = arith.constant 0 : i32
    %c0_i32_1 = arith.constant 0 : i32
    %c0_i32_2 = arith.constant 0 : i32
    return %c0_i32, %c0_i32_0, %c0_i32_1 : i32, i32, i32
  }
  func.func @transform_1(%arg0: i32) -> (i32, i32) {
    %c0_i32 = arith.constant 0 : i32
    %c0_i32_0 = arith.constant 0 : i32
    %c0_i32_1 = arith.constant 0 : i32
    return %c0_i32, %c0_i32_0 : i32, i32
  }
  func.func @transform_2(%arg0: i32) -> (i32, i32) {
    %c0_i32 = arith.constant 0 : i32
    %c0_i32_0 = arith.constant 0 : i32
    %c0_i32_1 = arith.constant 0 : i32
    return %c0_i32, %c0_i32_0 : i32, i32
  }
  func.func @transform_3(%arg0: i32) -> (i32, i32, i32, i32) {
    %c0_i32 = arith.constant 0 : i32
    %c0_i32_0 = arith.constant 0 : i32
    %c0_i32_1 = arith.constant 0 : i32
    %c0_i32_2 = arith.constant 0 : i32
    return %arg0, %c0_i32, %c0_i32_0, %c0_i32_1 : i32, i32, i32, i32
  }
  func.func @transform_4(%arg0: i32) -> (i32, i32) {
    %c0_i32 = arith.constant 0 : i32
    %c0_i32_0 = arith.constant 0 : i32
    return %c0_i32, %arg0 : i32, i32
  }
  func.func @transform_5(%arg0: i32) -> (i32, i32, i32) {
    %c0_i32 = arith.constant 0 : i32
    %c0_i32_0 = arith.constant 0 : i32
    %c0_i32_1 = arith.constant 0 : i32
    %c0_i32_2 = arith.constant 0 : i32
    return %c0_i32, %c0_i32_0, %c0_i32_1 : i32, i32, i32
  }
  func.func @transform_6(%arg0: i32) -> (i32, i32) {
    %c0_i32 = arith.constant 0 : i32
    %c0_i32_0 = arith.constant 0 : i32
    %c0_i32_1 = arith.constant 0 : i32
    return %c0_i32, %c0_i32_0 : i32, i32
  }
  func.func @transform_7(%arg0: i32) -> (i32, i32, i32) {
    %c0_i32 = arith.constant 0 : i32
    %c0_i32_0 = arith.constant 0 : i32
    %c0_i32_1 = arith.constant 0 : i32
    %c0_i32_2 = arith.constant 0 : i32
    return %c0_i32, %c0_i32_0, %c0_i32_1 : i32, i32, i32
  }
  func.func @transform_8(%arg0: i32) -> (i32, i32, i32) {
    %c0_i32 = arith.constant 0 : i32
    %c0_i32_0 = arith.constant 0 : i32
    %c0_i32_1 = arith.constant 0 : i32
    %c0_i32_2 = arith.constant 0 : i32
    return %c0_i32, %c0_i32_0, %c0_i32_1 : i32, i32, i32
  }
  func.func @transform_9(%arg0: i32) -> (i32, i32) {
    %c0_i32 = arith.constant 0 : i32
    %c0_i32_0 = arith.constant 0 : i32
    %c0_i32_1 = arith.constant 0 : i32
    return %c0_i32, %c0_i32_0 : i32, i32
  }
  func.func @transform_10(%arg0: i32) -> (i32, i32) {
    %c0_i32 = arith.constant 0 : i32
    %c0_i32_0 = arith.constant 0 : i32
    %c0_i32_1 = arith.constant 0 : i32
    return %c0_i32, %c0_i32_0 : i32, i32
  }
  func.func @transform_11(%arg0: i32) -> (i32, i32) {
    %c0_i32 = arith.constant 0 : i32
    %c0_i32_0 = arith.constant 0 : i32
    %c0_i32_1 = arith.constant 0 : i32
    return %c0_i32, %c0_i32_0 : i32, i32
  }
}

</mosaic_0001>

<llo_original>
// kernel: squeeze.10
$region0: #{squeeze.10}
  %s0 = inlined_call_operand.vmem [shape: f32[2,28,28], index: 0, kind: input, shape index: {}]
  %s1 = inlined_call_operand.vmem [shape: f32[2,1,784], index: 1, kind: output, shape index: {}]
  $region1: #{squeeze.10} parent=0
    #allocation0 [shape = 'u8[57344]{0}', space=vmem, size = 0xe000, scoped, tag = 'scoped mem for output reshape']
    %v2 = vld [vmem:[%s0] sm:$0x1]
    %s3 = scalar_lea.vmem %s0, 31
    %v4 = vld [vmem:[%s3] sm:$0x2]
    %vm5 = vcmask 1041409
    %v6 = vsel %vm5, %v4, %v2
    %vm7 = vcmask 228352
    %8 = vst.msk [vmem:[#allocation0] ss:$56 sm:$0x3] %vm7, %v6
    %s9 = scalar_lea.vmem %s0, 41
    %v10 = vld [vmem:[%s9] sm:$0x1]
    %s11 = scalar_lea.vmem %s0, 8
    %v12 = vld [vmem:[%s11] sm:$0x2]
    %vm13 = vcmask 1041409
    %v14 = vsel %vm13, %v12, %v10
    %s15 = scalar_lea.vmem %s0, 41
    %v16 = vld [vmem:[%s15] sm:$0x1]
    %s17 = scalar_lea.vmem %s0, 8
    %v18 = vld [vmem:[%s17] sm:$0x2]
    %vm19 = vcmask 1041409
    %v20 = vsel %vm19, %v18, %v16
    %vm21 = vcmask 31744
    %v22 = vsel %vm21, %v20, %v14
    %23 = vrot.lane.b32.xlu0 %v22, 124
    %v24 = vpop.permute.xlu0 %23
    %vm25 = vcmask 195584
    %s26 = scalar_lea.vmem [#allocation0], 72
    %27 = vst.msk [vmem:[%s26] ss:$-56 sm:$0x3] %vm25, %v24
    %vm28 = vcmask 1048544
    %s29 = scalar_lea.vmem [#allocation0], 64
    %30 = vst.msk [vmem:[%s29] ss:$-56 sm:$0x3] %vm28, %v24
    %s31 = scalar_lea.vmem %s0, 18
    %v32 = vld [vmem:[%s31] sm:$0x1]
    %s33 = scalar_lea.vmem %s0, 49
    %v34 = vld [vmem:[%s33] sm:$0x2]
    %vm35 = vcmask 1041409
    %v36 = vsel %vm35, %v34, %v32
    %s37 = scalar_lea.vmem %s0, 50
    %v38 = vld [vmem:[%s37] sm:$0x1]
    %s39 = scalar_lea.vmem %s0, 17
    %v40 = vld [vmem:[%s39] sm:$0x2]
    %vm41 = vcmask 1041409
    %v42 = vsel %vm41, %v40, %v38
    %vm43 = vcmask 64512
    %v44 = vsel %vm43, %v42, %v36
    %45 = vrot.lane.b32.xlu0 %v44, 120
    %v46 = vpop.permute.xlu0 %45
    %vm47 = vcmask 162816
    %s48 = scalar_lea.vmem [#allocation0], 32
    %49 = vst.msk [vmem:[%s48] ss:$56 sm:$0x3] %vm47, %v46
    %vm50 = vcmask 1048512
    %s51 = scalar_lea.vmem [#allocation0], 80
    %52 = vst.msk [vmem:[%s51] ss:$-56 sm:$0x3] %vm50, %v46
    %s53 = scalar_lea.vmem %s0, 59
    %v54 = vld [vmem:[%s53] sm:$0x1]
    %s55 = scalar_lea.vmem %s0, 26
    %v56 = vld [vmem:[%s55] sm:$0x2]
    %vm57 = vcmask 1041409
    %v58 = vsel %vm57, %v56, %v54
    %s59 = scalar_lea.vmem %s0, 59
    %v60 = vld [vmem:[%s59] sm:$0x1]
    %s61 = scalar_lea.vmem %s0, 26
    %v62 = vld [vmem:[%s61] sm:$0x2]
    %vm63 = vcmask 1041409
    %v64 = vsel %vm63, %v62, %v60
    %vm65 = vcmask 97280
    %v66 = vsel %vm65, %v64, %v58
    %67 = vrot.lane.b32.xlu0 %v66, 116
    %v68 = vpop.permute.xlu0 %67
    %vm69 = vcmask 130048
    %s70 = scalar_lea.vmem [#allocation0], 104
    %71 = vst.msk [vmem:[%s70] ss:$-56 sm:$0x3] %vm69, %v68
    %vm72 = vcmask 1048480
    %s73 = scalar_lea.vmem [#allocation0], 96
    %74 = vst.msk [vmem:[%s73] ss:$-56 sm:$0x3] %vm72, %v68
    %s75 = scalar_lea.vmem %s0, 36
    %v76 = vld [vmem:[%s75] sm:$0x1]
    %s77 = scalar_lea.vmem %s0, 3
    %v78 = vld [vmem:[%s77] sm:$0x2]
    %vm79 = vcmask 1041409
    %v80 = vsel %vm79, %v78, %v76
    %s81 = scalar_lea.vmem %s0, 4
    %v82 = vld [vmem:[%s81] sm:$0x1]
    %s83 = scalar_lea.vmem %s0, 35
    %v84 = vld [vmem:[%s83] sm:$0x2]
    %vm85 = vcmask 1041409
    %v86 = vsel %vm85, %v84, %v82
    %vm87 = vcmask 130048
    %v88 = vsel %vm87, %v86, %v80
    %89 = vrot.lane.b32.xlu0 %v88, 112
    %v90 = vpop.permute.xlu0 %89
    %vm91 = vcmask 97280
    %s92 = scalar_lea.vmem [#allocation0], 64
    %93 = vst.msk [vmem:[%s92] ss:$-56 sm:$0x3] %vm91, %v90
    %vm94 = vcmask 1048448
    %95 = vst.msk [vmem:[#allocation0] ss:$56 sm:$0x3] %vm94, %v90
    %s96 = scalar_lea.vmem %s0, 45
    %v97 = vld [vmem:[%s96] sm:$0x1]
    %s98 = scalar_lea.vmem %s0, 12
    %v99 = vld [vmem:[%s98] sm:$0x2]
    %vm100 = vcmask 1041409
    %v101 = vsel %vm100, %v99, %v97
    %s102 = scalar_lea.vmem %s0, 45
    %v103 = vld [vmem:[%s102] sm:$0x1]
    %s104 = scalar_lea.vmem %s0, 12
    %v105 = vld [vmem:[%s104] sm:$0x2]
    %vm106 = vcmask 1041409
    %v107 = vsel %vm106, %v105, %v103
    %vm108 = vcmask 162816
    %v109 = vsel %vm108, %v107, %v101
    %110 = vrot.lane.b32.xlu0 %v109, 108
    %v111 = vpop.permute.xlu0 %110
    %vm112 = vcmask 64512
    %s113 = scalar_lea.vmem [#allocation0], 80
    %114 = vst.msk [vmem:[%s113] ss:$-56 sm:$0x3] %vm112, %v111
    %vm115 = vcmask 1048416
    %s116 = scalar_lea.vmem [#allocation0], 72
    %117 = vst.msk [vmem:[%s116] ss:$-56 sm:$0x3] %vm115, %v111
    %s118 = scalar_lea.vmem %s0, 54
    %v119 = vld [vmem:[%s118] sm:$0x1]
    %s120 = scalar_lea.vmem %s0, 21
    %v121 = vld [vmem:[%s120] sm:$0x2]
    %vm122 = vcmask 1041409
    %v123 = vsel %vm122, %v121, %v119
    %s124 = scalar_lea.vmem %s0, 22
    %v125 = vld [vmem:[%s124] sm:$0x1]
    %s126 = scalar_lea.vmem %s0, 53
    %v127 = vld [vmem:[%s126] sm:$0x2]
    %vm128 = vcmask 1041409
    %v129 = vsel %vm128, %v127, %v125
    %vm130 = vcmask 195584
    %v131 = vsel %vm130, %v129, %v123
    %132 = vrot.lane.b32.xlu0 %v131, 104
    %v133 = vpop.permute.xlu0 %132
    %vm134 = vcmask 31744
    %s135 = scalar_lea.vmem [#allocation0], 96
    %136 = vst.msk [vmem:[%s135] ss:$-56 sm:$0x3] %vm134, %v133
    %vm137 = vcmask 1048384
    %s138 = scalar_lea.vmem [#allocation0], 32
    %139 = vst.msk [vmem:[%s138] ss:$56 sm:$0x3] %vm137, %v133
    %s140 = scalar_lea.vmem %s0, 40
    %v141 = vld [vmem:[%s140] sm:$0x1]
    %s142 = scalar_lea.vmem %s0, 7
    %v143 = vld [vmem:[%s142] sm:$0x2]
    %vm144 = vcmask 1041409
    %v145 = vsel %vm144, %v143, %v141
    %146 = vrot.lane.b32.xlu0 %v145, 96
    %v147 = vpop.permute.xlu0 %146
    %vm148 = vcmask 1015552
    %s149 = scalar_lea.vmem [#allocation0], 64
    %150 = vst.msk [vmem:[%s149] ss:$-56 sm:$0x3] %vm148, %v147
    %s151 = scalar_lea.vmem %s0, 49
    %v152 = vld [vmem:[%s151] sm:$0x1]
    %s153 = scalar_lea.vmem %s0, 16
    %v154 = vld [vmem:[%s153] sm:$0x2]
    %vm155 = vcmask 1041409
    %v156 = vsel %vm155, %v154, %v152
    %157 = vrot.lane.b32.xlu0 %v156, 92
    %v158 = vpop.permute.xlu0 %157
    %vm159 = vcmask 982752
    %s160 = scalar_lea.vmem [#allocation0], 80
    %161 = vst.msk [vmem:[%s160] ss:$-56 sm:$0x3] %vm159, %v158
    %s162 = scalar_lea.vmem %s0, 58
    %v163 = vld [vmem:[%s162] sm:$0x1]
    %s164 = scalar_lea.vmem %s0, 25
    %v165 = vld [vmem:[%s164] sm:$0x2]
    %vm166 = vcmask 1041409
    %v167 = vsel %vm166, %v165, %v163
    %168 = vrot.lane.b32.xlu0 %v167, 88
    %v169 = vpop.permute.xlu0 %168
    %vm170 = vcmask 949952
    %s171 = scalar_lea.vmem [#allocation0], 96
    %172 = vst.msk [vmem:[%s171] ss:$-56 sm:$0x3] %vm170, %v169
    %s173 = scalar_lea.vmem %s0, 3
    %v174 = vld [vmem:[%s173] sm:$0x1]
    %s175 = scalar_lea.vmem %s0, 34
    %v176 = vld [vmem:[%s175] sm:$0x2]
    %vm177 = vcmask 1041409
    %v178 = vsel %vm177, %v176, %v174
    %179 = vrot.lane.b32.xlu0 %v178, 84
    %v180 = vpop.permute.xlu0 %179
    %vm181 = vcmask 917152
    %182 = vst.msk [vmem:[#allocation0] ss:$56 sm:$0x3] %vm181, %v180
    %s183 = scalar_lea.vmem %s0, 44
    %v184 = vld [vmem:[%s183] sm:$0x1]
    %s185 = scalar_lea.vmem %s0, 11
    %v186 = vld [vmem:[%s185] sm:$0x2]
    %vm187 = vcmask 1041409
    %v188 = vsel %vm187, %v186, %v184
    %189 = vrot.lane.b32.xlu0 %v188, 80
    %v190 = vpop.permute.xlu0 %189
    %vm191 = vcmask 884352
    %s192 = scalar_lea.vmem [#allocation0], 72
    %193 = vst.msk [vmem:[%s192] ss:$-56 sm:$0x3] %vm191, %v190
    %s194 = scalar_lea.vmem %s0, 21
    %v195 = vld [vmem:[%s194] sm:$0x1]
    %s196 = scalar_lea.vmem %s0, 52
    %v197 = vld [vmem:[%s196] sm:$0x2]
    %vm198 = vcmask 1041409
    %v199 = vsel %vm198, %v197, %v195
    %200 = vrot.lane.b32.xlu0 %v199, 76
    %v201 = vpop.permute.xlu0 %200
    %vm202 = vcmask 851552
    %s203 = scalar_lea.vmem [#allocation0], 32
    %204 = vst.msk [vmem:[%s203] ss:$56 sm:$0x3] %vm202, %v201
    %s205 = scalar_lea.vmem %s0, 39
    %v206 = vld [vmem:[%s205] sm:$0x1]
    %s207 = scalar_lea.vmem %s0, 6
    %v208 = vld [vmem:[%s207] sm:$0x2]
    %vm209 = vcmask 1041409
    %v210 = vsel %vm209, %v208, %v206
    %211 = vrot.lane.b32.xlu0 %v210, 68
    %v212 = vpop.permute.xlu0 %211
    %vm213 = vcmask 785952
    %s214 = scalar_lea.vmem [#allocation0], 64
    %215 = vst.msk [vmem:[%s214] ss:$-56 sm:$0x3] %vm213, %v212
    %s216 = scalar_lea.vmem %s0, 48
    %v217 = vld [vmem:[%s216] sm:$0x1]
    %s218 = scalar_lea.vmem %s0, 15
    %v219 = vld [vmem:[%s218] sm:$0x2]
    %vm220 = vcmask 1041409
    %v221 = vsel %vm220, %v219, %v217
    %222 = vrot.lane.b32.xlu0 %v221, 64
    %v223 = vpop.permute.xlu0 %222
    %vm224 = vcmask 753152
    %s225 = scalar_lea.vmem [#allocation0], 80
    %226 = vst.msk [vmem:[%s225] ss:$-56 sm:$0x3] %vm224, %v223
    %s227 = scalar_lea.vmem %s0, 57
    %v228 = vld [vmem:[%s227] sm:$0x1]
    %s229 = scalar_lea.vmem %s0, 24
    %v230 = vld [vmem:[%s229] sm:$0x2]
    %vm231 = vcmask 1041409
    %v232 = vsel %vm231, %v230, %v228
    %233 = vrot.lane.b32.xlu0 %v232, 60
    %v234 = vpop.permute.xlu0 %233
    %vm235 = vcmask 720352
    %s236 = scalar_lea.vmem [#allocation0], 96
    %237 = vst.msk [vmem:[%s236] ss:$-56 sm:$0x3] %vm235, %v234
    %s238 = scalar_lea.vmem %s0, 2
    %v239 = vld [vmem:[%s238] sm:$0x1]
    %s240 = scalar_lea.vmem %s0, 33
    %v241 = vld [vmem:[%s240] sm:$0x2]
    %vm242 = vcmask 1041409
    %v243 = vsel %vm242, %v241, %v239
    %244 = vrot.lane.b32.xlu0 %v243, 56
    %v245 = vpop.permute.xlu0 %244
    %vm246 = vcmask 687552
    %247 = vst.msk [vmem:[#allocation0] ss:$56 sm:$0x3] %vm246, %v245
    %s248 = scalar_lea.vmem %s0, 43
    %v249 = vld [vmem:[%s248] sm:$0x1]
    %s250 = scalar_lea.vmem %s0, 10
    %v251 = vld [vmem:[%s250] sm:$0x2]
    %vm252 = vcmask 1041409
    %v253 = vsel %vm252, %v251, %v249
    %254 = vrot.lane.b32.xlu0 %v253, 52
    %v255 = vpop.permute.xlu0 %254
    %vm256 = vcmask 654752
    %s257 = scalar_lea.vmem [#allocation0], 72
    %258 = vst.msk [vmem:[%s257] ss:$-56 sm:$0x3] %vm256, %v255
    %s259 = scalar_lea.vmem %s0, 20
    %v260 = vld [vmem:[%s259] sm:$0x1]
    %s261 = scalar_lea.vmem %s0, 51
    %v262 = vld [vmem:[%s261] sm:$0x2]
    %vm263 = vcmask 1041409
    %v264 = vsel %vm263, %v262, %v260
    %265 = vrot.lane.b32.xlu0 %v264, 48
    %v266 = vpop.permute.xlu0 %265
    %vm267 = vcmask 621952
    %s268 = scalar_lea.vmem [#allocation0], 32
    %269 = vst.msk [vmem:[%s268] ss:$56 sm:$0x3] %vm267, %v266
    %s270 = scalar_lea.vmem %s0, 38
    %v271 = vld [vmem:[%s270] sm:$0x1]
    %s272 = scalar_lea.vmem %s0, 5
    %v273 = vld [vmem:[%s272] sm:$0x2]
    %vm274 = vcmask 1041409
    %v275 = vsel %vm274, %v273, %v271
    %276 = vrot.lane.b32.xlu0 %v275, 40
    %v277 = vpop.permute.xlu0 %276
    %vm278 = vcmask 556352
    %s279 = scalar_lea.vmem [#allocation0], 64
    %280 = vst.msk [vmem:[%s279] ss:$-56 sm:$0x3] %vm278, %v277
    %s281 = scalar_lea.vmem %s0, 47
    %v282 = vld [vmem:[%s281] sm:$0x1]
    %s283 = scalar_lea.vmem %s0, 14
    %v284 = vld [vmem:[%s283] sm:$0x2]
    %vm285 = vcmask 1041409
    %v286 = vsel %vm285, %v284, %v282
    %287 = vrot.lane.b32.xlu0 %v286, 36
    %v288 = vpop.permute.xlu0 %287
    %vm289 = vcmask 523552
    %s290 = scalar_lea.vmem [#allocation0], 80
    %291 = vst.msk [vmem:[%s290] ss:$-56 sm:$0x3] %vm289, %v288
    %s292 = scalar_lea.vmem %s0, 56
    %v293 = vld [vmem:[%s292] sm:$0x1]
    %s294 = scalar_lea.vmem %s0, 23
    %v295 = vld [vmem:[%s294] sm:$0x2]
    %vm296 = vcmask 1041409
    %v297 = vsel %vm296, %v295, %v293
    %298 = vrot.lane.b32.xlu0 %v297, 32
    %v299 = vpop.permute.xlu0 %298
    %vm300 = vcmask 490752
    %s301 = scalar_lea.vmem [#allocation0], 96
    %302 = vst.msk [vmem:[%s301] ss:$-56 sm:$0x3] %vm300, %v299
    %s303 = scalar_lea.vmem %s0, 1
    %v304 = vld [vmem:[%s303] sm:$0x1]
    %s305 = scalar_lea.vmem %s0, 32
    %v306 = vld [vmem:[%s305] sm:$0x2]
    %vm307 = vcmask 1041409
    %v308 = vsel %vm307, %v306, %v304
    %309 = vrot.lane.b32.xlu0 %v308, 28
    %v310 = vpop.permute.xlu0 %309
    %vm311 = vcmask 457952
    %312 = vst.msk [vmem:[#allocation0] ss:$56 sm:$0x3] %vm311, %v310
    %s313 = scalar_lea.vmem %s0, 42
    %v314 = vld [vmem:[%s313] sm:$0x1]
    %s315 = scalar_lea.vmem %s0, 9
    %v316 = vld [vmem:[%s315] sm:$0x2]
    %vm317 = vcmask 1041409
    %v318 = vsel %vm317, %v316, %v314
    %319 = vrot.lane.b32.xlu0 %v318, 24
    %v320 = vpop.permute.xlu0 %319
    %vm321 = vcmask 425152
    %s322 = scalar_lea.vmem [#allocation0], 72
    %323 = vst.msk [vmem:[%s322] ss:$-56 sm:$0x3] %vm321, %v320
    %s324 = scalar_lea.vmem %s0, 19
    %v325 = vld [vmem:[%s324] sm:$0x1]
    %s326 = scalar_lea.vmem %s0, 50
    %v327 = vld [vmem:[%s326] sm:$0x2]
    %vm328 = vcmask 1041409
    %v329 = vsel %vm328, %v327, %v325
    %330 = vrot.lane.b32.xlu0 %v329, 20
    %v331 = vpop.permute.xlu0 %330
    %vm332 = vcmask 392352
    %s333 = scalar_lea.vmem [#allocation0], 32
    %334 = vst.msk [vmem:[%s333] ss:$56 sm:$0x3] %vm332, %v331
    %s335 = scalar_lea.vmem %s0, 37
    %v336 = vld [vmem:[%s335] sm:$0x1]
    %s337 = scalar_lea.vmem %s0, 4
    %v338 = vld [vmem:[%s337] sm:$0x2]
    %vm339 = vcmask 1041409
    %v340 = vsel %vm339, %v338, %v336
    %341 = vrot.lane.b32.xlu0 %v340, 12
    %v342 = vpop.permute.xlu0 %341
    %vm343 = vcmask 326752
    %s344 = scalar_lea.vmem [#allocation0], 64
    %345 = vst.msk [vmem:[%s344] ss:$-56 sm:$0x3] %vm343, %v342
    %s346 = scalar_lea.vmem %s0, 46
    %v347 = vld [vmem:[%s346] sm:$0x1]
    %s348 = scalar_lea.vmem %s0, 13
    %v349 = vld [vmem:[%s348] sm:$0x2]
    %vm350 = vcmask 1041409
    %v351 = vsel %vm350, %v349, %v347
    %352 = vrot.lane.b32.xlu0 %v351, 8
    %v353 = vpop.permute.xlu0 %352
    %vm354 = vcmask 293952
    %s355 = scalar_lea.vmem [#allocation0], 80
    %356 = vst.msk [vmem:[%s355] ss:$-56 sm:$0x3] %vm354, %v353
    %s357 = scalar_lea.vmem %s0, 55
    %v358 = vld [vmem:[%s357] sm:$0x1]
    %s359 = scalar_lea.vmem %s0, 22
    %v360 = vld [vmem:[%s359] sm:$0x2]
    %vm361 = vcmask 1041409
    %v362 = vsel %vm361, %v360, %v358
    %363 = vrot.lane.b32.xlu0 %v362, 4
    %v364 = vpop.permute.xlu0 %363
    %vm365 = vcmask 261152
    %s366 = scalar_lea.vmem [#allocation0], 96
    %367 = vst.msk [vmem:[%s366] ss:$-56 sm:$0x3] %vm365, %v364
    %s369 = sshllo.u32 0, 1
    %v371 = vld [vmem:[#allocation0] sm:%s369]
    %s372 = sshllo.u32 0, 1
    %373 = vst [vmem:[%s1] sm:%s372] %v371
    %s374 = scalar_lea.vmem [#allocation0], 8
    %v375 = vld [vmem:[%s374] sm:%s369]
    %s376 = sshllo.u32 0, 1
    %s377 = scalar_lea.vmem %s1, 1
    %378 = vst [vmem:[%s377] sm:%s376] %v375
    %s379 = scalar_lea.vmem [#allocation0], 16
    %v380 = vld [vmem:[%s379] sm:%s369]
    %s381 = sshllo.u32 0, 1
    %s382 = smul.addr 1, 2
    %s383 = scalar_lea.vmem %s1, %s382
    %384 = vst [vmem:[%s383] sm:%s381] %v380
    %s385 = scalar_lea.vmem [#allocation0], 24
    %v386 = vld [vmem:[%s385] sm:%s369]
    %s387 = sshllo.u32 0, 1
    %s388 = smul.addr 1, 3
    %s389 = scalar_lea.vmem %s1, %s388
    %390 = vst [vmem:[%s389] sm:%s387] %v386
    %s391 = scalar_lea.vmem [#allocation0], 32
    %v392 = vld [vmem:[%s391] sm:%s369]
    %s393 = sshllo.u32 0, 1
    %s394 = smul.addr 1, 4
    %s395 = scalar_lea.vmem %s1, %s394
    %396 = vst [vmem:[%s395] sm:%s393] %v392
    %s397 = scalar_lea.vmem [#allocation0], 40
    %v398 = vld [vmem:[%s397] sm:%s369]
    %s399 = sshllo.u32 0, 1
    %s400 = smul.addr 1, 5
    %s401 = scalar_lea.vmem %s1, %s400
    %402 = vst [vmem:[%s401] sm:%s399] %v398
    %s403 = scalar_lea.vmem [#allocation0], 48
    %v404 = vld [vmem:[%s403] sm:%s369]
    %s405 = sshllo.u32 0, 1
    %s406 = smul.addr 1, 6
    %s407 = scalar_lea.vmem %s1, %s406
    %408 = vst [vmem:[%s407] sm:%s405] %v404
    %s409 = scalar_lea.vmem [#allocation0], 56
    %v410 = vld [vmem:[%s409] sm:%s369]
    %s411 = sshllo.u32 0, 1
    %s412 = smul.addr 1, 7
    %s413 = scalar_lea.vmem %s1, %s412
    %414 = vst [vmem:[%s413] sm:%s411] %v410
    %s415 = scalar_lea.vmem [#allocation0], 64
    %v416 = vld [vmem:[%s415] sm:%s369]
    %s417 = sshllo.u32 0, 1
    %s418 = smul.addr 1, 8
    %s419 = scalar_lea.vmem %s1, %s418
    %420 = vst [vmem:[%s419] sm:%s417] %v416
    %s421 = scalar_lea.vmem [#allocation0], 72
    %v422 = vld [vmem:[%s421] sm:%s369]
    %s423 = sshllo.u32 0, 1
    %s424 = smul.addr 1, 9
    %s425 = scalar_lea.vmem %s1, %s424
    %426 = vst [vmem:[%s425] sm:%s423] %v422
    %s427 = scalar_lea.vmem [#allocation0], 80
    %v428 = vld [vmem:[%s427] sm:%s369]
    %s429 = sshllo.u32 0, 1
    %s430 = smul.addr 1, 10
    %s431 = scalar_lea.vmem %s1, %s430
    %432 = vst [vmem:[%s431] sm:%s429] %v428
    %s433 = scalar_lea.vmem [#allocation0], 88
    %v434 = vld [vmem:[%s433] sm:%s369]
    %s435 = sshllo.u32 0, 1
    %s436 = smul.addr 1, 11
    %s437 = scalar_lea.vmem %s1, %s436
    %438 = vst [vmem:[%s437] sm:%s435] %v434
    %s439 = scalar_lea.vmem [#allocation0], 96
    %v440 = vld [vmem:[%s439] sm:%s369]
    %s441 = sshllo.u32 0, 1
    %s442 = smul.addr 1, 12
    %s443 = scalar_lea.vmem %s1, %s442
    %444 = vst [vmem:[%s443] sm:%s441] %v440
    %s445 = scalar_lea.vmem [#allocation0], 104
    %v446 = vld [vmem:[%s445] sm:%s369]
    %s447 = sshllo.u32 0, 1
    %s448 = smul.addr 1, 13
    %s449 = scalar_lea.vmem %s1, %s448
    %450 = vst [vmem:[%s449] sm:%s447] %v446

// kernel: mamba_spike_forward.1
$region0: #{mamba_spike_forward.1}
  #allocation0 [shape = 'u32[]', space=smem, size = 0x4, offset = 0x4, fixed_abs, tag = 'smem constant byte address 0x4 - core index']
  #allocation1 [shape = 'u32[144,128]{1,0:T(1,128)}', space=vmem, size = 0x12000, scoped, tag = 'internal scratch']
  #allocation2 [shape = 'bf16[2,16,784]{2,1,0:T(16,128)(2,1)}', space=vmem, size = 0xe000, scoped, tag = 'scratch operand']
  #allocation3 [shape = 'f32[2,2,128]{2,1,0:T(2,128)}', space=vmem, size = 0x800, scoped, tag = 'scratch operand']
  %s0 = inlined_call_operand.vmem [shape: f32[2,9,784], index: 0, kind: input, shape index: {}]
  %s1 = inlined_call_operand.hbm [shape: f32[16,9], index: 1, kind: input, shape index: {}]
  %s2 = inlined_call_operand.vmem [shape: f32[16,1], index: 2, kind: input, shape index: {}]
  %s3 = inlined_call_operand.hbm [shape: bf16[2,16,784,128], index: 3, kind: input, shape index: {}]
  %s4 = inlined_call_operand.hbm [shape: f32[1,256], index: 4, kind: input, shape index: {}]
  %s5 = inlined_call_operand.vmem [shape: f32[2,128,32], index: 5, kind: input, shape index: {}]
  %s6 = inlined_call_operand.hbm [shape: f32[1,32], index: 6, kind: input, shape index: {}]
  %s7 = inlined_call_operand.hbm [shape: f32[1,32,32], index: 7, kind: input, shape index: {}]
  %s8 = inlined_call_operand.hbm [shape: f32[1,1,32], index: 8, kind: input, shape index: {}]
  %s9 = inlined_call_operand.vmem [shape: f32[32,10], index: 9, kind: input, shape index: {}]
  %s10 = inlined_call_operand.hbm [shape: f32[1,10], index: 10, kind: input, shape index: {}]
  %s11 = inlined_call_operand.hbm [shape: f32[2,10], index: 11, kind: output, shape index: {}]
  %s12 = sld [smem:[#allocation0]]
  $region113: #{mamba_spike_forward.1} parent=0
    _
  %s14 = ssub.s32 1, %s12
  %s15 = scalar_select 0, %s14, %s12
  $region1: #{mamba_spike_forward.1} parent=0
    #allocation4 [shape = 'u8[8192]{0}', space=vmem, size = 0x2000, scoped, tag = 'input window, operand 1, single buffered']
    #allocation5 [shape = 's32[2]{0}', space=sflag, size = 0x8, scoped, tag = 'scoped memory for mamba_spike_forward.1']
    #allocation6 [shape = 's32[2]{0}', space=sflag, size = 0x8, scoped, tag = 'scoped memory for mamba_spike_forward.1']
    #allocation7 [shape = 'u8[6422528]{0}', space=vmem, size = 0x620000, scoped, tag = 'input window, operand 3']
    #allocation8 [shape = 's32[2]{0}', space=sflag, size = 0x8, scoped, tag = 'scoped memory for mamba_spike_forward.1']
    #allocation9 [shape = 'u8[1024]{0}', space=vmem, size = 0x400, scoped, tag = 'input window, operand 4']
    #allocation10 [shape = 'u8[512]{0}', space=vmem, size = 0x400, scoped, tag = 'input window, operand 6, single buffered']
    #allocation11 [shape = 's32[1]{0}', space=sflag, size = 0x4, scoped, tag = 'scoped memory for mamba_spike_forward.1']
    #allocation12 [shape = 'u8[16384]{0}', space=vmem, size = 0x4000, scoped, tag = 'input window, operand 7, single buffered']
    #allocation13 [shape = 'u8[512]{0}', space=vmem, size = 0x400, scoped, tag = 'input window, operand 8, single buffered']
    #allocation14 [shape = 's32[1]{0}', space=sflag, size = 0x4, scoped, tag = 'scoped memory for mamba_spike_forward.1']
    #allocation15 [shape = 'u8[512]{0}', space=vmem, size = 0x400, scoped, tag = 'input window, operand 10, single buffered']
    #allocation16 [shape = 'u8[1024]{0}', space=vmem, size = 0x400, scoped, tag = 'output window, operand 0, single buffered']
    %16 = vsyncpa [#allocation5], 0
    %17 = vsyncpa [#allocation8], 0
    %s18 = scalar_lea.sflag [#allocation8], 1
    %19 = vsyncpa %s18, 0
    %20 = vsyncpa [#allocation11], 0
    %21 = vsyncpa [#allocation14], 0
    %22 = vsyncpa [#allocation6], 0
    loop: start=0, step=1, limit=4
    $region2: #{mamba_spike_forward.1} parent=1 // loop_pre_header
      _
    $region3: #{mamba_spike_forward.1} parent=1 // loop_header
      %s24 = sphi 0, %s28
      %p25 = scmp.ge.s32.totalorder %s24, 4
      %s32 = sphi 0, %s32
      %s34 = sphi 0, %s32
      %s35 = sphi 0, %s34
      %s49 = sphi 0, %s35
      %s53 = sphi 0, %s53
      %s55 = sphi 0, %s53
      %s56 = sphi 0, %s55
      %s70 = sphi 0, %s56
      %s74 = sphi 0, %s74
      %s76 = sphi 0, %s74
      %s77 = sphi 0, %s76
      %s91 = sphi 0, %s77
      %s97 = sphi 0, %s99
      %s100 = sphi 0, %s97
      %s101 = sphi 0, %s100
      %s117 = sphi 0, %s101
      %s123 = sphi 0, %s125
      %s126 = sphi 0, %s123
      %s127 = sphi 0, %s126
      %s143 = sphi 0, %s127
      %s147 = sphi 0, %s147
      %s149 = sphi 0, %s147
      %s150 = sphi 0, %s149
      %s164 = sphi 0, %s150
      %s168 = sphi 0, %s168
      %s170 = sphi 0, %s168
      %s171 = sphi 0, %s170
      %s185 = sphi 0, %s171
      %s189 = sphi 0, %s189
      %s191 = sphi 0, %s189
      %s192 = sphi 0, %s191
      %s206 = sphi 0, %s192
      %s210 = sphi 0, %s210
      %s212 = sphi 0, %s210
      %s213 = sphi 0, %s212
      %s227 = sphi 0, %s213
      %s231 = sphi 0, %s231
      %s233 = sphi 0, %s231
      %s234 = sphi 0, %s233
      %s248 = sphi 0, %s234
      %s252 = sphi 0, %s252
      %s254 = sphi 0, %s252
      %s255 = sphi 0, %s254
      %s269 = sphi 0, %s255
      %s273 = sphi 0, %s273
      %s275 = sphi 0, %s273
      %s276 = sphi 0, %s275
      %s290 = sphi 0, %s276
    $region4: #{mamba_spike_forward.1} parent=1 // loop_header_branch
      %27 = sbr.rel (%p25) target = $region8
    $region5: #{mamba_spike_forward.1} parent=1 // loop_body
      %s29 = ssub.s32 %s24, 1
      %s30 = ssub.s32 %s24, 2
      %s31 = sadd.s32 %s24, 1
      %s33 = sadd.s32 %s32, 1
      %p36 = scmp.eq.s32.totalorder %s24, 1
      %p37 = scmp.ne.s32.totalorder %s32, %s34
      %p38 = scmp.eq.s32.totalorder %s24, 0
      %p39 = por %p37, %p38
      %p40 = scmp.ne.s32.totalorder %s32, %s34
      %p41 = scmp.eq.s32.totalorder %s29, 1
      %p42 = por %p40, %p41
      %p43 = scmp.ne.s32.totalorder %s34, %s35
      %p44 = scmp.eq.s32.totalorder %s29, 0
      %p45 = por %p43, %p44
      %p46 = scmp.ne.s32.totalorder %s34, %s35
      %p47 = scmp.eq.s32.totalorder %s30, 1
      %p48 = por %p46, %p47
      %p50 = scmp.ne.s32.totalorder %s35, %s49
      %p51 = scmp.eq.s32.totalorder %s30, 0
      %p52 = por %p50, %p51
      %s54 = sadd.s32 %s53, 1
      %p57 = scmp.eq.s32.totalorder %s24, 1
      %p58 = scmp.ne.s32.totalorder %s53, %s55
      %p59 = scmp.eq.s32.totalorder %s24, 0
      %p60 = por %p58, %p59
      %p61 = scmp.ne.s32.totalorder %s53, %s55
      %p62 = scmp.eq.s32.totalorder %s29, 1
      %p63 = por %p61, %p62
      %p64 = scmp.ne.s32.totalorder %s55, %s56
      %p65 = scmp.eq.s32.totalorder %s29, 0
      %p66 = por %p64, %p65
      %p67 = scmp.ne.s32.totalorder %s55, %s56
      %p68 = scmp.eq.s32.totalorder %s30, 1
      %p69 = por %p67, %p68
      %p71 = scmp.ne.s32.totalorder %s56, %s70
      %p72 = scmp.eq.s32.totalorder %s30, 0
      %p73 = por %p71, %p72
      %s75 = sadd.s32 %s74, 1
      %p78 = scmp.eq.s32.totalorder %s24, 1
      %p79 = scmp.ne.s32.totalorder %s74, %s76
      %p80 = scmp.eq.s32.totalorder %s24, 0
      %p81 = por %p79, %p80
      %p82 = scmp.ne.s32.totalorder %s74, %s76
      %p83 = scmp.eq.s32.totalorder %s29, 1
      %p84 = por %p82, %p83
      %p85 = scmp.ne.s32.totalorder %s76, %s77
      %p86 = scmp.eq.s32.totalorder %s29, 0
      %p87 = por %p85, %p86
      %p88 = scmp.ne.s32.totalorder %s76, %s77
      %p89 = scmp.eq.s32.totalorder %s30, 1
      %p90 = por %p88, %p89
      %p92 = scmp.ne.s32.totalorder %s77, %s91
      %p93 = scmp.eq.s32.totalorder %s30, 0
      %p94 = por %p92, %p93
      %s95 = ssub.s32 %s24, %s31
      %p96 = scmp.eq.s32.totalorder %s95, 0
      %s98 = sadd.s32 %s97, 1
      %s99 = scalar_select %p96, %s97, %s98
      %p102 = pneg %p96
      %p103 = scmp.eq.s32.totalorder %s24, 1
      %p104 = por %p102, %p103
      %p105 = scmp.ne.s32.totalorder %s97, %s100
      %p106 = scmp.eq.s32.totalorder %s24, 0
      %p107 = por %p105, %p106
      %p108 = scmp.ne.s32.totalorder %s97, %s100
      %p109 = scmp.eq.s32.totalorder %s29, 1
      %p110 = por %p108, %p109
      %p111 = scmp.ne.s32.totalorder %s100, %s101
      %p112 = scmp.eq.s32.totalorder %s29, 0
      %p113 = por %p111, %p112
      %p114 = scmp.ne.s32.totalorder %s100, %s101
      %p115 = scmp.eq.s32.totalorder %s30, 1
      %p116 = por %p114, %p115
      %p118 = scmp.ne.s32.totalorder %s101, %s117
      %p119 = scmp.eq.s32.totalorder %s30, 0
      %p120 = por %p118, %p119
      %s121 = ssub.s32 %s24, %s31
      %p122 = scmp.eq.s32.totalorder %s121, 0
      %s124 = sadd.s32 %s123, 1
      %s125 = scalar_select %p122, %s123, %s124
      %p128 = pneg %p122
      %p129 = scmp.eq.s32.totalorder %s24, 1
      %p130 = por %p128, %p129
      %p131 = scmp.ne.s32.totalorder %s123, %s126
      %p132 = scmp.eq.s32.totalorder %s24, 0
      %p133 = por %p131, %p132
      %p134 = scmp.ne.s32.totalorder %s123, %s126
      %p135 = scmp.eq.s32.totalorder %s29, 1
      %p136 = por %p134, %p135
      %p137 = scmp.ne.s32.totalorder %s126, %s127
      %p138 = scmp.eq.s32.totalorder %s29, 0
      %p139 = por %p137, %p138
      %p140 = scmp.ne.s32.totalorder %s126, %s127
      %p141 = scmp.eq.s32.totalorder %s30, 1
      %p142 = por %p140, %p141
      %p144 = scmp.ne.s32.totalorder %s127, %s143
      %p145 = scmp.eq.s32.totalorder %s30, 0
      %p146 = por %p144, %p145
      %s148 = sadd.s32 %s147, 1
      %p151 = scmp.eq.s32.totalorder %s24, 1
      %p152 = scmp.ne.s32.totalorder %s147, %s149
      %p153 = scmp.eq.s32.totalorder %s24, 0
      %p154 = por %p152, %p153
      %p155 = scmp.ne.s32.totalorder %s147, %s149
      %p156 = scmp.eq.s32.totalorder %s29, 1
      %p157 = por %p155, %p156
      %p158 = scmp.ne.s32.totalorder %s149, %s150
      %p159 = scmp.eq.s32.totalorder %s29, 0
      %p160 = por %p158, %p159
      %p161 = scmp.ne.s32.totalorder %s149, %s150
      %p162 = scmp.eq.s32.totalorder %s30, 1
      %p163 = por %p161, %p162
      %p165 = scmp.ne.s32.totalorder %s150, %s164
      %p166 = scmp.eq.s32.totalorder %s30, 0
      %p167 = por %p165, %p166
      %s169 = sadd.s32 %s168, 1
      %p172 = scmp.eq.s32.totalorder %s24, 1
      %p173 = scmp.ne.s32.totalorder %s168, %s170
      %p174 = scmp.eq.s32.totalorder %s24, 0
      %p175 = por %p173, %p174
      %p176 = scmp.ne.s32.totalorder %s168, %s170
      %p177 = scmp.eq.s32.totalorder %s29, 1
      %p178 = por %p176, %p177
      %p179 = scmp.ne.s32.totalorder %s170, %s171
      %p180 = scmp.eq.s32.totalorder %s29, 0
      %p181 = por %p179, %p180
      %p182 = scmp.ne.s32.totalorder %s170, %s171
      %p183 = scmp.eq.s32.totalorder %s30, 1
      %p184 = por %p182, %p183
      %p186 = scmp.ne.s32.totalorder %s171, %s185
      %p187 = scmp.eq.s32.totalorder %s30, 0
      %p188 = por %p186, %p187
      %s190 = sadd.s32 %s189, 1
      %p193 = scmp.eq.s32.totalorder %s24, 1
      %p194 = scmp.ne.s32.totalorder %s189, %s191
      %p195 = scmp.eq.s32.totalorder %s24, 0
      %p196 = por %p194, %p195
      %p197 = scmp.ne.s32.totalorder %s189, %s191
      %p198 = scmp.eq.s32.totalorder %s29, 1
      %p199 = por %p197, %p198
      %p200 = scmp.ne.s32.totalorder %s191, %s192
      %p201 = scmp.eq.s32.totalorder %s29, 0
      %p202 = por %p200, %p201
      %p203 = scmp.ne.s32.totalorder %s191, %s192
      %p204 = scmp.eq.s32.totalorder %s30, 1
      %p205 = por %p203, %p204
      %p207 = scmp.ne.s32.totalorder %s192, %s206
      %p208 = scmp.eq.s32.totalorder %s30, 0
      %p209 = por %p207, %p208
      %s211 = sadd.s32 %s210, 1
      %p214 = scmp.eq.s32.totalorder %s24, 1
      %p215 = scmp.ne.s32.totalorder %s210, %s212
      %p216 = scmp.eq.s32.totalorder %s24, 0
      %p217 = por %p215, %p216
      %p218 = scmp.ne.s32.totalorder %s210, %s212
      %p219 = scmp.eq.s32.totalorder %s29, 1
      %p220 = por %p218, %p219
      %p221 = scmp.ne.s32.totalorder %s212, %s213
      %p222 = scmp.eq.s32.totalorder %s29, 0
      %p223 = por %p221, %p222
      %p224 = scmp.ne.s32.totalorder %s212, %s213
      %p225 = scmp.eq.s32.totalorder %s30, 1
      %p226 = por %p224, %p225
      %p228 = scmp.ne.s32.totalorder %s213, %s227
      %p229 = scmp.eq.s32.totalorder %s30, 0
      %p230 = por %p228, %p229
      %s232 = sadd.s32 %s231, 1
      %p235 = scmp.eq.s32.totalorder %s24, 1
      %p236 = scmp.ne.s32.totalorder %s231, %s233
      %p237 = scmp.eq.s32.totalorder %s24, 0
      %p238 = por %p236, %p237
      %p239 = scmp.ne.s32.totalorder %s231, %s233
      %p240 = scmp.eq.s32.totalorder %s29, 1
      %p241 = por %p239, %p240
      %p242 = scmp.ne.s32.totalorder %s233, %s234
      %p243 = scmp.eq.s32.totalorder %s29, 0
      %p244 = por %p242, %p243
      %p245 = scmp.ne.s32.totalorder %s233, %s234
      %p246 = scmp.eq.s32.totalorder %s30, 1
      %p247 = por %p245, %p246
      %p249 = scmp.ne.s32.totalorder %s234, %s248
      %p250 = scmp.eq.s32.totalorder %s30, 0
      %p251 = por %p249, %p250
      %s253 = sadd.s32 %s252, 1
      %p256 = scmp.eq.s32.totalorder %s24, 1
      %p257 = scmp.ne.s32.totalorder %s252, %s254
      %p258 = scmp.eq.s32.totalorder %s24, 0
      %p259 = por %p257, %p258
      %p260 = scmp.ne.s32.totalorder %s252, %s254
      %p261 = scmp.eq.s32.totalorder %s29, 1
      %p262 = por %p260, %p261
      %p263 = scmp.ne.s32.totalorder %s254, %s255
      %p264 = scmp.eq.s32.totalorder %s29, 0
      %p265 = por %p263, %p264
      %p266 = scmp.ne.s32.totalorder %s254, %s255
      %p267 = scmp.eq.s32.totalorder %s30, 1
      %p268 = por %p266, %p267
      %p270 = scmp.ne.s32.totalorder %s255, %s269
      %p271 = scmp.eq.s32.totalorder %s30, 0
      %p272 = por %p270, %p271
      %s274 = sadd.s32 %s273, 1
      %p277 = scmp.eq.s32.totalorder %s24, 1
      %p278 = scmp.ne.s32.totalorder %s273, %s275
      %p279 = scmp.eq.s32.totalorder %s24, 0
      %p280 = por %p278, %p279
      %p281 = scmp.ne.s32.totalorder %s273, %s275
      %p282 = scmp.eq.s32.totalorder %s29, 1
      %p283 = por %p281, %p282
      %p284 = scmp.ne.s32.totalorder %s275, %s276
      %p285 = scmp.eq.s32.totalorder %s29, 0
      %p286 = por %p284, %p285
      %p287 = scmp.ne.s32.totalorder %s275, %s276
      %p288 = scmp.eq.s32.totalorder %s30, 1
      %p289 = por %p287, %p288
      %p291 = scmp.ne.s32.totalorder %s276, %s290
      %p292 = scmp.eq.s32.totalorder %s30, 0
      %p293 = por %p291, %p292
      %p294 = scmp.le.s32.totalorder 1, %s24
      %p295 = scmp.lt.s32.totalorder %s24, 3
      %p296 = pnand %p294, %p295
      %p297 = pneg %p296
      // Predicated region
      $region9: #{mamba_spike_forward.1} parent=5 // pred_check
        _
      $region10: #{mamba_spike_forward.1} parent=5 // pred_check_branch
        %299 = sbr.rel (%p296) target = $region12
      $region11: #{mamba_spike_forward.1} parent=5 // pred_region
        %s300 = ssub.s32 %s24, 1
        // Predicated region
        $region13: #{mamba_spike_forward.1} parent=11 // pred_check
          %p301 = pneg %p45
        $region14: #{mamba_spike_forward.1} parent=11 // pred_check_branch
          %303 = sbr.rel (%p301) target = $region16
        $region15: #{mamba_spike_forward.1} parent=11 // pred_region
          _
        $region16: #{mamba_spike_forward.1} parent=11 // pred_fallthru
          _
        // Predicated region
        $region17: #{mamba_spike_forward.1} parent=11 // pred_check
          %p304 = pneg %p66
        $region18: #{mamba_spike_forward.1} parent=11 // pred_check_branch
          %306 = sbr.rel (%p304) target = $region20
        $region19: #{mamba_spike_forward.1} parent=11 // pred_region
          %s308 = ssub.s32 256, 256
          %309 = vsyncadd [#allocation5], %s308
          %s310 = sshll.u32 [#allocation4], 4
          %s311 = int_to_ptr.vmem [resolvable:$true] %s310
          %316 = dma.hbm_to_vmem [thread:$0]  %s1, 256, %s311, [#allocation5], 128, 128, 8
        $region20: #{mamba_spike_forward.1} parent=11 // pred_fallthru
          _
        // Predicated region
        $region21: #{mamba_spike_forward.1} parent=11 // pred_check
          %p317 = pneg %p87
        $region22: #{mamba_spike_forward.1} parent=11 // pred_check_branch
          %319 = sbr.rel (%p317) target = $region24
        $region23: #{mamba_spike_forward.1} parent=11 // pred_region
          _
        $region24: #{mamba_spike_forward.1} parent=11 // pred_fallthru
          _
        // Predicated region
        $region25: #{mamba_spike_forward.1} parent=11 // pred_check
          %p320 = pneg %p160
        $region26: #{mamba_spike_forward.1} parent=11 // pred_check_branch
          %322 = sbr.rel (%p320) target = $region28
        $region27: #{mamba_spike_forward.1} parent=11 // pred_region
          _
        $region28: #{mamba_spike_forward.1} parent=11 // pred_fallthru
          _
        // Predicated region
        $region29: #{mamba_spike_forward.1} parent=11 // pred_check
          %p323 = pneg %p181
        $region30: #{mamba_spike_forward.1} parent=11 // pred_check_branch
          %325 = sbr.rel (%p323) target = $region32
        $region31: #{mamba_spike_forward.1} parent=11 // pred_region
          %s327 = ssub.s32 16, 16
          %328 = vsyncadd [#allocation11], %s327
          %s330 = sshll.u32 [#allocation10], 4
          %s331 = int_to_ptr.vmem [resolvable:$true] %s330
          %333 = dma.hbm_to_vmem [thread:$0]  %s6, 16, %s331, [#allocation11]
        $region32: #{mamba_spike_forward.1} parent=11 // pred_fallthru
          _
        // Predicated region
        $region33: #{mamba_spike_forward.1} parent=11 // pred_check
          %p334 = pneg %p202
        $region34: #{mamba_spike_forward.1} parent=11 // pred_check_branch
          %336 = sbr.rel (%p334) target = $region36
        $region35: #{mamba_spike_forward.1} parent=11 // pred_region
          %s338 = ssub.s32 512, 512
          %339 = vsyncadd [#allocation11], %s338
          %s340 = sshll.u32 [#allocation12], 4
          %s341 = int_to_ptr.vmem [resolvable:$true] %s340
          %346 = dma.hbm_to_vmem [thread:$0]  %s7, 512, %s341, [#allocation11], 128, 128, 8
        $region36: #{mamba_spike_forward.1} parent=11 // pred_fallthru
          _
        // Predicated region
        $region37: #{mamba_spike_forward.1} parent=11 // pred_check
          %p347 = pneg %p223
        $region38: #{mamba_spike_forward.1} parent=11 // pred_check_branch
          %349 = sbr.rel (%p347) target = $region40
        $region39: #{mamba_spike_forward.1} parent=11 // pred_region
          %s351 = ssub.s32 16, 16
          %352 = vsyncadd [#allocation14], %s351
          %s354 = sshll.u32 [#allocation13], 4
          %s355 = int_to_ptr.vmem [resolvable:$true] %s354
          %357 = dma.hbm_to_vmem [thread:$0]  %s8, 16, %s355, [#allocation14]
        $region40: #{mamba_spike_forward.1} parent=11 // pred_fallthru
          _
        // Predicated region
        $region41: #{mamba_spike_forward.1} parent=11 // pred_check
          %p358 = pneg %p244
        $region42: #{mamba_spike_forward.1} parent=11 // pred_check_branch
          %360 = sbr.rel (%p358) target = $region44
        $region43: #{mamba_spike_forward.1} parent=11 // pred_region
          _
        $region44: #{mamba_spike_forward.1} parent=11 // pred_fallthru
          _
        // Predicated region
        $region45: #{mamba_spike_forward.1} parent=11 // pred_check
          %p361 = pneg %p265
        $region46: #{mamba_spike_forward.1} parent=11 // pred_check_branch
          %363 = sbr.rel (%p361) target = $region48
        $region47: #{mamba_spike_forward.1} parent=11 // pred_region
          %s365 = ssub.s32 16, 16
          %366 = vsyncadd [#allocation14], %s365
          %s368 = sshll.u32 [#allocation15], 4
          %s369 = int_to_ptr.vmem [resolvable:$true] %s368
          %371 = dma.hbm_to_vmem [thread:$0]  %s10, 16, %s369, [#allocation14]
        $region48: #{mamba_spike_forward.1} parent=11 // pred_fallthru
          _
      $region12: #{mamba_spike_forward.1} parent=5 // pred_fallthru
        _
      %p372 = scmp.lt.s32.totalorder %s24, 2
      // Predicated region
      $region49: #{mamba_spike_forward.1} parent=5 // pred_check
        %p373 = pneg %p372
      $region50: #{mamba_spike_forward.1} parent=5 // pred_check_branch
        %375 = sbr.rel (%p373) target = $region52
      $region51: #{mamba_spike_forward.1} parent=5 // pred_region
        // Predicated region
        $region53: #{mamba_spike_forward.1} parent=51 // pred_check
          %p376 = pneg %p107
        $region54: #{mamba_spike_forward.1} parent=51 // pred_check_branch
          %378 = sbr.rel (%p376) target = $region56
        $region55: #{mamba_spike_forward.1} parent=51 // pred_region
          %s379 = sand.u32 %s24, 1
          %s380 = scalar_lea.sflag [#allocation8], %s379
          %s381 = sand.u32 %s97, 1
          %s382 = smul.addr %s381, 6272
          %s383 = scalar_lea.vmem [#allocation7], %s382
          %s385 = ssub.s32 100352, 100352
          %386 = vsyncadd %s380, %s385
          %s387 = smul.addr %s24, 1568
          %s388 = smul.addr %s387, 64
          %s389 = scalar_lea.hbm %s3, %s388
          %s390 = sshll.u32 %s383, 4
          %s391 = int_to_ptr.vmem [resolvable:$true] %s390
          %396 = dma.hbm_to_vmem [thread:$0]  %s389, 100352, %s391, %s380, 64, 64, 4
        $region56: #{mamba_spike_forward.1} parent=51 // pred_fallthru
          _
        // Predicated region
        $region57: #{mamba_spike_forward.1} parent=51 // pred_check
          %p397 = pneg %p133
        $region58: #{mamba_spike_forward.1} parent=51 // pred_check_branch
          %399 = sbr.rel (%p397) target = $region60
        $region59: #{mamba_spike_forward.1} parent=51 // pred_region
          %s400 = sand.u32 %s24, 1
          %s401 = scalar_lea.sflag [#allocation8], %s400
          %s402 = sand.u32 %s123, 1
          %s403 = scalar_lea.vmem [#allocation9], %s402
          %s405 = ssub.s32 16, 16
          %406 = vsyncadd %s401, %s405
          %s407 = smul.addr %s24, 16
          %s408 = scalar_lea.hbm %s4, %s407
          %s410 = sshll.u32 %s403, 4
          %s411 = int_to_ptr.vmem [resolvable:$true] %s410
          %413 = dma.hbm_to_vmem [thread:$0]  %s408, 16, %s411, %s401
        $region60: #{mamba_spike_forward.1} parent=51 // pred_fallthru
          _
      $region52: #{mamba_spike_forward.1} parent=5 // pred_fallthru
        _
      %p414 = scmp.le.s32.totalorder 1, %s24
      %p415 = scmp.lt.s32.totalorder %s24, 3
      %p416 = pnand %p414, %p415
      %p417 = pneg %p416
      // Predicated region
      $region61: #{mamba_spike_forward.1} parent=5 // pred_check
        _
      $region62: #{mamba_spike_forward.1} parent=5 // pred_check_branch
        %419 = sbr.rel (%p416) target = $region64
      $region63: #{mamba_spike_forward.1} parent=5 // pred_region
        %s420 = ssub.s32 %s24, 1
        // Predicated region
        $region65: #{mamba_spike_forward.1} parent=63 // pred_check
          %p421 = pneg %p66
        $region66: #{mamba_spike_forward.1} parent=63 // pred_check_branch
          %423 = sbr.rel (%p421) target = $region68
        $region67: #{mamba_spike_forward.1} parent=63 // pred_region
          %424 = dma.done [#allocation5], 256
        $region68: #{mamba_spike_forward.1} parent=63 // pred_fallthru
          _
        %s425 = sand.u32 %s29, 1
        %s426 = scalar_lea.sflag [#allocation8], %s425
        %s427 = sand.u32 %s100, 1
        %s428 = smul.addr %s427, 6272
        %s429 = scalar_lea.vmem [#allocation7], %s428
        // Predicated region
        $region69: #{mamba_spike_forward.1} parent=63 // pred_check
          %p430 = pneg %p113
        $region70: #{mamba_spike_forward.1} parent=63 // pred_check_branch
          %432 = sbr.rel (%p430) target = $region72
        $region71: #{mamba_spike_forward.1} parent=63 // pred_region
          %433 = dma.done %s426, 100352
        $region72: #{mamba_spike_forward.1} parent=63 // pred_fallthru
          _
        %s434 = sand.u32 %s29, 1
        %s435 = scalar_lea.sflag [#allocation8], %s434
        %s436 = sand.u32 %s126, 1
        %s437 = scalar_lea.vmem [#allocation9], %s436
        // Predicated region
        $region73: #{mamba_spike_forward.1} parent=63 // pred_check
          %p438 = pneg %p139
        $region74: #{mamba_spike_forward.1} parent=63 // pred_check_branch
          %440 = sbr.rel (%p438) target = $region76
        $region75: #{mamba_spike_forward.1} parent=63 // pred_region
          %441 = dma.done %s435, 16
        $region76: #{mamba_spike_forward.1} parent=63 // pred_fallthru
          _
        // Predicated region
        $region77: #{mamba_spike_forward.1} parent=63 // pred_check
          %p442 = pneg %p181
        $region78: #{mamba_spike_forward.1} parent=63 // pred_check_branch
          %444 = sbr.rel (%p442) target = $region80
        $region79: #{mamba_spike_forward.1} parent=63 // pred_region
          %445 = dma.done [#allocation11], 16
        $region80: #{mamba_spike_forward.1} parent=63 // pred_fallthru
          _
        // Predicated region
        $region81: #{mamba_spike_forward.1} parent=63 // pred_check
          %p446 = pneg %p202
        $region82: #{mamba_spike_forward.1} parent=63 // pred_check_branch
          %448 = sbr.rel (%p446) target = $region84
        $region83: #{mamba_spike_forward.1} parent=63 // pred_region
          %449 = dma.done [#allocation11], 512
        $region84: #{mamba_spike_forward.1} parent=63 // pred_fallthru
          _
        // Predicated region
        $region85: #{mamba_spike_forward.1} parent=63 // pred_check
          %p450 = pneg %p223
        $region86: #{mamba_spike_forward.1} parent=63 // pred_check_branch
          %452 = sbr.rel (%p450) target = $region88
        $region87: #{mamba_spike_forward.1} parent=63 // pred_region
          %453 = dma.done [#allocation14], 16
        $region88: #{mamba_spike_forward.1} parent=63 // pred_fallthru
          _
        // Predicated region
        $region89: #{mamba_spike_forward.1} parent=63 // pred_check
          %p454 = pneg %p265
        $region90: #{mamba_spike_forward.1} parent=63 // pred_check_branch
          %456 = sbr.rel (%p454) target = $region92
        $region91: #{mamba_spike_forward.1} parent=63 // pred_region
          %457 = dma.done [#allocation14], 16
        $region92: #{mamba_spike_forward.1} parent=63 // pred_fallthru
          _
        %p458 = pneg %p45
        %p459 = pneg %p42
        %p460 = pneg %p66
        %p461 = pneg %p63
        %p462 = pneg %p87
        %p463 = pneg %p84
        %s464 = sand.u32 %s29, 1
        %s465 = scalar_lea.sflag [#allocation8], %s464
        %s466 = sand.u32 %s100, 1
        %s467 = smul.addr %s466, 6272
        %s468 = scalar_lea.vmem [#allocation7], %s467
        %p469 = pneg %p113
        %p470 = pneg %p110
        %s471 = sand.u32 %s29, 1
        %s472 = scalar_lea.sflag [#allocation8], %s471
        %s473 = sand.u32 %s126, 1
        %s474 = scalar_lea.vmem [#allocation9], %s473
        %p475 = pneg %p139
        %p476 = pneg %p136
        %p477 = pneg %p160
        %p478 = pneg %p157
        %p479 = pneg %p181
        %p480 = pneg %p178
        %p481 = pneg %p202
        %p482 = pneg %p199
        %p483 = pneg %p223
        %p484 = pneg %p220
        %p485 = pneg %p244
        %p486 = pneg %p241
        %p487 = pneg %p265
        %p488 = pneg %p262
        %p489 = pneg %p286
        %p490 = pneg %p283
        %p492 = scmp.eq.s32.totalorder %s29, 0
        // Predicated region
        $region93: #{mamba_spike_forward.1} parent=63 // pred_check
          %p493 = pneg %p492
        $region94: #{mamba_spike_forward.1} parent=63 // pred_check_branch
          %495 = sbr.rel (%p493) target = $region96
        $region95: #{mamba_spike_forward.1} parent=63 // pred_region
          %v496 = vld [vmem:[#allocation4] sm:$0xff]
          %v497 = vld [vmem:[#allocation4 + $0x8] sm:$0xff]
          %v498 = vld [vmem:[%s0] sm:$0xff]
          %v499 = vld [vmem:[%s0 + $0x8] sm:$0xff]
          %v500 = vld [vmem:[%s0 + $0x10] sm:$0xff]
          %v501 = vld [vmem:[%s0 + $0x18] sm:$0xff]
          %v502 = vld [vmem:[%s0 + $0x20] sm:$0xff]
          %v503 = vld [vmem:[%s0 + $0x28] sm:$0xff]
          %v504 = vld [vmem:[%s0 + $0x30] sm:$0xff]
          %v505 = vld [vmem:[%s0 + $0x38] sm:$0x1]
          %v506 = vld [vmem:[%s0 + $0x40] sm:$0x1]
          %v507 = vld [vmem:[%s0 + $0x48] sm:$0x1]
          %v508 = vld [vmem:[%s0 + $0x50] sm:$0x1]
          %v509 = vld [vmem:[%s0 + $0x58] sm:$0x1]
          %v510 = vld [vmem:[%s0 + $0x60] sm:$0x1]
          %v511 = vld [vmem:[%s0 + $0x68] sm:$0x1]
          %v512 = vld [vmem:[%s2] sm:$0xff]
          %v513 = vld [vmem:[%s2 + $0x8] sm:$0xff]
          %515 = vset.pattern.permute.xlu0 0
          %516 = vperm.xlu0 %515, %v512
          %v517 = vpop.permute.xlu0 %516
          %520 = vset.pattern.permute.xlu0 0
          %521 = vperm.xlu0 %520, %v513
          %v522 = vpop.permute.xlu0 %521
          %vm524 = vcmask 72704
          %v526 = vsel %vm524, %v496, 0
          %v529 = vsel %vm524, %v497, 0
          %vm531 = vcmask 1040384
          %v533 = vsel %vm531, %v505, 0
          %v536 = vsel %vm531, %v506, 0
          %v539 = vsel %vm531, %v507, 0
          %v542 = vsel %vm531, %v508, 0
          %v545 = vsel %vm531, %v509, 0
          %v548 = vsel %vm531, %v510, 0
          %v551 = vsel %vm531, %v511, 0
          %553 = vmatprep.subr.mxu0 %v499
          %554 = vmatpush1.msra.mxu0 %v498
          %555 = vmatprep.subr.mxu0 %v536
          %556 = vmatpush1.msra.mxu0 %v533
          %557 = vmatprep.subr.mxu0 0.0
          %558 = vmatpush1.msra.mxu0 0.0
          %559 = vmatprep.subr.mxu0 0.0
          %560 = vmatpush1.msra.mxu0 0.0
          %561 = vmatprep.subr.mxu0 0.0
          %562 = vmatpush1.msra.mxu0 0.0
          %563 = vmatprep.subr.mxu0 0.0
          %564 = vmatpush1.msra.mxu0 0.0
          %565 = vmatprep.subr.mxu0 0.0
          %566 = vmatpush1.msra.mxu0 0.0
          %567 = vmatprep.subr.mxu0 0.0
          %568 = vmatpush1.msra.mxu0 0.0
          %569 = vmatprep.subr.mxu0 0.0
          %570 = vmatpush1.msra.mxu0 0.0
          %571 = vmatprep.subr.mxu0 0.0
          %572 = vmatpush1.msra.mxu0 0.0
          %573 = vmatprep.subr.mxu0 0.0
          %574 = vmatpush1.msra.mxu0 0.0
          %575 = vmatprep.subr.mxu0 0.0
          %576 = vmatpush1.msra.mxu0 0.0
          %577 = vmatprep.subr.mxu0 0.0
          %578 = vmatpush1.msra.mxu0 0.0
          %579 = vmatprep.subr.mxu0 0.0
          %580 = vmatpush1.msra.mxu0 0.0
          %581 = vmatprep.subr.mxu0 0.0
          %582 = vmatpush1.msra.mxu0 0.0
          %583 = vmatprep.subr.mxu0 0.0
          %584 = vmatpush1.msra.mxu0 0.0
          %585 = vmatprep.subr.mxu0 0.0
          %586 = vmatpush1.msra.mxu0 0.0
          %587 = vmatprep.subr.mxu0 0.0
          %588 = vmatpush1.msra.mxu0 0.0
          %589 = vmatprep.subr.mxu0 0.0
          %590 = vmatpush1.msra.mxu0 0.0
          %591 = vmatprep.subr.mxu0 0.0
          %592 = vmatpush1.msra.mxu0 0.0
          %593 = vmatprep.subr.mxu0 0.0
          %594 = vmatpush1.msra.mxu0 0.0
          %595 = vmatprep.subr.mxu0 0.0
          %596 = vmatpush1.msra.mxu0 0.0
          %597 = vmatprep.subr.mxu0 0.0
          %598 = vmatpush1.msra.mxu0 0.0
          %599 = vmatprep.subr.mxu0 0.0
          %600 = vmatpush1.msra.mxu0 0.0
          %601 = vmatprep.subr.mxu0 0.0
          %602 = vmatpush1.msra.mxu0 0.0
          %603 = vmatprep.subr.mxu0 0.0
          %604 = vmatpush1.msra.mxu0 0.0
          %605 = vmatprep.subr.mxu0 0.0
          %606 = vmatpush1.msra.mxu0 0.0
          %607 = vmatprep.subr.mxu0 0.0
          %608 = vmatpush1.msra.mxu0 0.0
          %609 = vmatprep.subr.mxu0 0.0
          %610 = vmatpush1.msra.mxu0 0.0
          %611 = vmatprep.subr.mxu0 0.0
          %612 = vmatpush1.msra.mxu0 0.0
          %613 = vmatprep.subr.mxu0 0.0
          %614 = vmatpush1.msra.mxu0 0.0
          %615 = vmatprep.subr.mxu0 0.0
          %616 = vmatpush1.msra.mxu0 0.0
          %617 = vmatprep.mubr.f32.mxu0 0.0
          %618 = vmatmul.mubr.f32.gmra.mrb[0].mxu0 %v526
          %v619 = vpop.f32.mrb[0].mxu0
          %v620 = vadd.f32 %v517, %v619
          %v621 = vpop.f32.mrb[0].mxu0
          %v622 = vadd.f32 %v517, %v621
          %623 = vmatprep.mubr.f32.mxu0 0.0
          %624 = vmatmul.mubr.f32.gmra.mrb[0].mxu0 %v529
          %v625 = vpop.f32.mrb[0].mxu0
          %v626 = vadd.f32 %v522, %v625
          %v627 = vpop.f32.mrb[0].mxu0
          %v628 = vadd.f32 %v522, %v627
          %629 = vdwg.mxu0
          %630 = vmatprep.subr.mxu0 %v501
          %631 = vmatpush1.msra.mxu0 %v500
          %632 = vmatprep.subr.mxu0 %v542
          %633 = vmatpush1.msra.mxu0 %v539
          %634 = vmatprep.subr.mxu0 0.0
          %635 = vmatpush1.msra.mxu0 0.0
          %636 = vmatprep.subr.mxu0 0.0
          %637 = vmatpush1.msra.mxu0 0.0
          %638 = vmatprep.subr.mxu0 0.0
          %639 = vmatpush1.msra.mxu0 0.0
          %640 = vmatprep.subr.mxu0 0.0
          %641 = vmatpush1.msra.mxu0 0.0
          %642 = vmatprep.subr.mxu0 0.0
          %643 = vmatpush1.msra.mxu0 0.0
          %644 = vmatprep.subr.mxu0 0.0
          %645 = vmatpush1.msra.mxu0 0.0
          %646 = vmatprep.subr.mxu0 0.0
          %647 = vmatpush1.msra.mxu0 0.0
          %648 = vmatprep.subr.mxu0 0.0
          %649 = vmatpush1.msra.mxu0 0.0
          %650 = vmatprep.subr.mxu0 0.0
          %651 = vmatpush1.msra.mxu0 0.0
          %652 = vmatprep.subr.mxu0 0.0
          %653 = vmatpush1.msra.mxu0 0.0
          %654 = vmatprep.subr.mxu0 0.0
          %655 = vmatpush1.msra.mxu0 0.0
          %656 = vmatprep.subr.mxu0 0.0
          %657 = vmatpush1.msra.mxu0 0.0
          %658 = vmatprep.subr.mxu0 0.0
          %659 = vmatpush1.msra.mxu0 0.0
          %660 = vmatprep.subr.mxu0 0.0
          %661 = vmatpush1.msra.mxu0 0.0
          %662 = vmatprep.subr.mxu0 0.0
          %663 = vmatpush1.msra.mxu0 0.0
          %664 = vmatprep.subr.mxu0 0.0
          %665 = vmatpush1.msra.mxu0 0.0
          %666 = vmatprep.subr.mxu0 0.0
          %667 = vmatpush1.msra.mxu0 0.0
          %668 = vmatprep.subr.mxu0 0.0
          %669 = vmatpush1.msra.mxu0 0.0
          %670 = vmatprep.subr.mxu0 0.0
          %671 = vmatpush1.msra.mxu0 0.0
          %672 = vmatprep.subr.mxu0 0.0
          %673 = vmatpush1.msra.mxu0 0.0
          %674 = vmatprep.subr.mxu0 0.0
          %675 = vmatpush1.msra.mxu0 0.0
          %676 = vmatprep.subr.mxu0 0.0
          %677 = vmatpush1.msra.mxu0 0.0
          %678 = vmatprep.subr.mxu0 0.0
          %679 = vmatpush1.msra.mxu0 0.0
          %680 = vmatprep.subr.mxu0 0.0
          %681 = vmatpush1.msra.mxu0 0.0
          %682 = vmatprep.subr.mxu0 0.0
          %683 = vmatpush1.msra.mxu0 0.0
          %684 = vmatprep.subr.mxu0 0.0
          %685 = vmatpush1.msra.mxu0 0.0
          %686 = vmatprep.subr.mxu0 0.0
          %687 = vmatpush1.msra.mxu0 0.0
          %688 = vmatprep.subr.mxu0 0.0
          %689 = vmatpush1.msra.mxu0 0.0
          %690 = vmatprep.subr.mxu0 0.0
          %691 = vmatpush1.msra.mxu0 0.0
          %692 = vmatprep.subr.mxu0 0.0
          %693 = vmatpush1.msra.mxu0 0.0
          %694 = vmatprep.mubr.f32.mxu0 0.0
          %695 = vmatmul.mubr.f32.gmra.mrb[0].mxu0 %v526
          %v696 = vpop.f32.mrb[0].mxu0
          %v697 = vadd.f32 %v517, %v696
          %v698 = vpop.f32.mrb[0].mxu0
          %v699 = vadd.f32 %v517, %v698
          %700 = vmatprep.mubr.f32.mxu0 0.0
          %701 = vmatmul.mubr.f32.gmra.mrb[0].mxu0 %v529
          %v702 = vpop.f32.mrb[0].mxu0
          %v703 = vadd.f32 %v522, %v702
          %v704 = vpop.f32.mrb[0].mxu0
          %v705 = vadd.f32 %v522, %v704
          %706 = vdwg.mxu0
          %707 = vmatprep.subr.mxu0 %v503
          %708 = vmatpush1.msra.mxu0 %v502
          %709 = vmatprep.subr.mxu0 %v548
          %710 = vmatpush1.msra.mxu0 %v545
          %711 = vmatprep.subr.mxu0 0.0
          %712 = vmatpush1.msra.mxu0 0.0
          %713 = vmatprep.subr.mxu0 0.0
          %714 = vmatpush1.msra.mxu0 0.0
          %715 = vmatprep.subr.mxu0 0.0
          %716 = vmatpush1.msra.mxu0 0.0
          %717 = vmatprep.subr.mxu0 0.0
          %718 = vmatpush1.msra.mxu0 0.0
          %719 = vmatprep.subr.mxu0 0.0
          %720 = vmatpush1.msra.mxu0 0.0
          %721 = vmatprep.subr.mxu0 0.0
          %722 = vmatpush1.msra.mxu0 0.0
          %723 = vmatprep.subr.mxu0 0.0
          %724 = vmatpush1.msra.mxu0 0.0
          %725 = vmatprep.subr.mxu0 0.0
          %726 = vmatpush1.msra.mxu0 0.0
          %727 = vmatprep.subr.mxu0 0.0
          %728 = vmatpush1.msra.mxu0 0.0
          %729 = vmatprep.subr.mxu0 0.0
          %730 = vmatpush1.msra.mxu0 0.0
          %731 = vmatprep.subr.mxu0 0.0
          %732 = vmatpush1.msra.mxu0 0.0
          %733 = vmatprep.subr.mxu0 0.0
          %734 = vmatpush1.msra.mxu0 0.0
          %735 = vmatprep.subr.mxu0 0.0
          %736 = vmatpush1.msra.mxu0 0.0
          %737 = vmatprep.subr.mxu0 0.0
          %738 = vmatpush1.msra.mxu0 0.0
          %739 = vmatprep.subr.mxu0 0.0
          %740 = vmatpush1.msra.mxu0 0.0
          %741 = vmatprep.subr.mxu0 0.0
          %742 = vmatpush1.msra.mxu0 0.0
          %743 = vmatprep.subr.mxu0 0.0
          %744 = vmatpush1.msra.mxu0 0.0
          %745 = vmatprep.subr.mxu0 0.0
          %746 = vmatpush1.msra.mxu0 0.0
          %747 = vmatprep.subr.mxu0 0.0
          %748 = vmatpush1.msra.mxu0 0.0
          %749 = vmatprep.subr.mxu0 0.0
          %750 = vmatpush1.msra.mxu0 0.0
          %751 = vmatprep.subr.mxu0 0.0
          %752 = vmatpush1.msra.mxu0 0.0
          %753 = vmatprep.subr.mxu0 0.0
          %754 = vmatpush1.msra.mxu0 0.0
          %755 = vmatprep.subr.mxu0 0.0
          %756 = vmatpush1.msra.mxu0 0.0
          %757 = vmatprep.subr.mxu0 0.0
          %758 = vmatpush1.msra.mxu0 0.0
          %759 = vmatprep.subr.mxu0 0.0
          %760 = vmatpush1.msra.mxu0 0.0
          %761 = vmatprep.subr.mxu0 0.0
          %762 = vmatpush1.msra.mxu0 0.0
          %763 = vmatprep.subr.mxu0 0.0
          %764 = vmatpush1.msra.mxu0 0.0
          %765 = vmatprep.subr.mxu0 0.0
          %766 = vmatpush1.msra.mxu0 0.0
          %767 = vmatprep.subr.mxu0 0.0
          %768 = vmatpush1.msra.mxu0 0.0
          %769 = vmatprep.subr.mxu0 0.0
          %770 = vmatpush1.msra.mxu0 0.0
          %771 = vmatprep.mubr.f32.mxu0 0.0
          %772 = vmatmul.mubr.f32.gmra.mrb[0].mxu0 %v526
          %v773 = vpop.f32.mrb[0].mxu0
          %v774 = vadd.f32 %v517, %v773
          %v775 = vpop.f32.mrb[0].mxu0
          %v776 = vadd.f32 %v517, %v775
          %777 = vmatprep.mubr.f32.mxu0 0.0
          %778 = vmatmul.mubr.f32.gmra.mrb[0].mxu0 %v529
          %v779 = vpop.f32.mrb[0].mxu0
          %v780 = vadd.f32 %v522, %v779
          %v781 = vpop.f32.mrb[0].mxu0
          %v782 = vadd.f32 %v522, %v781
          %783 = vdwg.mxu0
          %784 = vmatprep.subr.mxu0 0.0
          %785 = vmatpush1.msra.mxu0 %v504
          %786 = vmatprep.subr.mxu0 0.0
          %787 = vmatpush1.msra.mxu0 %v551
          %788 = vmatprep.subr.mxu0 0.0
          %789 = vmatpush1.msra.mxu0 0.0
          %790 = vmatprep.subr.mxu0 0.0
          %791 = vmatpush1.msra.mxu0 0.0
          %792 = vmatprep.subr.mxu0 0.0
          %793 = vmatpush1.msra.mxu0 0.0
          %794 = vmatprep.subr.mxu0 0.0
          %795 = vmatpush1.msra.mxu0 0.0
          %796 = vmatprep.subr.mxu0 0.0
          %797 = vmatpush1.msra.mxu0 0.0
          %798 = vmatprep.subr.mxu0 0.0
          %799 = vmatpush1.msra.mxu0 0.0
          %800 = vmatprep.subr.mxu0 0.0
          %801 = vmatpush1.msra.mxu0 0.0
          %802 = vmatprep.subr.mxu0 0.0
          %803 = vmatpush1.msra.mxu0 0.0
          %804 = vmatprep.subr.mxu0 0.0
          %805 = vmatpush1.msra.mxu0 0.0
          %806 = vmatprep.subr.mxu0 0.0
          %807 = vmatpush1.msra.mxu0 0.0
          %808 = vmatprep.subr.mxu0 0.0
          %809 = vmatpush1.msra.mxu0 0.0
          %810 = vmatprep.subr.mxu0 0.0
          %811 = vmatpush1.msra.mxu0 0.0
          %812 = vmatprep.subr.mxu0 0.0
          %813 = vmatpush1.msra.mxu0 0.0
          %814 = vmatprep.subr.mxu0 0.0
          %815 = vmatpush1.msra.mxu0 0.0
          %816 = vmatprep.subr.mxu0 0.0
          %817 = vmatpush1.msra.mxu0 0.0
          %818 = vmatprep.subr.mxu0 0.0
          %819 = vmatpush1.msra.mxu0 0.0
          %820 = vmatprep.subr.mxu0 0.0
          %821 = vmatpush1.msra.mxu0 0.0
          %822 = vmatprep.subr.mxu0 0.0
          %823 = vmatpush1.msra.mxu0 0.0
          %824 = vmatprep.subr.mxu0 0.0
          %825 = vmatpush1.msra.mxu0 0.0
          %826 = vmatprep.subr.mxu0 0.0
          %827 = vmatpush1.msra.mxu0 0.0
          %828 = vmatprep.subr.mxu0 0.0
          %829 = vmatpush1.msra.mxu0 0.0
          %830 = vmatprep.subr.mxu0 0.0
          %831 = vmatpush1.msra.mxu0 0.0
          %832 = vmatprep.subr.mxu0 0.0
          %833 = vmatpush1.msra.mxu0 0.0
          %834 = vmatprep.subr.mxu0 0.0
          %835 = vmatpush1.msra.mxu0 0.0
          %836 = vmatprep.subr.mxu0 0.0
          %837 = vmatpush1.msra.mxu0 0.0
          %838 = vmatprep.subr.mxu0 0.0
          %839 = vmatpush1.msra.mxu0 0.0
          %840 = vmatprep.subr.mxu0 0.0
          %841 = vmatpush1.msra.mxu0 0.0
          %842 = vmatprep.subr.mxu0 0.0
          %843 = vmatpush1.msra.mxu0 0.0
          %844 = vmatprep.subr.mxu0 0.0
          %845 = vmatpush1.msra.mxu0 0.0
          %846 = vmatprep.subr.mxu0 0.0
          %847 = vmatpush1.msra.mxu0 0.0
          %848 = vmatprep.mubr.f32.mxu0 0.0
          %849 = vmatmul.mubr.f32.gmra.mrb[0].mxu0 %v526
          %v850 = vpop.f32.mrb[0].mxu0
          %v851 = vadd.f32 %v517, %v850
          %v852 = vpop.f32.mrb[0].mxu0
          %853 = vmatprep.mubr.f32.mxu0 0.0
          %854 = vmatmul.mubr.f32.gmra.mrb[0].mxu0 %v529
          %v855 = vpop.f32.mrb[0].mxu0
          %v856 = vadd.f32 %v522, %v855
          %v857 = vpop.f32.mrb[0].mxu0
          %858 = vdwg.mxu0
          %vm859 = vcmp.gt.f32.partialorder %v620, 1.0
          %vm860 = vcmp.gt.f32.partialorder %v622, 1.0
          %vm861 = vcmp.gt.f32.partialorder %v697, 1.0
          %vm862 = vcmp.gt.f32.partialorder %v699, 1.0
          %vm863 = vcmp.gt.f32.partialorder %v774, 1.0
          %vm864 = vcmp.gt.f32.partialorder %v776, 1.0
          %vm865 = vcmp.gt.f32.partialorder %v851, 1.0
          %vm866 = vcmp.gt.f32.partialorder %v626, 1.0
          %vm867 = vcmp.gt.f32.partialorder %v628, 1.0
          %vm868 = vcmp.gt.f32.partialorder %v703, 1.0
          %vm869 = vcmp.gt.f32.partialorder %v705, 1.0
          %vm870 = vcmp.gt.f32.partialorder %v780, 1.0
          %vm871 = vcmp.gt.f32.partialorder %v782, 1.0
          %vm872 = vcmp.gt.f32.partialorder %v856, 1.0
          %v873 = vsel %vm859, 1, 0
          %v874 = vsel %vm860, 1, 0
          %v875 = vsel %vm861, 1, 0
          %v876 = vsel %vm862, 1, 0
          %v877 = vsel %vm863, 1, 0
          %v878 = vsel %vm864, 1, 0
          %v879 = vsel %vm865, 1, 0
          %v880 = vsel %vm866, 1, 0
          %v881 = vsel %vm867, 1, 0
          %v882 = vsel %vm868, 1, 0
          %v883 = vsel %vm869, 1, 0
          %v884 = vsel %vm870, 1, 0
          %v885 = vsel %vm871, 1, 0
          %v886 = vsel %vm872, 1, 0
          %v887 = vcvt.s32.f32 %v873
          %v888 = vcvt.s32.f32 %v874
          %v889 = vcvt.s32.f32 %v875
          %v890 = vcvt.s32.f32 %v876
          %v891 = vcvt.s32.f32 %v877
          %v892 = vcvt.s32.f32 %v878
          %v893 = vcvt.s32.f32 %v879
          %v894 = vcvt.s32.f32 %v880
          %v895 = vcvt.s32.f32 %v881
          %v896 = vcvt.s32.f32 %v882
          %v897 = vcvt.s32.f32 %v883
          %v898 = vcvt.s32.f32 %v884
          %v899 = vcvt.s32.f32 %v885
          %v900 = vcvt.s32.f32 %v886
          %v901 = vpack.c.bf16 %v894, %v887
          %v902 = vpack.c.bf16 %v895, %v888
          %v903 = vpack.c.bf16 %v896, %v889
          %v904 = vpack.c.bf16 %v897, %v890
          %v905 = vpack.c.bf16 %v898, %v891
          %v906 = vpack.c.bf16 %v899, %v892
          %v907 = vpack.c.bf16 %v900, %v893
          %908 = vst [vmem:[#allocation2] sm:$0xff] %v901
          %909 = vst [vmem:[#allocation2 + $0x8] sm:$0xff] %v902
          %910 = vst [vmem:[#allocation2 + $0x10] sm:$0xff] %v903
          %911 = vst [vmem:[#allocation2 + $0x18] sm:$0xff] %v904
          %912 = vst [vmem:[#allocation2 + $0x20] sm:$0xff] %v905
          %913 = vst [vmem:[#allocation2 + $0x28] sm:$0xff] %v906
          %vm914 = vcmask 130048
          %915 = vst.msk [vmem:[#allocation2 + $0x30] sm:$0xff] %vm914, %v907
          %v916 = vld [vmem:[#allocation4] sm:$0xff]
          %v917 = vld [vmem:[#allocation4 + $0x8] sm:$0xff]
          %s918 = scalar_lea.vmem %s0, 112
          %v919 = vld [vmem:[%s918] sm:$0xff]
          %v920 = vld [vmem:[%s918 + $0x8] sm:$0xff]
          %v921 = vld [vmem:[%s918 + $0x10] sm:$0xff]
          %v922 = vld [vmem:[%s918 + $0x18] sm:$0xff]
          %v923 = vld [vmem:[%s918 + $0x20] sm:$0xff]
          %v924 = vld [vmem:[%s918 + $0x28] sm:$0xff]
          %v925 = vld [vmem:[%s918 + $0x30] sm:$0xff]
          %v926 = vld [vmem:[%s918 + $0x38] sm:$0x1]
          %v927 = vld [vmem:[%s918 + $0x40] sm:$0x1]
          %v928 = vld [vmem:[%s918 + $0x48] sm:$0x1]
          %v929 = vld [vmem:[%s918 + $0x50] sm:$0x1]
          %v930 = vld [vmem:[%s918 + $0x58] sm:$0x1]
          %v931 = vld [vmem:[%s918 + $0x60] sm:$0x1]
          %v932 = vld [vmem:[%s918 + $0x68] sm:$0x1]
          %v933 = vld [vmem:[%s2] sm:$0xff]
          %v934 = vld [vmem:[%s2 + $0x8] sm:$0xff]
          %936 = vset.pattern.permute.xlu0 0
          %937 = vperm.xlu0 %936, %v933
          %v938 = vpop.permute.xlu0 %937
          %941 = vset.pattern.permute.xlu0 0
          %942 = vperm.xlu0 %941, %v934
          %v943 = vpop.permute.xlu0 %942
          %v946 = vsel %vm524, %v916, 0
          %v949 = vsel %vm524, %v917, 0
          %v952 = vsel %vm531, %v926, 0
          %v955 = vsel %vm531, %v927, 0
          %v958 = vsel %vm531, %v928, 0
          %v961 = vsel %vm531, %v929, 0
          %v964 = vsel %vm531, %v930, 0
          %v967 = vsel %vm531, %v931, 0
          %v970 = vsel %vm531, %v932, 0
          %972 = vmatprep.subr.mxu0 %v920
          %973 = vmatpush1.msra.mxu0 %v919
          %974 = vmatprep.subr.mxu0 %v955
          %975 = vmatpush1.msra.mxu0 %v952
          %976 = vmatprep.subr.mxu0 0.0
          %977 = vmatpush1.msra.mxu0 0.0
          %978 = vmatprep.subr.mxu0 0.0
          %979 = vmatpush1.msra.mxu0 0.0
          %980 = vmatprep.subr.mxu0 0.0
          %981 = vmatpush1.msra.mxu0 0.0
          %982 = vmatprep.subr.mxu0 0.0
          %983 = vmatpush1.msra.mxu0 0.0
          %984 = vmatprep.subr.mxu0 0.0
          %985 = vmatpush1.msra.mxu0 0.0
          %986 = vmatprep.subr.mxu0 0.0
          %987 = vmatpush1.msra.mxu0 0.0
          %988 = vmatprep.subr.mxu0 0.0
          %989 = vmatpush1.msra.mxu0 0.0
          %990 = vmatprep.subr.mxu0 0.0
          %991 = vmatpush1.msra.mxu0 0.0
          %992 = vmatprep.subr.mxu0 0.0
          %993 = vmatpush1.msra.mxu0 0.0
          %994 = vmatprep.subr.mxu0 0.0
          %995 = vmatpush1.msra.mxu0 0.0
          %996 = vmatprep.subr.mxu0 0.0
          %997 = vmatpush1.msra.mxu0 0.0
          %998 = vmatprep.subr.mxu0 0.0
          %999 = vmatpush1.msra.mxu0 0.0
          %1000 = vmatprep.subr.mxu0 0.0
          %1001 = vmatpush1.msra.mxu0 0.0
          %1002 = vmatprep.subr.mxu0 0.0
          %1003 = vmatpush1.msra.mxu0 0.0
          %1004 = vmatprep.subr.mxu0 0.0
          %1005 = vmatpush1.msra.mxu0 0.0
          %1006 = vmatprep.subr.mxu0 0.0
          %1007 = vmatpush1.msra.mxu0 0.0
          %1008 = vmatprep.subr.mxu0 0.0
          %1009 = vmatpush1.msra.mxu0 0.0
          %1010 = vmatprep.subr.mxu0 0.0
          %1011 = vmatpush1.msra.mxu0 0.0
          %1012 = vmatprep.subr.mxu0 0.0
          %1013 = vmatpush1.msra.mxu0 0.0
          %1014 = vmatprep.subr.mxu0 0.0
          %1015 = vmatpush1.msra.mxu0 0.0
          %1016 = vmatprep.subr.mxu0 0.0
          %1017 = vmatpush1.msra.mxu0 0.0
          %1018 = vmatprep.subr.mxu0 0.0
          %1019 = vmatpush1.msra.mxu0 0.0
          %1020 = vmatprep.subr.mxu0 0.0
          %1021 = vmatpush1.msra.mxu0 0.0
          %1022 = vmatprep.subr.mxu0 0.0
          %1023 = vmatpush1.msra.mxu0 0.0
          %1024 = vmatprep.subr.mxu0 0.0
          %1025 = vmatpush1.msra.mxu0 0.0
          %1026 = vmatprep.subr.mxu0 0.0
          %1027 = vmatpush1.msra.mxu0 0.0
          %1028 = vmatprep.subr.mxu0 0.0
          %1029 = vmatpush1.msra.mxu0 0.0
          %1030 = vmatprep.subr.mxu0 0.0
          %1031 = vmatpush1.msra.mxu0 0.0
          %1032 = vmatprep.subr.mxu0 0.0
          %1033 = vmatpush1.msra.mxu0 0.0
          %1034 = vmatprep.subr.mxu0 0.0
          %1035 = vmatpush1.msra.mxu0 0.0
          %1036 = vmatprep.mubr.f32.mxu0 0.0
          %1037 = vmatmul.mubr.f32.gmra.mrb[0].mxu0 %v946
          %v1038 = vpop.f32.mrb[0].mxu0
          %v1039 = vadd.f32 %v938, %v1038
          %v1040 = vpop.f32.mrb[0].mxu0
          %v1041 = vadd.f32 %v938, %v1040
          %1042 = vmatprep.mubr.f32.mxu0 0.0
          %1043 = vmatmul.mubr.f32.gmra.mrb[0].mxu0 %v949
          %v1044 = vpop.f32.mrb[0].mxu0
          %v1045 = vadd.f32 %v943, %v1044
          %v1046 = vpop.f32.mrb[0].mxu0
          %v1047 = vadd.f32 %v943, %v1046
          %1048 = vdwg.mxu0
          %1049 = vmatprep.subr.mxu0 %v922
          %1050 = vmatpush1.msra.mxu0 %v921
          %1051 = vmatprep.subr.mxu0 %v961
          %1052 = vmatpush1.msra.mxu0 %v958
          %1053 = vmatprep.subr.mxu0 0.0
          %1054 = vmatpush1.msra.mxu0 0.0
          %1055 = vmatprep.subr.mxu0 0.0
          %1056 = vmatpush1.msra.mxu0 0.0
          %1057 = vmatprep.subr.mxu0 0.0
          %1058 = vmatpush1.msra.mxu0 0.0
          %1059 = vmatprep.subr.mxu0 0.0
          %1060 = vmatpush1.msra.mxu0 0.0
          %1061 = vmatprep.subr.mxu0 0.0
          %1062 = vmatpush1.msra.mxu0 0.0
          %1063 = vmatprep.subr.mxu0 0.0
          %1064 = vmatpush1.msra.mxu0 0.0
          %1065 = vmatprep.subr.mxu0 0.0
          %1066 = vmatpush1.msra.mxu0 0.0
          %1067 = vmatprep.subr.mxu0 0.0
          %1068 = vmatpush1.msra.mxu0 0.0
          %1069 = vmatprep.subr.mxu0 0.0
          %1070 = vmatpush1.msra.mxu0 0.0
          %1071 = vmatprep.subr.mxu0 0.0
          %1072 = vmatpush1.msra.mxu0 0.0
          %1073 = vmatprep.subr.mxu0 0.0
          %1074 = vmatpush1.msra.mxu0 0.0
          %1075 = vmatprep.subr.mxu0 0.0
          %1076 = vmatpush1.msra.mxu0 0.0
          %1077 = vmatprep.subr.mxu0 0.0
          %1078 = vmatpush1.msra.mxu0 0.0
          %1079 = vmatprep.subr.mxu0 0.0
          %1080 = vmatpush1.msra.mxu0 0.0
          %1081 = vmatprep.subr.mxu0 0.0
          %1082 = vmatpush1.msra.mxu0 0.0
          %1083 = vmatprep.subr.mxu0 0.0
          %1084 = vmatpush1.msra.mxu0 0.0
          %1085 = vmatprep.subr.mxu0 0.0
          %1086 = vmatpush1.msra.mxu0 0.0
          %1087 = vmatprep.subr.mxu0 0.0
          %1088 = vmatpush1.msra.mxu0 0.0
          %1089 = vmatprep.subr.mxu0 0.0
          %1090 = vmatpush1.msra.mxu0 0.0
          %1091 = vmatprep.subr.mxu0 0.0
          %1092 = vmatpush1.msra.mxu0 0.0
          %1093 = vmatprep.subr.mxu0 0.0
          %1094 = vmatpush1.msra.mxu0 0.0
          %1095 = vmatprep.subr.mxu0 0.0
          %1096 = vmatpush1.msra.mxu0 0.0
          %1097 = vmatprep.subr.mxu0 0.0
          %1098 = vmatpush1.msra.mxu0 0.0
          %1099 = vmatprep.subr.mxu0 0.0
          %1100 = vmatpush1.msra.mxu0 0.0
          %1101 = vmatprep.subr.mxu0 0.0
          %1102 = vmatpush1.msra.mxu0 0.0
          %1103 = vmatprep.subr.mxu0 0.0
          %1104 = vmatpush1.msra.mxu0 0.0
          %1105 = vmatprep.subr.mxu0 0.0
          %1106 = vmatpush1.msra.mxu0 0.0
          %1107 = vmatprep.subr.mxu0 0.0
          %1108 = vmatpush1.msra.mxu0 0.0
          %1109 = vmatprep.subr.mxu0 0.0
          %1110 = vmatpush1.msra.mxu0 0.0
          %1111 = vmatprep.subr.mxu0 0.0
          %1112 = vmatpush1.msra.mxu0 0.0
          %1113 = vmatprep.mubr.f32.mxu0 0.0
          %1114 = vmatmul.mubr.f32.gmra.mrb[0].mxu0 %v946
          %v1115 = vpop.f32.mrb[0].mxu0
          %v1116 = vadd.f32 %v938, %v1115
          %v1117 = vpop.f32.mrb[0].mxu0
          %v1118 = vadd.f32 %v938, %v1117
          %1119 = vmatprep.mubr.f32.mxu0 0.0
          %1120 = vmatmul.mubr.f32.gmra.mrb[0].mxu0 %v949
          %v1121 = vpop.f32.mrb[0].mxu0
          %v1122 = vadd.f32 %v943, %v1121
          %v1123 = vpop.f32.mrb[0].mxu0
          %v1124 = vadd.f32 %v943, %v1123
          %1125 = vdwg.mxu0
          %1126 = vmatprep.subr.mxu0 %v924
          %1127 = vmatpush1.msra.mxu0 %v923
          %1128 = vmatprep.subr.mxu0 %v967
          %1129 = vmatpush1.msra.mxu0 %v964
          %1130 = vmatprep.subr.mxu0 0.0
          %1131 = vmatpush1.msra.mxu0 0.0
          %1132 = vmatprep.subr.mxu0 0.0
          %1133 = vmatpush1.msra.mxu0 0.0
          %1134 = vmatprep.subr.mxu0 0.0
          %1135 = vmatpush1.msra.mxu0 0.0
          %1136 = vmatprep.subr.mxu0 0.0
          %1137 = vmatpush1.msra.mxu0 0.0
          %1138 = vmatprep.subr.mxu0 0.0
          %1139 = vmatpush1.msra.mxu0 0.0
          %1140 = vmatprep.subr.mxu0 0.0
          %1141 = vmatpush1.msra.mxu0 0.0
          %1142 = vmatprep.subr.mxu0 0.0
          %1143 = vmatpush1.msra.mxu0 0.0
          %1144 = vmatprep.subr.mxu0 0.0
          %1145 = vmatpush1.msra.mxu0 0.0
          %1146 = vmatprep.subr.mxu0 0.0
          %1147 = vmatpush1.msra.mxu0 0.0
          %1148 = vmatprep.subr.mxu0 0.0
          %1149 = vmatpush1.msra.mxu0 0.0
          %1150 = vmatprep.subr.mxu0 0.0
          %1151 = vmatpush1.msra.mxu0 0.0
          %1152 = vmatprep.subr.mxu0 0.0
          %1153 = vmatpush1.msra.mxu0 0.0
          %1154 = vmatprep.subr.mxu0 0.0
          %1155 = vmatpush1.msra.mxu0 0.0
          %1156 = vmatprep.subr.mxu0 0.0
          %1157 = vmatpush1.msra.mxu0 0.0
          %1158 = vmatprep.subr.mxu0 0.0
          %1159 = vmatpush1.msra.mxu0 0.0
          %1160 = vmatprep.subr.mxu0 0.0
          %1161 = vmatpush1.msra.mxu0 0.0
          %1162 = vmatprep.subr.mxu0 0.0
          %1163 = vmatpush1.msra.mxu0 0.0
          %1164 = vmatprep.subr.mxu0 0.0
          %1165 = vmatpush1.msra.mxu0 0.0
          %1166 = vmatprep.subr.mxu0 0.0
          %1167 = vmatpush1.msra.mxu0 0.0
          %1168 = vmatprep.subr.mxu0 0.0
          %1169 = vmatpush1.msra.mxu0 0.0
          %1170 = vmatprep.subr.mxu0 0.0
          %1171 = vmatpush1.msra.mxu0 0.0
          %1172 = vmatprep.subr.mxu0 0.0
          %1173 = vmatpush1.msra.mxu0 0.0
          %1174 = vmatprep.subr.mxu0 0.0
          %1175 = vmatpush1.msra.mxu0 0.0
          %1176 = vmatprep.subr.mxu0 0.0
          %1177 = vmatpush1.msra.mxu0 0.0
          %1178 = vmatprep.subr.mxu0 0.0
          %1179 = vmatpush1.msra.mxu0 0.0
          %1180 = vmatprep.subr.mxu0 0.0
          %1181 = vmatpush1.msra.mxu0 0.0
          %1182 = vmatprep.subr.mxu0 0.0
          %1183 = vmatpush1.msra.mxu0 0.0
          %1184 = vmatprep.subr.mxu0 0.0
          %1185 = vmatpush1.msra.mxu0 0.0
          %1186 = vmatprep.subr.mxu0 0.0
          %1187 = vmatpush1.msra.mxu0 0.0
          %1188 = vmatprep.subr.mxu0 0.0
          %1189 = vmatpush1.msra.mxu0 0.0
          %1190 = vmatprep.mubr.f32.mxu0 0.0
          %1191 = vmatmul.mubr.f32.gmra.mrb[0].mxu0 %v946
          %v1192 = vpop.f32.mrb[0].mxu0
          %v1193 = vadd.f32 %v938, %v1192
          %v1194 = vpop.f32.mrb[0].mxu0
          %v1195 = vadd.f32 %v938, %v1194
          %1196 = vmatprep.mubr.f32.mxu0 0.0
          %1197 = vmatmul.mubr.f32.gmra.mrb[0].mxu0 %v949
          %v1198 = vpop.f32.mrb[0].mxu0
          %v1199 = vadd.f32 %v943, %v1198
          %v1200 = vpop.f32.mrb[0].mxu0
          %v1201 = vadd.f32 %v943, %v1200
          %1202 = vdwg.mxu0
          %1203 = vmatprep.subr.mxu0 0.0
          %1204 = vmatpush1.msra.mxu0 %v925
          %1205 = vmatprep.subr.mxu0 0.0
          %1206 = vmatpush1.msra.mxu0 %v970
          %1207 = vmatprep.subr.mxu0 0.0
          %1208 = vmatpush1.msra.mxu0 0.0
          %1209 = vmatprep.subr.mxu0 0.0
          %1210 = vmatpush1.msra.mxu0 0.0
          %1211 = vmatprep.subr.mxu0 0.0
          %1212 = vmatpush1.msra.mxu0 0.0
          %1213 = vmatprep.subr.mxu0 0.0
          %1214 = vmatpush1.msra.mxu0 0.0
          %1215 = vmatprep.subr.mxu0 0.0
          %1216 = vmatpush1.msra.mxu0 0.0
          %1217 = vmatprep.subr.mxu0 0.0
          %1218 = vmatpush1.msra.mxu0 0.0
          %1219 = vmatprep.subr.mxu0 0.0
          %1220 = vmatpush1.msra.mxu0 0.0
          %1221 = vmatprep.subr.mxu0 0.0
          %1222 = vmatpush1.msra.mxu0 0.0
          %1223 = vmatprep.subr.mxu0 0.0
          %1224 = vmatpush1.msra.mxu0 0.0
          %1225 = vmatprep.subr.mxu0 0.0
          %1226 = vmatpush1.msra.mxu0 0.0
          %1227 = vmatprep.subr.mxu0 0.0
          %1228 = vmatpush1.msra.mxu0 0.0
          %1229 = vmatprep.subr.mxu0 0.0
          %1230 = vmatpush1.msra.mxu0 0.0
          %1231 = vmatprep.subr.mxu0 0.0
          %1232 = vmatpush1.msra.mxu0 0.0
          %1233 = vmatprep.subr.mxu0 0.0
          %1234 = vmatpush1.msra.mxu0 0.0
          %1235 = vmatprep.subr.mxu0 0.0
          %1236 = vmatpush1.msra.mxu0 0.0
          %1237 = vmatprep.subr.mxu0 0.0
          %1238 = vmatpush1.msra.mxu0 0.0
          %1239 = vmatprep.subr.mxu0 0.0
          %1240 = vmatpush1.msra.mxu0 0.0
          %1241 = vmatprep.subr.mxu0 0.0
          %1242 = vmatpush1.msra.mxu0 0.0
          %1243 = vmatprep.subr.mxu0 0.0
          %1244 = vmatpush1.msra.mxu0 0.0
          %1245 = vmatprep.subr.mxu0 0.0
          %1246 = vmatpush1.msra.mxu0 0.0
          %1247 = vmatprep.subr.mxu0 0.0
          %1248 = vmatpush1.msra.mxu0 0.0
          %1249 = vmatprep.subr.mxu0 0.0
          %1250 = vmatpush1.msra.mxu0 0.0
          %1251 = vmatprep.subr.mxu0 0.0
          %1252 = vmatpush1.msra.mxu0 0.0
          %1253 = vmatprep.subr.mxu0 0.0
          %1254 = vmatpush1.msra.mxu0 0.0
          %1255 = vmatprep.subr.mxu0 0.0
          %1256 = vmatpush1.msra.mxu0 0.0
          %1257 = vmatprep.subr.mxu0 0.0
          %1258 = vmatpush1.msra.mxu0 0.0
          %1259 = vmatprep.subr.mxu0 0.0
          %1260 = vmatpush1.msra.mxu0 0.0
          %1261 = vmatprep.subr.mxu0 0.0
          %1262 = vmatpush1.msra.mxu0 0.0
          %1263 = vmatprep.subr.mxu0 0.0
          %1264 = vmatpush1.msra.mxu0 0.0
          %1265 = vmatprep.subr.mxu0 0.0
          %1266 = vmatpush1.msra.mxu0 0.0
          %1267 = vmatprep.mubr.f32.mxu0 0.0
          %1268 = vmatmul.mubr.f32.gmra.mrb[0].mxu0 %v946
          %v1269 = vpop.f32.mrb[0].mxu0
          %v1270 = vadd.f32 %v938, %v1269
          %v1271 = vpop.f32.mrb[0].mxu0
          %1272 = vmatprep.mubr.f32.mxu0 0.0
          %1273 = vmatmul.mubr.f32.gmra.mrb[0].mxu0 %v949
          %v1274 = vpop.f32.mrb[0].mxu0
          %v1275 = vadd.f32 %v943, %v1274
          %v1276 = vpop.f32.mrb[0].mxu0
          %1277 = vdwg.mxu0
          %vm1278 = vcmp.gt.f32.partialorder %v1039, 1.0
          %vm1279 = vcmp.gt.f32.partialorder %v1041, 1.0
          %vm1280 = vcmp.gt.f32.partialorder %v1116, 1.0
          %vm1281 = vcmp.gt.f32.partialorder %v1118, 1.0
          %vm1282 = vcmp.gt.f32.partialorder %v1193, 1.0
          %vm1283 = vcmp.gt.f32.partialorder %v1195, 1.0
          %vm1284 = vcmp.gt.f32.partialorder %v1270, 1.0
          %vm1285 = vcmp.gt.f32.partialorder %v1045, 1.0
          %vm1286 = vcmp.gt.f32.partialorder %v1047, 1.0
          %vm1287 = vcmp.gt.f32.partialorder %v1122, 1.0
          %vm1288 = vcmp.gt.f32.partialorder %v1124, 1.0
          %vm1289 = vcmp.gt.f32.partialorder %v1199, 1.0
          %vm1290 = vcmp.gt.f32.partialorder %v1201, 1.0
          %vm1291 = vcmp.gt.f32.partialorder %v1275, 1.0
          %v1292 = vsel %vm1278, 1, 0
          %v1293 = vsel %vm1279, 1, 0
          %v1294 = vsel %vm1280, 1, 0
          %v1295 = vsel %vm1281, 1, 0
          %v1296 = vsel %vm1282, 1, 0
          %v1297 = vsel %vm1283, 1, 0
          %v1298 = vsel %vm1284, 1, 0
          %v1299 = vsel %vm1285, 1, 0
          %v1300 = vsel %vm1286, 1, 0
          %v1301 = vsel %vm1287, 1, 0
          %v1302 = vsel %vm1288, 1, 0
          %v1303 = vsel %vm1289, 1, 0
          %v1304 = vsel %vm1290, 1, 0
          %v1305 = vsel %vm1291, 1, 0
          %v1306 = vcvt.s32.f32 %v1292
          %v1307 = vcvt.s32.f32 %v1293
          %v1308 = vcvt.s32.f32 %v1294
          %v1309 = vcvt.s32.f32 %v1295
          %v1310 = vcvt.s32.f32 %v1296
          %v1311 = vcvt.s32.f32 %v1297
          %v1312 = vcvt.s32.f32 %v1298
          %v1313 = vcvt.s32.f32 %v1299
          %v1314 = vcvt.s32.f32 %v1300
          %v1315 = vcvt.s32.f32 %v1301
          %v1316 = vcvt.s32.f32 %v1302
          %v1317 = vcvt.s32.f32 %v1303
          %v1318 = vcvt.s32.f32 %v1304
          %v1319 = vcvt.s32.f32 %v1305
          %v1320 = vpack.c.bf16 %v1313, %v1306
          %v1321 = vpack.c.bf16 %v1314, %v1307
          %v1322 = vpack.c.bf16 %v1315, %v1308
          %v1323 = vpack.c.bf16 %v1316, %v1309
          %v1324 = vpack.c.bf16 %v1317, %v1310
          %v1325 = vpack.c.bf16 %v1318, %v1311
          %v1326 = vpack.c.bf16 %v1319, %v1312
          %s1327 = scalar_lea.vmem [#allocation2], 56
          %1328 = vst [vmem:[%s1327] sm:$0xff] %v1320
          %1329 = vst [vmem:[%s1327 + $0x8] sm:$0xff] %v1321
          %1330 = vst [vmem:[%s1327 + $0x10] sm:$0xff] %v1322
          %1331 = vst [vmem:[%s1327 + $0x18] sm:$0xff] %v1323
          %1332 = vst [vmem:[%s1327 + $0x20] sm:$0xff] %v1324
          %1333 = vst [vmem:[%s1327 + $0x28] sm:$0xff] %v1325
          %1334 = vst.msk [vmem:[%s1327 + $0x30] sm:$0xff] %vm914, %v1326
        $region96: #{mamba_spike_forward.1} parent=63 // pred_fallthru
          _
        %v1335 = vld [vmem:[#allocation2] sm:$0xff]
        %v1336 = vld [vmem:[#allocation2 + $0x8] sm:$0xff]
        %v1337 = vld [vmem:[#allocation2 + $0x10] sm:$0xff]
        %v1338 = vld [vmem:[#allocation2 + $0x18] sm:$0xff]
        %v1339 = vld [vmem:[#allocation2 + $0x20] sm:$0xff]
        %v1340 = vld [vmem:[#allocation2 + $0x28] sm:$0xff]
        %v1341 = vld [vmem:[#allocation2 + $0x30] sm:$0xff]
        %v1342 = vld [vmem:[#allocation2 + $0x38] sm:$0xff]
        %v1343 = vld [vmem:[#allocation2 + $0x40] sm:$0xff]
        %v1344 = vld [vmem:[#allocation2 + $0x48] sm:$0xff]
        %v1345 = vld [vmem:[#allocation2 + $0x50] sm:$0xff]
        %v1346 = vld [vmem:[#allocation2 + $0x58] sm:$0xff]
        %v1347 = vld [vmem:[#allocation2 + $0x60] sm:$0xff]
        %v1348 = vld [vmem:[#allocation2 + $0x68] sm:$0xff]
        %v1349 = vld [vmem:[%s429] sm:$0xf]
        %v1350 = vld [vmem:[%s429 + $0x4] sm:$0xf]
        %v1351 = vld [vmem:[%s429 + $0x8] sm:$0xf]
        %v1352 = vld [vmem:[%s429 + $0xc] sm:$0xf]
        %v1353 = vld [vmem:[%s429 + $0x10] sm:$0xf]
        %v1354 = vld [vmem:[%s429 + $0x14] sm:$0xf]
        %v1355 = vld [vmem:[%s429 + $0x18] sm:$0xf]
        %v1356 = vld [vmem:[%s429 + $0x1c] sm:$0xf]
        %v1357 = vld [vmem:[%s429 + $0x20] sm:$0xf]
        %v1358 = vld [vmem:[%s429 + $0x24] sm:$0xf]
        %v1359 = vld [vmem:[%s429 + $0x28] sm:$0xf]
        %v1360 = vld [vmem:[%s429 + $0x2c] sm:$0xf]
        %v1361 = vld [vmem:[%s429 + $0x30] sm:$0xf]
        %v1362 = vld [vmem:[%s429 + $0x34] sm:$0xf]
        %v1363 = vld [vmem:[%s429 + $0x38] sm:$0xf]
        %v1364 = vld [vmem:[%s429 + $0x3c] sm:$0xf]
        %v1365 = vld [vmem:[%s429 + $0x40] sm:$0xf]
        %v1366 = vld [vmem:[%s429 + $0x44] sm:$0xf]
        %v1367 = vld [vmem:[%s429 + $0x48] sm:$0xf]
        %v1368 = vld [vmem:[%s429 + $0x4c] sm:$0xf]
        %v1369 = vld [vmem:[%s429 + $0x50] sm:$0xf]
        %v1370 = vld [vmem:[%s429 + $0x54] sm:$0xf]
        %v1371 = vld [vmem:[%s429 + $0x58] sm:$0xf]
        %v1372 = vld [vmem:[%s429 + $0x5c] sm:$0xf]
        %v1373 = vld [vmem:[%s429 + $0x60] sm:$0xf]
        %v1374 = vld [vmem:[%s429 + $0x64] sm:$0xf]
        %v1375 = vld [vmem:[%s429 + $0x68] sm:$0xf]
        %v1376 = vld [vmem:[%s429 + $0x6c] sm:$0xf]
        %v1377 = vld [vmem:[%s429 + $0x70] sm:$0xf]
        %v1378 = vld [vmem:[%s429 + $0x74] sm:$0xf]
        %v1379 = vld [vmem:[%s429 + $0x78] sm:$0xf]
        %v1380 = vld [vmem:[%s429 + $0x7c] sm:$0xf]
        %v1381 = vld [vmem:[%s429 + $0x80] sm:$0xf]
        %v1382 = vld [vmem:[%s429 + $0x84] sm:$0xf]
        %v1383 = vld [vmem:[%s429 + $0x88] sm:$0xf]
        %v1384 = vld [vmem:[%s429 + $0x8c] sm:$0xf]
        %v1385 = vld [vmem:[%s429 + $0x90] sm:$0xf]
        %v1386 = vld [vmem:[%s429 + $0x94] sm:$0xf]
        %v1387 = vld [vmem:[%s429 + $0x98] sm:$0xf]
        %v1388 = vld [vmem:[%s429 + $0x9c] sm:$0xf]
        %v1389 = vld [vmem:[%s429 + $0xa0] sm:$0xf]
        %v1390 = vld [vmem:[%s429 + $0xa4] sm:$0xf]
        %v1391 = vld [vmem:[%s429 + $0xa8] sm:$0xf]
        %v1392 = vld [vmem:[%s429 + $0xac] sm:$0xf]
        %v1393 = vld [vmem:[%s429 + $0xb0] sm:$0xf]
        %v1394 = vld [vmem:[%s429 + $0xb4] sm:$0xf]
        %v1395 = vld [vmem:[%s429 + $0xb8] sm:$0xf]
        %v1396 = vld [vmem:[%s429 + $0xbc] sm:$0xf]
        %v1397 = vld [vmem:[%s429 + $0xc0] sm:$0xf]
        %v1398 = vld [vmem:[%s429 + $0xc4] sm:$0xf]
        %v1399 = vld [vmem:[%s429 + $0xc8] sm:$0xf]
        %v1400 = vld [vmem:[%s429 + $0xcc] sm:$0xf]
        %v1401 = vld [vmem:[%s429 + $0xd0] sm:$0xf]
        %v1402 = vld [vmem:[%s429 + $0xd4] sm:$0xf]
        %v1403 = vld [vmem:[%s429 + $0xd8] sm:$0xf]
        %v1404 = vld [vmem:[%s429 + $0xdc] sm:$0xf]
        %v1405 = vld [vmem:[%s429 + $0xe0] sm:$0xf]
        %v1406 = vld [vmem:[%s429 + $0xe4] sm:$0xf]
        %v1407 = vld [vmem:[%s429 + $0xe8] sm:$0xf]
        %v1408 = vld [vmem:[%s429 + $0xec] sm:$0xf]
        %v1409 = vld [vmem:[%s429 + $0xf0] sm:$0xf]
        %v1410 = vld [vmem:[%s429 + $0xf4] sm:$0xf]
        %v1411 = vld [vmem:[%s429 + $0xf8] sm:$0xf]
        %v1412 = vld [vmem:[%s429 + $0xfc] sm:$0xf]
        %v1413 = vld [vmem:[%s429 + $0x100] sm:$0xf]
        %v1414 = vld [vmem:[%s429 + $0x104] sm:$0xf]
        %v1415 = vld [vmem:[%s429 + $0x108] sm:$0xf]
        %v1416 = vld [vmem:[%s429 + $0x10c] sm:$0xf]
        %v1417 = vld [vmem:[%s429 + $0x110] sm:$0xf]
        %v1418 = vld [vmem:[%s429 + $0x114] sm:$0xf]
        %v1419 = vld [vmem:[%s429 + $0x118] sm:$0xf]
        %v1420 = vld [vmem:[%s429 + $0x11c] sm:$0xf]
        %v1421 = vld [vmem:[%s429 + $0x120] sm:$0xf]
        %v1422 = vld [vmem:[%s429 + $0x124] sm:$0xf]
        %v1423 = vld [vmem:[%s429 + $0x128] sm:$0xf]
        %v1424 = vld [vmem:[%s429 + $0x12c] sm:$0xf]
        %v1425 = vld [vmem:[%s429 + $0x130] sm:$0xf]
        %v1426 = vld [vmem:[%s429 + $0x134] sm:$0xf]
        %v1427 = vld [vmem:[%s429 + $0x138] sm:$0xf]
        %v1428 = vld [vmem:[%s429 + $0x13c] sm:$0xf]
        %v1429 = vld [vmem:[%s429 + $0x140] sm:$0xf]
        %v1430 = vld [vmem:[%s429 + $0x144] sm:$0xf]
        %v1431 = vld [vmem:[%s429 + $0x148] sm:$0xf]
        %v1432 = vld [vmem:[%s429 + $0x14c] sm:$0xf]
        %v1433 = vld [vmem:[%s429 + $0x150] sm:$0xf]
        %v1434 = vld [vmem:[%s429 + $0x154] sm:$0xf]
        %v1435 = vld [vmem:[%s429 + $0x158] sm:$0xf]
        %v1436 = vld [vmem:[%s429 + $0x15c] sm:$0xf]
        %v1437 = vld [vmem:[%s429 + $0x160] sm:$0xf]
        %v1438 = vld [vmem:[%s429 + $0x164] sm:$0xf]
        %v1439 = vld [vmem:[%s429 + $0x168] sm:$0xf]
        %v1440 = vld [vmem:[%s429 + $0x16c] sm:$0xf]
        %v1441 = vld [vmem:[%s429 + $0x170] sm:$0xf]
        %v1442 = vld [vmem:[%s429 + $0x174] sm:$0xf]
        %v1443 = vld [vmem:[%s429 + $0x178] sm:$0xf]
        %v1444 = vld [vmem:[%s429 + $0x17c] sm:$0xf]
        %v1445 = vld [vmem:[%s429 + $0x180] sm:$0xf]
        %v1446 = vld [vmem:[%s429 + $0x184] sm:$0xf]
        %s1447 = scalar_lea.vmem %s429, 392 [#allocation7]
        %v1448 = vld [vmem:[%s1447] sm:$0xf]
        %v1449 = vld [vmem:[%s1447 + $0x4] sm:$0xf]
        %v1450 = vld [vmem:[%s1447 + $0x8] sm:$0xf]
        %v1451 = vld [vmem:[%s1447 + $0xc] sm:$0xf]
        %v1452 = vld [vmem:[%s1447 + $0x10] sm:$0xf]
        %v1453 = vld [vmem:[%s1447 + $0x14] sm:$0xf]
        %v1454 = vld [vmem:[%s1447 + $0x18] sm:$0xf]
        %v1455 = vld [vmem:[%s1447 + $0x1c] sm:$0xf]
        %v1456 = vld [vmem:[%s1447 + $0x20] sm:$0xf]
        %v1457 = vld [vmem:[%s1447 + $0x24] sm:$0xf]
        %v1458 = vld [vmem:[%s1447 + $0x28] sm:$0xf]
        %v1459 = vld [vmem:[%s1447 + $0x2c] sm:$0xf]
        %v1460 = vld [vmem:[%s1447 + $0x30] sm:$0xf]
        %v1461 = vld [vmem:[%s1447 + $0x34] sm:$0xf]
        %v1462 = vld [vmem:[%s1447 + $0x38] sm:$0xf]
        %v1463 = vld [vmem:[%s1447 + $0x3c] sm:$0xf]
        %v1464 = vld [vmem:[%s1447 + $0x40] sm:$0xf]
        %v1465 = vld [vmem:[%s1447 + $0x44] sm:$0xf]
        %v1466 = vld [vmem:[%s1447 + $0x48] sm:$0xf]
        %v1467 = vld [vmem:[%s1447 + $0x4c] sm:$0xf]
        %v1468 = vld [vmem:[%s1447 + $0x50] sm:$0xf]
        %v1469 = vld [vmem:[%s1447 + $0x54] sm:$0xf]
        %v1470 = vld [vmem:[%s1447 + $0x58] sm:$0xf]
        %v1471 = vld [vmem:[%s1447 + $0x5c] sm:$0xf]
        %v1472 = vld [vmem:[%s1447 + $0x60] sm:$0xf]
        %v1473 = vld [vmem:[%s1447 + $0x64] sm:$0xf]
        %v1474 = vld [vmem:[%s1447 + $0x68] sm:$0xf]
        %v1475 = vld [vmem:[%s1447 + $0x6c] sm:$0xf]
        %v1476 = vld [vmem:[%s1447 + $0x70] sm:$0xf]
        %v1477 = vld [vmem:[%s1447 + $0x74] sm:$0xf]
        %v1478 = vld [vmem:[%s1447 + $0x78] sm:$0xf]
        %v1479 = vld [vmem:[%s1447 + $0x7c] sm:$0xf]
        %v1480 = vld [vmem:[%s1447 + $0x80] sm:$0xf]
        %v1481 = vld [vmem:[%s1447 + $0x84] sm:$0xf]
        %v1482 = vld [vmem:[%s1447 + $0x88] sm:$0xf]
        %v1483 = vld [vmem:[%s1447 + $0x8c] sm:$0xf]
        %v1484 = vld [vmem:[%s1447 + $0x90] sm:$0xf]
        %v1485 = vld [vmem:[%s1447 + $0x94] sm:$0xf]
        %v1486 = vld [vmem:[%s1447 + $0x98] sm:$0xf]
        %v1487 = vld [vmem:[%s1447 + $0x9c] sm:$0xf]
        %v1488 = vld [vmem:[%s1447 + $0xa0] sm:$0xf]
        %v1489 = vld [vmem:[%s1447 + $0xa4] sm:$0xf]
        %v1490 = vld [vmem:[%s1447 + $0xa8] sm:$0xf]
        %v1491 = vld [vmem:[%s1447 + $0xac] sm:$0xf]
        %v1492 = vld [vmem:[%s1447 + $0xb0] sm:$0xf]
        %v1493 = vld [vmem:[%s1447 + $0xb4] sm:$0xf]
        %v1494 = vld [vmem:[%s1447 + $0xb8] sm:$0xf]
        %v1495 = vld [vmem:[%s1447 + $0xbc] sm:$0xf]
        %v1496 = vld [vmem:[%s1447 + $0xc0] sm:$0xf]
        %v1497 = vld [vmem:[%s1447 + $0xc4] sm:$0xf]
        %v1498 = vld [vmem:[%s1447 + $0xc8] sm:$0xf]
        %v1499 = vld [vmem:[%s1447 + $0xcc] sm:$0xf]
        %v1500 = vld [vmem:[%s1447 + $0xd0] sm:$0xf]
        %v1501 = vld [vmem:[%s1447 + $0xd4] sm:$0xf]
        %v1502 = vld [vmem:[%s1447 + $0xd8] sm:$0xf]
        %v1503 = vld [vmem:[%s1447 + $0xdc] sm:$0xf]
        %v1504 = vld [vmem:[%s1447 + $0xe0] sm:$0xf]
        %v1505 = vld [vmem:[%s1447 + $0xe4] sm:$0xf]
        %v1506 = vld [vmem:[%s1447 + $0xe8] sm:$0xf]
        %v1507 = vld [vmem:[%s1447 + $0xec] sm:$0xf]
        %v1508 = vld [vmem:[%s1447 + $0xf0] sm:$0xf]
        %v1509 = vld [vmem:[%s1447 + $0xf4] sm:$0xf]
        %v1510 = vld [vmem:[%s1447 + $0xf8] sm:$0xf]
        %v1511 = vld [vmem:[%s1447 + $0xfc] sm:$0xf]
        %v1512 = vld [vmem:[%s1447 + $0x100] sm:$0xf]
        %v1513 = vld [vmem:[%s1447 + $0x104] sm:$0xf]
        %v1514 = vld [vmem:[%s1447 + $0x108] sm:$0xf]
        %v1515 = vld [vmem:[%s1447 + $0x10c] sm:$0xf]
        %v1516 = vld [vmem:[%s1447 + $0x110] sm:$0xf]
        %v1517 = vld [vmem:[%s1447 + $0x114] sm:$0xf]
        %v1518 = vld [vmem:[%s1447 + $0x118] sm:$0xf]
        %v1519 = vld [vmem:[%s1447 + $0x11c] sm:$0xf]
        %v1520 = vld [vmem:[%s1447 + $0x120] sm:$0xf]
        %v1521 = vld [vmem:[%s1447 + $0x124] sm:$0xf]
        %v1522 = vld [vmem:[%s1447 + $0x128] sm:$0xf]
        %v1523 = vld [vmem:[%s1447 + $0x12c] sm:$0xf]
        %v1524 = vld [vmem:[%s1447 + $0x130] sm:$0xf]
        %v1525 = vld [vmem:[%s1447 + $0x134] sm:$0xf]
        %v1526 = vld [vmem:[%s1447 + $0x138] sm:$0xf]
        %v1527 = vld [vmem:[%s1447 + $0x13c] sm:$0xf]
        %v1528 = vld [vmem:[%s1447 + $0x140] sm:$0xf]
        %v1529 = vld [vmem:[%s1447 + $0x144] sm:$0xf]
        %v1530 = vld [vmem:[%s1447 + $0x148] sm:$0xf]
        %v1531 = vld [vmem:[%s1447 + $0x14c] sm:$0xf]
        %v1532 = vld [vmem:[%s1447 + $0x150] sm:$0xf]
        %v1533 = vld [vmem:[%s1447 + $0x154] sm:$0xf]
        %v1534 = vld [vmem:[%s1447 + $0x158] sm:$0xf]
        %v1535 = vld [vmem:[%s1447 + $0x15c] sm:$0xf]
        %v1536 = vld [vmem:[%s1447 + $0x160] sm:$0xf]
        %v1537 = vld [vmem:[%s1447 + $0x164] sm:$0xf]
        %v1538 = vld [vmem:[%s1447 + $0x168] sm:$0xf]
        %v1539 = vld [vmem:[%s1447 + $0x16c] sm:$0xf]
        %v1540 = vld [vmem:[%s1447 + $0x170] sm:$0xf]
        %v1541 = vld [vmem:[%s1447 + $0x174] sm:$0xf]
        %v1542 = vld [vmem:[%s1447 + $0x178] sm:$0xf]
        %v1543 = vld [vmem:[%s1447 + $0x17c] sm:$0xf]
        %v1544 = vld [vmem:[%s1447 + $0x180] sm:$0xf]
        %v1545 = vld [vmem:[%s1447 + $0x184] sm:$0xf]
        %v1560 = vunpack.c.l.b16 %v1335
        %v1561 = vunpack.c.l.b16 %v1336
        %v1562 = vunpack.c.l.b16 %v1337
        %v1563 = vunpack.c.l.b16 %v1338
        %v1564 = vunpack.c.l.b16 %v1339
        %v1565 = vunpack.c.l.b16 %v1340
        %v1566 = vunpack.c.l.b16 %v1341
        %v1567 = vunpack.c.l.b16 %v1342
        %v1568 = vunpack.c.l.b16 %v1343
        %v1569 = vunpack.c.l.b16 %v1344
        %v1570 = vunpack.c.l.b16 %v1345
        %v1571 = vunpack.c.l.b16 %v1346
        %v1572 = vunpack.c.l.b16 %v1347
        %v1573 = vunpack.c.l.b16 %v1348
        %v1574 = vrot.slane %v1560, 1
        %vm1575 = vcmask 1041409
        %v1576 = vsel %vm1575, %v1567, %v1574
        %v1577 = vrot.slane %v1561, 1
        %v1578 = vsel %vm1575, %v1568, %v1577
        %v1579 = vrot.slane %v1562, 1
        %v1580 = vsel %vm1575, %v1569, %v1579
        %v1581 = vrot.slane %v1563, 1
        %v1582 = vsel %vm1575, %v1570, %v1581
        %v1583 = vrot.slane %v1564, 1
        %v1584 = vsel %vm1575, %v1571, %v1583
        %v1585 = vrot.slane %v1565, 1
        %v1586 = vsel %vm1575, %v1572, %v1585
        %v1587 = vrot.slane %v1566, 1
        %v1588 = vsel %vm1575, %v1573, %v1587
        %v1589 = vpack.c.b16 %v1576, %v1576
        %v1590 = vpack.c.b16 %v1578, %v1578
        %v1591 = vpack.c.b16 %v1580, %v1580
        %v1592 = vpack.c.b16 %v1582, %v1582
        %v1593 = vpack.c.b16 %v1584, %v1584
        %v1594 = vpack.c.b16 %v1586, %v1586
        %v1595 = vpack.c.b16 %v1588, %v1588
        %v1700 = vunpack.c.l.b16 %v1448
        %v1701 = vunpack.c.l.b16 %v1449
        %v1702 = vunpack.c.l.b16 %v1450
        %v1703 = vunpack.c.l.b16 %v1451
        %v1704 = vunpack.c.l.b16 %v1452
        %v1705 = vunpack.c.l.b16 %v1453
        %v1706 = vunpack.c.l.b16 %v1454
        %v1707 = vunpack.c.l.b16 %v1455
        %v1708 = vunpack.c.l.b16 %v1456
        %v1709 = vunpack.c.l.b16 %v1457
        %v1710 = vunpack.c.l.b16 %v1458
        %v1711 = vunpack.c.l.b16 %v1459
        %v1712 = vunpack.c.l.b16 %v1460
        %v1713 = vunpack.c.l.b16 %v1461
        %v1714 = vunpack.c.l.b16 %v1462
        %v1715 = vunpack.c.l.b16 %v1463
        %v1716 = vunpack.c.l.b16 %v1464
        %v1717 = vunpack.c.l.b16 %v1465
        %v1718 = vunpack.c.l.b16 %v1466
        %v1719 = vunpack.c.l.b16 %v1467
        %v1720 = vunpack.c.l.b16 %v1468
        %v1721 = vunpack.c.l.b16 %v1469
        %v1722 = vunpack.c.l.b16 %v1470
        %v1723 = vunpack.c.l.b16 %v1471
        %v1724 = vunpack.c.l.b16 %v1472
        %v1725 = vunpack.c.l.b16 %v1473
        %v1726 = vunpack.c.l.b16 %v1474
        %v1727 = vunpack.c.l.b16 %v1475
        %v1728 = vunpack.c.l.b16 %v1476
        %v1729 = vunpack.c.l.b16 %v1477
        %v1730 = vunpack.c.l.b16 %v1478
        %v1731 = vunpack.c.l.b16 %v1479
        %v1732 = vunpack.c.l.b16 %v1480
        %v1733 = vunpack.c.l.b16 %v1481
        %v1734 = vunpack.c.l.b16 %v1482
        %v1735 = vunpack.c.l.b16 %v1483
        %v1736 = vunpack.c.l.b16 %v1484
        %v1737 = vunpack.c.l.b16 %v1485
        %v1738 = vunpack.c.l.b16 %v1486
        %v1739 = vunpack.c.l.b16 %v1487
        %v1740 = vunpack.c.l.b16 %v1488
        %v1741 = vunpack.c.l.b16 %v1489
        %v1742 = vunpack.c.l.b16 %v1490
        %v1743 = vunpack.c.l.b16 %v1491
        %v1744 = vunpack.c.l.b16 %v1492
        %v1745 = vunpack.c.l.b16 %v1493
        %v1746 = vunpack.c.l.b16 %v1494
        %v1747 = vunpack.c.l.b16 %v1495
        %v1748 = vunpack.c.l.b16 %v1496
        %v1749 = vunpack.c.l.b16 %v1497
        %v1750 = vunpack.c.l.b16 %v1498
        %v1751 = vunpack.c.l.b16 %v1499
        %v1752 = vunpack.c.l.b16 %v1500
        %v1753 = vunpack.c.l.b16 %v1501
        %v1754 = vunpack.c.l.b16 %v1502
        %v1755 = vunpack.c.l.b16 %v1503
        %v1756 = vunpack.c.l.b16 %v1504
        %v1757 = vunpack.c.l.b16 %v1505
        %v1758 = vunpack.c.l.b16 %v1506
        %v1759 = vunpack.c.l.b16 %v1507
        %v1760 = vunpack.c.l.b16 %v1508
        %v1761 = vunpack.c.l.b16 %v1509
        %v1762 = vunpack.c.l.b16 %v1510
        %v1763 = vunpack.c.l.b16 %v1511
        %v1764 = vunpack.c.l.b16 %v1512
        %v1765 = vunpack.c.l.b16 %v1513
        %v1766 = vunpack.c.l.b16 %v1514
        %v1767 = vunpack.c.l.b16 %v1515
        %v1768 = vunpack.c.l.b16 %v1516
        %v1769 = vunpack.c.l.b16 %v1517
        %v1770 = vunpack.c.l.b16 %v1518
        %v1771 = vunpack.c.l.b16 %v1519
        %v1772 = vunpack.c.l.b16 %v1520
        %v1773 = vunpack.c.l.b16 %v1521
        %v1774 = vunpack.c.l.b16 %v1522
        %v1775 = vunpack.c.l.b16 %v1523
        %v1776 = vunpack.c.l.b16 %v1524
        %v1777 = vunpack.c.l.b16 %v1525
        %v1778 = vunpack.c.l.b16 %v1526
        %v1779 = vunpack.c.l.b16 %v1527
        %v1780 = vunpack.c.l.b16 %v1528
        %v1781 = vunpack.c.l.b16 %v1529
        %v1782 = vunpack.c.l.b16 %v1530
        %v1783 = vunpack.c.l.b16 %v1531
        %v1784 = vunpack.c.l.b16 %v1532
        %v1785 = vunpack.c.l.b16 %v1533
        %v1786 = vunpack.c.l.b16 %v1534
        %v1787 = vunpack.c.l.b16 %v1535
        %v1788 = vunpack.c.l.b16 %v1536
        %v1789 = vunpack.c.l.b16 %v1537
        %v1790 = vunpack.c.l.b16 %v1538
        %v1791 = vunpack.c.l.b16 %v1539
        %v1792 = vunpack.c.l.b16 %v1540
        %v1793 = vunpack.c.l.b16 %v1541
        %v1794 = vunpack.c.l.b16 %v1542
        %v1795 = vunpack.c.l.b16 %v1543
        %v1796 = vunpack.c.l.b16 %v1544
        %v1797 = vunpack.c.l.b16 %v1545
        %v1798 = vpack.c.b16 %v1701, %v1700
        %v1799 = vpack.c.b16 %v1703, %v1702
        %v1800 = vpack.c.b16 %v1705, %v1704
        %v1801 = vpack.c.b16 %v1707, %v1706
        %v1802 = vpack.c.b16 %v1709, %v1708
        %v1803 = vpack.c.b16 %v1711, %v1710
        %v1804 = vpack.c.b16 %v1713, %v1712
        %v1805 = vpack.c.b16 %v1715, %v1714
        %v1806 = vpack.c.b16 %v1717, %v1716
        %v1807 = vpack.c.b16 %v1719, %v1718
        %v1808 = vpack.c.b16 %v1721, %v1720
        %v1809 = vpack.c.b16 %v1723, %v1722
        %v1810 = vpack.c.b16 %v1725, %v1724
        %v1811 = vpack.c.b16 %v1727, %v1726
        %v1812 = vpack.c.b16 %v1729, %v1728
        %v1813 = vpack.c.b16 %v1731, %v1730
        %v1814 = vpack.c.b16 %v1733, %v1732
        %v1815 = vpack.c.b16 %v1735, %v1734
        %v1816 = vpack.c.b16 %v1737, %v1736
        %v1817 = vpack.c.b16 %v1739, %v1738
        %v1818 = vpack.c.b16 %v1741, %v1740
        %v1819 = vpack.c.b16 %v1743, %v1742
        %v1820 = vpack.c.b16 %v1745, %v1744
        %v1821 = vpack.c.b16 %v1747, %v1746
        %v1822 = vpack.c.b16 %v1749, %v1748
        %v1823 = vpack.c.b16 %v1751, %v1750
        %v1824 = vpack.c.b16 %v1753, %v1752
        %v1825 = vpack.c.b16 %v1755, %v1754
        %v1826 = vpack.c.b16 %v1757, %v1756
        %v1827 = vpack.c.b16 %v1759, %v1758
        %v1828 = vpack.c.b16 %v1761, %v1760
        %v1829 = vpack.c.b16 %v1763, %v1762
        %v1830 = vpack.c.b16 %v1765, %v1764
        %v1831 = vpack.c.b16 %v1767, %v1766
        %v1832 = vpack.c.b16 %v1769, %v1768
        %v1833 = vpack.c.b16 %v1771, %v1770
        %v1834 = vpack.c.b16 %v1773, %v1772
        %v1835 = vpack.c.b16 %v1775, %v1774
        %v1836 = vpack.c.b16 %v1777, %v1776
        %v1837 = vpack.c.b16 %v1779, %v1778
        %v1838 = vpack.c.b16 %v1781, %v1780
        %v1839 = vpack.c.b16 %v1783, %v1782
        %v1840 = vpack.c.b16 %v1785, %v1784
        %v1841 = vpack.c.b16 %v1787, %v1786
        %v1842 = vpack.c.b16 %v1789, %v1788
        %v1843 = vpack.c.b16 %v1791, %v1790
        %v1844 = vpack.c.b16 %v1793, %v1792
        %v1845 = vpack.c.b16 %v1795, %v1794
        %v1846 = vpack.c.b16 %v1797, %v1796
        %vm1896 = vcmask 130048
        %v1898 = vsel %vm1896, %v1595, 0
        %1900 = vmatprep.subr.bf16.mxu0 0
        %1901 = vmatpush1.bf16.msra.mxu0 %v1798
        %1902 = vmatprep.subr.bf16.mxu0 0
        %1903 = vmatpush1.bf16.msra.mxu0 %v1799
        %1904 = vmatprep.subr.bf16.mxu0 0
        %1905 = vmatpush1.bf16.msra.mxu0 %v1800
        %1906 = vmatprep.subr.bf16.mxu0 0
        %1907 = vmatpush1.bf16.msra.mxu0 %v1801
        %1908 = vmatprep.subr.bf16.mxu0 0
        %1909 = vmatpush1.bf16.msra.mxu0 %v1802
        %1910 = vmatprep.subr.bf16.mxu0 0
        %1911 = vmatpush1.bf16.msra.mxu0 %v1803
        %1912 = vmatprep.subr.bf16.mxu0 0
        %1913 = vmatpush1.bf16.msra.mxu0 %v1804
        %1914 = vmatprep.subr.bf16.mxu0 0
        %1915 = vmatpush1.bf16.msra.mxu0 %v1805
        %1916 = vmatprep.subr.bf16.mxu0 0
        %1917 = vmatpush1.bf16.msra.mxu0 %v1806
        %1918 = vmatprep.subr.bf16.mxu0 0
        %1919 = vmatpush1.bf16.msra.mxu0 %v1807
        %1920 = vmatprep.subr.bf16.mxu0 0
        %1921 = vmatpush1.bf16.msra.mxu0 %v1808
        %1922 = vmatprep.subr.bf16.mxu0 0
        %1923 = vmatpush1.bf16.msra.mxu0 %v1809
        %1924 = vmatprep.subr.bf16.mxu0 0
        %1925 = vmatpush1.bf16.msra.mxu0 %v1810
        %1926 = vmatprep.subr.bf16.mxu0 0
        %1927 = vmatpush1.bf16.msra.mxu0 %v1811
        %1928 = vmatprep.subr.bf16.mxu0 0
        %1929 = vmatpush1.bf16.msra.mxu0 %v1812
        %1930 = vmatprep.subr.bf16.mxu0 0
        %1931 = vmatpush1.bf16.msra.mxu0 %v1813
        %1932 = vmatprep.mubr.bf16.mxu0 %v1590
        %1933 = vmatmul.mubr.bf16.gmra.mrb[0].mxu0 %v1589
        %v1934 = vpop.f32.mrb[0].mxu0
        %v1935 = vadd.f32 0.0, %v1934
        %v1936 = vpop.f32.mrb[0].mxu0
        %v1937 = vpop.f32.mrb[0].mxu0
        %v1938 = vpop.f32.mrb[0].mxu0
        %1939 = vdwg.mxu0
        %1940 = vmatprep.subr.bf16.mxu0 0
        %1941 = vmatpush1.bf16.msra.mxu0 %v1814
        %1942 = vmatprep.subr.bf16.mxu0 0
        %1943 = vmatpush1.bf16.msra.mxu0 %v1815
        %1944 = vmatprep.subr.bf16.mxu0 0
        %1945 = vmatpush1.bf16.msra.mxu0 %v1816
        %1946 = vmatprep.subr.bf16.mxu0 0
        %1947 = vmatpush1.bf16.msra.mxu0 %v1817
        %1948 = vmatprep.subr.bf16.mxu0 0
        %1949 = vmatpush1.bf16.msra.mxu0 %v1818
        %1950 = vmatprep.subr.bf16.mxu0 0
        %1951 = vmatpush1.bf16.msra.mxu0 %v1819
        %1952 = vmatprep.subr.bf16.mxu0 0
        %1953 = vmatpush1.bf16.msra.mxu0 %v1820
        %1954 = vmatprep.subr.bf16.mxu0 0
        %1955 = vmatpush1.bf16.msra.mxu0 %v1821
        %1956 = vmatprep.subr.bf16.mxu0 0
        %1957 = vmatpush1.bf16.msra.mxu0 %v1822
        %1958 = vmatprep.subr.bf16.mxu0 0
        %1959 = vmatpush1.bf16.msra.mxu0 %v1823
        %1960 = vmatprep.subr.bf16.mxu0 0
        %1961 = vmatpush1.bf16.msra.mxu0 %v1824
        %1962 = vmatprep.subr.bf16.mxu0 0
        %1963 = vmatpush1.bf16.msra.mxu0 %v1825
        %1964 = vmatprep.subr.bf16.mxu0 0
        %1965 = vmatpush1.bf16.msra.mxu0 %v1826
        %1966 = vmatprep.subr.bf16.mxu0 0
        %1967 = vmatpush1.bf16.msra.mxu0 %v1827
        %1968 = vmatprep.subr.bf16.mxu0 0
        %1969 = vmatpush1.bf16.msra.mxu0 %v1828
        %1970 = vmatprep.subr.bf16.mxu0 0
        %1971 = vmatpush1.bf16.msra.mxu0 %v1829
        %1972 = vmatprep.mubr.bf16.mxu0 %v1592
        %1973 = vmatmul.mubr.bf16.gmra.mrb[0].mxu0 %v1591
        %v1974 = vpop.f32.mrb[0].mxu0
        %v1975 = vadd.f32 %v1935, %v1974
        %v1976 = vpop.f32.mrb[0].mxu0
        %v1977 = vpop.f32.mrb[0].mxu0
        %v1978 = vpop.f32.mrb[0].mxu0
        %1979 = vdwg.mxu0
        %1980 = vmatprep.subr.bf16.mxu0 0
        %1981 = vmatpush1.bf16.msra.mxu0 %v1830
        %1982 = vmatprep.subr.bf16.mxu0 0
        %1983 = vmatpush1.bf16.msra.mxu0 %v1831
        %1984 = vmatprep.subr.bf16.mxu0 0
        %1985 = vmatpush1.bf16.msra.mxu0 %v1832
        %1986 = vmatprep.subr.bf16.mxu0 0
        %1987 = vmatpush1.bf16.msra.mxu0 %v1833
        %1988 = vmatprep.subr.bf16.mxu0 0
        %1989 = vmatpush1.bf16.msra.mxu0 %v1834
        %1990 = vmatprep.subr.bf16.mxu0 0
        %1991 = vmatpush1.bf16.msra.mxu0 %v1835
        %1992 = vmatprep.subr.bf16.mxu0 0
        %1993 = vmatpush1.bf16.msra.mxu0 %v1836
        %1994 = vmatprep.subr.bf16.mxu0 0
        %1995 = vmatpush1.bf16.msra.mxu0 %v1837
        %1996 = vmatprep.subr.bf16.mxu0 0
        %1997 = vmatpush1.bf16.msra.mxu0 %v1838
        %1998 = vmatprep.subr.bf16.mxu0 0
        %1999 = vmatpush1.bf16.msra.mxu0 %v1839
        %2000 = vmatprep.subr.bf16.mxu0 0
        %2001 = vmatpush1.bf16.msra.mxu0 %v1840
        %2002 = vmatprep.subr.bf16.mxu0 0
        %2003 = vmatpush1.bf16.msra.mxu0 %v1841
        %2004 = vmatprep.subr.bf16.mxu0 0
        %2005 = vmatpush1.bf16.msra.mxu0 %v1842
        %2006 = vmatprep.subr.bf16.mxu0 0
        %2007 = vmatpush1.bf16.msra.mxu0 %v1843
        %2008 = vmatprep.subr.bf16.mxu0 0
        %2009 = vmatpush1.bf16.msra.mxu0 %v1844
        %2010 = vmatprep.subr.bf16.mxu0 0
        %2011 = vmatpush1.bf16.msra.mxu0 %v1845
        %2012 = vmatprep.mubr.bf16.mxu0 %v1594
        %2013 = vmatmul.mubr.bf16.gmra.mrb[0].mxu0 %v1593
        %v2014 = vpop.f32.mrb[0].mxu0
        %v2015 = vadd.f32 %v1975, %v2014
        %v2016 = vpop.f32.mrb[0].mxu0
        %v2017 = vpop.f32.mrb[0].mxu0
        %v2018 = vpop.f32.mrb[0].mxu0
        %2019 = vdwg.mxu0
        %2020 = vmatprep.subr.bf16.mxu0 0
        %2021 = vmatpush1.bf16.msra.mxu0 %v1846
        %2022 = vmatprep.subr.bf16.mxu0 0
        %2023 = vmatpush1.bf16.msra.mxu0 0
        %2024 = vmatprep.subr.bf16.mxu0 0
        %2025 = vmatpush1.bf16.msra.mxu0 0
        %2026 = vmatprep.subr.bf16.mxu0 0
        %2027 = vmatpush1.bf16.msra.mxu0 0
        %2028 = vmatprep.subr.bf16.mxu0 0
        %2029 = vmatpush1.bf16.msra.mxu0 0
        %2030 = vmatprep.subr.bf16.mxu0 0
        %2031 = vmatpush1.bf16.msra.mxu0 0
        %2032 = vmatprep.subr.bf16.mxu0 0
        %2033 = vmatpush1.bf16.msra.mxu0 0
        %2034 = vmatprep.subr.bf16.mxu0 0
        %2035 = vmatpush1.bf16.msra.mxu0 0
        %2036 = vmatprep.subr.bf16.mxu0 0
        %2037 = vmatpush1.bf16.msra.mxu0 0
        %2038 = vmatprep.subr.bf16.mxu0 0
        %2039 = vmatpush1.bf16.msra.mxu0 0
        %2040 = vmatprep.subr.bf16.mxu0 0
        %2041 = vmatpush1.bf16.msra.mxu0 0
        %2042 = vmatprep.subr.bf16.mxu0 0
        %2043 = vmatpush1.bf16.msra.mxu0 0
        %2044 = vmatprep.subr.bf16.mxu0 0
        %2045 = vmatpush1.bf16.msra.mxu0 0
        %2046 = vmatprep.subr.bf16.mxu0 0
        %2047 = vmatpush1.bf16.msra.mxu0 0
        %2048 = vmatprep.subr.bf16.mxu0 0
        %2049 = vmatpush1.bf16.msra.mxu0 0
        %2050 = vmatprep.subr.bf16.mxu0 0
        %2051 = vmatpush1.bf16.msra.mxu0 0
        %2052 = vmatprep.mubr.bf16.mxu0 0
        %2053 = vmatmul.mubr.bf16.gmra.mrb[0].mxu0 %v1898
        %v2054 = vpop.f32.mrb[0].mxu0
        %v2055 = vadd.f32 %v2015, %v2054
        %v2056 = vpop.f32.mrb[0].mxu0
        %v2057 = vpop.f32.mrb[0].mxu0
        %v2058 = vpop.f32.mrb[0].mxu0
        %2059 = vdwg.mxu0
        %v2060 = vrot.slane %v1567, 7
        %v2061 = vsel %vm1575, %v2060, %v1560
        %v2062 = vrot.slane %v1568, 7
        %v2063 = vsel %vm1575, %v2062, %v1561
        %v2064 = vrot.slane %v1569, 7
        %v2065 = vsel %vm1575, %v2064, %v1562
        %v2066 = vrot.slane %v1570, 7
        %v2067 = vsel %vm1575, %v2066, %v1563
        %v2068 = vrot.slane %v1571, 7
        %v2069 = vsel %vm1575, %v2068, %v1564
        %v2070 = vrot.slane %v1572, 7
        %v2071 = vsel %vm1575, %v2070, %v1565
        %v2072 = vrot.slane %v1573, 7
        %v2073 = vsel %vm1575, %v2072, %v1566
        %v2074 = vpack.c.b16 %v2061, %v2061
        %v2075 = vpack.c.b16 %v2063, %v2063
        %v2076 = vpack.c.b16 %v2065, %v2065
        %v2077 = vpack.c.b16 %v2067, %v2067
        %v2078 = vpack.c.b16 %v2069, %v2069
        %v2079 = vpack.c.b16 %v2071, %v2071
        %v2080 = vpack.c.b16 %v2073, %v2073
        %v2185 = vunpack.c.l.b16 %v1349
        %v2186 = vunpack.c.l.b16 %v1350
        %v2187 = vunpack.c.l.b16 %v1351
        %v2188 = vunpack.c.l.b16 %v1352
        %v2189 = vunpack.c.l.b16 %v1353
        %v2190 = vunpack.c.l.b16 %v1354
        %v2191 = vunpack.c.l.b16 %v1355
        %v2192 = vunpack.c.l.b16 %v1356
        %v2193 = vunpack.c.l.b16 %v1357
        %v2194 = vunpack.c.l.b16 %v1358
        %v2195 = vunpack.c.l.b16 %v1359
        %v2196 = vunpack.c.l.b16 %v1360
        %v2197 = vunpack.c.l.b16 %v1361
        %v2198 = vunpack.c.l.b16 %v1362
        %v2199 = vunpack.c.l.b16 %v1363
        %v2200 = vunpack.c.l.b16 %v1364
        %v2201 = vunpack.c.l.b16 %v1365
        %v2202 = vunpack.c.l.b16 %v1366
        %v2203 = vunpack.c.l.b16 %v1367
        %v2204 = vunpack.c.l.b16 %v1368
        %v2205 = vunpack.c.l.b16 %v1369
        %v2206 = vunpack.c.l.b16 %v1370
        %v2207 = vunpack.c.l.b16 %v1371
        %v2208 = vunpack.c.l.b16 %v1372
        %v2209 = vunpack.c.l.b16 %v1373
        %v2210 = vunpack.c.l.b16 %v1374
        %v2211 = vunpack.c.l.b16 %v1375
        %v2212 = vunpack.c.l.b16 %v1376
        %v2213 = vunpack.c.l.b16 %v1377
        %v2214 = vunpack.c.l.b16 %v1378
        %v2215 = vunpack.c.l.b16 %v1379
        %v2216 = vunpack.c.l.b16 %v1380
        %v2217 = vunpack.c.l.b16 %v1381
        %v2218 = vunpack.c.l.b16 %v1382
        %v2219 = vunpack.c.l.b16 %v1383
        %v2220 = vunpack.c.l.b16 %v1384
        %v2221 = vunpack.c.l.b16 %v1385
        %v2222 = vunpack.c.l.b16 %v1386
        %v2223 = vunpack.c.l.b16 %v1387
        %v2224 = vunpack.c.l.b16 %v1388
        %v2225 = vunpack.c.l.b16 %v1389
        %v2226 = vunpack.c.l.b16 %v1390
        %v2227 = vunpack.c.l.b16 %v1391
        %v2228 = vunpack.c.l.b16 %v1392
        %v2229 = vunpack.c.l.b16 %v1393
        %v2230 = vunpack.c.l.b16 %v1394
        %v2231 = vunpack.c.l.b16 %v1395
        %v2232 = vunpack.c.l.b16 %v1396
        %v2233 = vunpack.c.l.b16 %v1397
        %v2234 = vunpack.c.l.b16 %v1398
        %v2235 = vunpack.c.l.b16 %v1399
        %v2236 = vunpack.c.l.b16 %v1400
        %v2237 = vunpack.c.l.b16 %v1401
        %v2238 = vunpack.c.l.b16 %v1402
        %v2239 = vunpack.c.l.b16 %v1403
        %v2240 = vunpack.c.l.b16 %v1404
        %v2241 = vunpack.c.l.b16 %v1405
        %v2242 = vunpack.c.l.b16 %v1406
        %v2243 = vunpack.c.l.b16 %v1407
        %v2244 = vunpack.c.l.b16 %v1408
        %v2245 = vunpack.c.l.b16 %v1409
        %v2246 = vunpack.c.l.b16 %v1410
        %v2247 = vunpack.c.l.b16 %v1411
        %v2248 = vunpack.c.l.b16 %v1412
        %v2249 = vunpack.c.l.b16 %v1413
        %v2250 = vunpack.c.l.b16 %v1414
        %v2251 = vunpack.c.l.b16 %v1415
        %v2252 = vunpack.c.l.b16 %v1416
        %v2253 = vunpack.c.l.b16 %v1417
        %v2254 = vunpack.c.l.b16 %v1418
        %v2255 = vunpack.c.l.b16 %v1419
        %v2256 = vunpack.c.l.b16 %v1420
        %v2257 = vunpack.c.l.b16 %v1421
        %v2258 = vunpack.c.l.b16 %v1422
        %v2259 = vunpack.c.l.b16 %v1423
        %v2260 = vunpack.c.l.b16 %v1424
        %v2261 = vunpack.c.l.b16 %v1425
        %v2262 = vunpack.c.l.b16 %v1426
        %v2263 = vunpack.c.l.b16 %v1427
        %v2264 = vunpack.c.l.b16 %v1428
        %v2265 = vunpack.c.l.b16 %v1429
        %v2266 = vunpack.c.l.b16 %v1430
        %v2267 = vunpack.c.l.b16 %v1431
        %v2268 = vunpack.c.l.b16 %v1432
        %v2269 = vunpack.c.l.b16 %v1433
        %v2270 = vunpack.c.l.b16 %v1434
        %v2271 = vunpack.c.l.b16 %v1435
        %v2272 = vunpack.c.l.b16 %v1436
        %v2273 = vunpack.c.l.b16 %v1437
        %v2274 = vunpack.c.l.b16 %v1438
        %v2275 = vunpack.c.l.b16 %v1439
        %v2276 = vunpack.c.l.b16 %v1440
        %v2277 = vunpack.c.l.b16 %v1441
        %v2278 = vunpack.c.l.b16 %v1442
        %v2279 = vunpack.c.l.b16 %v1443
        %v2280 = vunpack.c.l.b16 %v1444
        %v2281 = vunpack.c.l.b16 %v1445
        %v2282 = vunpack.c.l.b16 %v1446
        %v2283 = vpack.c.b16 %v2186, %v2185
        %v2284 = vpack.c.b16 %v2188, %v2187
        %v2285 = vpack.c.b16 %v2190, %v2189
        %v2286 = vpack.c.b16 %v2192, %v2191
        %v2287 = vpack.c.b16 %v2194, %v2193
        %v2288 = vpack.c.b16 %v2196, %v2195
        %v2289 = vpack.c.b16 %v2198, %v2197
        %v2290 = vpack.c.b16 %v2200, %v2199
        %v2291 = vpack.c.b16 %v2202, %v2201
        %v2292 = vpack.c.b16 %v2204, %v2203
        %v2293 = vpack.c.b16 %v2206, %v2205
        %v2294 = vpack.c.b16 %v2208, %v2207
        %v2295 = vpack.c.b16 %v2210, %v2209
        %v2296 = vpack.c.b16 %v2212, %v2211
        %v2297 = vpack.c.b16 %v2214, %v2213
        %v2298 = vpack.c.b16 %v2216, %v2215
        %v2299 = vpack.c.b16 %v2218, %v2217
        %v2300 = vpack.c.b16 %v2220, %v2219
        %v2301 = vpack.c.b16 %v2222, %v2221
        %v2302 = vpack.c.b16 %v2224, %v2223
        %v2303 = vpack.c.b16 %v2226, %v2225
        %v2304 = vpack.c.b16 %v2228, %v2227
        %v2305 = vpack.c.b16 %v2230, %v2229
        %v2306 = vpack.c.b16 %v2232, %v2231
        %v2307 = vpack.c.b16 %v2234, %v2233
        %v2308 = vpack.c.b16 %v2236, %v2235
        %v2309 = vpack.c.b16 %v2238, %v2237
        %v2310 = vpack.c.b16 %v2240, %v2239
        %v2311 = vpack.c.b16 %v2242, %v2241
        %v2312 = vpack.c.b16 %v2244, %v2243
        %v2313 = vpack.c.b16 %v2246, %v2245
        %v2314 = vpack.c.b16 %v2248, %v2247
        %v2315 = vpack.c.b16 %v2250, %v2249
        %v2316 = vpack.c.b16 %v2252, %v2251
        %v2317 = vpack.c.b16 %v2254, %v2253
        %v2318 = vpack.c.b16 %v2256, %v2255
        %v2319 = vpack.c.b16 %v2258, %v2257
        %v2320 = vpack.c.b16 %v2260, %v2259
        %v2321 = vpack.c.b16 %v2262, %v2261
        %v2322 = vpack.c.b16 %v2264, %v2263
        %v2323 = vpack.c.b16 %v2266, %v2265
        %v2324 = vpack.c.b16 %v2268, %v2267
        %v2325 = vpack.c.b16 %v2270, %v2269
        %v2326 = vpack.c.b16 %v2272, %v2271
        %v2327 = vpack.c.b16 %v2274, %v2273
        %v2328 = vpack.c.b16 %v2276, %v2275
        %v2329 = vpack.c.b16 %v2278, %v2277
        %v2330 = vpack.c.b16 %v2280, %v2279
        %v2331 = vpack.c.b16 %v2282, %v2281
        %v2382 = vsel %vm1896, %v2080, 0
        %2384 = vmatprep.subr.bf16.mxu0 0
        %2385 = vmatpush1.bf16.msra.mxu0 %v2283
        %2386 = vmatprep.subr.bf16.mxu0 0
        %2387 = vmatpush1.bf16.msra.mxu0 %v2284
        %2388 = vmatprep.subr.bf16.mxu0 0
        %2389 = vmatpush1.bf16.msra.mxu0 %v2285
        %2390 = vmatprep.subr.bf16.mxu0 0
        %2391 = vmatpush1.bf16.msra.mxu0 %v2286
        %2392 = vmatprep.subr.bf16.mxu0 0
        %2393 = vmatpush1.bf16.msra.mxu0 %v2287
        %2394 = vmatprep.subr.bf16.mxu0 0
        %2395 = vmatpush1.bf16.msra.mxu0 %v2288
        %2396 = vmatprep.subr.bf16.mxu0 0
        %2397 = vmatpush1.bf16.msra.mxu0 %v2289
        %2398 = vmatprep.subr.bf16.mxu0 0
        %2399 = vmatpush1.bf16.msra.mxu0 %v2290
        %2400 = vmatprep.subr.bf16.mxu0 0
        %2401 = vmatpush1.bf16.msra.mxu0 %v2291
        %2402 = vmatprep.subr.bf16.mxu0 0
        %2403 = vmatpush1.bf16.msra.mxu0 %v2292
        %2404 = vmatprep.subr.bf16.mxu0 0
        %2405 = vmatpush1.bf16.msra.mxu0 %v2293
        %2406 = vmatprep.subr.bf16.mxu0 0
        %2407 = vmatpush1.bf16.msra.mxu0 %v2294
        %2408 = vmatprep.subr.bf16.mxu0 0
        %2409 = vmatpush1.bf16.msra.mxu0 %v2295
        %2410 = vmatprep.subr.bf16.mxu0 0
        %2411 = vmatpush1.bf16.msra.mxu0 %v2296
        %2412 = vmatprep.subr.bf16.mxu0 0
        %2413 = vmatpush1.bf16.msra.mxu0 %v2297
        %2414 = vmatprep.subr.bf16.mxu0 0
        %2415 = vmatpush1.bf16.msra.mxu0 %v2298
        %2416 = vmatprep.mubr.bf16.mxu0 %v2075
        %2417 = vmatmul.mubr.bf16.gmra.mrb[0].mxu0 %v2074
        %v2418 = vpop.f32.mrb[0].mxu0
        %v2419 = vadd.f32 %v2055, %v2418
        %v2420 = vpop.f32.mrb[0].mxu0
        %v2421 = vpop.f32.mrb[0].mxu0
        %v2422 = vpop.f32.mrb[0].mxu0
        %2423 = vdwg.mxu0
        %2424 = vmatprep.subr.bf16.mxu0 0
        %2425 = vmatpush1.bf16.msra.mxu0 %v2299
        %2426 = vmatprep.subr.bf16.mxu0 0
        %2427 = vmatpush1.bf16.msra.mxu0 %v2300
        %2428 = vmatprep.subr.bf16.mxu0 0
        %2429 = vmatpush1.bf16.msra.mxu0 %v2301
        %2430 = vmatprep.subr.bf16.mxu0 0
        %2431 = vmatpush1.bf16.msra.mxu0 %v2302
        %2432 = vmatprep.subr.bf16.mxu0 0
        %2433 = vmatpush1.bf16.msra.mxu0 %v2303
        %2434 = vmatprep.subr.bf16.mxu0 0
        %2435 = vmatpush1.bf16.msra.mxu0 %v2304
        %2436 = vmatprep.subr.bf16.mxu0 0
        %2437 = vmatpush1.bf16.msra.mxu0 %v2305
        %2438 = vmatprep.subr.bf16.mxu0 0
        %2439 = vmatpush1.bf16.msra.mxu0 %v2306
        %2440 = vmatprep.subr.bf16.mxu0 0
        %2441 = vmatpush1.bf16.msra.mxu0 %v2307
        %2442 = vmatprep.subr.bf16.mxu0 0
        %2443 = vmatpush1.bf16.msra.mxu0 %v2308
        %2444 = vmatprep.subr.bf16.mxu0 0
        %2445 = vmatpush1.bf16.msra.mxu0 %v2309
        %2446 = vmatprep.subr.bf16.mxu0 0
        %2447 = vmatpush1.bf16.msra.mxu0 %v2310
        %2448 = vmatprep.subr.bf16.mxu0 0
        %2449 = vmatpush1.bf16.msra.mxu0 %v2311
        %2450 = vmatprep.subr.bf16.mxu0 0
        %2451 = vmatpush1.bf16.msra.mxu0 %v2312
        %2452 = vmatprep.subr.bf16.mxu0 0
        %2453 = vmatpush1.bf16.msra.mxu0 %v2313
        %2454 = vmatprep.subr.bf16.mxu0 0
        %2455 = vmatpush1.bf16.msra.mxu0 %v2314
        %2456 = vmatprep.mubr.bf16.mxu0 %v2077
        %2457 = vmatmul.mubr.bf16.gmra.mrb[0].mxu0 %v2076
        %v2458 = vpop.f32.mrb[0].mxu0
        %v2459 = vadd.f32 %v2419, %v2458
        %v2460 = vpop.f32.mrb[0].mxu0
        %v2461 = vpop.f32.mrb[0].mxu0
        %v2462 = vpop.f32.mrb[0].mxu0
        %2463 = vdwg.mxu0
        %2464 = vmatprep.subr.bf16.mxu0 0
        %2465 = vmatpush1.bf16.msra.mxu0 %v2315
        %2466 = vmatprep.subr.bf16.mxu0 0
        %2467 = vmatpush1.bf16.msra.mxu0 %v2316
        %2468 = vmatprep.subr.bf16.mxu0 0
        %2469 = vmatpush1.bf16.msra.mxu0 %v2317
        %2470 = vmatprep.subr.bf16.mxu0 0
        %2471 = vmatpush1.bf16.msra.mxu0 %v2318
        %2472 = vmatprep.subr.bf16.mxu0 0
        %2473 = vmatpush1.bf16.msra.mxu0 %v2319
        %2474 = vmatprep.subr.bf16.mxu0 0
        %2475 = vmatpush1.bf16.msra.mxu0 %v2320
        %2476 = vmatprep.subr.bf16.mxu0 0
        %2477 = vmatpush1.bf16.msra.mxu0 %v2321
        %2478 = vmatprep.subr.bf16.mxu0 0
        %2479 = vmatpush1.bf16.msra.mxu0 %v2322
        %2480 = vmatprep.subr.bf16.mxu0 0
        %2481 = vmatpush1.bf16.msra.mxu0 %v2323
        %2482 = vmatprep.subr.bf16.mxu0 0
        %2483 = vmatpush1.bf16.msra.mxu0 %v2324
        %2484 = vmatprep.subr.bf16.mxu0 0
        %2485 = vmatpush1.bf16.msra.mxu0 %v2325
        %2486 = vmatprep.subr.bf16.mxu0 0
        %2487 = vmatpush1.bf16.msra.mxu0 %v2326
        %2488 = vmatprep.subr.bf16.mxu0 0
        %2489 = vmatpush1.bf16.msra.mxu0 %v2327
        %2490 = vmatprep.subr.bf16.mxu0 0
        %2491 = vmatpush1.bf16.msra.mxu0 %v2328
        %2492 = vmatprep.subr.bf16.mxu0 0
        %2493 = vmatpush1.bf16.msra.mxu0 %v2329
        %2494 = vmatprep.subr.bf16.mxu0 0
        %2495 = vmatpush1.bf16.msra.mxu0 %v2330
        %2496 = vmatprep.mubr.bf16.mxu0 %v2079
        %2497 = vmatmul.mubr.bf16.gmra.mrb[0].mxu0 %v2078
        %v2498 = vpop.f32.mrb[0].mxu0
        %v2499 = vadd.f32 %v2459, %v2498
        %v2500 = vpop.f32.mrb[0].mxu0
        %v2501 = vpop.f32.mrb[0].mxu0
        %v2502 = vpop.f32.mrb[0].mxu0
        %2503 = vdwg.mxu0
        %2504 = vmatprep.subr.bf16.mxu0 0
        %2505 = vmatpush1.bf16.msra.mxu0 %v2331
        %2506 = vmatprep.subr.bf16.mxu0 0
        %2507 = vmatpush1.bf16.msra.mxu0 0
        %2508 = vmatprep.subr.bf16.mxu0 0
        %2509 = vmatpush1.bf16.msra.mxu0 0
        %2510 = vmatprep.subr.bf16.mxu0 0
        %2511 = vmatpush1.bf16.msra.mxu0 0
        %2512 = vmatprep.subr.bf16.mxu0 0
        %2513 = vmatpush1.bf16.msra.mxu0 0
        %2514 = vmatprep.subr.bf16.mxu0 0
        %2515 = vmatpush1.bf16.msra.mxu0 0
        %2516 = vmatprep.subr.bf16.mxu0 0
        %2517 = vmatpush1.bf16.msra.mxu0 0
        %2518 = vmatprep.subr.bf16.mxu0 0
        %2519 = vmatpush1.bf16.msra.mxu0 0
        %2520 = vmatprep.subr.bf16.mxu0 0
        %2521 = vmatpush1.bf16.msra.mxu0 0
        %2522 = vmatprep.subr.bf16.mxu0 0
        %2523 = vmatpush1.bf16.msra.mxu0 0
        %2524 = vmatprep.subr.bf16.mxu0 0
        %2525 = vmatpush1.bf16.msra.mxu0 0
        %2526 = vmatprep.subr.bf16.mxu0 0
        %2527 = vmatpush1.bf16.msra.mxu0 0
        %2528 = vmatprep.subr.bf16.mxu0 0
        %2529 = vmatpush1.bf16.msra.mxu0 0
        %2530 = vmatprep.subr.bf16.mxu0 0
        %2531 = vmatpush1.bf16.msra.mxu0 0
        %2532 = vmatprep.subr.bf16.mxu0 0
        %2533 = vmatpush1.bf16.msra.mxu0 0
        %2534 = vmatprep.subr.bf16.mxu0 0
        %2535 = vmatpush1.bf16.msra.mxu0 0
        %2536 = vmatprep.mubr.bf16.mxu0 0
        %2537 = vmatmul.mubr.bf16.gmra.mrb[0].mxu0 %v2382
        %v2538 = vpop.f32.mrb[0].mxu0
        %v2539 = vadd.f32 %v2499, %v2538
        %v2540 = vpop.f32.mrb[0].mxu0
        %v2541 = vpop.f32.mrb[0].mxu0
        %v2542 = vpop.f32.mrb[0].mxu0
        %2543 = vdwg.mxu0
        %s2544 = scalar_lea.vmem %s429, 784 [#allocation7]
        %v2545 = vld [vmem:[%s2544] sm:$0xf]
        %v2546 = vld [vmem:[%s2544 + $0x4] sm:$0xf]
        %v2547 = vld [vmem:[%s2544 + $0x8] sm:$0xf]
        %v2548 = vld [vmem:[%s2544 + $0xc] sm:$0xf]
        %v2549 = vld [vmem:[%s2544 + $0x10] sm:$0xf]
        %v2550 = vld [vmem:[%s2544 + $0x14] sm:$0xf]
        %v2551 = vld [vmem:[%s2544 + $0x18] sm:$0xf]
        %v2552 = vld [vmem:[%s2544 + $0x1c] sm:$0xf]
        %v2553 = vld [vmem:[%s2544 + $0x20] sm:$0xf]
        %v2554 = vld [vmem:[%s2544 + $0x24] sm:$0xf]
        %v2555 = vld [vmem:[%s2544 + $0x28] sm:$0xf]
        %v2556 = vld [vmem:[%s2544 + $0x2c] sm:$0xf]
        %v2557 = vld [vmem:[%s2544 + $0x30] sm:$0xf]
        %v2558 = vld [vmem:[%s2544 + $0x34] sm:$0xf]
        %v2559 = vld [vmem:[%s2544 + $0x38] sm:$0xf]
        %v2560 = vld [vmem:[%s2544 + $0x3c] sm:$0xf]
        %v2561 = vld [vmem:[%s2544 + $0x40] sm:$0xf]
        %v2562 = vld [vmem:[%s2544 + $0x44] sm:$0xf]
        %v2563 = vld [vmem:[%s2544 + $0x48] sm:$0xf]
        %v2564 = vld [vmem:[%s2544 + $0x4c] sm:$0xf]
        %v2565 = vld [vmem:[%s2544 + $0x50] sm:$0xf]
        %v2566 = vld [vmem:[%s2544 + $0x54] sm:$0xf]
        %v2567 = vld [vmem:[%s2544 + $0x58] sm:$0xf]
        %v2568 = vld [vmem:[%s2544 + $0x5c] sm:$0xf]
        %v2569 = vld [vmem:[%s2544 + $0x60] sm:$0xf]
        %v2570 = vld [vmem:[%s2544 + $0x64] sm:$0xf]
        %v2571 = vld [vmem:[%s2544 + $0x68] sm:$0xf]
        %v2572 = vld [vmem:[%s2544 + $0x6c] sm:$0xf]
        %v2573 = vld [vmem:[%s2544 + $0x70] sm:$0xf]
        %v2574 = vld [vmem:[%s2544 + $0x74] sm:$0xf]
        %v2575 = vld [vmem:[%s2544 + $0x78] sm:$0xf]
        %v2576 = vld [vmem:[%s2544 + $0x7c] sm:$0xf]
        %v2577 = vld [vmem:[%s2544 + $0x80] sm:$0xf]
        %v2578 = vld [vmem:[%s2544 + $0x84] sm:$0xf]
        %v2579 = vld [vmem:[%s2544 + $0x88] sm:$0xf]
        %v2580 = vld [vmem:[%s2544 + $0x8c] sm:$0xf]
        %v2581 = vld [vmem:[%s2544 + $0x90] sm:$0xf]
        %v2582 = vld [vmem:[%s2544 + $0x94] sm:$0xf]
        %v2583 = vld [vmem:[%s2544 + $0x98] sm:$0xf]
        %v2584 = vld [vmem:[%s2544 + $0x9c] sm:$0xf]
        %v2585 = vld [vmem:[%s2544 + $0xa0] sm:$0xf]
        %v2586 = vld [vmem:[%s2544 + $0xa4] sm:$0xf]
        %v2587 = vld [vmem:[%s2544 + $0xa8] sm:$0xf]
        %v2588 = vld [vmem:[%s2544 + $0xac] sm:$0xf]
        %v2589 = vld [vmem:[%s2544 + $0xb0] sm:$0xf]
        %v2590 = vld [vmem:[%s2544 + $0xb4] sm:$0xf]
        %v2591 = vld [vmem:[%s2544 + $0xb8] sm:$0xf]
        %v2592 = vld [vmem:[%s2544 + $0xbc] sm:$0xf]
        %v2593 = vld [vmem:[%s2544 + $0xc0] sm:$0xf]
        %v2594 = vld [vmem:[%s2544 + $0xc4] sm:$0xf]
        %v2595 = vld [vmem:[%s2544 + $0xc8] sm:$0xf]
        %v2596 = vld [vmem:[%s2544 + $0xcc] sm:$0xf]
        %v2597 = vld [vmem:[%s2544 + $0xd0] sm:$0xf]
        %v2598 = vld [vmem:[%s2544 + $0xd4] sm:$0xf]
        %v2599 = vld [vmem:[%s2544 + $0xd8] sm:$0xf]
        %v2600 = vld [vmem:[%s2544 + $0xdc] sm:$0xf]
        %v2601 = vld [vmem:[%s2544 + $0xe0] sm:$0xf]
        %v2602 = vld [vmem:[%s2544 + $0xe4] sm:$0xf]
        %v2603 = vld [vmem:[%s2544 + $0xe8] sm:$0xf]
        %v2604 = vld [vmem:[%s2544 + $0xec] sm:$0xf]
        %v2605 = vld [vmem:[%s2544 + $0xf0] sm:$0xf]
        %v2606 = vld [vmem:[%s2544 + $0xf4] sm:$0xf]
        %v2607 = vld [vmem:[%s2544 + $0xf8] sm:$0xf]
        %v2608 = vld [vmem:[%s2544 + $0xfc] sm:$0xf]
        %v2609 = vld [vmem:[%s2544 + $0x100] sm:$0xf]
        %v2610 = vld [vmem:[%s2544 + $0x104] sm:$0xf]
        %v2611 = vld [vmem:[%s2544 + $0x108] sm:$0xf]
        %v2612 = vld [vmem:[%s2544 + $0x10c] sm:$0xf]
        %v2613 = vld [vmem:[%s2544 + $0x110] sm:$0xf]
        %v2614 = vld [vmem:[%s2544 + $0x114] sm:$0xf]
        %v2615 = vld [vmem:[%s2544 + $0x118] sm:$0xf]
        %v2616 = vld [vmem:[%s2544 + $0x11c] sm:$0xf]
        %v2617 = vld [vmem:[%s2544 + $0x120] sm:$0xf]
        %v2618 = vld [vmem:[%s2544 + $0x124] sm:$0xf]
        %v2619 = vld [vmem:[%s2544 + $0x128] sm:$0xf]
        %v2620 = vld [vmem:[%s2544 + $0x12c] sm:$0xf]
        %v2621 = vld [vmem:[%s2544 + $0x130] sm:$0xf]
        %v2622 = vld [vmem:[%s2544 + $0x134] sm:$0xf]
        %v2623 = vld [vmem:[%s2544 + $0x138] sm:$0xf]
        %v2624 = vld [vmem:[%s2544 + $0x13c] sm:$0xf]
        %v2625 = vld [vmem:[%s2544 + $0x140] sm:$0xf]
        %v2626 = vld [vmem:[%s2544 + $0x144] sm:$0xf]
        %v2627 = vld [vmem:[%s2544 + $0x148] sm:$0xf]
        %v2628 = vld [vmem:[%s2544 + $0x14c] sm:$0xf]
        %v2629 = vld [vmem:[%s2544 + $0x150] sm:$0xf]
        %v2630 = vld [vmem:[%s2544 + $0x154] sm:$0xf]
        %v2631 = vld [vmem:[%s2544 + $0x158] sm:$0xf]
        %v2632 = vld [vmem:[%s2544 + $0x15c] sm:$0xf]
        %v2633 = vld [vmem:[%s2544 + $0x160] sm:$0xf]
        %v2634 = vld [vmem:[%s2544 + $0x164] sm:$0xf]
        %v2635 = vld [vmem:[%s2544 + $0x168] sm:$0xf]
        %v2636 = vld [vmem:[%s2544 + $0x16c] sm:$0xf]
        %v2637 = vld [vmem:[%s2544 + $0x170] sm:$0xf]
        %v2638 = vld [vmem:[%s2544 + $0x174] sm:$0xf]
        %v2639 = vld [vmem:[%s2544 + $0x178] sm:$0xf]
        %v2640 = vld [vmem:[%s2544 + $0x17c] sm:$0xf]
        %v2641 = vld [vmem:[%s2544 + $0x180] sm:$0xf]
        %v2642 = vld [vmem:[%s2544 + $0x184] sm:$0xf]
        %v2643 = vrot.slane %v1560, 2
        %v2644 = vrot.slane %v1567, 1
        %v2645 = vsel %vm1575, %v2644, %v2643
        %v2646 = vrot.slane %v1561, 2
        %v2647 = vrot.slane %v1568, 1
        %v2648 = vsel %vm1575, %v2647, %v2646
        %v2649 = vrot.slane %v1562, 2
        %v2650 = vrot.slane %v1569, 1
        %v2651 = vsel %vm1575, %v2650, %v2649
        %v2652 = vrot.slane %v1563, 2
        %v2653 = vrot.slane %v1570, 1
        %v2654 = vsel %vm1575, %v2653, %v2652
        %v2655 = vrot.slane %v1564, 2
        %v2656 = vrot.slane %v1571, 1
        %v2657 = vsel %vm1575, %v2656, %v2655
        %v2658 = vrot.slane %v1565, 2
        %v2659 = vrot.slane %v1572, 1
        %v2660 = vsel %vm1575, %v2659, %v2658
        %v2661 = vrot.slane %v1566, 2
        %v2662 = vrot.slane %v1573, 1
        %v2663 = vsel %vm1575, %v2662, %v2661
        %v2664 = vpack.c.b16 %v2645, %v2645
        %v2665 = vpack.c.b16 %v2648, %v2648
        %v2666 = vpack.c.b16 %v2651, %v2651
        %v2667 = vpack.c.b16 %v2654, %v2654
        %v2668 = vpack.c.b16 %v2657, %v2657
        %v2669 = vpack.c.b16 %v2660, %v2660
        %v2670 = vpack.c.b16 %v2663, %v2663
        %v2775 = vunpack.c.l.b16 %v2545
        %v2776 = vunpack.c.l.b16 %v2546
        %v2777 = vunpack.c.l.b16 %v2547
        %v2778 = vunpack.c.l.b16 %v2548
        %v2779 = vunpack.c.l.b16 %v2549
        %v2780 = vunpack.c.l.b16 %v2550
        %v2781 = vunpack.c.l.b16 %v2551
        %v2782 = vunpack.c.l.b16 %v2552
        %v2783 = vunpack.c.l.b16 %v2553
        %v2784 = vunpack.c.l.b16 %v2554
        %v2785 = vunpack.c.l.b16 %v2555
        %v2786 = vunpack.c.l.b16 %v2556
        %v2787 = vunpack.c.l.b16 %v2557
        %v2788 = vunpack.c.l.b16 %v2558
        %v2789 = vunpack.c.l.b16 %v2559
        %v2790 = vunpack.c.l.b16 %v2560
        %v2791 = vunpack.c.l.b16 %v2561
        %v2792 = vunpack.c.l.b16 %v2562
        %v2793 = vunpack.c.l.b16 %v2563
        %v2794 = vunpack.c.l.b16 %v2564
        %v2795 = vunpack.c.l.b16 %v2565
        %v2796 = vunpack.c.l.b16 %v2566
        %v2797 = vunpack.c.l.b16 %v2567
        %v2798 = vunpack.c.l.b16 %v2568
        %v2799 = vunpack.c.l.b16 %v2569
        %v2800 = vunpack.c.l.b16 %v2570
        %v2801 = vunpack.c.l.b16 %v2571
        %v2802 = vunpack.c.l.b16 %v2572
        %v2803 = vunpack.c.l.b16 %v2573
        %v2804 = vunpack.c.l.b16 %v2574
        %v2805 = vunpack.c.l.b16 %v2575
        %v2806 = vunpack.c.l.b16 %v2576
        %v2807 = vunpack.c.l.b16 %v2577
        %v2808 = vunpack.c.l.b16 %v2578
        %v2809 = vunpack.c.l.b16 %v2579
        %v2810 = vunpack.c.l.b16 %v2580
        %v2811 = vunpack.c.l.b16 %v2581
        %v2812 = vunpack.c.l.b16 %v2582
        %v2813 = vunpack.c.l.b16 %v2583
        %v2814 = vunpack.c.l.b16 %v2584
        %v2815 = vunpack.c.l.b16 %v2585
        %v2816 = vunpack.c.l.b16 %v2586
        %v2817 = vunpack.c.l.b16 %v2587
        %v2818 = vunpack.c.l.b16 %v2588
        %v2819 = vunpack.c.l.b16 %v2589
        %v2820 = vunpack.c.l.b16 %v2590
        %v2821 = vunpack.c.l.b16 %v2591
        %v2822 = vunpack.c.l.b16 %v2592
        %v2823 = vunpack.c.l.b16 %v2593
        %v2824 = vunpack.c.l.b16 %v2594
        %v2825 = vunpack.c.l.b16 %v2595
        %v2826 = vunpack.c.l.b16 %v2596
        %v2827 = vunpack.c.l.b16 %v2597
        %v2828 = vunpack.c.l.b16 %v2598
        %v2829 = vunpack.c.l.b16 %v2599
        %v2830 = vunpack.c.l.b16 %v2600
        %v2831 = vunpack.c.l.b16 %v2601
        %v2832 = vunpack.c.l.b16 %v2602
        %v2833 = vunpack.c.l.b16 %v2603
        %v2834 = vunpack.c.l.b16 %v2604
        %v2835 = vunpack.c.l.b16 %v2605
        %v2836 = vunpack.c.l.b16 %v2606
        %v2837 = vunpack.c.l.b16 %v2607
        %v2838 = vunpack.c.l.b16 %v2608
        %v2839 = vunpack.c.l.b16 %v2609
        %v2840 = vunpack.c.l.b16 %v2610
        %v2841 = vunpack.c.l.b16 %v2611
        %v2842 = vunpack.c.l.b16 %v2612
        %v2843 = vunpack.c.l.b16 %v2613
        %v2844 = vunpack.c.l.b16 %v2614
        %v2845 = vunpack.c.l.b16 %v2615
        %v2846 = vunpack.c.l.b16 %v2616
        %v2847 = vunpack.c.l.b16 %v2617
        %v2848 = vunpack.c.l.b16 %v2618
        %v2849 = vunpack.c.l.b16 %v2619
        %v2850 = vunpack.c.l.b16 %v2620
        %v2851 = vunpack.c.l.b16 %v2621
        %v2852 = vunpack.c.l.b16 %v2622
        %v2853 = vunpack.c.l.b16 %v2623
        %v2854 = vunpack.c.l.b16 %v2624
        %v2855 = vunpack.c.l.b16 %v2625
        %v2856 = vunpack.c.l.b16 %v2626
        %v2857 = vunpack.c.l.b16 %v2627
        %v2858 = vunpack.c.l.b16 %v2628
        %v2859 = vunpack.c.l.b16 %v2629
        %v2860 = vunpack.c.l.b16 %v2630
        %v2861 = vunpack.c.l.b16 %v2631
        %v2862 = vunpack.c.l.b16 %v2632
        %v2863 = vunpack.c.l.b16 %v2633
        %v2864 = vunpack.c.l.b16 %v2634
        %v2865 = vunpack.c.l.b16 %v2635
        %v2866 = vunpack.c.l.b16 %v2636
        %v2867 = vunpack.c.l.b16 %v2637
        %v2868 = vunpack.c.l.b16 %v2638
        %v2869 = vunpack.c.l.b16 %v2639
        %v2870 = vunpack.c.l.b16 %v2640
        %v2871 = vunpack.c.l.b16 %v2641
        %v2872 = vunpack.c.l.b16 %v2642
        %v2873 = vpack.c.b16 %v2776, %v2775
        %v2874 = vpack.c.b16 %v2778, %v2777
        %v2875 = vpack.c.b16 %v2780, %v2779
        %v2876 = vpack.c.b16 %v2782, %v2781
        %v2877 = vpack.c.b16 %v2784, %v2783
        %v2878 = vpack.c.b16 %v2786, %v2785
        %v2879 = vpack.c.b16 %v2788, %v2787
        %v2880 = vpack.c.b16 %v2790, %v2789
        %v2881 = vpack.c.b16 %v2792, %v2791
        %v2882 = vpack.c.b16 %v2794, %v2793
        %v2883 = vpack.c.b16 %v2796, %v2795
        %v2884 = vpack.c.b16 %v2798, %v2797
        %v2885 = vpack.c.b16 %v2800, %v2799
        %v2886 = vpack.c.b16 %v2802, %v2801
        %v2887 = vpack.c.b16 %v2804, %v2803
        %v2888 = vpack.c.b16 %v2806, %v2805
        %v2889 = vpack.c.b16 %v2808, %v2807
        %v2890 = vpack.c.b16 %v2810, %v2809
        %v2891 = vpack.c.b16 %v2812, %v2811
        %v2892 = vpack.c.b16 %v2814, %v2813
        %v2893 = vpack.c.b16 %v2816, %v2815
        %v2894 = vpack.c.b16 %v2818, %v2817
        %v2895 = vpack.c.b16 %v2820, %v2819
        %v2896 = vpack.c.b16 %v2822, %v2821
        %v2897 = vpack.c.b16 %v2824, %v2823
        %v2898 = vpack.c.b16 %v2826, %v2825
        %v2899 = vpack.c.b16 %v2828, %v2827
        %v2900 = vpack.c.b16 %v2830, %v2829
        %v2901 = vpack.c.b16 %v2832, %v2831
        %v2902 = vpack.c.b16 %v2834, %v2833
        %v2903 = vpack.c.b16 %v2836, %v2835
        %v2904 = vpack.c.b16 %v2838, %v2837
        %v2905 = vpack.c.b16 %v2840, %v2839
        %v2906 = vpack.c.b16 %v2842, %v2841
        %v2907 = vpack.c.b16 %v2844, %v2843
        %v2908 = vpack.c.b16 %v2846, %v2845
        %v2909 = vpack.c.b16 %v2848, %v2847
        %v2910 = vpack.c.b16 %v2850, %v2849
        %v2911 = vpack.c.b16 %v2852, %v2851
        %v2912 = vpack.c.b16 %v2854, %v2853
        %v2913 = vpack.c.b16 %v2856, %v2855
        %v2914 = vpack.c.b16 %v2858, %v2857
        %v2915 = vpack.c.b16 %v2860, %v2859
        %v2916 = vpack.c.b16 %v2862, %v2861
        %v2917 = vpack.c.b16 %v2864, %v2863
        %v2918 = vpack.c.b16 %v2866, %v2865
        %v2919 = vpack.c.b16 %v2868, %v2867
        %v2920 = vpack.c.b16 %v2870, %v2869
        %v2921 = vpack.c.b16 %v2872, %v2871
        %v2972 = vsel %vm1896, %v2670, 0
        %2974 = vmatprep.subr.bf16.mxu0 0
        %2975 = vmatpush1.bf16.msra.mxu0 %v2873
        %2976 = vmatprep.subr.bf16.mxu0 0
        %2977 = vmatpush1.bf16.msra.mxu0 %v2874
        %2978 = vmatprep.subr.bf16.mxu0 0
        %2979 = vmatpush1.bf16.msra.mxu0 %v2875
        %2980 = vmatprep.subr.bf16.mxu0 0
        %2981 = vmatpush1.bf16.msra.mxu0 %v2876
        %2982 = vmatprep.subr.bf16.mxu0 0
        %2983 = vmatpush1.bf16.msra.mxu0 %v2877
        %2984 = vmatprep.subr.bf16.mxu0 0
        %2985 = vmatpush1.bf16.msra.mxu0 %v2878
        %2986 = vmatprep.subr.bf16.mxu0 0
        %2987 = vmatpush1.bf16.msra.mxu0 %v2879
        %2988 = vmatprep.subr.bf16.mxu0 0
        %2989 = vmatpush1.bf16.msra.mxu0 %v2880
        %2990 = vmatprep.subr.bf16.mxu0 0
        %2991 = vmatpush1.bf16.msra.mxu0 %v2881
        %2992 = vmatprep.subr.bf16.mxu0 0
        %2993 = vmatpush1.bf16.msra.mxu0 %v2882
        %2994 = vmatprep.subr.bf16.mxu0 0
        %2995 = vmatpush1.bf16.msra.mxu0 %v2883
        %2996 = vmatprep.subr.bf16.mxu0 0
        %2997 = vmatpush1.bf16.msra.mxu0 %v2884
        %2998 = vmatprep.subr.bf16.mxu0 0
        %2999 = vmatpush1.bf16.msra.mxu0 %v2885
        %3000 = vmatprep.subr.bf16.mxu0 0
        %3001 = vmatpush1.bf16.msra.mxu0 %v2886
        %3002 = vmatprep.subr.bf16.mxu0 0
        %3003 = vmatpush1.bf16.msra.mxu0 %v2887
        %3004 = vmatprep.subr.bf16.mxu0 0
        %3005 = vmatpush1.bf16.msra.mxu0 %v2888
        %3006 = vmatprep.mubr.bf16.mxu0 %v2665
        %3007 = vmatmul.mubr.bf16.gmra.mrb[0].mxu0 %v2664
        %v3008 = vpop.f32.mrb[0].mxu0
        %v3009 = vadd.f32 0.0, %v3008
        %v3010 = vpop.f32.mrb[0].mxu0
        %v3011 = vpop.f32.mrb[0].mxu0
        %v3012 = vpop.f32.mrb[0].mxu0
        %3013 = vdwg.mxu0
        %3014 = vmatprep.subr.bf16.mxu0 0
        %3015 = vmatpush1.bf16.msra.mxu0 %v2889
        %3016 = vmatprep.subr.bf16.mxu0 0
        %3017 = vmatpush1.bf16.msra.mxu0 %v2890
        %3018 = vmatprep.subr.bf16.mxu0 0
        %3019 = vmatpush1.bf16.msra.mxu0 %v2891
        %3020 = vmatprep.subr.bf16.mxu0 0
        %3021 = vmatpush1.bf16.msra.mxu0 %v2892
        %3022 = vmatprep.subr.bf16.mxu0 0
        %3023 = vmatpush1.bf16.msra.mxu0 %v2893
        %3024 = vmatprep.subr.bf16.mxu0 0
        %3025 = vmatpush1.bf16.msra.mxu0 %v2894
        %3026 = vmatprep.subr.bf16.mxu0 0
        %3027 = vmatpush1.bf16.msra.mxu0 %v2895
        %3028 = vmatprep.subr.bf16.mxu0 0
        %3029 = vmatpush1.bf16.msra.mxu0 %v2896
        %3030 = vmatprep.subr.bf16.mxu0 0
        %3031 = vmatpush1.bf16.msra.mxu0 %v2897
        %3032 = vmatprep.subr.bf16.mxu0 0
        %3033 = vmatpush1.bf16.msra.mxu0 %v2898
        %3034 = vmatprep.subr.bf16.mxu0 0
        %3035 = vmatpush1.bf16.msra.mxu0 %v2899
        %3036 = vmatprep.subr.bf16.mxu0 0
        %3037 = vmatpush1.bf16.msra.mxu0 %v2900
        %3038 = vmatprep.subr.bf16.mxu0 0
        %3039 = vmatpush1.bf16.msra.mxu0 %v2901
        %3040 = vmatprep.subr.bf16.mxu0 0
        %3041 = vmatpush1.bf16.msra.mxu0 %v2902
        %3042 = vmatprep.subr.bf16.mxu0 0
        %3043 = vmatpush1.bf16.msra.mxu0 %v2903
        %3044 = vmatprep.subr.bf16.mxu0 0
        %3045 = vmatpush1.bf16.msra.mxu0 %v2904
        %3046 = vmatprep.mubr.bf16.mxu0 %v2667
        %3047 = vmatmul.mubr.bf16.gmra.mrb[0].mxu0 %v2666
        %v3048 = vpop.f32.mrb[0].mxu0
        %v3049 = vadd.f32 %v3009, %v3048
        %v3050 = vpop.f32.mrb[0].mxu0
        %v3051 = vpop.f32.mrb[0].mxu0
        %v3052 = vpop.f32.mrb[0].mxu0
        %3053 = vdwg.mxu0
        %3054 = vmatprep.subr.bf16.mxu0 0
        %3055 = vmatpush1.bf16.msra.mxu0 %v2905
        %3056 = vmatprep.subr.bf16.mxu0 0
        %3057 = vmatpush1.bf16.msra.mxu0 %v2906
        %3058 = vmatprep.subr.bf16.mxu0 0
        %3059 = vmatpush1.bf16.msra.mxu0 %v2907
        %3060 = vmatprep.subr.bf16.mxu0 0
        %3061 = vmatpush1.bf16.msra.mxu0 %v2908
        %3062 = vmatprep.subr.bf16.mxu0 0
        %3063 = vmatpush1.bf16.msra.mxu0 %v2909
        %3064 = vmatprep.subr.bf16.mxu0 0
        %3065 = vmatpush1.bf16.msra.mxu0 %v2910
        %3066 = vmatprep.subr.bf16.mxu0 0
        %3067 = vmatpush1.bf16.msra.mxu0 %v2911
        %3068 = vmatprep.subr.bf16.mxu0 0
        %3069 = vmatpush1.bf16.msra.mxu0 %v2912
        %3070 = vmatprep.subr.bf16.mxu0 0
        %3071 = vmatpush1.bf16.msra.mxu0 %v2913
        %3072 = vmatprep.subr.bf16.mxu0 0
        %3073 = vmatpush1.bf16.msra.mxu0 %v2914
        %3074 = vmatprep.subr.bf16.mxu0 0
        %3075 = vmatpush1.bf16.msra.mxu0 %v2915
        %3076 = vmatprep.subr.bf16.mxu0 0
        %3077 = vmatpush1.bf16.msra.mxu0 %v2916
        %3078 = vmatprep.subr.bf16.mxu0 0
        %3079 = vmatpush1.bf16.msra.mxu0 %v2917
        %3080 = vmatprep.subr.bf16.mxu0 0
        %3081 = vmatpush1.bf16.msra.mxu0 %v2918
        %3082 = vmatprep.subr.bf16.mxu0 0
        %3083 = vmatpush1.bf16.msra.mxu0 %v2919
        %3084 = vmatprep.subr.bf16.mxu0 0
        %3085 = vmatpush1.bf16.msra.mxu0 %v2920
        %3086 = vmatprep.mubr.bf16.mxu0 %v2669
        %3087 = vmatmul.mubr.bf16.gmra.mrb[0].mxu0 %v2668
        %v3088 = vpop.f32.mrb[0].mxu0
        %v3089 = vadd.f32 %v3049, %v3088
        %v3090 = vpop.f32.mrb[0].mxu0
        %v3091 = vpop.f32.mrb[0].mxu0
        %v3092 = vpop.f32.mrb[0].mxu0
        %3093 = vdwg.mxu0
        %3094 = vmatprep.subr.bf16.mxu0 0
        %3095 = vmatpush1.bf16.msra.mxu0 %v2921
        %3096 = vmatprep.subr.bf16.mxu0 0
        %3097 = vmatpush1.bf16.msra.mxu0 0
        %3098 = vmatprep.subr.bf16.mxu0 0
        %3099 = vmatpush1.bf16.msra.mxu0 0
        %3100 = vmatprep.subr.bf16.mxu0 0
        %3101 = vmatpush1.bf16.msra.mxu0 0
        %3102 = vmatprep.subr.bf16.mxu0 0
        %3103 = vmatpush1.bf16.msra.mxu0 0
        %3104 = vmatprep.subr.bf16.mxu0 0
        %3105 = vmatpush1.bf16.msra.mxu0 0
        %3106 = vmatprep.subr.bf16.mxu0 0
        %3107 = vmatpush1.bf16.msra.mxu0 0
        %3108 = vmatprep.subr.bf16.mxu0 0
        %3109 = vmatpush1.bf16.msra.mxu0 0
        %3110 = vmatprep.subr.bf16.mxu0 0
        %3111 = vmatpush1.bf16.msra.mxu0 0
        %3112 = vmatprep.subr.bf16.mxu0 0
        %3113 = vmatpush1.bf16.msra.mxu0 0
        %3114 = vmatprep.subr.bf16.mxu0 0
        %3115 = vmatpush1.bf16.msra.mxu0 0
        %3116 = vmatprep.subr.bf16.mxu0 0
        %3117 = vmatpush1.bf16.msra.mxu0 0
        %3118 = vmatprep.subr.bf16.mxu0 0
        %3119 = vmatpush1.bf16.msra.mxu0 0
        %3120 = vmatprep.subr.bf16.mxu0 0
        %3121 = vmatpush1.bf16.msra.mxu0 0
        %3122 = vmatprep.subr.bf16.mxu0 0
        %3123 = vmatpush1.bf16.msra.mxu0 0
        %3124 = vmatprep.subr.bf16.mxu0 0
        %3125 = vmatpush1.bf16.msra.mxu0 0
        %3126 = vmatprep.mubr.bf16.mxu0 0
        %3127 = vmatmul.mubr.bf16.gmra.mrb[0].mxu0 %v2972
        %v3128 = vpop.f32.mrb[0].mxu0
        %v3129 = vadd.f32 %v3089, %v3128
        %v3130 = vpop.f32.mrb[0].mxu0
        %v3131 = vpop.f32.mrb[0].mxu0
        %v3132 = vpop.f32.mrb[0].mxu0
        %3133 = vdwg.mxu0
        %v3134 = vadd.f32 %v2539, %v3129
        %s3135 = scalar_lea.vmem %s429, 1176 [#allocation7]
        %v3136 = vld [vmem:[%s3135] sm:$0xf]
        %v3137 = vld [vmem:[%s3135 + $0x4] sm:$0xf]
        %v3138 = vld [vmem:[%s3135 + $0x8] sm:$0xf]
        %v3139 = vld [vmem:[%s3135 + $0xc] sm:$0xf]
        %v3140 = vld [vmem:[%s3135 + $0x10] sm:$0xf]
        %v3141 = vld [vmem:[%s3135 + $0x14] sm:$0xf]
        %v3142 = vld [vmem:[%s3135 + $0x18] sm:$0xf]
        %v3143 = vld [vmem:[%s3135 + $0x1c] sm:$0xf]
        %v3144 = vld [vmem:[%s3135 + $0x20] sm:$0xf]
        %v3145 = vld [vmem:[%s3135 + $0x24] sm:$0xf]
        %v3146 = vld [vmem:[%s3135 + $0x28] sm:$0xf]
        %v3147 = vld [vmem:[%s3135 + $0x2c] sm:$0xf]
        %v3148 = vld [vmem:[%s3135 + $0x30] sm:$0xf]
        %v3149 = vld [vmem:[%s3135 + $0x34] sm:$0xf]
        %v3150 = vld [vmem:[%s3135 + $0x38] sm:$0xf]
        %v3151 = vld [vmem:[%s3135 + $0x3c] sm:$0xf]
        %v3152 = vld [vmem:[%s3135 + $0x40] sm:$0xf]
        %v3153 = vld [vmem:[%s3135 + $0x44] sm:$0xf]
        %v3154 = vld [vmem:[%s3135 + $0x48] sm:$0xf]
        %v3155 = vld [vmem:[%s3135 + $0x4c] sm:$0xf]
        %v3156 = vld [vmem:[%s3135 + $0x50] sm:$0xf]
        %v3157 = vld [vmem:[%s3135 + $0x54] sm:$0xf]
        %v3158 = vld [vmem:[%s3135 + $0x58] sm:$0xf]
        %v3159 = vld [vmem:[%s3135 + $0x5c] sm:$0xf]
        %v3160 = vld [vmem:[%s3135 + $0x60] sm:$0xf]
        %v3161 = vld [vmem:[%s3135 + $0x64] sm:$0xf]
        %v3162 = vld [vmem:[%s3135 + $0x68] sm:$0xf]
        %v3163 = vld [vmem:[%s3135 + $0x6c] sm:$0xf]
        %v3164 = vld [vmem:[%s3135 + $0x70] sm:$0xf]
        %v3165 = vld [vmem:[%s3135 + $0x74] sm:$0xf]
        %v3166 = vld [vmem:[%s3135 + $0x78] sm:$0xf]
        %v3167 = vld [vmem:[%s3135 + $0x7c] sm:$0xf]
        %v3168 = vld [vmem:[%s3135 + $0x80] sm:$0xf]
        %v3169 = vld [vmem:[%s3135 + $0x84] sm:$0xf]
        %v3170 = vld [vmem:[%s3135 + $0x88] sm:$0xf]
        %v3171 = vld [vmem:[%s3135 + $0x8c] sm:$0xf]
        %v3172 = vld [vmem:[%s3135 + $0x90] sm:$0xf]
        %v3173 = vld [vmem:[%s3135 + $0x94] sm:$0xf]
        %v3174 = vld [vmem:[%s3135 + $0x98] sm:$0xf]
        %v3175 = vld [vmem:[%s3135 + $0x9c] sm:$0xf]
        %v3176 = vld [vmem:[%s3135 + $0xa0] sm:$0xf]
        %v3177 = vld [vmem:[%s3135 + $0xa4] sm:$0xf]
        %v3178 = vld [vmem:[%s3135 + $0xa8] sm:$0xf]
        %v3179 = vld [vmem:[%s3135 + $0xac] sm:$0xf]
        %v3180 = vld [vmem:[%s3135 + $0xb0] sm:$0xf]
        %v3181 = vld [vmem:[%s3135 + $0xb4] sm:$0xf]
        %v3182 = vld [vmem:[%s3135 + $0xb8] sm:$0xf]
        %v3183 = vld [vmem:[%s3135 + $0xbc] sm:$0xf]
        %v3184 = vld [vmem:[%s3135 + $0xc0] sm:$0xf]
        %v3185 = vld [vmem:[%s3135 + $0xc4] sm:$0xf]
        %v3186 = vld [vmem:[%s3135 + $0xc8] sm:$0xf]
        %v3187 = vld [vmem:[%s3135 + $0xcc] sm:$0xf]
        %v3188 = vld [vmem:[%s3135 + $0xd0] sm:$0xf]
        %v3189 = vld [vmem:[%s3135 + $0xd4] sm:$0xf]
        %v3190 = vld [vmem:[%s3135 + $0xd8] sm:$0xf]
        %v3191 = vld [vmem:[%s3135 + $0xdc] sm:$0xf]
        %v3192 = vld [vmem:[%s3135 + $0xe0] sm:$0xf]
        %v3193 = vld [vmem:[%s3135 + $0xe4] sm:$0xf]
        %v3194 = vld [vmem:[%s3135 + $0xe8] sm:$0xf]
        %v3195 = vld [vmem:[%s3135 + $0xec] sm:$0xf]
        %v3196 = vld [vmem:[%s3135 + $0xf0] sm:$0xf]
        %v3197 = vld [vmem:[%s3135 + $0xf4] sm:$0xf]
        %v3198 = vld [vmem:[%s3135 + $0xf8] sm:$0xf]
        %v3199 = vld [vmem:[%s3135 + $0xfc] sm:$0xf]
        %v3200 = vld [vmem:[%s3135 + $0x100] sm:$0xf]
        %v3201 = vld [vmem:[%s3135 + $0x104] sm:$0xf]
        %v3202 = vld [vmem:[%s3135 + $0x108] sm:$0xf]
        %v3203 = vld [vmem:[%s3135 + $0x10c] sm:$0xf]
        %v3204 = vld [vmem:[%s3135 + $0x110] sm:$0xf]
        %v3205 = vld [vmem:[%s3135 + $0x114] sm:$0xf]
        %v3206 = vld [vmem:[%s3135 + $0x118] sm:$0xf]
        %v3207 = vld [vmem:[%s3135 + $0x11c] sm:$0xf]
        %v3208 = vld [vmem:[%s3135 + $0x120] sm:$0xf]
        %v3209 = vld [vmem:[%s3135 + $0x124] sm:$0xf]
        %v3210 = vld [vmem:[%s3135 + $0x128] sm:$0xf]
        %v3211 = vld [vmem:[%s3135 + $0x12c] sm:$0xf]
        %v3212 = vld [vmem:[%s3135 + $0x130] sm:$0xf]
        %v3213 = vld [vmem:[%s3135 + $0x134] sm:$0xf]
        %v3214 = vld [vmem:[%s3135 + $0x138] sm:$0xf]
        %v3215 = vld [vmem:[%s3135 + $0x13c] sm:$0xf]
        %v3216 = vld [vmem:[%s3135 + $0x140] sm:$0xf]
        %v3217 = vld [vmem:[%s3135 + $0x144] sm:$0xf]
        %v3218 = vld [vmem:[%s3135 + $0x148] sm:$0xf]
        %v3219 = vld [vmem:[%s3135 + $0x14c] sm:$0xf]
        %v3220 = vld [vmem:[%s3135 + $0x150] sm:$0xf]
        %v3221 = vld [vmem:[%s3135 + $0x154] sm:$0xf]
        %v3222 = vld [vmem:[%s3135 + $0x158] sm:$0xf]
        %v3223 = vld [vmem:[%s3135 + $0x15c] sm:$0xf]
        %v3224 = vld [vmem:[%s3135 + $0x160] sm:$0xf]
        %v3225 = vld [vmem:[%s3135 + $0x164] sm:$0xf]
        %v3226 = vld [vmem:[%s3135 + $0x168] sm:$0xf]
        %v3227 = vld [vmem:[%s3135 + $0x16c] sm:$0xf]
        %v3228 = vld [vmem:[%s3135 + $0x170] sm:$0xf]
        %v3229 = vld [vmem:[%s3135 + $0x174] sm:$0xf]
        %v3230 = vld [vmem:[%s3135 + $0x178] sm:$0xf]
        %v3231 = vld [vmem:[%s3135 + $0x17c] sm:$0xf]
        %v3232 = vld [vmem:[%s3135 + $0x180] sm:$0xf]
        %v3233 = vld [vmem:[%s3135 + $0x184] sm:$0xf]
        %v3234 = vrot.slane %v1560, 3
        %v3235 = vrot.slane %v1567, 2
        %v3236 = vsel %vm1575, %v3235, %v3234
        %v3237 = vrot.slane %v1561, 3
        %v3238 = vrot.slane %v1568, 2
        %v3239 = vsel %vm1575, %v3238, %v3237
        %v3240 = vrot.slane %v1562, 3
        %v3241 = vrot.slane %v1569, 2
        %v3242 = vsel %vm1575, %v3241, %v3240
        %v3243 = vrot.slane %v1563, 3
        %v3244 = vrot.slane %v1570, 2
        %v3245 = vsel %vm1575, %v3244, %v3243
        %v3246 = vrot.slane %v1564, 3
        %v3247 = vrot.slane %v1571, 2
        %v3248 = vsel %vm1575, %v3247, %v3246
        %v3249 = vrot.slane %v1565, 3
        %v3250 = vrot.slane %v1572, 2
        %v3251 = vsel %vm1575, %v3250, %v3249
        %v3252 = vrot.slane %v1566, 3
        %v3253 = vrot.slane %v1573, 2
        %v3254 = vsel %vm1575, %v3253, %v3252
        %v3255 = vpack.c.b16 %v3236, %v3236
        %v3256 = vpack.c.b16 %v3239, %v3239
        %v3257 = vpack.c.b16 %v3242, %v3242
        %v3258 = vpack.c.b16 %v3245, %v3245
        %v3259 = vpack.c.b16 %v3248, %v3248
        %v3260 = vpack.c.b16 %v3251, %v3251
        %v3261 = vpack.c.b16 %v3254, %v3254
        %v3366 = vunpack.c.l.b16 %v3136
        %v3367 = vunpack.c.l.b16 %v3137
        %v3368 = vunpack.c.l.b16 %v3138
        %v3369 = vunpack.c.l.b16 %v3139
        %v3370 = vunpack.c.l.b16 %v3140
        %v3371 = vunpack.c.l.b16 %v3141
        %v3372 = vunpack.c.l.b16 %v3142
        %v3373 = vunpack.c.l.b16 %v3143
        %v3374 = vunpack.c.l.b16 %v3144
        %v3375 = vunpack.c.l.b16 %v3145
        %v3376 = vunpack.c.l.b16 %v3146
        %v3377 = vunpack.c.l.b16 %v3147
        %v3378 = vunpack.c.l.b16 %v3148
        %v3379 = vunpack.c.l.b16 %v3149
        %v3380 = vunpack.c.l.b16 %v3150
        %v3381 = vunpack.c.l.b16 %v3151
        %v3382 = vunpack.c.l.b16 %v3152
        %v3383 = vunpack.c.l.b16 %v3153
        %v3384 = vunpack.c.l.b16 %v3154
        %v3385 = vunpack.c.l.b16 %v3155
        %v3386 = vunpack.c.l.b16 %v3156
        %v3387 = vunpack.c.l.b16 %v3157
        %v3388 = vunpack.c.l.b16 %v3158
        %v3389 = vunpack.c.l.b16 %v3159
        %v3390 = vunpack.c.l.b16 %v3160
        %v3391 = vunpack.c.l.b16 %v3161
        %v3392 = vunpack.c.l.b16 %v3162
        %v3393 = vunpack.c.l.b16 %v3163
        %v3394 = vunpack.c.l.b16 %v3164
        %v3395 = vunpack.c.l.b16 %v3165
        %v3396 = vunpack.c.l.b16 %v3166
        %v3397 = vunpack.c.l.b16 %v3167
        %v3398 = vunpack.c.l.b16 %v3168
        %v3399 = vunpack.c.l.b16 %v3169
        %v3400 = vunpack.c.l.b16 %v3170
        %v3401 = vunpack.c.l.b16 %v3171
        %v3402 = vunpack.c.l.b16 %v3172
        %v3403 = vunpack.c.l.b16 %v3173
        %v3404 = vunpack.c.l.b16 %v3174
        %v3405 = vunpack.c.l.b16 %v3175
        %v3406 = vunpack.c.l.b16 %v3176
        %v3407 = vunpack.c.l.b16 %v3177
        %v3408 = vunpack.c.l.b16 %v3178
        %v3409 = vunpack.c.l.b16 %v3179
        %v3410 = vunpack.c.l.b16 %v3180
        %v3411 = vunpack.c.l.b16 %v3181
        %v3412 = vunpack.c.l.b16 %v3182
        %v3413 = vunpack.c.l.b16 %v3183
        %v3414 = vunpack.c.l.b16 %v3184
        %v3415 = vunpack.c.l.b16 %v3185
        %v3416 = vunpack.c.l.b16 %v3186
        %v3417 = vunpack.c.l.b16 %v3187
        %v3418 = vunpack.c.l.b16 %v3188
        %v3419 = vunpack.c.l.b16 %v3189
        %v3420 = vunpack.c.l.b16 %v3190
        %v3421 = vunpack.c.l.b16 %v3191
        %v3422 = vunpack.c.l.b16 %v3192
        %v3423 = vunpack.c.l.b16 %v3193
        %v3424 = vunpack.c.l.b16 %v3194
        %v3425 = vunpack.c.l.b16 %v3195
        %v3426 = vunpack.c.l.b16 %v3196
        %v3427 = vunpack.c.l.b16 %v3197
        %v3428 = vunpack.c.l.b16 %v3198
        %v3429 = vunpack.c.l.b16 %v3199
        %v3430 = vunpack.c.l.b16 %v3200
        %v3431 = vunpack.c.l.b16 %v3201
        %v3432 = vunpack.c.l.b16 %v3202
        %v3433 = vunpack.c.l.b16 %v3203
        %v3434 = vunpack.c.l.b16 %v3204
        %v3435 = vunpack.c.l.b16 %v3205
        %v3436 = vunpack.c.l.b16 %v3206
        %v3437 = vunpack.c.l.b16 %v3207
        %v3438 = vunpack.c.l.b16 %v3208
        %v3439 = vunpack.c.l.b16 %v3209
        %v3440 = vunpack.c.l.b16 %v3210
        %v3441 = vunpack.c.l.b16 %v3211
        %v3442 = vunpack.c.l.b16 %v3212
        %v3443 = vunpack.c.l.b16 %v3213
        %v3444 = vunpack.c.l.b16 %v3214
        %v3445 = vunpack.c.l.b16 %v3215
        %v3446 = vunpack.c.l.b16 %v3216
        %v3447 = vunpack.c.l.b16 %v3217
        %v3448 = vunpack.c.l.b16 %v3218
        %v3449 = vunpack.c.l.b16 %v3219
        %v3450 = vunpack.c.l.b16 %v3220
        %v3451 = vunpack.c.l.b16 %v3221
        %v3452 = vunpack.c.l.b16 %v3222
        %v3453 = vunpack.c.l.b16 %v3223
        %v3454 = vunpack.c.l.b16 %v3224
        %v3455 = vunpack.c.l.b16 %v3225
        %v3456 = vunpack.c.l.b16 %v3226
        %v3457 = vunpack.c.l.b16 %v3227
        %v3458 = vunpack.c.l.b16 %v3228
        %v3459 = vunpack.c.l.b16 %v3229
        %v3460 = vunpack.c.l.b16 %v3230
        %v3461 = vunpack.c.l.b16 %v3231
        %v3462 = vunpack.c.l.b16 %v3232
        %v3463 = vunpack.c.l.b16 %v3233
        %v3464 = vpack.c.b16 %v3367, %v3366
        %v3465 = vpack.c.b16 %v3369, %v3368
        %v3466 = vpack.c.b16 %v3371, %v3370
        %v3467 = vpack.c.b16 %v3373, %v3372
        %v3468 = vpack.c.b16 %v3375, %v3374
        %v3469 = vpack.c.b16 %v3377, %v3376
        %v3470 = vpack.c.b16 %v3379, %v3378
        %v3471 = vpack.c.b16 %v3381, %v3380
        %v3472 = vpack.c.b16 %v3383, %v3382
        %v3473 = vpack.c.b16 %v3385, %v3384
        %v3474 = vpack.c.b16 %v3387, %v3386
        %v3475 = vpack.c.b16 %v3389, %v3388
        %v3476 = vpack.c.b16 %v3391, %v3390
        %v3477 = vpack.c.b16 %v3393, %v3392
        %v3478 = vpack.c.b16 %v3395, %v3394
        %v3479 = vpack.c.b16 %v3397, %v3396
        %v3480 = vpack.c.b16 %v3399, %v3398
        %v3481 = vpack.c.b16 %v3401, %v3400
        %v3482 = vpack.c.b16 %v3403, %v3402
        %v3483 = vpack.c.b16 %v3405, %v3404
        %v3484 = vpack.c.b16 %v3407, %v3406
        %v3485 = vpack.c.b16 %v3409, %v3408
        %v3486 = vpack.c.b16 %v3411, %v3410
        %v3487 = vpack.c.b16 %v3413, %v3412
        %v3488 = vpack.c.b16 %v3415, %v3414
        %v3489 = vpack.c.b16 %v3417, %v3416
        %v3490 = vpack.c.b16 %v3419, %v3418
        %v3491 = vpack.c.b16 %v3421, %v3420
        %v3492 = vpack.c.b16 %v3423, %v3422
        %v3493 = vpack.c.b16 %v3425, %v3424
        %v3494 = vpack.c.b16 %v3427, %v3426
        %v3495 = vpack.c.b16 %v3429, %v3428
        %v3496 = vpack.c.b16 %v3431, %v3430
        %v3497 = vpack.c.b16 %v3433, %v3432
        %v3498 = vpack.c.b16 %v3435, %v3434
        %v3499 = vpack.c.b16 %v3437, %v3436
        %v3500 = vpack.c.b16 %v3439, %v3438
        %v3501 = vpack.c.b16 %v3441, %v3440
        %v3502 = vpack.c.b16 %v3443, %v3442
        %v3503 = vpack.c.b16 %v3445, %v3444
        %v3504 = vpack.c.b16 %v3447, %v3446
        %v3505 = vpack.c.b16 %v3449, %v3448
        %v3506 = vpack.c.b16 %v3451, %v3450
        %v3507 = vpack.c.b16 %v3453, %v3452
        %v3508 = vpack.c.b16 %v3455, %v3454
        %v3509 = vpack.c.b16 %v3457, %v3456
        %v3510 = vpack.c.b16 %v3459, %v3458
        %v3511 = vpack.c.b16 %v3461, %v3460
        %v3512 = vpack.c.b16 %v3463, %v3462
        %v3563 = vsel %vm1896, %v3261, 0
        %3565 = vmatprep.subr.bf16.mxu0 0
        %3566 = vmatpush1.bf16.msra.mxu0 %v3464
        %3567 = vmatprep.subr.bf16.mxu0 0
        %3568 = vmatpush1.bf16.msra.mxu0 %v3465
        %3569 = vmatprep.subr.bf16.mxu0 0
        %3570 = vmatpush1.bf16.msra.mxu0 %v3466
        %3571 = vmatprep.subr.bf16.mxu0 0
        %3572 = vmatpush1.bf16.msra.mxu0 %v3467
        %3573 = vmatprep.subr.bf16.mxu0 0
        %3574 = vmatpush1.bf16.msra.mxu0 %v3468
        %3575 = vmatprep.subr.bf16.mxu0 0
        %3576 = vmatpush1.bf16.msra.mxu0 %v3469
        %3577 = vmatprep.subr.bf16.mxu0 0
        %3578 = vmatpush1.bf16.msra.mxu0 %v3470
        %3579 = vmatprep.subr.bf16.mxu0 0
        %3580 = vmatpush1.bf16.msra.mxu0 %v3471
        %3581 = vmatprep.subr.bf16.mxu0 0
        %3582 = vmatpush1.bf16.msra.mxu0 %v3472
        %3583 = vmatprep.subr.bf16.mxu0 0
        %3584 = vmatpush1.bf16.msra.mxu0 %v3473
        %3585 = vmatprep.subr.bf16.mxu0 0
        %3586 = vmatpush1.bf16.msra.mxu0 %v3474
        %3587 = vmatprep.subr.bf16.mxu0 0
        %3588 = vmatpush1.bf16.msra.mxu0 %v3475
        %3589 = vmatprep.subr.bf16.mxu0 0
        %3590 = vmatpush1.bf16.msra.mxu0 %v3476
        %3591 = vmatprep.subr.bf16.mxu0 0
        %3592 = vmatpush1.bf16.msra.mxu0 %v3477
        %3593 = vmatprep.subr.bf16.mxu0 0
        %3594 = vmatpush1.bf16.msra.mxu0 %v3478
        %3595 = vmatprep.subr.bf16.mxu0 0
        %3596 = vmatpush1.bf16.msra.mxu0 %v3479
        %3597 = vmatprep.mubr.bf16.mxu0 %v3256
        %3598 = vmatmul.mubr.bf16.gmra.mrb[0].mxu0 %v3255
        %v3599 = vpop.f32.mrb[0].mxu0
        %v3600 = vadd.f32 0.0, %v3599
        %v3601 = vpop.f32.mrb[0].mxu0
        %v3602 = vpop.f32.mrb[0].mxu0
        %v3603 = vpop.f32.mrb[0].mxu0
        %3604 = vdwg.mxu0
        %3605 = vmatprep.subr.bf16.mxu0 0
        %3606 = vmatpush1.bf16.msra.mxu0 %v3480
        %3607 = vmatprep.subr.bf16.mxu0 0
        %3608 = vmatpush1.bf16.msra.mxu0 %v3481
        %3609 = vmatprep.subr.bf16.mxu0 0
        %3610 = vmatpush1.bf16.msra.mxu0 %v3482
        %3611 = vmatprep.subr.bf16.mxu0 0
        %3612 = vmatpush1.bf16.msra.mxu0 %v3483
        %3613 = vmatprep.subr.bf16.mxu0 0
        %3614 = vmatpush1.bf16.msra.mxu0 %v3484
        %3615 = vmatprep.subr.bf16.mxu0 0
        %3616 = vmatpush1.bf16.msra.mxu0 %v3485
        %3617 = vmatprep.subr.bf16.mxu0 0
        %3618 = vmatpush1.bf16.msra.mxu0 %v3486
        %3619 = vmatprep.subr.bf16.mxu0 0
        %3620 = vmatpush1.bf16.msra.mxu0 %v3487
        %3621 = vmatprep.subr.bf16.mxu0 0
        %3622 = vmatpush1.bf16.msra.mxu0 %v3488
        %3623 = vmatprep.subr.bf16.mxu0 0
        %3624 = vmatpush1.bf16.msra.mxu0 %v3489
        %3625 = vmatprep.subr.bf16.mxu0 0
        %3626 = vmatpush1.bf16.msra.mxu0 %v3490
        %3627 = vmatprep.subr.bf16.mxu0 0
        %3628 = vmatpush1.bf16.msra.mxu0 %v3491
        %3629 = vmatprep.subr.bf16.mxu0 0
        %3630 = vmatpush1.bf16.msra.mxu0 %v3492
        %3631 = vmatprep.subr.bf16.mxu0 0
        %3632 = vmatpush1.bf16.msra.mxu0 %v3493
        %3633 = vmatprep.subr.bf16.mxu0 0
        %3634 = vmatpush1.bf16.msra.mxu0 %v3494
        %3635 = vmatprep.subr.bf16.mxu0 0
        %3636 = vmatpush1.bf16.msra.mxu0 %v3495
        %3637 = vmatprep.mubr.bf16.mxu0 %v3258
        %3638 = vmatmul.mubr.bf16.gmra.mrb[0].mxu0 %v3257
        %v3639 = vpop.f32.mrb[0].mxu0
        %v3640 = vadd.f32 %v3600, %v3639
        %v3641 = vpop.f32.mrb[0].mxu0
        %v3642 = vpop.f32.mrb[0].mxu0
        %v3643 = vpop.f32.mrb[0].mxu0
        %3644 = vdwg.mxu0
        %3645 = vmatprep.subr.bf16.mxu0 0
        %3646 = vmatpush1.bf16.msra.mxu0 %v3496
        %3647 = vmatprep.subr.bf16.mxu0 0
        %3648 = vmatpush1.bf16.msra.mxu0 %v3497
        %3649 = vmatprep.subr.bf16.mxu0 0
        %3650 = vmatpush1.bf16.msra.mxu0 %v3498
        %3651 = vmatprep.subr.bf16.mxu0 0
        %3652 = vmatpush1.bf16.msra.mxu0 %v3499
        %3653 = vmatprep.subr.bf16.mxu0 0
        %3654 = vmatpush1.bf16.msra.mxu0 %v3500
        %3655 = vmatprep.subr.bf16.mxu0 0
        %3656 = vmatpush1.bf16.msra.mxu0 %v3501
        %3657 = vmatprep.subr.bf16.mxu0 0
        %3658 = vmatpush1.bf16.msra.mxu0 %v3502
        %3659 = vmatprep.subr.bf16.mxu0 0
        %3660 = vmatpush1.bf16.msra.mxu0 %v3503
        %3661 = vmatprep.subr.bf16.mxu0 0
        %3662 = vmatpush1.bf16.msra.mxu0 %v3504
        %3663 = vmatprep.subr.bf16.mxu0 0
        %3664 = vmatpush1.bf16.msra.mxu0 %v3505
        %3665 = vmatprep.subr.bf16.mxu0 0
        %3666 = vmatpush1.bf16.msra.mxu0 %v3506
        %3667 = vmatprep.subr.bf16.mxu0 0
        %3668 = vmatpush1.bf16.msra.mxu0 %v3507
        %3669 = vmatprep.subr.bf16.mxu0 0
        %3670 = vmatpush1.bf16.msra.mxu0 %v3508
        %3671 = vmatprep.subr.bf16.mxu0 0
        %3672 = vmatpush1.bf16.msra.mxu0 %v3509
        %3673 = vmatprep.subr.bf16.mxu0 0
        %3674 = vmatpush1.bf16.msra.mxu0 %v3510
        %3675 = vmatprep.subr.bf16.mxu0 0
        %3676 = vmatpush1.bf16.msra.mxu0 %v3511
        %3677 = vmatprep.mubr.bf16.mxu0 %v3260
        %3678 = vmatmul.mubr.bf16.gmra.mrb[0].mxu0 %v3259
        %v3679 = vpop.f32.mrb[0].mxu0
        %v3680 = vadd.f32 %v3640, %v3679
        %v3681 = vpop.f32.mrb[0].mxu0
        %v3682 = vpop.f32.mrb[0].mxu0
        %v3683 = vpop.f32.mrb[0].mxu0
        %3684 = vdwg.mxu0
        %3685 = vmatprep.subr.bf16.mxu0 0
        %3686 = vmatpush1.bf16.msra.mxu0 %v3512
        %3687 = vmatprep.subr.bf16.mxu0 0
        %3688 = vmatpush1.bf16.msra.mxu0 0
        %3689 = vmatprep.subr.bf16.mxu0 0
        %3690 = vmatpush1.bf16.msra.mxu0 0
        %3691 = vmatprep.subr.bf16.mxu0 0
        %3692 = vmatpush1.bf16.msra.mxu0 0
        %3693 = vmatprep.subr.bf16.mxu0 0
        %3694 = vmatpush1.bf16.msra.mxu0 0
        %3695 = vmatprep.subr.bf16.mxu0 0
        %3696 = vmatpush1.bf16.msra.mxu0 0
        %3697 = vmatprep.subr.bf16.mxu0 0
        %3698 = vmatpush1.bf16.msra.mxu0 0
        %3699 = vmatprep.subr.bf16.mxu0 0
        %3700 = vmatpush1.bf16.msra.mxu0 0
        %3701 = vmatprep.subr.bf16.mxu0 0
        %3702 = vmatpush1.bf16.msra.mxu0 0
        %3703 = vmatprep.subr.bf16.mxu0 0
        %3704 = vmatpush1.bf16.msra.mxu0 0
        %3705 = vmatprep.subr.bf16.mxu0 0
        %3706 = vmatpush1.bf16.msra.mxu0 0
        %3707 = vmatprep.subr.bf16.mxu0 0
        %3708 = vmatpush1.bf16.msra.mxu0 0
        %3709 = vmatprep.subr.bf16.mxu0 0
        %3710 = vmatpush1.bf16.msra.mxu0 0
        %3711 = vmatprep.subr.bf16.mxu0 0
        %3712 = vmatpush1.bf16.msra.mxu0 0
        %3713 = vmatprep.subr.bf16.mxu0 0
        %3714 = vmatpush1.bf16.msra.mxu0 0
        %3715 = vmatprep.subr.bf16.mxu0 0
        %3716 = vmatpush1.bf16.msra.mxu0 0
        %3717 = vmatprep.mubr.bf16.mxu0 0
        %3718 = vmatmul.mubr.bf16.gmra.mrb[0].mxu0 %v3563
        %v3719 = vpop.f32.mrb[0].mxu0
        %v3720 = vadd.f32 %v3680, %v3719
        %v3721 = vpop.f32.mrb[0].mxu0
        %v3722 = vpop.f32.mrb[0].mxu0
        %v3723 = vpop.f32.mrb[0].mxu0
        %3724 = vdwg.mxu0
        %v3725 = vadd.f32 %v3134, %v3720
        %s3726 = scalar_lea.vmem %s429, 1568 [#allocation7]
        %v3727 = vld [vmem:[%s3726] sm:$0xf]
        %v3728 = vld [vmem:[%s3726 + $0x4] sm:$0xf]
        %v3729 = vld [vmem:[%s3726 + $0x8] sm:$0xf]
        %v3730 = vld [vmem:[%s3726 + $0xc] sm:$0xf]
        %v3731 = vld [vmem:[%s3726 + $0x10] sm:$0xf]
        %v3732 = vld [vmem:[%s3726 + $0x14] sm:$0xf]
        %v3733 = vld [vmem:[%s3726 + $0x18] sm:$0xf]
        %v3734 = vld [vmem:[%s3726 + $0x1c] sm:$0xf]
        %v3735 = vld [vmem:[%s3726 + $0x20] sm:$0xf]
        %v3736 = vld [vmem:[%s3726 + $0x24] sm:$0xf]
        %v3737 = vld [vmem:[%s3726 + $0x28] sm:$0xf]
        %v3738 = vld [vmem:[%s3726 + $0x2c] sm:$0xf]
        %v3739 = vld [vmem:[%s3726 + $0x30] sm:$0xf]
        %v3740 = vld [vmem:[%s3726 + $0x34] sm:$0xf]
        %v3741 = vld [vmem:[%s3726 + $0x38] sm:$0xf]
        %v3742 = vld [vmem:[%s3726 + $0x3c] sm:$0xf]
        %v3743 = vld [vmem:[%s3726 + $0x40] sm:$0xf]
        %v3744 = vld [vmem:[%s3726 + $0x44] sm:$0xf]
        %v3745 = vld [vmem:[%s3726 + $0x48] sm:$0xf]
        %v3746 = vld [vmem:[%s3726 + $0x4c] sm:$0xf]
        %v3747 = vld [vmem:[%s3726 + $0x50] sm:$0xf]
        %v3748 = vld [vmem:[%s3726 + $0x54] sm:$0xf]
        %v3749 = vld [vmem:[%s3726 + $0x58] sm:$0xf]
        %v3750 = vld [vmem:[%s3726 + $0x5c] sm:$0xf]
        %v3751 = vld [vmem:[%s3726 + $0x60] sm:$0xf]
        %v3752 = vld [vmem:[%s3726 + $0x64] sm:$0xf]
        %v3753 = vld [vmem:[%s3726 + $0x68] sm:$0xf]
        %v3754 = vld [vmem:[%s3726 + $0x6c] sm:$0xf]
        %v3755 = vld [vmem:[%s3726 + $0x70] sm:$0xf]
        %v3756 = vld [vmem:[%s3726 + $0x74] sm:$0xf]
        %v3757 = vld [vmem:[%s3726 + $0x78] sm:$0xf]
        %v3758 = vld [vmem:[%s3726 + $0x7c] sm:$0xf]
        %v3759 = vld [vmem:[%s3726 + $0x80] sm:$0xf]
        %v3760 = vld [vmem:[%s3726 + $0x84] sm:$0xf]
        %v3761 = vld [vmem:[%s3726 + $0x88] sm:$0xf]
        %v3762 = vld [vmem:[%s3726 + $0x8c] sm:$0xf]
        %v3763 = vld [vmem:[%s3726 + $0x90] sm:$0xf]
        %v3764 = vld [vmem:[%s3726 + $0x94] sm:$0xf]
        %v3765 = vld [vmem:[%s3726 + $0x98] sm:$0xf]
        %v3766 = vld [vmem:[%s3726 + $0x9c] sm:$0xf]
        %v3767 = vld [vmem:[%s3726 + $0xa0] sm:$0xf]
        %v3768 = vld [vmem:[%s3726 + $0xa4] sm:$0xf]
        %v3769 = vld [vmem:[%s3726 + $0xa8] sm:$0xf]
        %v3770 = vld [vmem:[%s3726 + $0xac] sm:$0xf]
        %v3771 = vld [vmem:[%s3726 + $0xb0] sm:$0xf]
        %v3772 = vld [vmem:[%s3726 + $0xb4] sm:$0xf]
        %v3773 = vld [vmem:[%s3726 + $0xb8] sm:$0xf]
        %v3774 = vld [vmem:[%s3726 + $0xbc] sm:$0xf]
        %v3775 = vld [vmem:[%s3726 + $0xc0] sm:$0xf]
        %v3776 = vld [vmem:[%s3726 + $0xc4] sm:$0xf]
        %v3777 = vld [vmem:[%s3726 + $0xc8] sm:$0xf]
        %v3778 = vld [vmem:[%s3726 + $0xcc] sm:$0xf]
        %v3779 = vld [vmem:[%s3726 + $0xd0] sm:$0xf]
        %v3780 = vld [vmem:[%s3726 + $0xd4] sm:$0xf]
        %v3781 = vld [vmem:[%s3726 + $0xd8] sm:$0xf]
        %v3782 = vld [vmem:[%s3726 + $0xdc] sm:$0xf]
        %v3783 = vld [vmem:[%s3726 + $0xe0] sm:$0xf]
        %v3784 = vld [vmem:[%s3726 + $0xe4] sm:$0xf]
        %v3785 = vld [vmem:[%s3726 + $0xe8] sm:$0xf]
        %v3786 = vld [vmem:[%s3726 + $0xec] sm:$0xf]
        %v3787 = vld [vmem:[%s3726 + $0xf0] sm:$0xf]
        %v3788 = vld [vmem:[%s3726 + $0xf4] sm:$0xf]
        %v3789 = vld [vmem:[%s3726 + $0xf8] sm:$0xf]
        %v3790 = vld [vmem:[%s3726 + $0xfc] sm:$0xf]
        %v3791 = vld [vmem:[%s3726 + $0x100] sm:$0xf]
        %v3792 = vld [vmem:[%s3726 + $0x104] sm:$0xf]
        %v3793 = vld [vmem:[%s3726 + $0x108] sm:$0xf]
        %v3794 = vld [vmem:[%s3726 + $0x10c] sm:$0xf]
        %v3795 = vld [vmem:[%s3726 + $0x110] sm:$0xf]
        %v3796 = vld [vmem:[%s3726 + $0x114] sm:$0xf]
        %v3797 = vld [vmem:[%s3726 + $0x118] sm:$0xf]
        %v3798 = vld [vmem:[%s3726 + $0x11c] sm:$0xf]
        %v3799 = vld [vmem:[%s3726 + $0x120] sm:$0xf]
        %v3800 = vld [vmem:[%s3726 + $0x124] sm:$0xf]
        %v3801 = vld [vmem:[%s3726 + $0x128] sm:$0xf]
        %v3802 = vld [vmem:[%s3726 + $0x12c] sm:$0xf]
        %v3803 = vld [vmem:[%s3726 + $0x130] sm:$0xf]
        %v3804 = vld [vmem:[%s3726 + $0x134] sm:$0xf]
        %v3805 = vld [vmem:[%s3726 + $0x138] sm:$0xf]
        %v3806 = vld [vmem:[%s3726 + $0x13c] sm:$0xf]
        %v3807 = vld [vmem:[%s3726 + $0x140] sm:$0xf]
        %v3808 = vld [vmem:[%s3726 + $0x144] sm:$0xf]
        %v3809 = vld [vmem:[%s3726 + $0x148] sm:$0xf]
        %v3810 = vld [vmem:[%s3726 + $0x14c] sm:$0xf]
        %v3811 = vld [vmem:[%s3726 + $0x150] sm:$0xf]
        %v3812 = vld [vmem:[%s3726 + $0x154] sm:$0xf]
        %v3813 = vld [vmem:[%s3726 + $0x158] sm:$0xf]
        %v3814 = vld [vmem:[%s3726 + $0x15c] sm:$0xf]
        %v3815 = vld [vmem:[%s3726 + $0x160] sm:$0xf]
        %v3816 = vld [vmem:[%s3726 + $0x164] sm:$0xf]
        %v3817 = vld [vmem:[%s3726 + $0x168] sm:$0xf]
        %v3818 = vld [vmem:[%s3726 + $0x16c] sm:$0xf]
        %v3819 = vld [vmem:[%s3726 + $0x170] sm:$0xf]
        %v3820 = vld [vmem:[%s3726 + $0x174] sm:$0xf]
        %v3821 = vld [vmem:[%s3726 + $0x178] sm:$0xf]
        %v3822 = vld [vmem:[%s3726 + $0x17c] sm:$0xf]
        %v3823 = vld [vmem:[%s3726 + $0x180] sm:$0xf]
        %v3824 = vld [vmem:[%s3726 + $0x184] sm:$0xf]
        %v3825 = vrot.slane %v1560, 4
        %v3826 = vrot.slane %v1567, 3
        %v3827 = vsel %vm1575, %v3826, %v3825
        %v3828 = vrot.slane %v1561, 4
        %v3829 = vrot.slane %v1568, 3
        %v3830 = vsel %vm1575, %v3829, %v3828
        %v3831 = vrot.slane %v1562, 4
        %v3832 = vrot.slane %v1569, 3
        %v3833 = vsel %vm1575, %v3832, %v3831
        %v3834 = vrot.slane %v1563, 4
        %v3835 = vrot.slane %v1570, 3
        %v3836 = vsel %vm1575, %v3835, %v3834
        %v3837 = vrot.slane %v1564, 4
        %v3838 = vrot.slane %v1571, 3
        %v3839 = vsel %vm1575, %v3838, %v3837
        %v3840 = vrot.slane %v1565, 4
        %v3841 = vrot.slane %v1572, 3
        %v3842 = vsel %vm1575, %v3841, %v3840
        %v3843 = vrot.slane %v1566, 4
        %v3844 = vrot.slane %v1573, 3
        %v3845 = vsel %vm1575, %v3844, %v3843
        %v3846 = vpack.c.b16 %v3827, %v3827
        %v3847 = vpack.c.b16 %v3830, %v3830
        %v3848 = vpack.c.b16 %v3833, %v3833
        %v3849 = vpack.c.b16 %v3836, %v3836
        %v3850 = vpack.c.b16 %v3839, %v3839
        %v3851 = vpack.c.b16 %v3842, %v3842
        %v3852 = vpack.c.b16 %v3845, %v3845
        %v3957 = vunpack.c.l.b16 %v3727
        %v3958 = vunpack.c.l.b16 %v3728
        %v3959 = vunpack.c.l.b16 %v3729
        %v3960 = vunpack.c.l.b16 %v3730
        %v3961 = vunpack.c.l.b16 %v3731
        %v3962 = vunpack.c.l.b16 %v3732
        %v3963 = vunpack.c.l.b16 %v3733
        %v3964 = vunpack.c.l.b16 %v3734
        %v3965 = vunpack.c.l.b16 %v3735
        %v3966 = vunpack.c.l.b16 %v3736
        %v3967 = vunpack.c.l.b16 %v3737
        %v3968 = vunpack.c.l.b16 %v3738
        %v3969 = vunpack.c.l.b16 %v3739
        %v3970 = vunpack.c.l.b16 %v3740
        %v3971 = vunpack.c.l.b16 %v3741
        %v3972 = vunpack.c.l.b16 %v3742
        %v3973 = vunpack.c.l.b16 %v3743
        %v3974 = vunpack.c.l.b16 %v3744
        %v3975 = vunpack.c.l.b16 %v3745
        %v3976 = vunpack.c.l.b16 %v3746
        %v3977 = vunpack.c.l.b16 %v3747
        %v3978 = vunpack.c.l.b16 %v3748
        %v3979 = vunpack.c.l.b16 %v3749
        %v3980 = vunpack.c.l.b16 %v3750
        %v3981 = vunpack.c.l.b16 %v3751
        %v3982 = vunpack.c.l.b16 %v3752
        %v3983 = vunpack.c.l.b16 %v3753
        %v3984 = vunpack.c.l.b16 %v3754
        %v3985 = vunpack.c.l.b16 %v3755
        %v3986 = vunpack.c.l.b16 %v3756
        %v3987 = vunpack.c.l.b16 %v3757
        %v3988 = vunpack.c.l.b16 %v3758
        %v3989 = vunpack.c.l.b16 %v3759
        %v3990 = vunpack.c.l.b16 %v3760
        %v3991 = vunpack.c.l.b16 %v3761
        %v3992 = vunpack.c.l.b16 %v3762
        %v3993 = vunpack.c.l.b16 %v3763
        %v3994 = vunpack.c.l.b16 %v3764
        %v3995 = vunpack.c.l.b16 %v3765
        %v3996 = vunpack.c.l.b16 %v3766
        %v3997 = vunpack.c.l.b16 %v3767
        %v3998 = vunpack.c.l.b16 %v3768
        %v3999 = vunpack.c.l.b16 %v3769
        %v4000 = vunpack.c.l.b16 %v3770
        %v4001 = vunpack.c.l.b16 %v3771
        %v4002 = vunpack.c.l.b16 %v3772
        %v4003 = vunpack.c.l.b16 %v3773
        %v4004 = vunpack.c.l.b16 %v3774
        %v4005 = vunpack.c.l.b16 %v3775
        %v4006 = vunpack.c.l.b16 %v3776
        %v4007 = vunpack.c.l.b16 %v3777
        %v4008 = vunpack.c.l.b16 %v3778
        %v4009 = vunpack.c.l.b16 %v3779
        %v4010 = vunpack.c.l.b16 %v3780
        %v4011 = vunpack.c.l.b16 %v3781
        %v4012 = vunpack.c.l.b16 %v3782
        %v4013 = vunpack.c.l.b16 %v3783
        %v4014 = vunpack.c.l.b16 %v3784
        %v4015 = vunpack.c.l.b16 %v3785
        %v4016 = vunpack.c.l.b16 %v3786
        %v4017 = vunpack.c.l.b16 %v3787
        %v4018 = vunpack.c.l.b16 %v3788
        %v4019 = vunpack.c.l.b16 %v3789
        %v4020 = vunpack.c.l.b16 %v3790
        %v4021 = vunpack.c.l.b16 %v3791
        %v4022 = vunpack.c.l.b16 %v3792
        %v4023 = vunpack.c.l.b16 %v3793
        %v4024 = vunpack.c.l.b16 %v3794
        %v4025 = vunpack.c.l.b16 %v3795
        %v4026 = vunpack.c.l.b16 %v3796
        %v4027 = vunpack.c.l.b16 %v3797
        %v4028 = vunpack.c.l.b16 %v3798
        %v4029 = vunpack.c.l.b16 %v3799
        %v4030 = vunpack.c.l.b16 %v3800
        %v4031 = vunpack.c.l.b16 %v3801
        %v4032 = vunpack.c.l.b16 %v3802
        %v4033 = vunpack.c.l.b16 %v3803
        %v4034 = vunpack.c.l.b16 %v3804
        %v4035 = vunpack.c.l.b16 %v3805
        %v4036 = vunpack.c.l.b16 %v3806
        %v4037 = vunpack.c.l.b16 %v3807
        %v4038 = vunpack.c.l.b16 %v3808
        %v4039 = vunpack.c.l.b16 %v3809
        %v4040 = vunpack.c.l.b16 %v3810
        %v4041 = vunpack.c.l.b16 %v3811
        %v4042 = vunpack.c.l.b16 %v3812
        %v4043 = vunpack.c.l.b16 %v3813
        %v4044 = vunpack.c.l.b16 %v3814
        %v4045 = vunpack.c.l.b16 %v3815
        %v4046 = vunpack.c.l.b16 %v3816
        %v4047 = vunpack.c.l.b16 %v3817
        %v4048 = vunpack.c.l.b16 %v3818
        %v4049 = vunpack.c.l.b16 %v3819
        %v4050 = vunpack.c.l.b16 %v3820
        %v4051 = vunpack.c.l.b16 %v3821
        %v4052 = vunpack.c.l.b16 %v3822
        %v4053 = vunpack.c.l.b16 %v3823
        %v4054 = vunpack.c.l.b16 %v3824
        %v4055 = vpack.c.b16 %v3958, %v3957
        %v4056 = vpack.c.b16 %v3960, %v3959
        %v4057 = vpack.c.b16 %v3962, %v3961
        %v4058 = vpack.c.b16 %v3964, %v3963
        %v4059 = vpack.c.b16 %v3966, %v3965
        %v4060 = vpack.c.b16 %v3968, %v3967
        %v4061 = vpack.c.b16 %v3970, %v3969
        %v4062 = vpack.c.b16 %v3972, %v3971
        %v4063 = vpack.c.b16 %v3974, %v3973
        %v4064 = vpack.c.b16 %v3976, %v3975
        %v4065 = vpack.c.b16 %v3978, %v3977
        %v4066 = vpack.c.b16 %v3980, %v3979
        %v4067 = vpack.c.b16 %v3982, %v3981
        %v4068 = vpack.c.b16 %v3984, %v3983
        %v4069 = vpack.c.b16 %v3986, %v3985
        %v4070 = vpack.c.b16 %v3988, %v3987
        %v4071 = vpack.c.b16 %v3990, %v3989
        %v4072 = vpack.c.b16 %v3992, %v3991
        %v4073 = vpack.c.b16 %v3994, %v3993
        %v4074 = vpack.c.b16 %v3996, %v3995
        %v4075 = vpack.c.b16 %v3998, %v3997
        %v4076 = vpack.c.b16 %v4000, %v3999
        %v4077 = vpack.c.b16 %v4002, %v4001
        %v4078 = vpack.c.b16 %v4004, %v4003
        %v4079 = vpack.c.b16 %v4006, %v4005
        %v4080 = vpack.c.b16 %v4008, %v4007
        %v4081 = vpack.c.b16 %v4010, %v4009
        %v4082 = vpack.c.b16 %v4012, %v4011
        %v4083 = vpack.c.b16 %v4014, %v4013
        %v4084 = vpack.c.b16 %v4016, %v4015
        %v4085 = vpack.c.b16 %v4018, %v4017
        %v4086 = vpack.c.b16 %v4020, %v4019
        %v4087 = vpack.c.b16 %v4022, %v4021
        %v4088 = vpack.c.b16 %v4024, %v4023
        %v4089 = vpack.c.b16 %v4026, %v4025
        %v4090 = vpack.c.b16 %v4028, %v4027
        %v4091 = vpack.c.b16 %v4030, %v4029
        %v4092 = vpack.c.b16 %v4032, %v4031
        %v4093 = vpack.c.b16 %v4034, %v4033
        %v4094 = vpack.c.b16 %v4036, %v4035
        %v4095 = vpack.c.b16 %v4038, %v4037
        %v4096 = vpack.c.b16 %v4040, %v4039
        %v4097 = vpack.c.b16 %v4042, %v4041
        %v4098 = vpack.c.b16 %v4044, %v4043
        %v4099 = vpack.c.b16 %v4046, %v4045
        %v4100 = vpack.c.b16 %v4048, %v4047
        %v4101 = vpack.c.b16 %v4050, %v4049
        %v4102 = vpack.c.b16 %v4052, %v4051
        %v4103 = vpack.c.b16 %v4054, %v4053
        %v4154 = vsel %vm1896, %v3852, 0
        %4156 = vmatprep.subr.bf16.mxu0 0
        %4157 = vmatpush1.bf16.msra.mxu0 %v4055
        %4158 = vmatprep.subr.bf16.mxu0 0
        %4159 = vmatpush1.bf16.msra.mxu0 %v4056
        %4160 = vmatprep.subr.bf16.mxu0 0
        %4161 = vmatpush1.bf16.msra.mxu0 %v4057
        %4162 = vmatprep.subr.bf16.mxu0 0
        %4163 = vmatpush1.bf16.msra.mxu0 %v4058
        %4164 = vmatprep.subr.bf16.mxu0 0
        %4165 = vmatpush1.bf16.msra.mxu0 %v4059
        %4166 = vmatprep.subr.bf16.mxu0 0
        %4167 = vmatpush1.bf16.msra.mxu0 %v4060
        %4168 = vmatprep.subr.bf16.mxu0 0
        %4169 = vmatpush1.bf16.msra.mxu0 %v4061
        %4170 = vmatprep.subr.bf16.mxu0 0
        %4171 = vmatpush1.bf16.msra.mxu0 %v4062
        %4172 = vmatprep.subr.bf16.mxu0 0
        %4173 = vmatpush1.bf16.msra.mxu0 %v4063
        %4174 = vmatprep.subr.bf16.mxu0 0
        %4175 = vmatpush1.bf16.msra.mxu0 %v4064
        %4176 = vmatprep.subr.bf16.mxu0 0
        %4177 = vmatpush1.bf16.msra.mxu0 %v4065
        %4178 = vmatprep.subr.bf16.mxu0 0
        %4179 = vmatpush1.bf16.msra.mxu0 %v4066
        %4180 = vmatprep.subr.bf16.mxu0 0
        %4181 = vmatpush1.bf16.msra.mxu0 %v4067
        %4182 = vmatprep.subr.bf16.mxu0 0
        %4183 = vmatpush1.bf16.msra.mxu0 %v4068
        %4184 = vmatprep.subr.bf16.mxu0 0
        %4185 = vmatpush1.bf16.msra.mxu0 %v4069
        %4186 = vmatprep.subr.bf16.mxu0 0
        %4187 = vmatpush1.bf16.msra.mxu0 %v4070
        %4188 = vmatprep.mubr.bf16.mxu0 %v3847
        %4189 = vmatmul.mubr.bf16.gmra.mrb[0].mxu0 %v3846
        %v4190 = vpop.f32.mrb[0].mxu0
        %v4191 = vadd.f32 0.0, %v4190
        %v4192 = vpop.f32.mrb[0].mxu0
        %v4193 = vpop.f32.mrb[0].mxu0
        %v4194 = vpop.f32.mrb[0].mxu0
        %4195 = vdwg.mxu0
        %4196 = vmatprep.subr.bf16.mxu0 0
        %4197 = vmatpush1.bf16.msra.mxu0 %v4071
        %4198 = vmatprep.subr.bf16.mxu0 0
        %4199 = vmatpush1.bf16.msra.mxu0 %v4072
        %4200 = vmatprep.subr.bf16.mxu0 0
        %4201 = vmatpush1.bf16.msra.mxu0 %v4073
        %4202 = vmatprep.subr.bf16.mxu0 0
        %4203 = vmatpush1.bf16.msra.mxu0 %v4074
        %4204 = vmatprep.subr.bf16.mxu0 0
        %4205 = vmatpush1.bf16.msra.mxu0 %v4075
        %4206 = vmatprep.subr.bf16.mxu0 0
        %4207 = vmatpush1.bf16.msra.mxu0 %v4076
        %4208 = vmatprep.subr.bf16.mxu0 0
        %4209 = vmatpush1.bf16.msra.mxu0 %v4077
        %4210 = vmatprep.subr.bf16.mxu0 0
        %4211 = vmatpush1.bf16.msra.mxu0 %v4078
        %4212 = vmatprep.subr.bf16.mxu0 0
        %4213 = vmatpush1.bf16.msra.mxu0 %v4079
        %4214 = vmatprep.subr.bf16.mxu0 0
        %4215 = vmatpush1.bf16.msra.mxu0 %v4080
        %4216 = vmatprep.subr.bf16.mxu0 0
        %4217 = vmatpush1.bf16.msra.mxu0 %v4081
        %4218 = vmatprep.subr.bf16.mxu0 0
        %4219 = vmatpush1.bf16.msra.mxu0 %v4082
        %4220 = vmatprep.subr.bf16.mxu0 0
        %4221 = vmatpush1.bf16.msra.mxu0 %v4083
        %4222 = vmatprep.subr.bf16.mxu0 0
        %4223 = vmatpush1.bf16.msra.mxu0 %v4084
        %4224 = vmatprep.subr.bf16.mxu0 0
        %4225 = vmatpush1.bf16.msra.mxu0 %v4085
        %4226 = vmatprep.subr.bf16.mxu0 0
        %4227 = vmatpush1.bf16.msra.mxu0 %v4086
        %4228 = vmatprep.mubr.bf16.mxu0 %v3849
        %4229 = vmatmul.mubr.bf16.gmra.mrb[0].mxu0 %v3848
        %v4230 = vpop.f32.mrb[0].mxu0
        %v4231 = vadd.f32 %v4191, %v4230
        %v4232 = vpop.f32.mrb[0].mxu0
        %v4233 = vpop.f32.mrb[0].mxu0
        %v4234 = vpop.f32.mrb[0].mxu0
        %4235 = vdwg.mxu0
        %4236 = vmatprep.subr.bf16.mxu0 0
        %4237 = vmatpush1.bf16.msra.mxu0 %v4087
        %4238 = vmatprep.subr.bf16.mxu0 0
        %4239 = vmatpush1.bf16.msra.mxu0 %v4088
        %4240 = vmatprep.subr.bf16.mxu0 0
        %4241 = vmatpush1.bf16.msra.mxu0 %v4089
        %4242 = vmatprep.subr.bf16.mxu0 0
        %4243 = vmatpush1.bf16.msra.mxu0 %v4090
        %4244 = vmatprep.subr.bf16.mxu0 0
        %4245 = vmatpush1.bf16.msra.mxu0 %v4091
        %4246 = vmatprep.subr.bf16.mxu0 0
        %4247 = vmatpush1.bf16.msra.mxu0 %v4092
        %4248 = vmatprep.subr.bf16.mxu0 0
        %4249 = vmatpush1.bf16.msra.mxu0 %v4093
        %4250 = vmatprep.subr.bf16.mxu0 0
        %4251 = vmatpush1.bf16.msra.mxu0 %v4094
        %4252 = vmatprep.subr.bf16.mxu0 0
        %4253 = vmatpush1.bf16.msra.mxu0 %v4095
        %4254 = vmatprep.subr.bf16.mxu0 0
        %4255 = vmatpush1.bf16.msra.mxu0 %v4096
        %4256 = vmatprep.subr.bf16.mxu0 0
        %4257 = vmatpush1.bf16.msra.mxu0 %v4097
        %4258 = vmatprep.subr.bf16.mxu0 0
        %4259 = vmatpush1.bf16.msra.mxu0 %v4098
        %4260 = vmatprep.subr.bf16.mxu0 0
        %4261 = vmatpush1.bf16.msra.mxu0 %v4099
        %4262 = vmatprep.subr.bf16.mxu0 0
        %4263 = vmatpush1.bf16.msra.mxu0 %v4100
        %4264 = vmatprep.subr.bf16.mxu0 0
        %4265 = vmatpush1.bf16.msra.mxu0 %v4101
        %4266 = vmatprep.subr.bf16.mxu0 0
        %4267 = vmatpush1.bf16.msra.mxu0 %v4102
        %4268 = vmatprep.mubr.bf16.mxu0 %v3851
        %4269 = vmatmul.mubr.bf16.gmra.mrb[0].mxu0 %v3850
        %v4270 = vpop.f32.mrb[0].mxu0
        %v4271 = vadd.f32 %v4231, %v4270
        %v4272 = vpop.f32.mrb[0].mxu0
        %v4273 = vpop.f32.mrb[0].mxu0
        %v4274 = vpop.f32.mrb[0].mxu0
        %4275 = vdwg.mxu0
        %4276 = vmatprep.subr.bf16.mxu0 0
        %4277 = vmatpush1.bf16.msra.mxu0 %v4103
        %4278 = vmatprep.subr.bf16.mxu0 0
        %4279 = vmatpush1.bf16.msra.mxu0 0
        %4280 = vmatprep.subr.bf16.mxu0 0
        %4281 = vmatpush1.bf16.msra.mxu0 0
        %4282 = vmatprep.subr.bf16.mxu0 0
        %4283 = vmatpush1.bf16.msra.mxu0 0
        %4284 = vmatprep.subr.bf16.mxu0 0
        %4285 = vmatpush1.bf16.msra.mxu0 0
        %4286 = vmatprep.subr.bf16.mxu0 0
        %4287 = vmatpush1.bf16.msra.mxu0 0
        %4288 = vmatprep.subr.bf16.mxu0 0
        %4289 = vmatpush1.bf16.msra.mxu0 0
        %4290 = vmatprep.subr.bf16.mxu0 0
        %4291 = vmatpush1.bf16.msra.mxu0 0
        %4292 = vmatprep.subr.bf16.mxu0 0
        %4293 = vmatpush1.bf16.msra.mxu0 0
        %4294 = vmatprep.subr.bf16.mxu0 0
        %4295 = vmatpush1.bf16.msra.mxu0 0
        %4296 = vmatprep.subr.bf16.mxu0 0
        %4297 = vmatpush1.bf16.msra.mxu0 0
        %4298 = vmatprep.subr.bf16.mxu0 0
        %4299 = vmatpush1.bf16.msra.mxu0 0
        %4300 = vmatprep.subr.bf16.mxu0 0
        %4301 = vmatpush1.bf16.msra.mxu0 0
        %4302 = vmatprep.subr.bf16.mxu0 0
        %4303 = vmatpush1.bf16.msra.mxu0 0
        %4304 = vmatprep.subr.bf16.mxu0 0
        %4305 = vmatpush1.bf16.msra.mxu0 0
        %4306 = vmatprep.subr.bf16.mxu0 0
        %4307 = vmatpush1.bf16.msra.mxu0 0
        %4308 = vmatprep.mubr.bf16.mxu0 0
        %4309 = vmatmul.mubr.bf16.gmra.mrb[0].mxu0 %v4154
        %v4310 = vpop.f32.mrb[0].mxu0
        %v4311 = vadd.f32 %v4271, %v4310
        %v4312 = vpop.f32.mrb[0].mxu0
        %v4313 = vpop.f32.mrb[0].mxu0
        %v4314 = vpop.f32.mrb[0].mxu0
        %4315 = vdwg.mxu0
        %v4316 = vadd.f32 %v3725, %v4311
        %s4317 = scalar_lea.vmem %s429, 1960 [#allocation7]
        %v4318 = vld [vmem:[%s4317] sm:$0xf]
        %v4319 = vld [vmem:[%s4317 + $0x4] sm:$0xf]
        %v4320 = vld [vmem:[%s4317 + $0x8] sm:$0xf]
        %v4321 = vld [vmem:[%s4317 + $0xc] sm:$0xf]
        %v4322 = vld [vmem:[%s4317 + $0x10] sm:$0xf]
        %v4323 = vld [vmem:[%s4317 + $0x14] sm:$0xf]
        %v4324 = vld [vmem:[%s4317 + $0x18] sm:$0xf]
        %v4325 = vld [vmem:[%s4317 + $0x1c] sm:$0xf]
        %v4326 = vld [vmem:[%s4317 + $0x20] sm:$0xf]
        %v4327 = vld [vmem:[%s4317 + $0x24] sm:$0xf]
        %v4328 = vld [vmem:[%s4317 + $0x28] sm:$0xf]
        %v4329 = vld [vmem:[%s4317 + $0x2c] sm:$0xf]
        %v4330 = vld [vmem:[%s4317 + $0x30] sm:$0xf]
        %v4331 = vld [vmem:[%s4317 + $0x34] sm:$0xf]
        %v4332 = vld [vmem:[%s4317 + $0x38] sm:$0xf]
        %v4333 = vld [vmem:[%s4317 + $0x3c] sm:$0xf]
        %v4334 = vld [vmem:[%s4317 + $0x40] sm:$0xf]
        %v4335 = vld [vmem:[%s4317 + $0x44] sm:$0xf]
        %v4336 = vld [vmem:[%s4317 + $0x48] sm:$0xf]
        %v4337 = vld [vmem:[%s4317 + $0x4c] sm:$0xf]
        %v4338 = vld [vmem:[%s4317 + $0x50] sm:$0xf]
        %v4339 = vld [vmem:[%s4317 + $0x54] sm:$0xf]
        %v4340 = vld [vmem:[%s4317 + $0x58] sm:$0xf]
        %v4341 = vld [vmem:[%s4317 + $0x5c] sm:$0xf]
        %v4342 = vld [vmem:[%s4317 + $0x60] sm:$0xf]
        %v4343 = vld [vmem:[%s4317 + $0x64] sm:$0xf]
        %v4344 = vld [vmem:[%s4317 + $0x68] sm:$0xf]
        %v4345 = vld [vmem:[%s4317 + $0x6c] sm:$0xf]
        %v4346 = vld [vmem:[%s4317 + $0x70] sm:$0xf]
        %v4347 = vld [vmem:[%s4317 + $0x74] sm:$0xf]
        %v4348 = vld [vmem:[%s4317 + $0x78] sm:$0xf]
        %v4349 = vld [vmem:[%s4317 + $0x7c] sm:$0xf]
        %v4350 = vld [vmem:[%s4317 + $0x80] sm:$0xf]
        %v4351 = vld [vmem:[%s4317 + $0x84] sm:$0xf]
        %v4352 = vld [vmem:[%s4317 + $0x88] sm:$0xf]
        %v4353 = vld [vmem:[%s4317 + $0x8c] sm:$0xf]
        %v4354 = vld [vmem:[%s4317 + $0x90] sm:$0xf]
        %v4355 = vld [vmem:[%s4317 + $0x94] sm:$0xf]
        %v4356 = vld [vmem:[%s4317 + $0x98] sm:$0xf]
        %v4357 = vld [vmem:[%s4317 + $0x9c] sm:$0xf]
        %v4358 = vld [vmem:[%s4317 + $0xa0] sm:$0xf]
        %v4359 = vld [vmem:[%s4317 + $0xa4] sm:$0xf]
        %v4360 = vld [vmem:[%s4317 + $0xa8] sm:$0xf]
        %v4361 = vld [vmem:[%s4317 + $0xac] sm:$0xf]
        %v4362 = vld [vmem:[%s4317 + $0xb0] sm:$0xf]
        %v4363 = vld [vmem:[%s4317 + $0xb4] sm:$0xf]
        %v4364 = vld [vmem:[%s4317 + $0xb8] sm:$0xf]
        %v4365 = vld [vmem:[%s4317 + $0xbc] sm:$0xf]
        %v4366 = vld [vmem:[%s4317 + $0xc0] sm:$0xf]
        %v4367 = vld [vmem:[%s4317 + $0xc4] sm:$0xf]
        %v4368 = vld [vmem:[%s4317 + $0xc8] sm:$0xf]
        %v4369 = vld [vmem:[%s4317 + $0xcc] sm:$0xf]
        %v4370 = vld [vmem:[%s4317 + $0xd0] sm:$0xf]
        %v4371 = vld [vmem:[%s4317 + $0xd4] sm:$0xf]
        %v4372 = vld [vmem:[%s4317 + $0xd8] sm:$0xf]
        %v4373 = vld [vmem:[%s4317 + $0xdc] sm:$0xf]
        %v4374 = vld [vmem:[%s4317 + $0xe0] sm:$0xf]
        %v4375 = vld [vmem:[%s4317 + $0xe4] sm:$0xf]
        %v4376 = vld [vmem:[%s4317 + $0xe8] sm:$0xf]
        %v4377 = vld [vmem:[%s4317 + $0xec] sm:$0xf]
        %v4378 = vld [vmem:[%s4317 + $0xf0] sm:$0xf]
        %v4379 = vld [vmem:[%s4317 + $0xf4] sm:$0xf]
        %v4380 = vld [vmem:[%s4317 + $0xf8] sm:$0xf]
        %v4381 = vld [vmem:[%s4317 + $0xfc] sm:$0xf]
        %v4382 = vld [vmem:[%s4317 + $0x100] sm:$0xf]
        %v4383 = vld [vmem:[%s4317 + $0x104] sm:$0xf]
        %v4384 = vld [vmem:[%s4317 + $0x108] sm:$0xf]
        %v4385 = vld [vmem:[%s4317 + $0x10c] sm:$0xf]
        %v4386 = vld [vmem:[%s4317 + $0x110] sm:$0xf]
        %v4387 = vld [vmem:[%s4317 + $0x114] sm:$0xf]
        %v4388 = vld [vmem:[%s4317 + $0x118] sm:$0xf]
        %v4389 = vld [vmem:[%s4317 + $0x11c] sm:$0xf]
        %v4390 = vld [vmem:[%s4317 + $0x120] sm:$0xf]
        %v4391 = vld [vmem:[%s4317 + $0x124] sm:$0xf]
        %v4392 = vld [vmem:[%s4317 + $0x128] sm:$0xf]
        %v4393 = vld [vmem:[%s4317 + $0x12c] sm:$0xf]
        %v4394 = vld [vmem:[%s4317 + $0x130] sm:$0xf]
        %v4395 = vld [vmem:[%s4317 + $0x134] sm:$0xf]
        %v4396 = vld [vmem:[%s4317 + $0x138] sm:$0xf]
        %v4397 = vld [vmem:[%s4317 + $0x13c] sm:$0xf]
        %v4398 = vld [vmem:[%s4317 + $0x140] sm:$0xf]
        %v4399 = vld [vmem:[%s4317 + $0x144] sm:$0xf]
        %v4400 = vld [vmem:[%s4317 + $0x148] sm:$0xf]
        %v4401 = vld [vmem:[%s4317 + $0x14c] sm:$0xf]
        %v4402 = vld [vmem:[%s4317 + $0x150] sm:$0xf]
        %v4403 = vld [vmem:[%s4317 + $0x154] sm:$0xf]
        %v4404 = vld [vmem:[%s4317 + $0x158] sm:$0xf]
        %v4405 = vld [vmem:[%s4317 + $0x15c] sm:$0xf]
        %v4406 = vld [vmem:[%s4317 + $0x160] sm:$0xf]
        %v4407 = vld [vmem:[%s4317 + $0x164] sm:$0xf]
        %v4408 = vld [vmem:[%s4317 + $0x168] sm:$0xf]
        %v4409 = vld [vmem:[%s4317 + $0x16c] sm:$0xf]
        %v4410 = vld [vmem:[%s4317 + $0x170] sm:$0xf]
        %v4411 = vld [vmem:[%s4317 + $0x174] sm:$0xf]
        %v4412 = vld [vmem:[%s4317 + $0x178] sm:$0xf]
        %v4413 = vld [vmem:[%s4317 + $0x17c] sm:$0xf]
        %v4414 = vld [vmem:[%s4317 + $0x180] sm:$0xf]
        %v4415 = vld [vmem:[%s4317 + $0x184] sm:$0xf]
        %v4416 = vrot.slane %v1560, 5
        %v4417 = vrot.slane %v1567, 4
        %v4418 = vsel %vm1575, %v4417, %v4416
        %v4419 = vrot.slane %v1561, 5
        %v4420 = vrot.slane %v1568, 4
        %v4421 = vsel %vm1575, %v4420, %v4419
        %v4422 = vrot.slane %v1562, 5
        %v4423 = vrot.slane %v1569, 4
        %v4424 = vsel %vm1575, %v4423, %v4422
        %v4425 = vrot.slane %v1563, 5
        %v4426 = vrot.slane %v1570, 4
        %v4427 = vsel %vm1575, %v4426, %v4425
        %v4428 = vrot.slane %v1564, 5
        %v4429 = vrot.slane %v1571, 4
        %v4430 = vsel %vm1575, %v4429, %v4428
        %v4431 = vrot.slane %v1565, 5
        %v4432 = vrot.slane %v1572, 4
        %v4433 = vsel %vm1575, %v4432, %v4431
        %v4434 = vrot.slane %v1566, 5
        %v4435 = vrot.slane %v1573, 4
        %v4436 = vsel %vm1575, %v4435, %v4434
        %v4437 = vpack.c.b16 %v4418, %v4418
        %v4438 = vpack.c.b16 %v4421, %v4421
        %v4439 = vpack.c.b16 %v4424, %v4424
        %v4440 = vpack.c.b16 %v4427, %v4427
        %v4441 = vpack.c.b16 %v4430, %v4430
        %v4442 = vpack.c.b16 %v4433, %v4433
        %v4443 = vpack.c.b16 %v4436, %v4436
        %v4548 = vunpack.c.l.b16 %v4318
        %v4549 = vunpack.c.l.b16 %v4319
        %v4550 = vunpack.c.l.b16 %v4320
        %v4551 = vunpack.c.l.b16 %v4321
        %v4552 = vunpack.c.l.b16 %v4322
        %v4553 = vunpack.c.l.b16 %v4323
        %v4554 = vunpack.c.l.b16 %v4324
        %v4555 = vunpack.c.l.b16 %v4325
        %v4556 = vunpack.c.l.b16 %v4326
        %v4557 = vunpack.c.l.b16 %v4327
        %v4558 = vunpack.c.l.b16 %v4328
        %v4559 = vunpack.c.l.b16 %v4329
        %v4560 = vunpack.c.l.b16 %v4330
        %v4561 = vunpack.c.l.b16 %v4331
        %v4562 = vunpack.c.l.b16 %v4332
        %v4563 = vunpack.c.l.b16 %v4333
        %v4564 = vunpack.c.l.b16 %v4334
        %v4565 = vunpack.c.l.b16 %v4335
        %v4566 = vunpack.c.l.b16 %v4336
        %v4567 = vunpack.c.l.b16 %v4337
        %v4568 = vunpack.c.l.b16 %v4338
        %v4569 = vunpack.c.l.b16 %v4339
        %v4570 = vunpack.c.l.b16 %v4340
        %v4571 = vunpack.c.l.b16 %v4341
        %v4572 = vunpack.c.l.b16 %v4342
        %v4573 = vunpack.c.l.b16 %v4343
        %v4574 = vunpack.c.l.b16 %v4344
        %v4575 = vunpack.c.l.b16 %v4345
        %v4576 = vunpack.c.l.b16 %v4346
        %v4577 = vunpack.c.l.b16 %v4347
        %v4578 = vunpack.c.l.b16 %v4348
        %v4579 = vunpack.c.l.b16 %v4349
        %v4580 = vunpack.c.l.b16 %v4350
        %v4581 = vunpack.c.l.b16 %v4351
        %v4582 = vunpack.c.l.b16 %v4352
        %v4583 = vunpack.c.l.b16 %v4353
        %v4584 = vunpack.c.l.b16 %v4354
        %v4585 = vunpack.c.l.b16 %v4355
        %v4586 = vunpack.c.l.b16 %v4356
        %v4587 = vunpack.c.l.b16 %v4357
        %v4588 = vunpack.c.l.b16 %v4358
        %v4589 = vunpack.c.l.b16 %v4359
        %v4590 = vunpack.c.l.b16 %v4360
        %v4591 = vunpack.c.l.b16 %v4361
        %v4592 = vunpack.c.l.b16 %v4362
        %v4593 = vunpack.c.l.b16 %v4363
        %v4594 = vunpack.c.l.b16 %v4364
        %v4595 = vunpack.c.l.b16 %v4365
        %v4596 = vunpack.c.l.b16 %v4366
        %v4597 = vunpack.c.l.b16 %v4367
        %v4598 = vunpack.c.l.b16 %v4368
        %v4599 = vunpack.c.l.b16 %v4369
        %v4600 = vunpack.c.l.b16 %v4370
        %v4601 = vunpack.c.l.b16 %v4371
        %v4602 = vunpack.c.l.b16 %v4372
        %v4603 = vunpack.c.l.b16 %v4373
        %v4604 = vunpack.c.l.b16 %v4374
        %v4605 = vunpack.c.l.b16 %v4375
        %v4606 = vunpack.c.l.b16 %v4376
        %v4607 = vunpack.c.l.b16 %v4377
        %v4608 = vunpack.c.l.b16 %v4378
        %v4609 = vunpack.c.l.b16 %v4379
        %v4610 = vunpack.c.l.b16 %v4380
        %v4611 = vunpack.c.l.b16 %v4381
        %v4612 = vunpack.c.l.b16 %v4382
        %v4613 = vunpack.c.l.b16 %v4383
        %v4614 = vunpack.c.l.b16 %v4384
        %v4615 = vunpack.c.l.b16 %v4385
        %v4616 = vunpack.c.l.b16 %v4386
        %v4617 = vunpack.c.l.b16 %v4387
        %v4618 = vunpack.c.l.b16 %v4388
        %v4619 = vunpack.c.l.b16 %v4389
        %v4620 = vunpack.c.l.b16 %v4390
        %v4621 = vunpack.c.l.b16 %v4391
        %v4622 = vunpack.c.l.b16 %v4392
        %v4623 = vunpack.c.l.b16 %v4393
        %v4624 = vunpack.c.l.b16 %v4394
        %v4625 = vunpack.c.l.b16 %v4395
        %v4626 = vunpack.c.l.b16 %v4396
        %v4627 = vunpack.c.l.b16 %v4397
        %v4628 = vunpack.c.l.b16 %v4398
        %v4629 = vunpack.c.l.b16 %v4399
        %v4630 = vunpack.c.l.b16 %v4400
        %v4631 = vunpack.c.l.b16 %v4401
        %v4632 = vunpack.c.l.b16 %v4402
        %v4633 = vunpack.c.l.b16 %v4403
        %v4634 = vunpack.c.l.b16 %v4404
        %v4635 = vunpack.c.l.b16 %v4405
        %v4636 = vunpack.c.l.b16 %v4406
        %v4637 = vunpack.c.l.b16 %v4407
        %v4638 = vunpack.c.l.b16 %v4408
        %v4639 = vunpack.c.l.b16 %v4409
        %v4640 = vunpack.c.l.b16 %v4410
        %v4641 = vunpack.c.l.b16 %v4411
        %v4642 = vunpack.c.l.b16 %v4412
        %v4643 = vunpack.c.l.b16 %v4413
        %v4644 = vunpack.c.l.b16 %v4414
        %v4645 = vunpack.c.l.b16 %v4415
        %v4646 = vpack.c.b16 %v4549, %v4548
        %v4647 = vpack.c.b16 %v4551, %v4550
        %v4648 = vpack.c.b16 %v4553, %v4552
        %v4649 = vpack.c.b16 %v4555, %v4554
        %v4650 = vpack.c.b16 %v4557, %v4556
        %v4651 = vpack.c.b16 %v4559, %v4558
        %v4652 = vpack.c.b16 %v4561, %v4560
        %v4653 = vpack.c.b16 %v4563, %v4562
        %v4654 = vpack.c.b16 %v4565, %v4564
        %v4655 = vpack.c.b16 %v4567, %v4566
        %v4656 = vpack.c.b16 %v4569, %v4568
        %v4657 = vpack.c.b16 %v4571, %v4570
        %v4658 = vpack.c.b16 %v4573, %v4572
        %v4659 = vpack.c.b16 %v4575, %v4574
        %v4660 = vpack.c.b16 %v4577, %v4576
        %v4661 = vpack.c.b16 %v4579, %v4578
        %v4662 = vpack.c.b16 %v4581, %v4580
        %v4663 = vpack.c.b16 %v4583, %v4582
        %v4664 = vpack.c.b16 %v4585, %v4584
        %v4665 = vpack.c.b16 %v4587, %v4586
        %v4666 = vpack.c.b16 %v4589, %v4588
        %v4667 = vpack.c.b16 %v4591, %v4590
        %v4668 = vpack.c.b16 %v4593, %v4592
        %v4669 = vpack.c.b16 %v4595, %v4594
        %v4670 = vpack.c.b16 %v4597, %v4596
        %v4671 = vpack.c.b16 %v4599, %v4598
        %v4672 = vpack.c.b16 %v4601, %v4600
        %v4673 = vpack.c.b16 %v4603, %v4602
        %v4674 = vpack.c.b16 %v4605, %v4604
        %v4675 = vpack.c.b16 %v4607, %v4606
        %v4676 = vpack.c.b16 %v4609, %v4608
        %v4677 = vpack.c.b16 %v4611, %v4610
        %v4678 = vpack.c.b16 %v4613, %v4612
        %v4679 = vpack.c.b16 %v4615, %v4614
        %v4680 = vpack.c.b16 %v4617, %v4616
        %v4681 = vpack.c.b16 %v4619, %v4618
        %v4682 = vpack.c.b16 %v4621, %v4620
        %v4683 = vpack.c.b16 %v4623, %v4622
        %v4684 = vpack.c.b16 %v4625, %v4624
        %v4685 = vpack.c.b16 %v4627, %v4626
        %v4686 = vpack.c.b16 %v4629, %v4628
        %v4687 = vpack.c.b16 %v4631, %v4630
        %v4688 = vpack.c.b16 %v4633, %v4632
        %v4689 = vpack.c.b16 %v4635, %v4634
        %v4690 = vpack.c.b16 %v4637, %v4636
        %v4691 = vpack.c.b16 %v4639, %v4638
        %v4692 = vpack.c.b16 %v4641, %v4640
        %v4693 = vpack.c.b16 %v4643, %v4642
        %v4694 = vpack.c.b16 %v4645, %v4644
        %v4745 = vsel %vm1896, %v4443, 0
        %4747 = vmatprep.subr.bf16.mxu0 0
        %4748 = vmatpush1.bf16.msra.mxu0 %v4646
        %4749 = vmatprep.subr.bf16.mxu0 0
        %4750 = vmatpush1.bf16.msra.mxu0 %v4647
        %4751 = vmatprep.subr.bf16.mxu0 0
        %4752 = vmatpush1.bf16.msra.mxu0 %v4648
        %4753 = vmatprep.subr.bf16.mxu0 0
        %4754 = vmatpush1.bf16.msra.mxu0 %v4649
        %4755 = vmatprep.subr.bf16.mxu0 0
        %4756 = vmatpush1.bf16.msra.mxu0 %v4650
        %4757 = vmatprep.subr.bf16.mxu0 0
        %4758 = vmatpush1.bf16.msra.mxu0 %v4651
        %4759 = vmatprep.subr.bf16.mxu0 0
        %4760 = vmatpush1.bf16.msra.mxu0 %v4652
        %4761 = vmatprep.subr.bf16.mxu0 0
        %4762 = vmatpush1.bf16.msra.mxu0 %v4653
        %4763 = vmatprep.subr.bf16.mxu0 0
        %4764 = vmatpush1.bf16.msra.mxu0 %v4654
        %4765 = vmatprep.subr.bf16.mxu0 0
        %4766 = vmatpush1.bf16.msra.mxu0 %v4655
        %4767 = vmatprep.subr.bf16.mxu0 0
        %4768 = vmatpush1.bf16.msra.mxu0 %v4656
        %4769 = vmatprep.subr.bf16.mxu0 0
        %4770 = vmatpush1.bf16.msra.mxu0 %v4657
        %4771 = vmatprep.subr.bf16.mxu0 0
        %4772 = vmatpush1.bf16.msra.mxu0 %v4658
        %4773 = vmatprep.subr.bf16.mxu0 0
        %4774 = vmatpush1.bf16.msra.mxu0 %v4659
        %4775 = vmatprep.subr.bf16.mxu0 0
        %4776 = vmatpush1.bf16.msra.mxu0 %v4660
        %4777 = vmatprep.subr.bf16.mxu0 0
        %4778 = vmatpush1.bf16.msra.mxu0 %v4661
        %4779 = vmatprep.mubr.bf16.mxu0 %v4438
        %4780 = vmatmul.mubr.bf16.gmra.mrb[0].mxu0 %v4437
        %v4781 = vpop.f32.mrb[0].mxu0
        %v4782 = vadd.f32 0.0, %v4781
        %v4783 = vpop.f32.mrb[0].mxu0
        %v4784 = vpop.f32.mrb[0].mxu0
        %v4785 = vpop.f32.mrb[0].mxu0
        %4786 = vdwg.mxu0
        %4787 = vmatprep.subr.bf16.mxu0 0
        %4788 = vmatpush1.bf16.msra.mxu0 %v4662
        %4789 = vmatprep.subr.bf16.mxu0 0
        %4790 = vmatpush1.bf16.msra.mxu0 %v4663
        %4791 = vmatprep.subr.bf16.mxu0 0
        %4792 = vmatpush1.bf16.msra.mxu0 %v4664
        %4793 = vmatprep.subr.bf16.mxu0 0
        %4794 = vmatpush1.bf16.msra.mxu0 %v4665
        %4795 = vmatprep.subr.bf16.mxu0 0
        %4796 = vmatpush1.bf16.msra.mxu0 %v4666
        %4797 = vmatprep.subr.bf16.mxu0 0
        %4798 = vmatpush1.bf16.msra.mxu0 %v4667
        %4799 = vmatprep.subr.bf16.mxu0 0
        %4800 = vmatpush1.bf16.msra.mxu0 %v4668
        %4801 = vmatprep.subr.bf16.mxu0 0
        %4802 = vmatpush1.bf16.msra.mxu0 %v4669
        %4803 = vmatprep.subr.bf16.mxu0 0
        %4804 = vmatpush1.bf16.msra.mxu0 %v4670
        %4805 = vmatprep.subr.bf16.mxu0 0
        %4806 = vmatpush1.bf16.msra.mxu0 %v4671
        %4807 = vmatprep.subr.bf16.mxu0 0
        %4808 = vmatpush1.bf16.msra.mxu0 %v4672
        %4809 = vmatprep.subr.bf16.mxu0 0
        %4810 = vmatpush1.bf16.msra.mxu0 %v4673
        %4811 = vmatprep.subr.bf16.mxu0 0
        %4812 = vmatpush1.bf16.msra.mxu0 %v4674
        %4813 = vmatprep.subr.bf16.mxu0 0
        %4814 = vmatpush1.bf16.msra.mxu0 %v4675
        %4815 = vmatprep.subr.bf16.mxu0 0
        %4816 = vmatpush1.bf16.msra.mxu0 %v4676
        %4817 = vmatprep.subr.bf16.mxu0 0
        %4818 = vmatpush1.bf16.msra.mxu0 %v4677
        %4819 = vmatprep.mubr.bf16.mxu0 %v4440
        %4820 = vmatmul.mubr.bf16.gmra.mrb[0].mxu0 %v4439
        %v4821 = vpop.f32.mrb[0].mxu0
        %v4822 = vadd.f32 %v4782, %v4821
        %v4823 = vpop.f32.mrb[0].mxu0
        %v4824 = vpop.f32.mrb[0].mxu0
        %v4825 = vpop.f32.mrb[0].mxu0
        %4826 = vdwg.mxu0
        %4827 = vmatprep.subr.bf16.mxu0 0
        %4828 = vmatpush1.bf16.msra.mxu0 %v4678
        %4829 = vmatprep.subr.bf16.mxu0 0
        %4830 = vmatpush1.bf16.msra.mxu0 %v4679
        %4831 = vmatprep.subr.bf16.mxu0 0
        %4832 = vmatpush1.bf16.msra.mxu0 %v4680
        %4833 = vmatprep.subr.bf16.mxu0 0
        %4834 = vmatpush1.bf16.msra.mxu0 %v4681
        %4835 = vmatprep.subr.bf16.mxu0 0
        %4836 = vmatpush1.bf16.msra.mxu0 %v4682
        %4837 = vmatprep.subr.bf16.mxu0 0
        %4838 = vmatpush1.bf16.msra.mxu0 %v4683
        %4839 = vmatprep.subr.bf16.mxu0 0
        %4840 = vmatpush1.bf16.msra.mxu0 %v4684
        %4841 = vmatprep.subr.bf16.mxu0 0
        %4842 = vmatpush1.bf16.msra.mxu0 %v4685
        %4843 = vmatprep.subr.bf16.mxu0 0
        %4844 = vmatpush1.bf16.msra.mxu0 %v4686
        %4845 = vmatprep.subr.bf16.mxu0 0
        %4846 = vmatpush1.bf16.msra.mxu0 %v4687
        %4847 = vmatprep.subr.bf16.mxu0 0
        %4848 = vmatpush1.bf16.msra.mxu0 %v4688
        %4849 = vmatprep.subr.bf16.mxu0 0
        %4850 = vmatpush1.bf16.msra.mxu0 %v4689
        %4851 = vmatprep.subr.bf16.mxu0 0
        %4852 = vmatpush1.bf16.msra.mxu0 %v4690
        %4853 = vmatprep.subr.bf16.mxu0 0
        %4854 = vmatpush1.bf16.msra.mxu0 %v4691
        %4855 = vmatprep.subr.bf16.mxu0 0
        %4856 = vmatpush1.bf16.msra.mxu0 %v4692
        %4857 = vmatprep.subr.bf16.mxu0 0
        %4858 = vmatpush1.bf16.msra.mxu0 %v4693
        %4859 = vmatprep.mubr.bf16.mxu0 %v4442
        %4860 = vmatmul.mubr.bf16.gmra.mrb[0].mxu0 %v4441
        %v4861 = vpop.f32.mrb[0].mxu0
        %v4862 = vadd.f32 %v4822, %v4861
        %v4863 = vpop.f32.mrb[0].mxu0
        %v4864 = vpop.f32.mrb[0].mxu0
        %v4865 = vpop.f32.mrb[0].mxu0
        %4866 = vdwg.mxu0
        %4867 = vmatprep.subr.bf16.mxu0 0
        %4868 = vmatpush1.bf16.msra.mxu0 %v4694
        %4869 = vmatprep.subr.bf16.mxu0 0
        %4870 = vmatpush1.bf16.msra.mxu0 0
        %4871 = vmatprep.subr.bf16.mxu0 0
        %4872 = vmatpush1.bf16.msra.mxu0 0
        %4873 = vmatprep.subr.bf16.mxu0 0
        %4874 = vmatpush1.bf16.msra.mxu0 0
        %4875 = vmatprep.subr.bf16.mxu0 0
        %4876 = vmatpush1.bf16.msra.mxu0 0
        %4877 = vmatprep.subr.bf16.mxu0 0
        %4878 = vmatpush1.bf16.msra.mxu0 0
        %4879 = vmatprep.subr.bf16.mxu0 0
        %4880 = vmatpush1.bf16.msra.mxu0 0
        %4881 = vmatprep.subr.bf16.mxu0 0
        %4882 = vmatpush1.bf16.msra.mxu0 0
        %4883 = vmatprep.subr.bf16.mxu0 0
        %4884 = vmatpush1.bf16.msra.mxu0 0
        %4885 = vmatprep.subr.bf16.mxu0 0
        %4886 = vmatpush1.bf16.msra.mxu0 0
        %4887 = vmatprep.subr.bf16.mxu0 0
        %4888 = vmatpush1.bf16.msra.mxu0 0
        %4889 = vmatprep.subr.bf16.mxu0 0
        %4890 = vmatpush1.bf16.msra.mxu0 0
        %4891 = vmatprep.subr.bf16.mxu0 0
        %4892 = vmatpush1.bf16.msra.mxu0 0
        %4893 = vmatprep.subr.bf16.mxu0 0
        %4894 = vmatpush1.bf16.msra.mxu0 0
        %4895 = vmatprep.subr.bf16.mxu0 0
        %4896 = vmatpush1.bf16.msra.mxu0 0
        %4897 = vmatprep.subr.bf16.mxu0 0
        %4898 = vmatpush1.bf16.msra.mxu0 0
        %4899 = vmatprep.mubr.bf16.mxu0 0
        %4900 = vmatmul.mubr.bf16.gmra.mrb[0].mxu0 %v4745
        %v4901 = vpop.f32.mrb[0].mxu0
        %v4902 = vadd.f32 %v4862, %v4901
        %v4903 = vpop.f32.mrb[0].mxu0
        %v4904 = vpop.f32.mrb[0].mxu0
        %v4905 = vpop.f32.mrb[0].mxu0
        %4906 = vdwg.mxu0
        %v4907 = vadd.f32 %v4316, %v4902
        %s4908 = scalar_lea.vmem %s429, 2352 [#allocation7]
        %v4909 = vld [vmem:[%s4908] sm:$0xf]
        %v4910 = vld [vmem:[%s4908 + $0x4] sm:$0xf]
        %v4911 = vld [vmem:[%s4908 + $0x8] sm:$0xf]
        %v4912 = vld [vmem:[%s4908 + $0xc] sm:$0xf]
        %v4913 = vld [vmem:[%s4908 + $0x10] sm:$0xf]
        %v4914 = vld [vmem:[%s4908 + $0x14] sm:$0xf]
        %v4915 = vld [vmem:[%s4908 + $0x18] sm:$0xf]
        %v4916 = vld [vmem:[%s4908 + $0x1c] sm:$0xf]
        %v4917 = vld [vmem:[%s4908 + $0x20] sm:$0xf]
        %v4918 = vld [vmem:[%s4908 + $0x24] sm:$0xf]
        %v4919 = vld [vmem:[%s4908 + $0x28] sm:$0xf]
        %v4920 = vld [vmem:[%s4908 + $0x2c] sm:$0xf]
        %v4921 = vld [vmem:[%s4908 + $0x30] sm:$0xf]
        %v4922 = vld [vmem:[%s4908 + $0x34] sm:$0xf]
        %v4923 = vld [vmem:[%s4908 + $0x38] sm:$0xf]
        %v4924 = vld [vmem:[%s4908 + $0x3c] sm:$0xf]
        %v4925 = vld [vmem:[%s4908 + $0x40] sm:$0xf]
        %v4926 = vld [vmem:[%s4908 + $0x44] sm:$0xf]
        %v4927 = vld [vmem:[%s4908 + $0x48] sm:$0xf]
        %v4928 = vld [vmem:[%s4908 + $0x4c] sm:$0xf]
        %v4929 = vld [vmem:[%s4908 + $0x50] sm:$0xf]
        %v4930 = vld [vmem:[%s4908 + $0x54] sm:$0xf]
        %v4931 = vld [vmem:[%s4908 + $0x58] sm:$0xf]
        %v4932 = vld [vmem:[%s4908 + $0x5c] sm:$0xf]
        %v4933 = vld [vmem:[%s4908 + $0x60] sm:$0xf]
        %v4934 = vld [vmem:[%s4908 + $0x64] sm:$0xf]
        %v4935 = vld [vmem:[%s4908 + $0x68] sm:$0xf]
        %v4936 = vld [vmem:[%s4908 + $0x6c] sm:$0xf]
        %v4937 = vld [vmem:[%s4908 + $0x70] sm:$0xf]
        %v4938 = vld [vmem:[%s4908 + $0x74] sm:$0xf]
        %v4939 = vld [vmem:[%s4908 + $0x78] sm:$0xf]
        %v4940 = vld [vmem:[%s4908 + $0x7c] sm:$0xf]
        %v4941 = vld [vmem:[%s4908 + $0x80] sm:$0xf]
        %v4942 = vld [vmem:[%s4908 + $0x84] sm:$0xf]
        %v4943 = vld [vmem:[%s4908 + $0x88] sm:$0xf]
        %v4944 = vld [vmem:[%s4908 + $0x8c] sm:$0xf]
        %v4945 = vld [vmem:[%s4908 + $0x90] sm:$0xf]
        %v4946 = vld [vmem:[%s4908 + $0x94] sm:$0xf]
        %v4947 = vld [vmem:[%s4908 + $0x98] sm:$0xf]
        %v4948 = vld [vmem:[%s4908 + $0x9c] sm:$0xf]
        %v4949 = vld [vmem:[%s4908 + $0xa0] sm:$0xf]
        %v4950 = vld [vmem:[%s4908 + $0xa4] sm:$0xf]
        %v4951 = vld [vmem:[%s4908 + $0xa8] sm:$0xf]
        %v4952 = vld [vmem:[%s4908 + $0xac] sm:$0xf]
        %v4953 = vld [vmem:[%s4908 + $0xb0] sm:$0xf]
        %v4954 = vld [vmem:[%s4908 + $0xb4] sm:$0xf]
        %v4955 = vld [vmem:[%s4908 + $0xb8] sm:$0xf]
        %v4956 = vld [vmem:[%s4908 + $0xbc] sm:$0xf]
        %v4957 = vld [vmem:[%s4908 + $0xc0] sm:$0xf]
        %v4958 = vld [vmem:[%s4908 + $0xc4] sm:$0xf]
        %v4959 = vld [vmem:[%s4908 + $0xc8] sm:$0xf]
        %v4960 = vld [vmem:[%s4908 + $0xcc] sm:$0xf]
        %v4961 = vld [vmem:[%s4908 + $0xd0] sm:$0xf]
        %v4962 = vld [vmem:[%s4908 + $0xd4] sm:$0xf]
        %v4963 = vld [vmem:[%s4908 + $0xd8] sm:$0xf]
        %v4964 = vld [vmem:[%s4908 + $0xdc] sm:$0xf]
        %v4965 = vld [vmem:[%s4908 + $0xe0] sm:$0xf]
        %v4966 = vld [vmem:[%s4908 + $0xe4] sm:$0xf]
        %v4967 = vld [vmem:[%s4908 + $0xe8] sm:$0xf]
        %v4968 = vld [vmem:[%s4908 + $0xec] sm:$0xf]
        %v4969 = vld [vmem:[%s4908 + $0xf0] sm:$0xf]
        %v4970 = vld [vmem:[%s4908 + $0xf4] sm:$0xf]
        %v4971 = vld [vmem:[%s4908 + $0xf8] sm:$0xf]
        %v4972 = vld [vmem:[%s4908 + $0xfc] sm:$0xf]
        %v4973 = vld [vmem:[%s4908 + $0x100] sm:$0xf]
        %v4974 = vld [vmem:[%s4908 + $0x104] sm:$0xf]
        %v4975 = vld [vmem:[%s4908 + $0x108] sm:$0xf]
        %v4976 = vld [vmem:[%s4908 + $0x10c] sm:$0xf]
        %v4977 = vld [vmem:[%s4908 + $0x110] sm:$0xf]
        %v4978 = vld [vmem:[%s4908 + $0x114] sm:$0xf]
        %v4979 = vld [vmem:[%s4908 + $0x118] sm:$0xf]
        %v4980 = vld [vmem:[%s4908 + $0x11c] sm:$0xf]
        %v4981 = vld [vmem:[%s4908 + $0x120] sm:$0xf]
        %v4982 = vld [vmem:[%s4908 + $0x124] sm:$0xf]
        %v4983 = vld [vmem:[%s4908 + $0x128] sm:$0xf]
        %v4984 = vld [vmem:[%s4908 + $0x12c] sm:$0xf]
        %v4985 = vld [vmem:[%s4908 + $0x130] sm:$0xf]
        %v4986 = vld [vmem:[%s4908 + $0x134] sm:$0xf]
        %v4987 = vld [vmem:[%s4908 + $0x138] sm:$0xf]
        %v4988 = vld [vmem:[%s4908 + $0x13c] sm:$0xf]
        %v4989 = vld [vmem:[%s4908 + $0x140] sm:$0xf]
        %v4990 = vld [vmem:[%s4908 + $0x144] sm:$0xf]
        %v4991 = vld [vmem:[%s4908 + $0x148] sm:$0xf]
        %v4992 = vld [vmem:[%s4908 + $0x14c] sm:$0xf]
        %v4993 = vld [vmem:[%s4908 + $0x150] sm:$0xf]
        %v4994 = vld [vmem:[%s4908 + $0x154] sm:$0xf]
        %v4995 = vld [vmem:[%s4908 + $0x158] sm:$0xf]
        %v4996 = vld [vmem:[%s4908 + $0x15c] sm:$0xf]
        %v4997 = vld [vmem:[%s4908 + $0x160] sm:$0xf]
        %v4998 = vld [vmem:[%s4908 + $0x164] sm:$0xf]
        %v4999 = vld [vmem:[%s4908 + $0x168] sm:$0xf]
        %v5000 = vld [vmem:[%s4908 + $0x16c] sm:$0xf]
        %v5001 = vld [vmem:[%s4908 + $0x170] sm:$0xf]
        %v5002 = vld [vmem:[%s4908 + $0x174] sm:$0xf]
        %v5003 = vld [vmem:[%s4908 + $0x178] sm:$0xf]
        %v5004 = vld [vmem:[%s4908 + $0x17c] sm:$0xf]
        %v5005 = vld [vmem:[%s4908 + $0x180] sm:$0xf]
        %v5006 = vld [vmem:[%s4908 + $0x184] sm:$0xf]
        %v5007 = vrot.slane %v1560, 6
        %v5008 = vrot.slane %v1567, 5
        %v5009 = vsel %vm1575, %v5008, %v5007
        %v5010 = vrot.slane %v1561, 6
        %v5011 = vrot.slane %v1568, 5
        %v5012 = vsel %vm1575, %v5011, %v5010
        %v5013 = vrot.slane %v1562, 6
        %v5014 = vrot.slane %v1569, 5
        %v5015 = vsel %vm1575, %v5014, %v5013
        %v5016 = vrot.slane %v1563, 6
        %v5017 = vrot.slane %v1570, 5
        %v5018 = vsel %vm1575, %v5017, %v5016
        %v5019 = vrot.slane %v1564, 6
        %v5020 = vrot.slane %v1571, 5
        %v5021 = vsel %vm1575, %v5020, %v5019
        %v5022 = vrot.slane %v1565, 6
        %v5023 = vrot.slane %v1572, 5
        %v5024 = vsel %vm1575, %v5023, %v5022
        %v5025 = vrot.slane %v1566, 6
        %v5026 = vrot.slane %v1573, 5
        %v5027 = vsel %vm1575, %v5026, %v5025
        %v5028 = vpack.c.b16 %v5009, %v5009
        %v5029 = vpack.c.b16 %v5012, %v5012
        %v5030 = vpack.c.b16 %v5015, %v5015
        %v5031 = vpack.c.b16 %v5018, %v5018
        %v5032 = vpack.c.b16 %v5021, %v5021
        %v5033 = vpack.c.b16 %v5024, %v5024
        %v5034 = vpack.c.b16 %v5027, %v5027
        %v5139 = vunpack.c.l.b16 %v4909
        %v5140 = vunpack.c.l.b16 %v4910
        %v5141 = vunpack.c.l.b16 %v4911
        %v5142 = vunpack.c.l.b16 %v4912
        %v5143 = vunpack.c.l.b16 %v4913
        %v5144 = vunpack.c.l.b16 %v4914
        %v5145 = vunpack.c.l.b16 %v4915
        %v5146 = vunpack.c.l.b16 %v4916
        %v5147 = vunpack.c.l.b16 %v4917
        %v5148 = vunpack.c.l.b16 %v4918
        %v5149 = vunpack.c.l.b16 %v4919
        %v5150 = vunpack.c.l.b16 %v4920
        %v5151 = vunpack.c.l.b16 %v4921
        %v5152 = vunpack.c.l.b16 %v4922
        %v5153 = vunpack.c.l.b16 %v4923
        %v5154 = vunpack.c.l.b16 %v4924
        %v5155 = vunpack.c.l.b16 %v4925
        %v5156 = vunpack.c.l.b16 %v4926
        %v5157 = vunpack.c.l.b16 %v4927
        %v5158 = vunpack.c.l.b16 %v4928
        %v5159 = vunpack.c.l.b16 %v4929
        %v5160 = vunpack.c.l.b16 %v4930
        %v5161 = vunpack.c.l.b16 %v4931
        %v5162 = vunpack.c.l.b16 %v4932
        %v5163 = vunpack.c.l.b16 %v4933
        %v5164 = vunpack.c.l.b16 %v4934
        %v5165 = vunpack.c.l.b16 %v4935
        %v5166 = vunpack.c.l.b16 %v4936
        %v5167 = vunpack.c.l.b16 %v4937
        %v5168 = vunpack.c.l.b16 %v4938
        %v5169 = vunpack.c.l.b16 %v4939
        %v5170 = vunpack.c.l.b16 %v4940
        %v5171 = vunpack.c.l.b16 %v4941
        %v5172 = vunpack.c.l.b16 %v4942
        %v5173 = vunpack.c.l.b16 %v4943
        %v5174 = vunpack.c.l.b16 %v4944
        %v5175 = vunpack.c.l.b16 %v4945
        %v5176 = vunpack.c.l.b16 %v4946
        %v5177 = vunpack.c.l.b16 %v4947
        %v5178 = vunpack.c.l.b16 %v4948
        %v5179 = vunpack.c.l.b16 %v4949
        %v5180 = vunpack.c.l.b16 %v4950
        %v5181 = vunpack.c.l.b16 %v4951
        %v5182 = vunpack.c.l.b16 %v4952
        %v5183 = vunpack.c.l.b16 %v4953
        %v5184 = vunpack.c.l.b16 %v4954
        %v5185 = vunpack.c.l.b16 %v4955
        %v5186 = vunpack.c.l.b16 %v4956
        %v5187 = vunpack.c.l.b16 %v4957
        %v5188 = vunpack.c.l.b16 %v4958
        %v5189 = vunpack.c.l.b16 %v4959
        %v5190 = vunpack.c.l.b16 %v4960
        %v5191 = vunpack.c.l.b16 %v4961
        %v5192 = vunpack.c.l.b16 %v4962
        %v5193 = vunpack.c.l.b16 %v4963
        %v5194 = vunpack.c.l.b16 %v4964
        %v5195 = vunpack.c.l.b16 %v4965
        %v5196 = vunpack.c.l.b16 %v4966
        %v5197 = vunpack.c.l.b16 %v4967
        %v5198 = vunpack.c.l.b16 %v4968
        %v5199 = vunpack.c.l.b16 %v4969
        %v5200 = vunpack.c.l.b16 %v4970
        %v5201 = vunpack.c.l.b16 %v4971
        %v5202 = vunpack.c.l.b16 %v4972
        %v5203 = vunpack.c.l.b16 %v4973
        %v5204 = vunpack.c.l.b16 %v4974
        %v5205 = vunpack.c.l.b16 %v4975
        %v5206 = vunpack.c.l.b16 %v4976
        %v5207 = vunpack.c.l.b16 %v4977
        %v5208 = vunpack.c.l.b16 %v4978
        %v5209 = vunpack.c.l.b16 %v4979
        %v5210 = vunpack.c.l.b16 %v4980
        %v5211 = vunpack.c.l.b16 %v4981
        %v5212 = vunpack.c.l.b16 %v4982
        %v5213 = vunpack.c.l.b16 %v4983
        %v5214 = vunpack.c.l.b16 %v4984
        %v5215 = vunpack.c.l.b16 %v4985
        %v5216 = vunpack.c.l.b16 %v4986
        %v5217 = vunpack.c.l.b16 %v4987
        %v5218 = vunpack.c.l.b16 %v4988
        %v5219 = vunpack.c.l.b16 %v4989
        %v5220 = vunpack.c.l.b16 %v4990
        %v5221 = vunpack.c.l.b16 %v4991
        %v5222 = vunpack.c.l.b16 %v4992
        %v5223 = vunpack.c.l.b16 %v4993
        %v5224 = vunpack.c.l.b16 %v4994
        %v5225 = vunpack.c.l.b16 %v4995
        %v5226 = vunpack.c.l.b16 %v4996
        %v5227 = vunpack.c.l.b16 %v4997
        %v5228 = vunpack.c.l.b16 %v4998
        %v5229 = vunpack.c.l.b16 %v4999
        %v5230 = vunpack.c.l.b16 %v5000
        %v5231 = vunpack.c.l.b16 %v5001
        %v5232 = vunpack.c.l.b16 %v5002
        %v5233 = vunpack.c.l.b16 %v5003
        %v5234 = vunpack.c.l.b16 %v5004
        %v5235 = vunpack.c.l.b16 %v5005
        %v5236 = vunpack.c.l.b16 %v5006
        %v5237 = vpack.c.b16 %v5140, %v5139
        %v5238 = vpack.c.b16 %v5142, %v5141
        %v5239 = vpack.c.b16 %v5144, %v5143
        %v5240 = vpack.c.b16 %v5146, %v5145
        %v5241 = vpack.c.b16 %v5148, %v5147
        %v5242 = vpack.c.b16 %v5150, %v5149
        %v5243 = vpack.c.b16 %v5152, %v5151
        %v5244 = vpack.c.b16 %v5154, %v5153
        %v5245 = vpack.c.b16 %v5156, %v5155
        %v5246 = vpack.c.b16 %v5158, %v5157
        %v5247 = vpack.c.b16 %v5160, %v5159
        %v5248 = vpack.c.b16 %v5162, %v5161
        %v5249 = vpack.c.b16 %v5164, %v5163
        %v5250 = vpack.c.b16 %v5166, %v5165
        %v5251 = vpack.c.b16 %v5168, %v5167
        %v5252 = vpack.c.b16 %v5170, %v5169
        %v5253 = vpack.c.b16 %v5172, %v5171
        %v5254 = vpack.c.b16 %v5174, %v5173
        %v5255 = vpack.c.b16 %v5176, %v5175
        %v5256 = vpack.c.b16 %v5178, %v5177
        %v5257 = vpack.c.b16 %v5180, %v5179
        %v5258 = vpack.c.b16 %v5182, %v5181
        %v5259 = vpack.c.b16 %v5184, %v5183
        %v5260 = vpack.c.b16 %v5186, %v5185
        %v5261 = vpack.c.b16 %v5188, %v5187
        %v5262 = vpack.c.b16 %v5190, %v5189
        %v5263 = vpack.c.b16 %v5192, %v5191
        %v5264 = vpack.c.b16 %v5194, %v5193
        %v5265 = vpack.c.b16 %v5196, %v5195
        %v5266 = vpack.c.b16 %v5198, %v5197
        %v5267 = vpack.c.b16 %v5200, %v5199
        %v5268 = vpack.c.b16 %v5202, %v5201
        %v5269 = vpack.c.b16 %v5204, %v5203
        %v5270 = vpack.c.b16 %v5206, %v5205
        %v5271 = vpack.c.b16 %v5208, %v5207
        %v5272 = vpack.c.b16 %v5210, %v5209
        %v5273 = vpack.c.b16 %v5212, %v5211
        %v5274 = vpack.c.b16 %v5214, %v5213
        %v5275 = vpack.c.b16 %v5216, %v5215
        %v5276 = vpack.c.b16 %v5218, %v5217
        %v5277 = vpack.c.b16 %v5220, %v5219
        %v5278 = vpack.c.b16 %v5222, %v5221
        %v5279 = vpack.c.b16 %v5224, %v5223
        %v5280 = vpack.c.b16 %v5226, %v5225
        %v5281 = vpack.c.b16 %v5228, %v5227
        %v5282 = vpack.c.b16 %v5230, %v5229
        %v5283 = vpack.c.b16 %v5232, %v5231
        %v5284 = vpack.c.b16 %v5234, %v5233
        %v5285 = vpack.c.b16 %v5236, %v5235
        %v5336 = vsel %vm1896, %v5034, 0
        %5338 = vmatprep.subr.bf16.mxu0 0
        %5339 = vmatpush1.bf16.msra.mxu0 %v5237
        %5340 = vmatprep.subr.bf16.mxu0 0
        %5341 = vmatpush1.bf16.msra.mxu0 %v5238
        %5342 = vmatprep.subr.bf16.mxu0 0
        %5343 = vmatpush1.bf16.msra.mxu0 %v5239
        %5344 = vmatprep.subr.bf16.mxu0 0
        %5345 = vmatpush1.bf16.msra.mxu0 %v5240
        %5346 = vmatprep.subr.bf16.mxu0 0
        %5347 = vmatpush1.bf16.msra.mxu0 %v5241
        %5348 = vmatprep.subr.bf16.mxu0 0
        %5349 = vmatpush1.bf16.msra.mxu0 %v5242
        %5350 = vmatprep.subr.bf16.mxu0 0
        %5351 = vmatpush1.bf16.msra.mxu0 %v5243
        %5352 = vmatprep.subr.bf16.mxu0 0
        %5353 = vmatpush1.bf16.msra.mxu0 %v5244
        %5354 = vmatprep.subr.bf16.mxu0 0
        %5355 = vmatpush1.bf16.msra.mxu0 %v5245
        %5356 = vmatprep.subr.bf16.mxu0 0
        %5357 = vmatpush1.bf16.msra.mxu0 %v5246
        %5358 = vmatprep.subr.bf16.mxu0 0
        %5359 = vmatpush1.bf16.msra.mxu0 %v5247
        %5360 = vmatprep.subr.bf16.mxu0 0
        %5361 = vmatpush1.bf16.msra.mxu0 %v5248
        %5362 = vmatprep.subr.bf16.mxu0 0
        %5363 = vmatpush1.bf16.msra.mxu0 %v5249
        %5364 = vmatprep.subr.bf16.mxu0 0
        %5365 = vmatpush1.bf16.msra.mxu0 %v5250
        %5366 = vmatprep.subr.bf16.mxu0 0
        %5367 = vmatpush1.bf16.msra.mxu0 %v5251
        %5368 = vmatprep.subr.bf16.mxu0 0
        %5369 = vmatpush1.bf16.msra.mxu0 %v5252
        %5370 = vmatprep.mubr.bf16.mxu0 %v5029
        %5371 = vmatmul.mubr.bf16.gmra.mrb[0].mxu0 %v5028
        %v5372 = vpop.f32.mrb[0].mxu0
        %v5373 = vadd.f32 0.0, %v5372
        %v5374 = vpop.f32.mrb[0].mxu0
        %v5375 = vpop.f32.mrb[0].mxu0
        %v5376 = vpop.f32.mrb[0].mxu0
        %5377 = vdwg.mxu0
        %5378 = vmatprep.subr.bf16.mxu0 0
        %5379 = vmatpush1.bf16.msra.mxu0 %v5253
        %5380 = vmatprep.subr.bf16.mxu0 0
        %5381 = vmatpush1.bf16.msra.mxu0 %v5254
        %5382 = vmatprep.subr.bf16.mxu0 0
        %5383 = vmatpush1.bf16.msra.mxu0 %v5255
        %5384 = vmatprep.subr.bf16.mxu0 0
        %5385 = vmatpush1.bf16.msra.mxu0 %v5256
        %5386 = vmatprep.subr.bf16.mxu0 0
        %5387 = vmatpush1.bf16.msra.mxu0 %v5257
        %5388 = vmatprep.subr.bf16.mxu0 0
        %5389 = vmatpush1.bf16.msra.mxu0 %v5258
        %5390 = vmatprep.subr.bf16.mxu0 0
        %5391 = vmatpush1.bf16.msra.mxu0 %v5259
        %5392 = vmatprep.subr.bf16.mxu0 0
        %5393 = vmatpush1.bf16.msra.mxu0 %v5260
        %5394 = vmatprep.subr.bf16.mxu0 0
        %5395 = vmatpush1.bf16.msra.mxu0 %v5261
        %5396 = vmatprep.subr.bf16.mxu0 0
        %5397 = vmatpush1.bf16.msra.mxu0 %v5262
        %5398 = vmatprep.subr.bf16.mxu0 0
        %5399 = vmatpush1.bf16.msra.mxu0 %v5263
        %5400 = vmatprep.subr.bf16.mxu0 0
        %5401 = vmatpush1.bf16.msra.mxu0 %v5264
        %5402 = vmatprep.subr.bf16.mxu0 0
        %5403 = vmatpush1.bf16.msra.mxu0 %v5265
        %5404 = vmatprep.subr.bf16.mxu0 0
        %5405 = vmatpush1.bf16.msra.mxu0 %v5266
        %5406 = vmatprep.subr.bf16.mxu0 0
        %5407 = vmatpush1.bf16.msra.mxu0 %v5267
        %5408 = vmatprep.subr.bf16.mxu0 0
        %5409 = vmatpush1.bf16.msra.mxu0 %v5268
        %5410 = vmatprep.mubr.bf16.mxu0 %v5031
        %5411 = vmatmul.mubr.bf16.gmra.mrb[0].mxu0 %v5030
        %v5412 = vpop.f32.mrb[0].mxu0
        %v5413 = vadd.f32 %v5373, %v5412
        %v5414 = vpop.f32.mrb[0].mxu0
        %v5415 = vpop.f32.mrb[0].mxu0
        %v5416 = vpop.f32.mrb[0].mxu0
        %5417 = vdwg.mxu0
        %5418 = vmatprep.subr.bf16.mxu0 0
        %5419 = vmatpush1.bf16.msra.mxu0 %v5269
        %5420 = vmatprep.subr.bf16.mxu0 0
        %5421 = vmatpush1.bf16.msra.mxu0 %v5270
        %5422 = vmatprep.subr.bf16.mxu0 0
        %5423 = vmatpush1.bf16.msra.mxu0 %v5271
        %5424 = vmatprep.subr.bf16.mxu0 0
        %5425 = vmatpush1.bf16.msra.mxu0 %v5272
        %5426 = vmatprep.subr.bf16.mxu0 0
        %5427 = vmatpush1.bf16.msra.mxu0 %v5273
        %5428 = vmatprep.subr.bf16.mxu0 0
        %5429 = vmatpush1.bf16.msra.mxu0 %v5274
        %5430 = vmatprep.subr.bf16.mxu0 0
        %5431 = vmatpush1.bf16.msra.mxu0 %v5275
        %5432 = vmatprep.subr.bf16.mxu0 0
        %5433 = vmatpush1.bf16.msra.mxu0 %v5276
        %5434 = vmatprep.subr.bf16.mxu0 0
        %5435 = vmatpush1.bf16.msra.mxu0 %v5277
        %5436 = vmatprep.subr.bf16.mxu0 0
        %5437 = vmatpush1.bf16.msra.mxu0 %v5278
        %5438 = vmatprep.subr.bf16.mxu0 0
        %5439 = vmatpush1.bf16.msra.mxu0 %v5279
        %5440 = vmatprep.subr.bf16.mxu0 0
        %5441 = vmatpush1.bf16.msra.mxu0 %v5280
        %5442 = vmatprep.subr.bf16.mxu0 0
        %5443 = vmatpush1.bf16.msra.mxu0 %v5281
        %5444 = vmatprep.subr.bf16.mxu0 0
        %5445 = vmatpush1.bf16.msra.mxu0 %v5282
        %5446 = vmatprep.subr.bf16.mxu0 0
        %5447 = vmatpush1.bf16.msra.mxu0 %v5283
        %5448 = vmatprep.subr.bf16.mxu0 0
        %5449 = vmatpush1.bf16.msra.mxu0 %v5284
        %5450 = vmatprep.mubr.bf16.mxu0 %v5033
        %5451 = vmatmul.mubr.bf16.gmra.mrb[0].mxu0 %v5032
        %v5452 = vpop.f32.mrb[0].mxu0
        %v5453 = vadd.f32 %v5413, %v5452
        %v5454 = vpop.f32.mrb[0].mxu0
        %v5455 = vpop.f32.mrb[0].mxu0
        %v5456 = vpop.f32.mrb[0].mxu0
        %5457 = vdwg.mxu0
        %5458 = vmatprep.subr.bf16.mxu0 0
        %5459 = vmatpush1.bf16.msra.mxu0 %v5285
        %5460 = vmatprep.subr.bf16.mxu0 0
        %5461 = vmatpush1.bf16.msra.mxu0 0
        %5462 = vmatprep.subr.bf16.mxu0 0
        %5463 = vmatpush1.bf16.msra.mxu0 0
        %5464 = vmatprep.subr.bf16.mxu0 0
        %5465 = vmatpush1.bf16.msra.mxu0 0
        %5466 = vmatprep.subr.bf16.mxu0 0
        %5467 = vmatpush1.bf16.msra.mxu0 0
        %5468 = vmatprep.subr.bf16.mxu0 0
        %5469 = vmatpush1.bf16.msra.mxu0 0
        %5470 = vmatprep.subr.bf16.mxu0 0
        %5471 = vmatpush1.bf16.msra.mxu0 0
        %5472 = vmatprep.subr.bf16.mxu0 0
        %5473 = vmatpush1.bf16.msra.mxu0 0
        %5474 = vmatprep.subr.bf16.mxu0 0
        %5475 = vmatpush1.bf16.msra.mxu0 0
        %5476 = vmatprep.subr.bf16.mxu0 0
        %5477 = vmatpush1.bf16.msra.mxu0 0
        %5478 = vmatprep.subr.bf16.mxu0 0
        %5479 = vmatpush1.bf16.msra.mxu0 0
        %5480 = vmatprep.subr.bf16.mxu0 0
        %5481 = vmatpush1.bf16.msra.mxu0 0
        %5482 = vmatprep.subr.bf16.mxu0 0
        %5483 = vmatpush1.bf16.msra.mxu0 0
        %5484 = vmatprep.subr.bf16.mxu0 0
        %5485 = vmatpush1.bf16.msra.mxu0 0
        %5486 = vmatprep.subr.bf16.mxu0 0
        %5487 = vmatpush1.bf16.msra.mxu0 0
        %5488 = vmatprep.subr.bf16.mxu0 0
        %5489 = vmatpush1.bf16.msra.mxu0 0
        %5490 = vmatprep.mubr.bf16.mxu0 0
        %5491 = vmatmul.mubr.bf16.gmra.mrb[0].mxu0 %v5336
        %v5492 = vpop.f32.mrb[0].mxu0
        %v5493 = vadd.f32 %v5453, %v5492
        %v5494 = vpop.f32.mrb[0].mxu0
        %v5495 = vpop.f32.mrb[0].mxu0
        %v5496 = vpop.f32.mrb[0].mxu0
        %5497 = vdwg.mxu0
        %v5498 = vadd.f32 %v4907, %v5493
        %s5499 = scalar_lea.vmem %s429, 2744 [#allocation7]
        %v5500 = vld [vmem:[%s5499] sm:$0xf]
        %v5501 = vld [vmem:[%s5499 + $0x4] sm:$0xf]
        %v5502 = vld [vmem:[%s5499 + $0x8] sm:$0xf]
        %v5503 = vld [vmem:[%s5499 + $0xc] sm:$0xf]
        %v5504 = vld [vmem:[%s5499 + $0x10] sm:$0xf]
        %v5505 = vld [vmem:[%s5499 + $0x14] sm:$0xf]
        %v5506 = vld [vmem:[%s5499 + $0x18] sm:$0xf]
        %v5507 = vld [vmem:[%s5499 + $0x1c] sm:$0xf]
        %v5508 = vld [vmem:[%s5499 + $0x20] sm:$0xf]
        %v5509 = vld [vmem:[%s5499 + $0x24] sm:$0xf]
        %v5510 = vld [vmem:[%s5499 + $0x28] sm:$0xf]
        %v5511 = vld [vmem:[%s5499 + $0x2c] sm:$0xf]
        %v5512 = vld [vmem:[%s5499 + $0x30] sm:$0xf]
        %v5513 = vld [vmem:[%s5499 + $0x34] sm:$0xf]
        %v5514 = vld [vmem:[%s5499 + $0x38] sm:$0xf]
        %v5515 = vld [vmem:[%s5499 + $0x3c] sm:$0xf]
        %v5516 = vld [vmem:[%s5499 + $0x40] sm:$0xf]
        %v5517 = vld [vmem:[%s5499 + $0x44] sm:$0xf]
        %v5518 = vld [vmem:[%s5499 + $0x48] sm:$0xf]
        %v5519 = vld [vmem:[%s5499 + $0x4c] sm:$0xf]
        %v5520 = vld [vmem:[%s5499 + $0x50] sm:$0xf]
        %v5521 = vld [vmem:[%s5499 + $0x54] sm:$0xf]
        %v5522 = vld [vmem:[%s5499 + $0x58] sm:$0xf]
        %v5523 = vld [vmem:[%s5499 + $0x5c] sm:$0xf]
        %v5524 = vld [vmem:[%s5499 + $0x60] sm:$0xf]
        %v5525 = vld [vmem:[%s5499 + $0x64] sm:$0xf]
        %v5526 = vld [vmem:[%s5499 + $0x68] sm:$0xf]
        %v5527 = vld [vmem:[%s5499 + $0x6c] sm:$0xf]
        %v5528 = vld [vmem:[%s5499 + $0x70] sm:$0xf]
        %v5529 = vld [vmem:[%s5499 + $0x74] sm:$0xf]
        %v5530 = vld [vmem:[%s5499 + $0x78] sm:$0xf]
        %v5531 = vld [vmem:[%s5499 + $0x7c] sm:$0xf]
        %v5532 = vld [vmem:[%s5499 + $0x80] sm:$0xf]
        %v5533 = vld [vmem:[%s5499 + $0x84] sm:$0xf]
        %v5534 = vld [vmem:[%s5499 + $0x88] sm:$0xf]
        %v5535 = vld [vmem:[%s5499 + $0x8c] sm:$0xf]
        %v5536 = vld [vmem:[%s5499 + $0x90] sm:$0xf]
        %v5537 = vld [vmem:[%s5499 + $0x94] sm:$0xf]
        %v5538 = vld [vmem:[%s5499 + $0x98] sm:$0xf]
        %v5539 = vld [vmem:[%s5499 + $0x9c] sm:$0xf]
        %v5540 = vld [vmem:[%s5499 + $0xa0] sm:$0xf]
        %v5541 = vld [vmem:[%s5499 + $0xa4] sm:$0xf]
        %v5542 = vld [vmem:[%s5499 + $0xa8] sm:$0xf]
        %v5543 = vld [vmem:[%s5499 + $0xac] sm:$0xf]
        %v5544 = vld [vmem:[%s5499 + $0xb0] sm:$0xf]
        %v5545 = vld [vmem:[%s5499 + $0xb4] sm:$0xf]
        %v5546 = vld [vmem:[%s5499 + $0xb8] sm:$0xf]
        %v5547 = vld [vmem:[%s5499 + $0xbc] sm:$0xf]
        %v5548 = vld [vmem:[%s5499 + $0xc0] sm:$0xf]
        %v5549 = vld [vmem:[%s5499 + $0xc4] sm:$0xf]
        %v5550 = vld [vmem:[%s5499 + $0xc8] sm:$0xf]
        %v5551 = vld [vmem:[%s5499 + $0xcc] sm:$0xf]
        %v5552 = vld [vmem:[%s5499 + $0xd0] sm:$0xf]
        %v5553 = vld [vmem:[%s5499 + $0xd4] sm:$0xf]
        %v5554 = vld [vmem:[%s5499 + $0xd8] sm:$0xf]
        %v5555 = vld [vmem:[%s5499 + $0xdc] sm:$0xf]
        %v5556 = vld [vmem:[%s5499 + $0xe0] sm:$0xf]
        %v5557 = vld [vmem:[%s5499 + $0xe4] sm:$0xf]
        %v5558 = vld [vmem:[%s5499 + $0xe8] sm:$0xf]
        %v5559 = vld [vmem:[%s5499 + $0xec] sm:$0xf]
        %v5560 = vld [vmem:[%s5499 + $0xf0] sm:$0xf]
        %v5561 = vld [vmem:[%s5499 + $0xf4] sm:$0xf]
        %v5562 = vld [vmem:[%s5499 + $0xf8] sm:$0xf]
        %v5563 = vld [vmem:[%s5499 + $0xfc] sm:$0xf]
        %v5564 = vld [vmem:[%s5499 + $0x100] sm:$0xf]
        %v5565 = vld [vmem:[%s5499 + $0x104] sm:$0xf]
        %v5566 = vld [vmem:[%s5499 + $0x108] sm:$0xf]
        %v5567 = vld [vmem:[%s5499 + $0x10c] sm:$0xf]
        %v5568 = vld [vmem:[%s5499 + $0x110] sm:$0xf]
        %v5569 = vld [vmem:[%s5499 + $0x114] sm:$0xf]
        %v5570 = vld [vmem:[%s5499 + $0x118] sm:$0xf]
        %v5571 = vld [vmem:[%s5499 + $0x11c] sm:$0xf]
        %v5572 = vld [vmem:[%s5499 + $0x120] sm:$0xf]
        %v5573 = vld [vmem:[%s5499 + $0x124] sm:$0xf]
        %v5574 = vld [vmem:[%s5499 + $0x128] sm:$0xf]
        %v5575 = vld [vmem:[%s5499 + $0x12c] sm:$0xf]
        %v5576 = vld [vmem:[%s5499 + $0x130] sm:$0xf]
        %v5577 = vld [vmem:[%s5499 + $0x134] sm:$0xf]
        %v5578 = vld [vmem:[%s5499 + $0x138] sm:$0xf]
        %v5579 = vld [vmem:[%s5499 + $0x13c] sm:$0xf]
        %v5580 = vld [vmem:[%s5499 + $0x140] sm:$0xf]
        %v5581 = vld [vmem:[%s5499 + $0x144] sm:$0xf]
        %v5582 = vld [vmem:[%s5499 + $0x148] sm:$0xf]
        %v5583 = vld [vmem:[%s5499 + $0x14c] sm:$0xf]
        %v5584 = vld [vmem:[%s5499 + $0x150] sm:$0xf]
        %v5585 = vld [vmem:[%s5499 + $0x154] sm:$0xf]
        %v5586 = vld [vmem:[%s5499 + $0x158] sm:$0xf]
        %v5587 = vld [vmem:[%s5499 + $0x15c] sm:$0xf]
        %v5588 = vld [vmem:[%s5499 + $0x160] sm:$0xf]
        %v5589 = vld [vmem:[%s5499 + $0x164] sm:$0xf]
        %v5590 = vld [vmem:[%s5499 + $0x168] sm:$0xf]
        %v5591 = vld [vmem:[%s5499 + $0x16c] sm:$0xf]
        %v5592 = vld [vmem:[%s5499 + $0x170] sm:$0xf]
        %v5593 = vld [vmem:[%s5499 + $0x174] sm:$0xf]
        %v5594 = vld [vmem:[%s5499 + $0x178] sm:$0xf]
        %v5595 = vld [vmem:[%s5499 + $0x17c] sm:$0xf]
        %v5596 = vld [vmem:[%s5499 + $0x180] sm:$0xf]
        %v5597 = vld [vmem:[%s5499 + $0x184] sm:$0xf]
        %v5598 = vrot.slane %v1560, 7
        %v5599 = vrot.slane %v1567, 6
        %v5600 = vsel %vm1575, %v5599, %v5598
        %v5601 = vrot.slane %v1561, 7
        %v5602 = vrot.slane %v1568, 6
        %v5603 = vsel %vm1575, %v5602, %v5601
        %v5604 = vrot.slane %v1562, 7
        %v5605 = vrot.slane %v1569, 6
        %v5606 = vsel %vm1575, %v5605, %v5604
        %v5607 = vrot.slane %v1563, 7
        %v5608 = vrot.slane %v1570, 6
        %v5609 = vsel %vm1575, %v5608, %v5607
        %v5610 = vrot.slane %v1564, 7
        %v5611 = vrot.slane %v1571, 6
        %v5612 = vsel %vm1575, %v5611, %v5610
        %v5613 = vrot.slane %v1565, 7
        %v5614 = vrot.slane %v1572, 6
        %v5615 = vsel %vm1575, %v5614, %v5613
        %v5616 = vrot.slane %v1566, 7
        %v5617 = vrot.slane %v1573, 6
        %v5618 = vsel %vm1575, %v5617, %v5616
        %v5619 = vpack.c.b16 %v5600, %v5600
        %v5620 = vpack.c.b16 %v5603, %v5603
        %v5621 = vpack.c.b16 %v5606, %v5606
        %v5622 = vpack.c.b16 %v5609, %v5609
        %v5623 = vpack.c.b16 %v5612, %v5612
        %v5624 = vpack.c.b16 %v5615, %v5615
        %v5625 = vpack.c.b16 %v5618, %v5618
        %v5730 = vunpack.c.l.b16 %v5500
        %v5731 = vunpack.c.l.b16 %v5501
        %v5732 = vunpack.c.l.b16 %v5502
        %v5733 = vunpack.c.l.b16 %v5503
        %v5734 = vunpack.c.l.b16 %v5504
        %v5735 = vunpack.c.l.b16 %v5505
        %v5736 = vunpack.c.l.b16 %v5506
        %v5737 = vunpack.c.l.b16 %v5507
        %v5738 = vunpack.c.l.b16 %v5508
        %v5739 = vunpack.c.l.b16 %v5509
        %v5740 = vunpack.c.l.b16 %v5510
        %v5741 = vunpack.c.l.b16 %v5511
        %v5742 = vunpack.c.l.b16 %v5512
        %v5743 = vunpack.c.l.b16 %v5513
        %v5744 = vunpack.c.l.b16 %v5514
        %v5745 = vunpack.c.l.b16 %v5515
        %v5746 = vunpack.c.l.b16 %v5516
        %v5747 = vunpack.c.l.b16 %v5517
        %v5748 = vunpack.c.l.b16 %v5518
        %v5749 = vunpack.c.l.b16 %v5519
        %v5750 = vunpack.c.l.b16 %v5520
        %v5751 = vunpack.c.l.b16 %v5521
        %v5752 = vunpack.c.l.b16 %v5522
        %v5753 = vunpack.c.l.b16 %v5523
        %v5754 = vunpack.c.l.b16 %v5524
        %v5755 = vunpack.c.l.b16 %v5525
        %v5756 = vunpack.c.l.b16 %v5526
        %v5757 = vunpack.c.l.b16 %v5527
        %v5758 = vunpack.c.l.b16 %v5528
        %v5759 = vunpack.c.l.b16 %v5529
        %v5760 = vunpack.c.l.b16 %v5530
        %v5761 = vunpack.c.l.b16 %v5531
        %v5762 = vunpack.c.l.b16 %v5532
        %v5763 = vunpack.c.l.b16 %v5533
        %v5764 = vunpack.c.l.b16 %v5534
        %v5765 = vunpack.c.l.b16 %v5535
        %v5766 = vunpack.c.l.b16 %v5536
        %v5767 = vunpack.c.l.b16 %v5537
        %v5768 = vunpack.c.l.b16 %v5538
        %v5769 = vunpack.c.l.b16 %v5539
        %v5770 = vunpack.c.l.b16 %v5540
        %v5771 = vunpack.c.l.b16 %v5541
        %v5772 = vunpack.c.l.b16 %v5542
        %v5773 = vunpack.c.l.b16 %v5543
        %v5774 = vunpack.c.l.b16 %v5544
        %v5775 = vunpack.c.l.b16 %v5545
        %v5776 = vunpack.c.l.b16 %v5546
        %v5777 = vunpack.c.l.b16 %v5547
        %v5778 = vunpack.c.l.b16 %v5548
        %v5779 = vunpack.c.l.b16 %v5549
        %v5780 = vunpack.c.l.b16 %v5550
        %v5781 = vunpack.c.l.b16 %v5551
        %v5782 = vunpack.c.l.b16 %v5552
        %v5783 = vunpack.c.l.b16 %v5553
        %v5784 = vunpack.c.l.b16 %v5554
        %v5785 = vunpack.c.l.b16 %v5555
        %v5786 = vunpack.c.l.b16 %v5556
        %v5787 = vunpack.c.l.b16 %v5557
        %v5788 = vunpack.c.l.b16 %v5558
        %v5789 = vunpack.c.l.b16 %v5559
        %v5790 = vunpack.c.l.b16 %v5560
        %v5791 = vunpack.c.l.b16 %v5561
        %v5792 = vunpack.c.l.b16 %v5562
        %v5793 = vunpack.c.l.b16 %v5563
        %v5794 = vunpack.c.l.b16 %v5564
        %v5795 = vunpack.c.l.b16 %v5565
        %v5796 = vunpack.c.l.b16 %v5566
        %v5797 = vunpack.c.l.b16 %v5567
        %v5798 = vunpack.c.l.b16 %v5568
        %v5799 = vunpack.c.l.b16 %v5569
        %v5800 = vunpack.c.l.b16 %v5570
        %v5801 = vunpack.c.l.b16 %v5571
        %v5802 = vunpack.c.l.b16 %v5572
        %v5803 = vunpack.c.l.b16 %v5573
        %v5804 = vunpack.c.l.b16 %v5574
        %v5805 = vunpack.c.l.b16 %v5575
        %v5806 = vunpack.c.l.b16 %v5576
        %v5807 = vunpack.c.l.b16 %v5577
        %v5808 = vunpack.c.l.b16 %v5578
        %v5809 = vunpack.c.l.b16 %v5579
        %v5810 = vunpack.c.l.b16 %v5580
        %v5811 = vunpack.c.l.b16 %v5581
        %v5812 = vunpack.c.l.b16 %v5582
        %v5813 = vunpack.c.l.b16 %v5583
        %v5814 = vunpack.c.l.b16 %v5584
        %v5815 = vunpack.c.l.b16 %v5585
        %v5816 = vunpack.c.l.b16 %v5586
        %v5817 = vunpack.c.l.b16 %v5587
        %v5818 = vunpack.c.l.b16 %v5588
        %v5819 = vunpack.c.l.b16 %v5589
        %v5820 = vunpack.c.l.b16 %v5590
        %v5821 = vunpack.c.l.b16 %v5591
        %v5822 = vunpack.c.l.b16 %v5592
        %v5823 = vunpack.c.l.b16 %v5593
        %v5824 = vunpack.c.l.b16 %v5594
        %v5825 = vunpack.c.l.b16 %v5595
        %v5826 = vunpack.c.l.b16 %v5596
        %v5827 = vunpack.c.l.b16 %v5597
        %v5828 = vpack.c.b16 %v5731, %v5730
        %v5829 = vpack.c.b16 %v5733, %v5732
        %v5830 = vpack.c.b16 %v5735, %v5734
        %v5831 = vpack.c.b16 %v5737, %v5736
        %v5832 = vpack.c.b16 %v5739, %v5738
        %v5833 = vpack.c.b16 %v5741, %v5740
        %v5834 = vpack.c.b16 %v5743, %v5742
        %v5835 = vpack.c.b16 %v5745, %v5744
        %v5836 = vpack.c.b16 %v5747, %v5746
        %v5837 = vpack.c.b16 %v5749, %v5748
        %v5838 = vpack.c.b16 %v5751, %v5750
        %v5839 = vpack.c.b16 %v5753, %v5752
        %v5840 = vpack.c.b16 %v5755, %v5754
        %v5841 = vpack.c.b16 %v5757, %v5756
        %v5842 = vpack.c.b16 %v5759, %v5758
        %v5843 = vpack.c.b16 %v5761, %v5760
        %v5844 = vpack.c.b16 %v5763, %v5762
        %v5845 = vpack.c.b16 %v5765, %v5764
        %v5846 = vpack.c.b16 %v5767, %v5766
        %v5847 = vpack.c.b16 %v5769, %v5768
        %v5848 = vpack.c.b16 %v5771, %v5770
        %v5849 = vpack.c.b16 %v5773, %v5772
        %v5850 = vpack.c.b16 %v5775, %v5774
        %v5851 = vpack.c.b16 %v5777, %v5776
        %v5852 = vpack.c.b16 %v5779, %v5778
        %v5853 = vpack.c.b16 %v5781, %v5780
        %v5854 = vpack.c.b16 %v5783, %v5782
        %v5855 = vpack.c.b16 %v5785, %v5784
        %v5856 = vpack.c.b16 %v5787, %v5786
        %v5857 = vpack.c.b16 %v5789, %v5788
        %v5858 = vpack.c.b16 %v5791, %v5790
        %v5859 = vpack.c.b16 %v5793, %v5792
        %v5860 = vpack.c.b16 %v5795, %v5794
        %v5861 = vpack.c.b16 %v5797, %v5796
        %v5862 = vpack.c.b16 %v5799, %v5798
        %v5863 = vpack.c.b16 %v5801, %v5800
        %v5864 = vpack.c.b16 %v5803, %v5802
        %v5865 = vpack.c.b16 %v5805, %v5804
        %v5866 = vpack.c.b16 %v5807, %v5806
        %v5867 = vpack.c.b16 %v5809, %v5808
        %v5868 = vpack.c.b16 %v5811, %v5810
        %v5869 = vpack.c.b16 %v5813, %v5812
        %v5870 = vpack.c.b16 %v5815, %v5814
        %v5871 = vpack.c.b16 %v5817, %v5816
        %v5872 = vpack.c.b16 %v5819, %v5818
        %v5873 = vpack.c.b16 %v5821, %v5820
        %v5874 = vpack.c.b16 %v5823, %v5822
        %v5875 = vpack.c.b16 %v5825, %v5824
        %v5876 = vpack.c.b16 %v5827, %v5826
        %v5927 = vsel %vm1896, %v5625, 0
        %5929 = vmatprep.subr.bf16.mxu0 0
        %5930 = vmatpush1.bf16.msra.mxu0 %v5828
        %5931 = vmatprep.subr.bf16.mxu0 0
        %5932 = vmatpush1.bf16.msra.mxu0 %v5829
        %5933 = vmatprep.subr.bf16.mxu0 0
        %5934 = vmatpush1.bf16.msra.mxu0 %v5830
        %5935 = vmatprep.subr.bf16.mxu0 0
        %5936 = vmatpush1.bf16.msra.mxu0 %v5831
        %5937 = vmatprep.subr.bf16.mxu0 0
        %5938 = vmatpush1.bf16.msra.mxu0 %v5832
        %5939 = vmatprep.subr.bf16.mxu0 0
        %5940 = vmatpush1.bf16.msra.mxu0 %v5833
        %5941 = vmatprep.subr.bf16.mxu0 0
        %5942 = vmatpush1.bf16.msra.mxu0 %v5834
        %5943 = vmatprep.subr.bf16.mxu0 0
        %5944 = vmatpush1.bf16.msra.mxu0 %v5835
        %5945 = vmatprep.subr.bf16.mxu0 0
        %5946 = vmatpush1.bf16.msra.mxu0 %v5836
        %5947 = vmatprep.subr.bf16.mxu0 0
        %5948 = vmatpush1.bf16.msra.mxu0 %v5837
        %5949 = vmatprep.subr.bf16.mxu0 0
        %5950 = vmatpush1.bf16.msra.mxu0 %v5838
        %5951 = vmatprep.subr.bf16.mxu0 0
        %5952 = vmatpush1.bf16.msra.mxu0 %v5839
        %5953 = vmatprep.subr.bf16.mxu0 0
        %5954 = vmatpush1.bf16.msra.mxu0 %v5840
        %5955 = vmatprep.subr.bf16.mxu0 0
        %5956 = vmatpush1.bf16.msra.mxu0 %v5841
        %5957 = vmatprep.subr.bf16.mxu0 0
        %5958 = vmatpush1.bf16.msra.mxu0 %v5842
        %5959 = vmatprep.subr.bf16.mxu0 0
        %5960 = vmatpush1.bf16.msra.mxu0 %v5843
        %5961 = vmatprep.mubr.bf16.mxu0 %v5620
        %5962 = vmatmul.mubr.bf16.gmra.mrb[0].mxu0 %v5619
        %v5963 = vpop.f32.mrb[0].mxu0
        %v5964 = vadd.f32 0.0, %v5963
        %v5965 = vpop.f32.mrb[0].mxu0
        %v5966 = vpop.f32.mrb[0].mxu0
        %v5967 = vpop.f32.mrb[0].mxu0
        %5968 = vdwg.mxu0
        %5969 = vmatprep.subr.bf16.mxu0 0
        %5970 = vmatpush1.bf16.msra.mxu0 %v5844
        %5971 = vmatprep.subr.bf16.mxu0 0
        %5972 = vmatpush1.bf16.msra.mxu0 %v5845
        %5973 = vmatprep.subr.bf16.mxu0 0
        %5974 = vmatpush1.bf16.msra.mxu0 %v5846
        %5975 = vmatprep.subr.bf16.mxu0 0
        %5976 = vmatpush1.bf16.msra.mxu0 %v5847
        %5977 = vmatprep.subr.bf16.mxu0 0
        %5978 = vmatpush1.bf16.msra.mxu0 %v5848
        %5979 = vmatprep.subr.bf16.mxu0 0
        %5980 = vmatpush1.bf16.msra.mxu0 %v5849
        %5981 = vmatprep.subr.bf16.mxu0 0
        %5982 = vmatpush1.bf16.msra.mxu0 %v5850
        %5983 = vmatprep.subr.bf16.mxu0 0
        %5984 = vmatpush1.bf16.msra.mxu0 %v5851
        %5985 = vmatprep.subr.bf16.mxu0 0
        %5986 = vmatpush1.bf16.msra.mxu0 %v5852
        %5987 = vmatprep.subr.bf16.mxu0 0
        %5988 = vmatpush1.bf16.msra.mxu0 %v5853
        %5989 = vmatprep.subr.bf16.mxu0 0
        %5990 = vmatpush1.bf16.msra.mxu0 %v5854
        %5991 = vmatprep.subr.bf16.mxu0 0
        %5992 = vmatpush1.bf16.msra.mxu0 %v5855
        %5993 = vmatprep.subr.bf16.mxu0 0
        %5994 = vmatpush1.bf16.msra.mxu0 %v5856
        %5995 = vmatprep.subr.bf16.mxu0 0
        %5996 = vmatpush1.bf16.msra.mxu0 %v5857
        %5997 = vmatprep.subr.bf16.mxu0 0
        %5998 = vmatpush1.bf16.msra.mxu0 %v5858
        %5999 = vmatprep.subr.bf16.mxu0 0
        %6000 = vmatpush1.bf16.msra.mxu0 %v5859
        %6001 = vmatprep.mubr.bf16.mxu0 %v5622
        %6002 = vmatmul.mubr.bf16.gmra.mrb[0].mxu0 %v5621
        %v6003 = vpop.f32.mrb[0].mxu0
        %v6004 = vadd.f32 %v5964, %v6003
        %v6005 = vpop.f32.mrb[0].mxu0
        %v6006 = vpop.f32.mrb[0].mxu0
        %v6007 = vpop.f32.mrb[0].mxu0
        %6008 = vdwg.mxu0
        %6009 = vmatprep.subr.bf16.mxu0 0
        %6010 = vmatpush1.bf16.msra.mxu0 %v5860
        %6011 = vmatprep.subr.bf16.mxu0 0
        %6012 = vmatpush1.bf16.msra.mxu0 %v5861
        %6013 = vmatprep.subr.bf16.mxu0 0
        %6014 = vmatpush1.bf16.msra.mxu0 %v5862
        %6015 = vmatprep.subr.bf16.mxu0 0
        %6016 = vmatpush1.bf16.msra.mxu0 %v5863
        %6017 = vmatprep.subr.bf16.mxu0 0
        %6018 = vmatpush1.bf16.msra.mxu0 %v5864
        %6019 = vmatprep.subr.bf16.mxu0 0
        %6020 = vmatpush1.bf16.msra.mxu0 %v5865
        %6021 = vmatprep.subr.bf16.mxu0 0
        %6022 = vmatpush1.bf16.msra.mxu0 %v5866
        %6023 = vmatprep.subr.bf16.mxu0 0
        %6024 = vmatpush1.bf16.msra.mxu0 %v5867
        %6025 = vmatprep.subr.bf16.mxu0 0
        %6026 = vmatpush1.bf16.msra.mxu0 %v5868
        %6027 = vmatprep.subr.bf16.mxu0 0
        %6028 = vmatpush1.bf16.msra.mxu0 %v5869
        %6029 = vmatprep.subr.bf16.mxu0 0
        %6030 = vmatpush1.bf16.msra.mxu0 %v5870
        %6031 = vmatprep.subr.bf16.mxu0 0
        %6032 = vmatpush1.bf16.msra.mxu0 %v5871
        %6033 = vmatprep.subr.bf16.mxu0 0
        %6034 = vmatpush1.bf16.msra.mxu0 %v5872
        %6035 = vmatprep.subr.bf16.mxu0 0
        %6036 = vmatpush1.bf16.msra.mxu0 %v5873
        %6037 = vmatprep.subr.bf16.mxu0 0
        %6038 = vmatpush1.bf16.msra.mxu0 %v5874
        %6039 = vmatprep.subr.bf16.mxu0 0
        %6040 = vmatpush1.bf16.msra.mxu0 %v5875
        %6041 = vmatprep.mubr.bf16.mxu0 %v5624
        %6042 = vmatmul.mubr.bf16.gmra.mrb[0].mxu0 %v5623
        %v6043 = vpop.f32.mrb[0].mxu0
        %v6044 = vadd.f32 %v6004, %v6043
        %v6045 = vpop.f32.mrb[0].mxu0
        %v6046 = vpop.f32.mrb[0].mxu0
        %v6047 = vpop.f32.mrb[0].mxu0
        %6048 = vdwg.mxu0
        %6049 = vmatprep.subr.bf16.mxu0 0
        %6050 = vmatpush1.bf16.msra.mxu0 %v5876
        %6051 = vmatprep.subr.bf16.mxu0 0
        %6052 = vmatpush1.bf16.msra.mxu0 0
        %6053 = vmatprep.subr.bf16.mxu0 0
        %6054 = vmatpush1.bf16.msra.mxu0 0
        %6055 = vmatprep.subr.bf16.mxu0 0
        %6056 = vmatpush1.bf16.msra.mxu0 0
        %6057 = vmatprep.subr.bf16.mxu0 0
        %6058 = vmatpush1.bf16.msra.mxu0 0
        %6059 = vmatprep.subr.bf16.mxu0 0
        %6060 = vmatpush1.bf16.msra.mxu0 0
        %6061 = vmatprep.subr.bf16.mxu0 0
        %6062 = vmatpush1.bf16.msra.mxu0 0
        %6063 = vmatprep.subr.bf16.mxu0 0
        %6064 = vmatpush1.bf16.msra.mxu0 0
        %6065 = vmatprep.subr.bf16.mxu0 0
        %6066 = vmatpush1.bf16.msra.mxu0 0
        %6067 = vmatprep.subr.bf16.mxu0 0
        %6068 = vmatpush1.bf16.msra.mxu0 0
        %6069 = vmatprep.subr.bf16.mxu0 0
        %6070 = vmatpush1.bf16.msra.mxu0 0
        %6071 = vmatprep.subr.bf16.mxu0 0
        %6072 = vmatpush1.bf16.msra.mxu0 0
        %6073 = vmatprep.subr.bf16.mxu0 0
        %6074 = vmatpush1.bf16.msra.mxu0 0
        %6075 = vmatprep.subr.bf16.mxu0 0
        %6076 = vmatpush1.bf16.msra.mxu0 0
        %6077 = vmatprep.subr.bf16.mxu0 0
        %6078 = vmatpush1.bf16.msra.mxu0 0
        %6079 = vmatprep.subr.bf16.mxu0 0
        %6080 = vmatpush1.bf16.msra.mxu0 0
        %6081 = vmatprep.mubr.bf16.mxu0 0
        %6082 = vmatmul.mubr.bf16.gmra.mrb[0].mxu0 %v5927
        %v6083 = vpop.f32.mrb[0].mxu0
        %v6084 = vadd.f32 %v6044, %v6083
        %v6085 = vpop.f32.mrb[0].mxu0
        %v6086 = vpop.f32.mrb[0].mxu0
        %v6087 = vpop.f32.mrb[0].mxu0
        %6088 = vdwg.mxu0
        %v6089 = vadd.f32 %v5498, %v6084
        %s6090 = scalar_lea.vmem %s429, 3136 [#allocation7]
        %v6091 = vld [vmem:[%s6090] sm:$0xf]
        %v6092 = vld [vmem:[%s6090 + $0x4] sm:$0xf]
        %v6093 = vld [vmem:[%s6090 + $0x8] sm:$0xf]
        %v6094 = vld [vmem:[%s6090 + $0xc] sm:$0xf]
        %v6095 = vld [vmem:[%s6090 + $0x10] sm:$0xf]
        %v6096 = vld [vmem:[%s6090 + $0x14] sm:$0xf]
        %v6097 = vld [vmem:[%s6090 + $0x18] sm:$0xf]
        %v6098 = vld [vmem:[%s6090 + $0x1c] sm:$0xf]
        %v6099 = vld [vmem:[%s6090 + $0x20] sm:$0xf]
        %v6100 = vld [vmem:[%s6090 + $0x24] sm:$0xf]
        %v6101 = vld [vmem:[%s6090 + $0x28] sm:$0xf]
        %v6102 = vld [vmem:[%s6090 + $0x2c] sm:$0xf]
        %v6103 = vld [vmem:[%s6090 + $0x30] sm:$0xf]
        %v6104 = vld [vmem:[%s6090 + $0x34] sm:$0xf]
        %v6105 = vld [vmem:[%s6090 + $0x38] sm:$0xf]
        %v6106 = vld [vmem:[%s6090 + $0x3c] sm:$0xf]
        %v6107 = vld [vmem:[%s6090 + $0x40] sm:$0xf]
        %v6108 = vld [vmem:[%s6090 + $0x44] sm:$0xf]
        %v6109 = vld [vmem:[%s6090 + $0x48] sm:$0xf]
        %v6110 = vld [vmem:[%s6090 + $0x4c] sm:$0xf]
        %v6111 = vld [vmem:[%s6090 + $0x50] sm:$0xf]
        %v6112 = vld [vmem:[%s6090 + $0x54] sm:$0xf]
        %v6113 = vld [vmem:[%s6090 + $0x58] sm:$0xf]
        %v6114 = vld [vmem:[%s6090 + $0x5c] sm:$0xf]
        %v6115 = vld [vmem:[%s6090 + $0x60] sm:$0xf]
        %v6116 = vld [vmem:[%s6090 + $0x64] sm:$0xf]
        %v6117 = vld [vmem:[%s6090 + $0x68] sm:$0xf]
        %v6118 = vld [vmem:[%s6090 + $0x6c] sm:$0xf]
        %v6119 = vld [vmem:[%s6090 + $0x70] sm:$0xf]
        %v6120 = vld [vmem:[%s6090 + $0x74] sm:$0xf]
        %v6121 = vld [vmem:[%s6090 + $0x78] sm:$0xf]
        %v6122 = vld [vmem:[%s6090 + $0x7c] sm:$0xf]
        %v6123 = vld [vmem:[%s6090 + $0x80] sm:$0xf]
        %v6124 = vld [vmem:[%s6090 + $0x84] sm:$0xf]
        %v6125 = vld [vmem:[%s6090 + $0x88] sm:$0xf]
        %v6126 = vld [vmem:[%s6090 + $0x8c] sm:$0xf]
        %v6127 = vld [vmem:[%s6090 + $0x90] sm:$0xf]
        %v6128 = vld [vmem:[%s6090 + $0x94] sm:$0xf]
        %v6129 = vld [vmem:[%s6090 + $0x98] sm:$0xf]
        %v6130 = vld [vmem:[%s6090 + $0x9c] sm:$0xf]
        %v6131 = vld [vmem:[%s6090 + $0xa0] sm:$0xf]
        %v6132 = vld [vmem:[%s6090 + $0xa4] sm:$0xf]
        %v6133 = vld [vmem:[%s6090 + $0xa8] sm:$0xf]
        %v6134 = vld [vmem:[%s6090 + $0xac] sm:$0xf]
        %v6135 = vld [vmem:[%s6090 + $0xb0] sm:$0xf]
        %v6136 = vld [vmem:[%s6090 + $0xb4] sm:$0xf]
        %v6137 = vld [vmem:[%s6090 + $0xb8] sm:$0xf]
        %v6138 = vld [vmem:[%s6090 + $0xbc] sm:$0xf]
        %v6139 = vld [vmem:[%s6090 + $0xc0] sm:$0xf]
        %v6140 = vld [vmem:[%s6090 + $0xc4] sm:$0xf]
        %v6141 = vld [vmem:[%s6090 + $0xc8] sm:$0xf]
        %v6142 = vld [vmem:[%s6090 + $0xcc] sm:$0xf]
        %v6143 = vld [vmem:[%s6090 + $0xd0] sm:$0xf]
        %v6144 = vld [vmem:[%s6090 + $0xd4] sm:$0xf]
        %v6145 = vld [vmem:[%s6090 + $0xd8] sm:$0xf]
        %v6146 = vld [vmem:[%s6090 + $0xdc] sm:$0xf]
        %v6147 = vld [vmem:[%s6090 + $0xe0] sm:$0xf]
        %v6148 = vld [vmem:[%s6090 + $0xe4] sm:$0xf]
        %v6149 = vld [vmem:[%s6090 + $0xe8] sm:$0xf]
        %v6150 = vld [vmem:[%s6090 + $0xec] sm:$0xf]
        %v6151 = vld [vmem:[%s6090 + $0xf0] sm:$0xf]
        %v6152 = vld [vmem:[%s6090 + $0xf4] sm:$0xf]
        %v6153 = vld [vmem:[%s6090 + $0xf8] sm:$0xf]
        %v6154 = vld [vmem:[%s6090 + $0xfc] sm:$0xf]
        %v6155 = vld [vmem:[%s6090 + $0x100] sm:$0xf]
        %v6156 = vld [vmem:[%s6090 + $0x104] sm:$0xf]
        %v6157 = vld [vmem:[%s6090 + $0x108] sm:$0xf]
        %v6158 = vld [vmem:[%s6090 + $0x10c] sm:$0xf]
        %v6159 = vld [vmem:[%s6090 + $0x110] sm:$0xf]
        %v6160 = vld [vmem:[%s6090 + $0x114] sm:$0xf]
        %v6161 = vld [vmem:[%s6090 + $0x118] sm:$0xf]
        %v6162 = vld [vmem:[%s6090 + $0x11c] sm:$0xf]
        %v6163 = vld [vmem:[%s6090 + $0x120] sm:$0xf]
        %v6164 = vld [vmem:[%s6090 + $0x124] sm:$0xf]
        %v6165 = vld [vmem:[%s6090 + $0x128] sm:$0xf]
        %v6166 = vld [vmem:[%s6090 + $0x12c] sm:$0xf]
        %v6167 = vld [vmem:[%s6090 + $0x130] sm:$0xf]
        %v6168 = vld [vmem:[%s6090 + $0x134] sm:$0xf]
        %v6169 = vld [vmem:[%s6090 + $0x138] sm:$0xf]
        %v6170 = vld [vmem:[%s6090 + $0x13c] sm:$0xf]
        %v6171 = vld [vmem:[%s6090 + $0x140] sm:$0xf]
        %v6172 = vld [vmem:[%s6090 + $0x144] sm:$0xf]
        %v6173 = vld [vmem:[%s6090 + $0x148] sm:$0xf]
        %v6174 = vld [vmem:[%s6090 + $0x14c] sm:$0xf]
        %v6175 = vld [vmem:[%s6090 + $0x150] sm:$0xf]
        %v6176 = vld [vmem:[%s6090 + $0x154] sm:$0xf]
        %v6177 = vld [vmem:[%s6090 + $0x158] sm:$0xf]
        %v6178 = vld [vmem:[%s6090 + $0x15c] sm:$0xf]
        %v6179 = vld [vmem:[%s6090 + $0x160] sm:$0xf]
        %v6180 = vld [vmem:[%s6090 + $0x164] sm:$0xf]
        %v6181 = vld [vmem:[%s6090 + $0x168] sm:$0xf]
        %v6182 = vld [vmem:[%s6090 + $0x16c] sm:$0xf]
        %v6183 = vld [vmem:[%s6090 + $0x170] sm:$0xf]
        %v6184 = vld [vmem:[%s6090 + $0x174] sm:$0xf]
        %v6185 = vld [vmem:[%s6090 + $0x178] sm:$0xf]
        %v6186 = vld [vmem:[%s6090 + $0x17c] sm:$0xf]
        %v6187 = vld [vmem:[%s6090 + $0x180] sm:$0xf]
        %v6188 = vld [vmem:[%s6090 + $0x184] sm:$0xf]
        %v6189 = vunpack.c.h.b16 %v1335
        %v6190 = vunpack.c.h.b16 %v1336
        %v6191 = vunpack.c.h.b16 %v1337
        %v6192 = vunpack.c.h.b16 %v1338
        %v6193 = vunpack.c.h.b16 %v1339
        %v6194 = vunpack.c.h.b16 %v1340
        %v6195 = vunpack.c.h.b16 %v1341
        %v6196 = vunpack.c.h.b16 %v1342
        %v6197 = vunpack.c.h.b16 %v1343
        %v6198 = vunpack.c.h.b16 %v1344
        %v6199 = vunpack.c.h.b16 %v1345
        %v6200 = vunpack.c.h.b16 %v1346
        %v6201 = vunpack.c.h.b16 %v1347
        %v6202 = vunpack.c.h.b16 %v1348
        %v6203 = vrot.slane %v6196, 7
        %v6204 = vsel %vm1575, %v6203, %v6189
        %v6205 = vrot.slane %v6197, 7
        %v6206 = vsel %vm1575, %v6205, %v6190
        %v6207 = vrot.slane %v6198, 7
        %v6208 = vsel %vm1575, %v6207, %v6191
        %v6209 = vrot.slane %v6199, 7
        %v6210 = vsel %vm1575, %v6209, %v6192
        %v6211 = vrot.slane %v6200, 7
        %v6212 = vsel %vm1575, %v6211, %v6193
        %v6213 = vrot.slane %v6201, 7
        %v6214 = vsel %vm1575, %v6213, %v6194
        %v6215 = vrot.slane %v6202, 7
        %v6216 = vsel %vm1575, %v6215, %v6195
        %v6217 = vpack.c.b16 %v6204, %v6204
        %v6218 = vpack.c.b16 %v6206, %v6206
        %v6219 = vpack.c.b16 %v6208, %v6208
        %v6220 = vpack.c.b16 %v6210, %v6210
        %v6221 = vpack.c.b16 %v6212, %v6212
        %v6222 = vpack.c.b16 %v6214, %v6214
        %v6223 = vpack.c.b16 %v6216, %v6216
        %v6328 = vunpack.c.l.b16 %v6091
        %v6329 = vunpack.c.l.b16 %v6092
        %v6330 = vunpack.c.l.b16 %v6093
        %v6331 = vunpack.c.l.b16 %v6094
        %v6332 = vunpack.c.l.b16 %v6095
        %v6333 = vunpack.c.l.b16 %v6096
        %v6334 = vunpack.c.l.b16 %v6097
        %v6335 = vunpack.c.l.b16 %v6098
        %v6336 = vunpack.c.l.b16 %v6099
        %v6337 = vunpack.c.l.b16 %v6100
        %v6338 = vunpack.c.l.b16 %v6101
        %v6339 = vunpack.c.l.b16 %v6102
        %v6340 = vunpack.c.l.b16 %v6103
        %v6341 = vunpack.c.l.b16 %v6104
        %v6342 = vunpack.c.l.b16 %v6105
        %v6343 = vunpack.c.l.b16 %v6106
        %v6344 = vunpack.c.l.b16 %v6107
        %v6345 = vunpack.c.l.b16 %v6108
        %v6346 = vunpack.c.l.b16 %v6109
        %v6347 = vunpack.c.l.b16 %v6110
        %v6348 = vunpack.c.l.b16 %v6111
        %v6349 = vunpack.c.l.b16 %v6112
        %v6350 = vunpack.c.l.b16 %v6113
        %v6351 = vunpack.c.l.b16 %v6114
        %v6352 = vunpack.c.l.b16 %v6115
        %v6353 = vunpack.c.l.b16 %v6116
        %v6354 = vunpack.c.l.b16 %v6117
        %v6355 = vunpack.c.l.b16 %v6118
        %v6356 = vunpack.c.l.b16 %v6119
        %v6357 = vunpack.c.l.b16 %v6120
        %v6358 = vunpack.c.l.b16 %v6121
        %v6359 = vunpack.c.l.b16 %v6122
        %v6360 = vunpack.c.l.b16 %v6123
        %v6361 = vunpack.c.l.b16 %v6124
        %v6362 = vunpack.c.l.b16 %v6125
        %v6363 = vunpack.c.l.b16 %v6126
        %v6364 = vunpack.c.l.b16 %v6127
        %v6365 = vunpack.c.l.b16 %v6128
        %v6366 = vunpack.c.l.b16 %v6129
        %v6367 = vunpack.c.l.b16 %v6130
        %v6368 = vunpack.c.l.b16 %v6131
        %v6369 = vunpack.c.l.b16 %v6132
        %v6370 = vunpack.c.l.b16 %v6133
        %v6371 = vunpack.c.l.b16 %v6134
        %v6372 = vunpack.c.l.b16 %v6135
        %v6373 = vunpack.c.l.b16 %v6136
        %v6374 = vunpack.c.l.b16 %v6137
        %v6375 = vunpack.c.l.b16 %v6138
        %v6376 = vunpack.c.l.b16 %v6139
        %v6377 = vunpack.c.l.b16 %v6140
        %v6378 = vunpack.c.l.b16 %v6141
        %v6379 = vunpack.c.l.b16 %v6142
        %v6380 = vunpack.c.l.b16 %v6143
        %v6381 = vunpack.c.l.b16 %v6144
        %v6382 = vunpack.c.l.b16 %v6145
        %v6383 = vunpack.c.l.b16 %v6146
        %v6384 = vunpack.c.l.b16 %v6147
        %v6385 = vunpack.c.l.b16 %v6148
        %v6386 = vunpack.c.l.b16 %v6149
        %v6387 = vunpack.c.l.b16 %v6150
        %v6388 = vunpack.c.l.b16 %v6151
        %v6389 = vunpack.c.l.b16 %v6152
        %v6390 = vunpack.c.l.b16 %v6153
        %v6391 = vunpack.c.l.b16 %v6154
        %v6392 = vunpack.c.l.b16 %v6155
        %v6393 = vunpack.c.l.b16 %v6156
        %v6394 = vunpack.c.l.b16 %v6157
        %v6395 = vunpack.c.l.b16 %v6158
        %v6396 = vunpack.c.l.b16 %v6159
        %v6397 = vunpack.c.l.b16 %v6160
        %v6398 = vunpack.c.l.b16 %v6161
        %v6399 = vunpack.c.l.b16 %v6162
        %v6400 = vunpack.c.l.b16 %v6163
        %v6401 = vunpack.c.l.b16 %v6164
        %v6402 = vunpack.c.l.b16 %v6165
        %v6403 = vunpack.c.l.b16 %v6166
        %v6404 = vunpack.c.l.b16 %v6167
        %v6405 = vunpack.c.l.b16 %v6168
        %v6406 = vunpack.c.l.b16 %v6169
        %v6407 = vunpack.c.l.b16 %v6170
        %v6408 = vunpack.c.l.b16 %v6171
        %v6409 = vunpack.c.l.b16 %v6172
        %v6410 = vunpack.c.l.b16 %v6173
        %v6411 = vunpack.c.l.b16 %v6174
        %v6412 = vunpack.c.l.b16 %v6175
        %v6413 = vunpack.c.l.b16 %v6176
        %v6414 = vunpack.c.l.b16 %v6177
        %v6415 = vunpack.c.l.b16 %v6178
        %v6416 = vunpack.c.l.b16 %v6179
        %v6417 = vunpack.c.l.b16 %v6180
        %v6418 = vunpack.c.l.b16 %v6181
        %v6419 = vunpack.c.l.b16 %v6182
        %v6420 = vunpack.c.l.b16 %v6183
        %v6421 = vunpack.c.l.b16 %v6184
        %v6422 = vunpack.c.l.b16 %v6185
        %v6423 = vunpack.c.l.b16 %v6186
        %v6424 = vunpack.c.l.b16 %v6187
        %v6425 = vunpack.c.l.b16 %v6188
        %v6426 = vpack.c.b16 %v6329, %v6328
        %v6427 = vpack.c.b16 %v6331, %v6330
        %v6428 = vpack.c.b16 %v6333, %v6332
        %v6429 = vpack.c.b16 %v6335, %v6334
        %v6430 = vpack.c.b16 %v6337, %v6336
        %v6431 = vpack.c.b16 %v6339, %v6338
        %v6432 = vpack.c.b16 %v6341, %v6340
        %v6433 = vpack.c.b16 %v6343, %v6342
        %v6434 = vpack.c.b16 %v6345, %v6344
        %v6435 = vpack.c.b16 %v6347, %v6346
        %v6436 = vpack.c.b16 %v6349, %v6348
        %v6437 = vpack.c.b16 %v6351, %v6350
        %v6438 = vpack.c.b16 %v6353, %v6352
        %v6439 = vpack.c.b16 %v6355, %v6354
        %v6440 = vpack.c.b16 %v6357, %v6356
        %v6441 = vpack.c.b16 %v6359, %v6358
        %v6442 = vpack.c.b16 %v6361, %v6360
        %v6443 = vpack.c.b16 %v6363, %v6362
        %v6444 = vpack.c.b16 %v6365, %v6364
        %v6445 = vpack.c.b16 %v6367, %v6366
        %v6446 = vpack.c.b16 %v6369, %v6368
        %v6447 = vpack.c.b16 %v6371, %v6370
        %v6448 = vpack.c.b16 %v6373, %v6372
        %v6449 = vpack.c.b16 %v6375, %v6374
        %v6450 = vpack.c.b16 %v6377, %v6376
        %v6451 = vpack.c.b16 %v6379, %v6378
        %v6452 = vpack.c.b16 %v6381, %v6380
        %v6453 = vpack.c.b16 %v6383, %v6382
        %v6454 = vpack.c.b16 %v6385, %v6384
        %v6455 = vpack.c.b16 %v6387, %v6386
        %v6456 = vpack.c.b16 %v6389, %v6388
        %v6457 = vpack.c.b16 %v6391, %v6390
        %v6458 = vpack.c.b16 %v6393, %v6392
        %v6459 = vpack.c.b16 %v6395, %v6394
        %v6460 = vpack.c.b16 %v6397, %v6396
        %v6461 = vpack.c.b16 %v6399, %v6398
        %v6462 = vpack.c.b16 %v6401, %v6400
        %v6463 = vpack.c.b16 %v6403, %v6402
        %v6464 = vpack.c.b16 %v6405, %v6404
        %v6465 = vpack.c.b16 %v6407, %v6406
        %v6466 = vpack.c.b16 %v6409, %v6408
        %v6467 = vpack.c.b16 %v6411, %v6410
        %v6468 = vpack.c.b16 %v6413, %v6412
        %v6469 = vpack.c.b16 %v6415, %v6414
        %v6470 = vpack.c.b16 %v6417, %v6416
        %v6471 = vpack.c.b16 %v6419, %v6418
        %v6472 = vpack.c.b16 %v6421, %v6420
        %v6473 = vpack.c.b16 %v6423, %v6422
        %v6474 = vpack.c.b16 %v6425, %v6424
        %v6525 = vsel %vm1896, %v6223, 0
        %6527 = vmatprep.subr.bf16.mxu0 0
        %6528 = vmatpush1.bf16.msra.mxu0 %v6426
        %6529 = vmatprep.subr.bf16.mxu0 0
        %6530 = vmatpush1.bf16.msra.mxu0 %v6427
        %6531 = vmatprep.subr.bf16.mxu0 0
        %6532 = vmatpush1.bf16.msra.mxu0 %v6428
        %6533 = vmatprep.subr.bf16.mxu0 0
        %6534 = vmatpush1.bf16.msra.mxu0 %v6429
        %6535 = vmatprep.subr.bf16.mxu0 0
        %6536 = vmatpush1.bf16.msra.mxu0 %v6430
        %6537 = vmatprep.subr.bf16.mxu0 0
        %6538 = vmatpush1.bf16.msra.mxu0 %v6431
        %6539 = vmatprep.subr.bf16.mxu0 0
        %6540 = vmatpush1.bf16.msra.mxu0 %v6432
        %6541 = vmatprep.subr.bf16.mxu0 0
        %6542 = vmatpush1.bf16.msra.mxu0 %v6433
        %6543 = vmatprep.subr.bf16.mxu0 0
        %6544 = vmatpush1.bf16.msra.mxu0 %v6434
        %6545 = vmatprep.subr.bf16.mxu0 0
        %6546 = vmatpush1.bf16.msra.mxu0 %v6435
        %6547 = vmatprep.subr.bf16.mxu0 0
        %6548 = vmatpush1.bf16.msra.mxu0 %v6436
        %6549 = vmatprep.subr.bf16.mxu0 0
        %6550 = vmatpush1.bf16.msra.mxu0 %v6437
        %6551 = vmatprep.subr.bf16.mxu0 0
        %6552 = vmatpush1.bf16.msra.mxu0 %v6438
        %6553 = vmatprep.subr.bf16.mxu0 0
        %6554 = vmatpush1.bf16.msra.mxu0 %v6439
        %6555 = vmatprep.subr.bf16.mxu0 0
        %6556 = vmatpush1.bf16.msra.mxu0 %v6440
        %6557 = vmatprep.subr.bf16.mxu0 0
        %6558 = vmatpush1.bf16.msra.mxu0 %v6441
        %6559 = vmatprep.mubr.bf16.mxu0 %v6218
        %6560 = vmatmul.mubr.bf16.gmra.mrb[0].mxu0 %v6217
        %v6561 = vpop.f32.mrb[0].mxu0
        %v6562 = vadd.f32 0.0, %v6561
        %v6563 = vpop.f32.mrb[0].mxu0
        %v6564 = vpop.f32.mrb[0].mxu0
        %v6565 = vpop.f32.mrb[0].mxu0
        %6566 = vdwg.mxu0
        %6567 = vmatprep.subr.bf16.mxu0 0
        %6568 = vmatpush1.bf16.msra.mxu0 %v6442
        %6569 = vmatprep.subr.bf16.mxu0 0
        %6570 = vmatpush1.bf16.msra.mxu0 %v6443
        %6571 = vmatprep.subr.bf16.mxu0 0
        %6572 = vmatpush1.bf16.msra.mxu0 %v6444
        %6573 = vmatprep.subr.bf16.mxu0 0
        %6574 = vmatpush1.bf16.msra.mxu0 %v6445
        %6575 = vmatprep.subr.bf16.mxu0 0
        %6576 = vmatpush1.bf16.msra.mxu0 %v6446
        %6577 = vmatprep.subr.bf16.mxu0 0
        %6578 = vmatpush1.bf16.msra.mxu0 %v6447
        %6579 = vmatprep.subr.bf16.mxu0 0
        %6580 = vmatpush1.bf16.msra.mxu0 %v6448
        %6581 = vmatprep.subr.bf16.mxu0 0
        %6582 = vmatpush1.bf16.msra.mxu0 %v6449
        %6583 = vmatprep.subr.bf16.mxu0 0
        %6584 = vmatpush1.bf16.msra.mxu0 %v6450
        %6585 = vmatprep.subr.bf16.mxu0 0
        %6586 = vmatpush1.bf16.msra.mxu0 %v6451
        %6587 = vmatprep.subr.bf16.mxu0 0
        %6588 = vmatpush1.bf16.msra.mxu0 %v6452
        %6589 = vmatprep.subr.bf16.mxu0 0
        %6590 = vmatpush1.bf16.msra.mxu0 %v6453
        %6591 = vmatprep.subr.bf16.mxu0 0
        %6592 = vmatpush1.bf16.msra.mxu0 %v6454
        %6593 = vmatprep.subr.bf16.mxu0 0
        %6594 = vmatpush1.bf16.msra.mxu0 %v6455
        %6595 = vmatprep.subr.bf16.mxu0 0
        %6596 = vmatpush1.bf16.msra.mxu0 %v6456
        %6597 = vmatprep.subr.bf16.mxu0 0
        %6598 = vmatpush1.bf16.msra.mxu0 %v6457
        %6599 = vmatprep.mubr.bf16.mxu0 %v6220
        %6600 = vmatmul.mubr.bf16.gmra.mrb[0].mxu0 %v6219
        %v6601 = vpop.f32.mrb[0].mxu0
        %v6602 = vadd.f32 %v6562, %v6601
        %v6603 = vpop.f32.mrb[0].mxu0
        %v6604 = vpop.f32.mrb[0].mxu0
        %v6605 = vpop.f32.mrb[0].mxu0
        %6606 = vdwg.mxu0
        %6607 = vmatprep.subr.bf16.mxu0 0
        %6608 = vmatpush1.bf16.msra.mxu0 %v6458
        %6609 = vmatprep.subr.bf16.mxu0 0
        %6610 = vmatpush1.bf16.msra.mxu0 %v6459
        %6611 = vmatprep.subr.bf16.mxu0 0
        %6612 = vmatpush1.bf16.msra.mxu0 %v6460
        %6613 = vmatprep.subr.bf16.mxu0 0
        %6614 = vmatpush1.bf16.msra.mxu0 %v6461
        %6615 = vmatprep.subr.bf16.mxu0 0
        %6616 = vmatpush1.bf16.msra.mxu0 %v6462
        %6617 = vmatprep.subr.bf16.mxu0 0
        %6618 = vmatpush1.bf16.msra.mxu0 %v6463
        %6619 = vmatprep.subr.bf16.mxu0 0
        %6620 = vmatpush1.bf16.msra.mxu0 %v6464
        %6621 = vmatprep.subr.bf16.mxu0 0
        %6622 = vmatpush1.bf16.msra.mxu0 %v6465
        %6623 = vmatprep.subr.bf16.mxu0 0
        %6624 = vmatpush1.bf16.msra.mxu0 %v6466
        %6625 = vmatprep.subr.bf16.mxu0 0
        %6626 = vmatpush1.bf16.msra.mxu0 %v6467
        %6627 = vmatprep.subr.bf16.mxu0 0
        %6628 = vmatpush1.bf16.msra.mxu0 %v6468
        %6629 = vmatprep.subr.bf16.mxu0 0
        %6630 = vmatpush1.bf16.msra.mxu0 %v6469
        %6631 = vmatprep.subr.bf16.mxu0 0
        %6632 = vmatpush1.bf16.msra.mxu0 %v6470
        %6633 = vmatprep.subr.bf16.mxu0 0
        %6634 = vmatpush1.bf16.msra.mxu0 %v6471
        %6635 = vmatprep.subr.bf16.mxu0 0
        %6636 = vmatpush1.bf16.msra.mxu0 %v6472
        %6637 = vmatprep.subr.bf16.mxu0 0
        %6638 = vmatpush1.bf16.msra.mxu0 %v6473
        %6639 = vmatprep.mubr.bf16.mxu0 %v6222
        %6640 = vmatmul.mubr.bf16.gmra.mrb[0].mxu0 %v6221
        %v6641 = vpop.f32.mrb[0].mxu0
        %v6642 = vadd.f32 %v6602, %v6641
        %v6643 = vpop.f32.mrb[0].mxu0
        %v6644 = vpop.f32.mrb[0].mxu0
        %v6645 = vpop.f32.mrb[0].mxu0
        %6646 = vdwg.mxu0
        %6647 = vmatprep.subr.bf16.mxu0 0
        %6648 = vmatpush1.bf16.msra.mxu0 %v6474
        %6649 = vmatprep.subr.bf16.mxu0 0
        %6650 = vmatpush1.bf16.msra.mxu0 0
        %6651 = vmatprep.subr.bf16.mxu0 0
        %6652 = vmatpush1.bf16.msra.mxu0 0
        %6653 = vmatprep.subr.bf16.mxu0 0
        %6654 = vmatpush1.bf16.msra.mxu0 0
        %6655 = vmatprep.subr.bf16.mxu0 0
        %6656 = vmatpush1.bf16.msra.mxu0 0
        %6657 = vmatprep.subr.bf16.mxu0 0
        %6658 = vmatpush1.bf16.msra.mxu0 0
        %6659 = vmatprep.subr.bf16.mxu0 0
        %6660 = vmatpush1.bf16.msra.mxu0 0
        %6661 = vmatprep.subr.bf16.mxu0 0
        %6662 = vmatpush1.bf16.msra.mxu0 0
        %6663 = vmatprep.subr.bf16.mxu0 0
        %6664 = vmatpush1.bf16.msra.mxu0 0
        %6665 = vmatprep.subr.bf16.mxu0 0
        %6666 = vmatpush1.bf16.msra.mxu0 0
        %6667 = vmatprep.subr.bf16.mxu0 0
        %6668 = vmatpush1.bf16.msra.mxu0 0
        %6669 = vmatprep.subr.bf16.mxu0 0
        %6670 = vmatpush1.bf16.msra.mxu0 0
        %6671 = vmatprep.subr.bf16.mxu0 0
        %6672 = vmatpush1.bf16.msra.mxu0 0
        %6673 = vmatprep.subr.bf16.mxu0 0
        %6674 = vmatpush1.bf16.msra.mxu0 0
        %6675 = vmatprep.subr.bf16.mxu0 0
        %6676 = vmatpush1.bf16.msra.mxu0 0
        %6677 = vmatprep.subr.bf16.mxu0 0
        %6678 = vmatpush1.bf16.msra.mxu0 0
        %6679 = vmatprep.mubr.bf16.mxu0 0
        %6680 = vmatmul.mubr.bf16.gmra.mrb[0].mxu0 %v6525
        %v6681 = vpop.f32.mrb[0].mxu0
        %v6682 = vadd.f32 %v6642, %v6681
        %v6683 = vpop.f32.mrb[0].mxu0
        %v6684 = vpop.f32.mrb[0].mxu0
        %v6685 = vpop.f32.mrb[0].mxu0
        %6686 = vdwg.mxu0
        %v6687 = vadd.f32 %v6089, %v6682
        %s6688 = scalar_lea.vmem %s429, 3528 [#allocation7]
        %v6689 = vld [vmem:[%s6688] sm:$0xf]
        %v6690 = vld [vmem:[%s6688 + $0x4] sm:$0xf]
        %v6691 = vld [vmem:[%s6688 + $0x8] sm:$0xf]
        %v6692 = vld [vmem:[%s6688 + $0xc] sm:$0xf]
        %v6693 = vld [vmem:[%s6688 + $0x10] sm:$0xf]
        %v6694 = vld [vmem:[%s6688 + $0x14] sm:$0xf]
        %v6695 = vld [vmem:[%s6688 + $0x18] sm:$0xf]
        %v6696 = vld [vmem:[%s6688 + $0x1c] sm:$0xf]
        %v6697 = vld [vmem:[%s6688 + $0x20] sm:$0xf]
        %v6698 = vld [vmem:[%s6688 + $0x24] sm:$0xf]
        %v6699 = vld [vmem:[%s6688 + $0x28] sm:$0xf]
        %v6700 = vld [vmem:[%s6688 + $0x2c] sm:$0xf]
        %v6701 = vld [vmem:[%s6688 + $0x30] sm:$0xf]
        %v6702 = vld [vmem:[%s6688 + $0x34] sm:$0xf]
        %v6703 = vld [vmem:[%s6688 + $0x38] sm:$0xf]
        %v6704 = vld [vmem:[%s6688 + $0x3c] sm:$0xf]
        %v6705 = vld [vmem:[%s6688 + $0x40] sm:$0xf]
        %v6706 = vld [vmem:[%s6688 + $0x44] sm:$0xf]
        %v6707 = vld [vmem:[%s6688 + $0x48] sm:$0xf]
        %v6708 = vld [vmem:[%s6688 + $0x4c] sm:$0xf]
        %v6709 = vld [vmem:[%s6688 + $0x50] sm:$0xf]
        %v6710 = vld [vmem:[%s6688 + $0x54] sm:$0xf]
        %v6711 = vld [vmem:[%s6688 + $0x58] sm:$0xf]
        %v6712 = vld [vmem:[%s6688 + $0x5c] sm:$0xf]
        %v6713 = vld [vmem:[%s6688 + $0x60] sm:$0xf]
        %v6714 = vld [vmem:[%s6688 + $0x64] sm:$0xf]
        %v6715 = vld [vmem:[%s6688 + $0x68] sm:$0xf]
        %v6716 = vld [vmem:[%s6688 + $0x6c] sm:$0xf]
        %v6717 = vld [vmem:[%s6688 + $0x70] sm:$0xf]
        %v6718 = vld [vmem:[%s6688 + $0x74] sm:$0xf]
        %v6719 = vld [vmem:[%s6688 + $0x78] sm:$0xf]
        %v6720 = vld [vmem:[%s6688 + $0x7c] sm:$0xf]
        %v6721 = vld [vmem:[%s6688 + $0x80] sm:$0xf]
        %v6722 = vld [vmem:[%s6688 + $0x84] sm:$0xf]
        %v6723 = vld [vmem:[%s6688 + $0x88] sm:$0xf]
        %v6724 = vld [vmem:[%s6688 + $0x8c] sm:$0xf]
        %v6725 = vld [vmem:[%s6688 + $0x90] sm:$0xf]
        %v6726 = vld [vmem:[%s6688 + $0x94] sm:$0xf]
        %v6727 = vld [vmem:[%s6688 + $0x98] sm:$0xf]
        %v6728 = vld [vmem:[%s6688 + $0x9c] sm:$0xf]
        %v6729 = vld [vmem:[%s6688 + $0xa0] sm:$0xf]
        %v6730 = vld [vmem:[%s6688 + $0xa4] sm:$0xf]
        %v6731 = vld [vmem:[%s6688 + $0xa8] sm:$0xf]
        %v6732 = vld [vmem:[%s6688 + $0xac] sm:$0xf]
        %v6733 = vld [vmem:[%s6688 + $0xb0] sm:$0xf]
        %v6734 = vld [vmem:[%s6688 + $0xb4] sm:$0xf]
        %v6735 = vld [vmem:[%s6688 + $0xb8] sm:$0xf]
        %v6736 = vld [vmem:[%s6688 + $0xbc] sm:$0xf]
        %v6737 = vld [vmem:[%s6688 + $0xc0] sm:$0xf]
        %v6738 = vld [vmem:[%s6688 + $0xc4] sm:$0xf]
        %v6739 = vld [vmem:[%s6688 + $0xc8] sm:$0xf]
        %v6740 = vld [vmem:[%s6688 + $0xcc] sm:$0xf]
        %v6741 = vld [vmem:[%s6688 + $0xd0] sm:$0xf]
        %v6742 = vld [vmem:[%s6688 + $0xd4] sm:$0xf]
        %v6743 = vld [vmem:[%s6688 + $0xd8] sm:$0xf]
        %v6744 = vld [vmem:[%s6688 + $0xdc] sm:$0xf]
        %v6745 = vld [vmem:[%s6688 + $0xe0] sm:$0xf]
        %v6746 = vld [vmem:[%s6688 + $0xe4] sm:$0xf]
        %v6747 = vld [vmem:[%s6688 + $0xe8] sm:$0xf]
        %v6748 = vld [vmem:[%s6688 + $0xec] sm:$0xf]
        %v6749 = vld [vmem:[%s6688 + $0xf0] sm:$0xf]
        %v6750 = vld [vmem:[%s6688 + $0xf4] sm:$0xf]
        %v6751 = vld [vmem:[%s6688 + $0xf8] sm:$0xf]
        %v6752 = vld [vmem:[%s6688 + $0xfc] sm:$0xf]
        %v6753 = vld [vmem:[%s6688 + $0x100] sm:$0xf]
        %v6754 = vld [vmem:[%s6688 + $0x104] sm:$0xf]
        %v6755 = vld [vmem:[%s6688 + $0x108] sm:$0xf]
        %v6756 = vld [vmem:[%s6688 + $0x10c] sm:$0xf]
        %v6757 = vld [vmem:[%s6688 + $0x110] sm:$0xf]
        %v6758 = vld [vmem:[%s6688 + $0x114] sm:$0xf]
        %v6759 = vld [vmem:[%s6688 + $0x118] sm:$0xf]
        %v6760 = vld [vmem:[%s6688 + $0x11c] sm:$0xf]
        %v6761 = vld [vmem:[%s6688 + $0x120] sm:$0xf]
        %v6762 = vld [vmem:[%s6688 + $0x124] sm:$0xf]
        %v6763 = vld [vmem:[%s6688 + $0x128] sm:$0xf]
        %v6764 = vld [vmem:[%s6688 + $0x12c] sm:$0xf]
        %v6765 = vld [vmem:[%s6688 + $0x130] sm:$0xf]
        %v6766 = vld [vmem:[%s6688 + $0x134] sm:$0xf]
        %v6767 = vld [vmem:[%s6688 + $0x138] sm:$0xf]
        %v6768 = vld [vmem:[%s6688 + $0x13c] sm:$0xf]
        %v6769 = vld [vmem:[%s6688 + $0x140] sm:$0xf]
        %v6770 = vld [vmem:[%s6688 + $0x144] sm:$0xf]
        %v6771 = vld [vmem:[%s6688 + $0x148] sm:$0xf]
        %v6772 = vld [vmem:[%s6688 + $0x14c] sm:$0xf]
        %v6773 = vld [vmem:[%s6688 + $0x150] sm:$0xf]
        %v6774 = vld [vmem:[%s6688 + $0x154] sm:$0xf]
        %v6775 = vld [vmem:[%s6688 + $0x158] sm:$0xf]
        %v6776 = vld [vmem:[%s6688 + $0x15c] sm:$0xf]
        %v6777 = vld [vmem:[%s6688 + $0x160] sm:$0xf]
        %v6778 = vld [vmem:[%s6688 + $0x164] sm:$0xf]
        %v6779 = vld [vmem:[%s6688 + $0x168] sm:$0xf]
        %v6780 = vld [vmem:[%s6688 + $0x16c] sm:$0xf]
        %v6781 = vld [vmem:[%s6688 + $0x170] sm:$0xf]
        %v6782 = vld [vmem:[%s6688 + $0x174] sm:$0xf]
        %v6783 = vld [vmem:[%s6688 + $0x178] sm:$0xf]
        %v6784 = vld [vmem:[%s6688 + $0x17c] sm:$0xf]
        %v6785 = vld [vmem:[%s6688 + $0x180] sm:$0xf]
        %v6786 = vld [vmem:[%s6688 + $0x184] sm:$0xf]
        %v6787 = vrot.slane %v6189, 1
        %v6788 = vsel %vm1575, %v6196, %v6787
        %v6789 = vrot.slane %v6190, 1
        %v6790 = vsel %vm1575, %v6197, %v6789
        %v6791 = vrot.slane %v6191, 1
        %v6792 = vsel %vm1575, %v6198, %v6791
        %v6793 = vrot.slane %v6192, 1
        %v6794 = vsel %vm1575, %v6199, %v6793
        %v6795 = vrot.slane %v6193, 1
        %v6796 = vsel %vm1575, %v6200, %v6795
        %v6797 = vrot.slane %v6194, 1
        %v6798 = vsel %vm1575, %v6201, %v6797
        %v6799 = vrot.slane %v6195, 1
        %v6800 = vsel %vm1575, %v6202, %v6799
        %v6801 = vpack.c.b16 %v6788, %v6788
        %v6802 = vpack.c.b16 %v6790, %v6790
        %v6803 = vpack.c.b16 %v6792, %v6792
        %v6804 = vpack.c.b16 %v6794, %v6794
        %v6805 = vpack.c.b16 %v6796, %v6796
        %v6806 = vpack.c.b16 %v6798, %v6798
        %v6807 = vpack.c.b16 %v6800, %v6800
        %v6912 = vunpack.c.l.b16 %v6689
        %v6913 = vunpack.c.l.b16 %v6690
        %v6914 = vunpack.c.l.b16 %v6691
        %v6915 = vunpack.c.l.b16 %v6692
        %v6916 = vunpack.c.l.b16 %v6693
        %v6917 = vunpack.c.l.b16 %v6694
        %v6918 = vunpack.c.l.b16 %v6695
        %v6919 = vunpack.c.l.b16 %v6696
        %v6920 = vunpack.c.l.b16 %v6697
        %v6921 = vunpack.c.l.b16 %v6698
        %v6922 = vunpack.c.l.b16 %v6699
        %v6923 = vunpack.c.l.b16 %v6700
        %v6924 = vunpack.c.l.b16 %v6701
        %v6925 = vunpack.c.l.b16 %v6702
        %v6926 = vunpack.c.l.b16 %v6703
        %v6927 = vunpack.c.l.b16 %v6704
        %v6928 = vunpack.c.l.b16 %v6705
        %v6929 = vunpack.c.l.b16 %v6706
        %v6930 = vunpack.c.l.b16 %v6707
        %v6931 = vunpack.c.l.b16 %v6708
        %v6932 = vunpack.c.l.b16 %v6709
        %v6933 = vunpack.c.l.b16 %v6710
        %v6934 = vunpack.c.l.b16 %v6711
        %v6935 = vunpack.c.l.b16 %v6712
        %v6936 = vunpack.c.l.b16 %v6713
        %v6937 = vunpack.c.l.b16 %v6714
        %v6938 = vunpack.c.l.b16 %v6715
        %v6939 = vunpack.c.l.b16 %v6716
        %v6940 = vunpack.c.l.b16 %v6717
        %v6941 = vunpack.c.l.b16 %v6718
        %v6942 = vunpack.c.l.b16 %v6719
        %v6943 = vunpack.c.l.b16 %v6720
        %v6944 = vunpack.c.l.b16 %v6721
        %v6945 = vunpack.c.l.b16 %v6722
        %v6946 = vunpack.c.l.b16 %v6723
        %v6947 = vunpack.c.l.b16 %v6724
        %v6948 = vunpack.c.l.b16 %v6725
        %v6949 = vunpack.c.l.b16 %v6726
        %v6950 = vunpack.c.l.b16 %v6727
        %v6951 = vunpack.c.l.b16 %v6728
        %v6952 = vunpack.c.l.b16 %v6729
        %v6953 = vunpack.c.l.b16 %v6730
        %v6954 = vunpack.c.l.b16 %v6731
        %v6955 = vunpack.c.l.b16 %v6732
        %v6956 = vunpack.c.l.b16 %v6733
        %v6957 = vunpack.c.l.b16 %v6734
        %v6958 = vunpack.c.l.b16 %v6735
        %v6959 = vunpack.c.l.b16 %v6736
        %v6960 = vunpack.c.l.b16 %v6737
        %v6961 = vunpack.c.l.b16 %v6738
        %v6962 = vunpack.c.l.b16 %v6739
        %v6963 = vunpack.c.l.b16 %v6740
        %v6964 = vunpack.c.l.b16 %v6741
        %v6965 = vunpack.c.l.b16 %v6742
        %v6966 = vunpack.c.l.b16 %v6743
        %v6967 = vunpack.c.l.b16 %v6744
        %v6968 = vunpack.c.l.b16 %v6745
        %v6969 = vunpack.c.l.b16 %v6746
        %v6970 = vunpack.c.l.b16 %v6747
        %v6971 = vunpack.c.l.b16 %v6748
        %v6972 = vunpack.c.l.b16 %v6749
        %v6973 = vunpack.c.l.b16 %v6750
        %v6974 = vunpack.c.l.b16 %v6751
        %v6975 = vunpack.c.l.b16 %v6752
        %v6976 = vunpack.c.l.b16 %v6753
        %v6977 = vunpack.c.l.b16 %v6754
        %v6978 = vunpack.c.l.b16 %v6755
        %v6979 = vunpack.c.l.b16 %v6756
        %v6980 = vunpack.c.l.b16 %v6757
        %v6981 = vunpack.c.l.b16 %v6758
        %v6982 = vunpack.c.l.b16 %v6759
        %v6983 = vunpack.c.l.b16 %v6760
        %v6984 = vunpack.c.l.b16 %v6761
        %v6985 = vunpack.c.l.b16 %v6762
        %v6986 = vunpack.c.l.b16 %v6763
        %v6987 = vunpack.c.l.b16 %v6764
        %v6988 = vunpack.c.l.b16 %v6765
        %v6989 = vunpack.c.l.b16 %v6766
        %v6990 = vunpack.c.l.b16 %v6767
        %v6991 = vunpack.c.l.b16 %v6768
        %v6992 = vunpack.c.l.b16 %v6769
        %v6993 = vunpack.c.l.b16 %v6770
        %v6994 = vunpack.c.l.b16 %v6771
        %v6995 = vunpack.c.l.b16 %v6772
        %v6996 = vunpack.c.l.b16 %v6773
        %v6997 = vunpack.c.l.b16 %v6774
        %v6998 = vunpack.c.l.b16 %v6775
        %v6999 = vunpack.c.l.b16 %v6776
        %v7000 = vunpack.c.l.b16 %v6777
        %v7001 = vunpack.c.l.b16 %v6778
        %v7002 = vunpack.c.l.b16 %v6779
        %v7003 = vunpack.c.l.b16 %v6780
        %v7004 = vunpack.c.l.b16 %v6781
        %v7005 = vunpack.c.l.b16 %v6782
        %v7006 = vunpack.c.l.b16 %v6783
        %v7007 = vunpack.c.l.b16 %v6784
        %v7008 = vunpack.c.l.b16 %v6785
        %v7009 = vunpack.c.l.b16 %v6786
        %v7010 = vpack.c.b16 %v6913, %v6912
        %v7011 = vpack.c.b16 %v6915, %v6914
        %v7012 = vpack.c.b16 %v6917, %v6916
        %v7013 = vpack.c.b16 %v6919, %v6918
        %v7014 = vpack.c.b16 %v6921, %v6920
        %v7015 = vpack.c.b16 %v6923, %v6922
        %v7016 = vpack.c.b16 %v6925, %v6924
        %v7017 = vpack.c.b16 %v6927, %v6926
        %v7018 = vpack.c.b16 %v6929, %v6928
        %v7019 = vpack.c.b16 %v6931, %v6930
        %v7020 = vpack.c.b16 %v6933, %v6932
        %v7021 = vpack.c.b16 %v6935, %v6934
        %v7022 = vpack.c.b16 %v6937, %v6936
        %v7023 = vpack.c.b16 %v6939, %v6938
        %v7024 = vpack.c.b16 %v6941, %v6940
        %v7025 = vpack.c.b16 %v6943, %v6942
        %v7026 = vpack.c.b16 %v6945, %v6944
        %v7027 = vpack.c.b16 %v6947, %v6946
        %v7028 = vpack.c.b16 %v6949, %v6948
        %v7029 = vpack.c.b16 %v6951, %v6950
        %v7030 = vpack.c.b16 %v6953, %v6952
        %v7031 = vpack.c.b16 %v6955, %v6954
        %v7032 = vpack.c.b16 %v6957, %v6956
        %v7033 = vpack.c.b16 %v6959, %v6958
        %v7034 = vpack.c.b16 %v6961, %v6960
        %v7035 = vpack.c.b16 %v6963, %v6962
        %v7036 = vpack.c.b16 %v6965, %v6964
        %v7037 = vpack.c.b16 %v6967, %v6966
        %v7038 = vpack.c.b16 %v6969, %v6968
        %v7039 = vpack.c.b16 %v6971, %v6970
        %v7040 = vpack.c.b16 %v6973, %v6972
        %v7041 = vpack.c.b16 %v6975, %v6974
        %v7042 = vpack.c.b16 %v6977, %v6976
        %v7043 = vpack.c.b16 %v6979, %v6978
        %v7044 = vpack.c.b16 %v6981, %v6980
        %v7045 = vpack.c.b16 %v6983, %v6982
        %v7046 = vpack.c.b16 %v6985, %v6984
        %v7047 = vpack.c.b16 %v6987, %v6986
        %v7048 = vpack.c.b16 %v6989, %v6988
        %v7049 = vpack.c.b16 %v6991, %v6990
        %v7050 = vpack.c.b16 %v6993, %v6992
        %v7051 = vpack.c.b16 %v6995, %v6994
        %v7052 = vpack.c.b16 %v6997, %v6996
        %v7053 = vpack.c.b16 %v6999, %v6998
        %v7054 = vpack.c.b16 %v7001, %v7000
        %v7055 = vpack.c.b16 %v7003, %v7002
        %v7056 = vpack.c.b16 %v7005, %v7004
        %v7057 = vpack.c.b16 %v7007, %v7006
        %v7058 = vpack.c.b16 %v7009, %v7008
        %v7109 = vsel %vm1896, %v6807, 0
        %7111 = vmatprep.subr.bf16.mxu0 0
        %7112 = vmatpush1.bf16.msra.mxu0 %v7010
        %7113 = vmatprep.subr.bf16.mxu0 0
        %7114 = vmatpush1.bf16.msra.mxu0 %v7011
        %7115 = vmatprep.subr.bf16.mxu0 0
        %7116 = vmatpush1.bf16.msra.mxu0 %v7012
        %7117 = vmatprep.subr.bf16.mxu0 0
        %7118 = vmatpush1.bf16.msra.mxu0 %v7013
        %7119 = vmatprep.subr.bf16.mxu0 0
        %7120 = vmatpush1.bf16.msra.mxu0 %v7014
        %7121 = vmatprep.subr.bf16.mxu0 0
        %7122 = vmatpush1.bf16.msra.mxu0 %v7015
        %7123 = vmatprep.subr.bf16.mxu0 0
        %7124 = vmatpush1.bf16.msra.mxu0 %v7016
        %7125 = vmatprep.subr.bf16.mxu0 0
        %7126 = vmatpush1.bf16.msra.mxu0 %v7017
        %7127 = vmatprep.subr.bf16.mxu0 0
        %7128 = vmatpush1.bf16.msra.mxu0 %v7018
        %7129 = vmatprep.subr.bf16.mxu0 0
        %7130 = vmatpush1.bf16.msra.mxu0 %v7019
        %7131 = vmatprep.subr.bf16.mxu0 0
        %7132 = vmatpush1.bf16.msra.mxu0 %v7020
        %7133 = vmatprep.subr.bf16.mxu0 0
        %7134 = vmatpush1.bf16.msra.mxu0 %v7021
        %7135 = vmatprep.subr.bf16.mxu0 0
        %7136 = vmatpush1.bf16.msra.mxu0 %v7022
        %7137 = vmatprep.subr.bf16.mxu0 0
        %7138 = vmatpush1.bf16.msra.mxu0 %v7023
        %7139 = vmatprep.subr.bf16.mxu0 0
        %7140 = vmatpush1.bf16.msra.mxu0 %v7024
        %7141 = vmatprep.subr.bf16.mxu0 0
        %7142 = vmatpush1.bf16.msra.mxu0 %v7025
        %7143 = vmatprep.mubr.bf16.mxu0 %v6802
        %7144 = vmatmul.mubr.bf16.gmra.mrb[0].mxu0 %v6801
        %v7145 = vpop.f32.mrb[0].mxu0
        %v7146 = vadd.f32 0.0, %v7145
        %v7147 = vpop.f32.mrb[0].mxu0
        %v7148 = vpop.f32.mrb[0].mxu0
        %v7149 = vpop.f32.mrb[0].mxu0
        %7150 = vdwg.mxu0
        %7151 = vmatprep.subr.bf16.mxu0 0
        %7152 = vmatpush1.bf16.msra.mxu0 %v7026
        %7153 = vmatprep.subr.bf16.mxu0 0
        %7154 = vmatpush1.bf16.msra.mxu0 %v7027
        %7155 = vmatprep.subr.bf16.mxu0 0
        %7156 = vmatpush1.bf16.msra.mxu0 %v7028
        %7157 = vmatprep.subr.bf16.mxu0 0
        %7158 = vmatpush1.bf16.msra.mxu0 %v7029
        %7159 = vmatprep.subr.bf16.mxu0 0
        %7160 = vmatpush1.bf16.msra.mxu0 %v7030
        %7161 = vmatprep.subr.bf16.mxu0 0
        %7162 = vmatpush1.bf16.msra.mxu0 %v7031
        %7163 = vmatprep.subr.bf16.mxu0 0
        %7164 = vmatpush1.bf16.msra.mxu0 %v7032
        %7165 = vmatprep.subr.bf16.mxu0 0
        %7166 = vmatpush1.bf16.msra.mxu0 %v7033
        %7167 = vmatprep.subr.bf16.mxu0 0
        %7168 = vmatpush1.bf16.msra.mxu0 %v7034
        %7169 = vmatprep.subr.bf16.mxu0 0
        %7170 = vmatpush1.bf16.msra.mxu0 %v7035
        %7171 = vmatprep.subr.bf16.mxu0 0
        %7172 = vmatpush1.bf16.msra.mxu0 %v7036
        %7173 = vmatprep.subr.bf16.mxu0 0
        %7174 = vmatpush1.bf16.msra.mxu0 %v7037
        %7175 = vmatprep.subr.bf16.mxu0 0
        %7176 = vmatpush1.bf16.msra.mxu0 %v7038
        %7177 = vmatprep.subr.bf16.mxu0 0
        %7178 = vmatpush1.bf16.msra.mxu0 %v7039
        %7179 = vmatprep.subr.bf16.mxu0 0
        %7180 = vmatpush1.bf16.msra.mxu0 %v7040
        %7181 = vmatprep.subr.bf16.mxu0 0
        %7182 = vmatpush1.bf16.msra.mxu0 %v7041
        %7183 = vmatprep.mubr.bf16.mxu0 %v6804
        %7184 = vmatmul.mubr.bf16.gmra.mrb[0].mxu0 %v6803
        %v7185 = vpop.f32.mrb[0].mxu0
        %v7186 = vadd.f32 %v7146, %v7185
        %v7187 = vpop.f32.mrb[0].mxu0
        %v7188 = vpop.f32.mrb[0].mxu0
        %v7189 = vpop.f32.mrb[0].mxu0
        %7190 = vdwg.mxu0
        %7191 = vmatprep.subr.bf16.mxu0 0
        %7192 = vmatpush1.bf16.msra.mxu0 %v7042
        %7193 = vmatprep.subr.bf16.mxu0 0
        %7194 = vmatpush1.bf16.msra.mxu0 %v7043
        %7195 = vmatprep.subr.bf16.mxu0 0
        %7196 = vmatpush1.bf16.msra.mxu0 %v7044
        %7197 = vmatprep.subr.bf16.mxu0 0
        %7198 = vmatpush1.bf16.msra.mxu0 %v7045
        %7199 = vmatprep.subr.bf16.mxu0 0
        %7200 = vmatpush1.bf16.msra.mxu0 %v7046
        %7201 = vmatprep.subr.bf16.mxu0 0
        %7202 = vmatpush1.bf16.msra.mxu0 %v7047
        %7203 = vmatprep.subr.bf16.mxu0 0
        %7204 = vmatpush1.bf16.msra.mxu0 %v7048
        %7205 = vmatprep.subr.bf16.mxu0 0
        %7206 = vmatpush1.bf16.msra.mxu0 %v7049
        %7207 = vmatprep.subr.bf16.mxu0 0
        %7208 = vmatpush1.bf16.msra.mxu0 %v7050
        %7209 = vmatprep.subr.bf16.mxu0 0
        %7210 = vmatpush1.bf16.msra.mxu0 %v7051
        %7211 = vmatprep.subr.bf16.mxu0 0
        %7212 = vmatpush1.bf16.msra.mxu0 %v7052
        %7213 = vmatprep.subr.bf16.mxu0 0
        %7214 = vmatpush1.bf16.msra.mxu0 %v7053
        %7215 = vmatprep.subr.bf16.mxu0 0
        %7216 = vmatpush1.bf16.msra.mxu0 %v7054
        %7217 = vmatprep.subr.bf16.mxu0 0
        %7218 = vmatpush1.bf16.msra.mxu0 %v7055
        %7219 = vmatprep.subr.bf16.mxu0 0
        %7220 = vmatpush1.bf16.msra.mxu0 %v7056
        %7221 = vmatprep.subr.bf16.mxu0 0
        %7222 = vmatpush1.bf16.msra.mxu0 %v7057
        %7223 = vmatprep.mubr.bf16.mxu0 %v6806
        %7224 = vmatmul.mubr.bf16.gmra.mrb[0].mxu0 %v6805
        %v7225 = vpop.f32.mrb[0].mxu0
        %v7226 = vadd.f32 %v7186, %v7225
        %v7227 = vpop.f32.mrb[0].mxu0
        %v7228 = vpop.f32.mrb[0].mxu0
        %v7229 = vpop.f32.mrb[0].mxu0
        %7230 = vdwg.mxu0
        %7231 = vmatprep.subr.bf16.mxu0 0
        %7232 = vmatpush1.bf16.msra.mxu0 %v7058
        %7233 = vmatprep.subr.bf16.mxu0 0
        %7234 = vmatpush1.bf16.msra.mxu0 0
        %7235 = vmatprep.subr.bf16.mxu0 0
        %7236 = vmatpush1.bf16.msra.mxu0 0
        %7237 = vmatprep.subr.bf16.mxu0 0
        %7238 = vmatpush1.bf16.msra.mxu0 0
        %7239 = vmatprep.subr.bf16.mxu0 0
        %7240 = vmatpush1.bf16.msra.mxu0 0
        %7241 = vmatprep.subr.bf16.mxu0 0
        %7242 = vmatpush1.bf16.msra.mxu0 0
        %7243 = vmatprep.subr.bf16.mxu0 0
        %7244 = vmatpush1.bf16.msra.mxu0 0
        %7245 = vmatprep.subr.bf16.mxu0 0
        %7246 = vmatpush1.bf16.msra.mxu0 0
        %7247 = vmatprep.subr.bf16.mxu0 0
        %7248 = vmatpush1.bf16.msra.mxu0 0
        %7249 = vmatprep.subr.bf16.mxu0 0
        %7250 = vmatpush1.bf16.msra.mxu0 0
        %7251 = vmatprep.subr.bf16.mxu0 0
        %7252 = vmatpush1.bf16.msra.mxu0 0
        %7253 = vmatprep.subr.bf16.mxu0 0
        %7254 = vmatpush1.bf16.msra.mxu0 0
        %7255 = vmatprep.subr.bf16.mxu0 0
        %7256 = vmatpush1.bf16.msra.mxu0 0
        %7257 = vmatprep.subr.bf16.mxu0 0
        %7258 = vmatpush1.bf16.msra.mxu0 0
        %7259 = vmatprep.subr.bf16.mxu0 0
        %7260 = vmatpush1.bf16.msra.mxu0 0
        %7261 = vmatprep.subr.bf16.mxu0 0
        %7262 = vmatpush1.bf16.msra.mxu0 0
        %7263 = vmatprep.mubr.bf16.mxu0 0
        %7264 = vmatmul.mubr.bf16.gmra.mrb[0].mxu0 %v7109
        %v7265 = vpop.f32.mrb[0].mxu0
        %v7266 = vadd.f32 %v7226, %v7265
        %v7267 = vpop.f32.mrb[0].mxu0
        %v7268 = vpop.f32.mrb[0].mxu0
        %v7269 = vpop.f32.mrb[0].mxu0
        %7270 = vdwg.mxu0
        %v7271 = vadd.f32 %v6687, %v7266
        %s7272 = scalar_lea.vmem %s429, 3920 [#allocation7]
        %v7273 = vld [vmem:[%s7272] sm:$0xf]
        %v7274 = vld [vmem:[%s7272 + $0x4] sm:$0xf]
        %v7275 = vld [vmem:[%s7272 + $0x8] sm:$0xf]
        %v7276 = vld [vmem:[%s7272 + $0xc] sm:$0xf]
        %v7277 = vld [vmem:[%s7272 + $0x10] sm:$0xf]
        %v7278 = vld [vmem:[%s7272 + $0x14] sm:$0xf]
        %v7279 = vld [vmem:[%s7272 + $0x18] sm:$0xf]
        %v7280 = vld [vmem:[%s7272 + $0x1c] sm:$0xf]
        %v7281 = vld [vmem:[%s7272 + $0x20] sm:$0xf]
        %v7282 = vld [vmem:[%s7272 + $0x24] sm:$0xf]
        %v7283 = vld [vmem:[%s7272 + $0x28] sm:$0xf]
        %v7284 = vld [vmem:[%s7272 + $0x2c] sm:$0xf]
        %v7285 = vld [vmem:[%s7272 + $0x30] sm:$0xf]
        %v7286 = vld [vmem:[%s7272 + $0x34] sm:$0xf]
        %v7287 = vld [vmem:[%s7272 + $0x38] sm:$0xf]
        %v7288 = vld [vmem:[%s7272 + $0x3c] sm:$0xf]
        %v7289 = vld [vmem:[%s7272 + $0x40] sm:$0xf]
        %v7290 = vld [vmem:[%s7272 + $0x44] sm:$0xf]
        %v7291 = vld [vmem:[%s7272 + $0x48] sm:$0xf]
        %v7292 = vld [vmem:[%s7272 + $0x4c] sm:$0xf]
        %v7293 = vld [vmem:[%s7272 + $0x50] sm:$0xf]
        %v7294 = vld [vmem:[%s7272 + $0x54] sm:$0xf]
        %v7295 = vld [vmem:[%s7272 + $0x58] sm:$0xf]
        %v7296 = vld [vmem:[%s7272 + $0x5c] sm:$0xf]
        %v7297 = vld [vmem:[%s7272 + $0x60] sm:$0xf]
        %v7298 = vld [vmem:[%s7272 + $0x64] sm:$0xf]
        %v7299 = vld [vmem:[%s7272 + $0x68] sm:$0xf]
        %v7300 = vld [vmem:[%s7272 + $0x6c] sm:$0xf]
        %v7301 = vld [vmem:[%s7272 + $0x70] sm:$0xf]
        %v7302 = vld [vmem:[%s7272 + $0x74] sm:$0xf]
        %v7303 = vld [vmem:[%s7272 + $0x78] sm:$0xf]
        %v7304 = vld [vmem:[%s7272 + $0x7c] sm:$0xf]
        %v7305 = vld [vmem:[%s7272 + $0x80] sm:$0xf]
        %v7306 = vld [vmem:[%s7272 + $0x84] sm:$0xf]
        %v7307 = vld [vmem:[%s7272 + $0x88] sm:$0xf]
        %v7308 = vld [vmem:[%s7272 + $0x8c] sm:$0xf]
        %v7309 = vld [vmem:[%s7272 + $0x90] sm:$0xf]
        %v7310 = vld [vmem:[%s7272 + $0x94] sm:$0xf]
        %v7311 = vld [vmem:[%s7272 + $0x98] sm:$0xf]
        %v7312 = vld [vmem:[%s7272 + $0x9c] sm:$0xf]
        %v7313 = vld [vmem:[%s7272 + $0xa0] sm:$0xf]
        %v7314 = vld [vmem:[%s7272 + $0xa4] sm:$0xf]
        %v7315 = vld [vmem:[%s7272 + $0xa8] sm:$0xf]
        %v7316 = vld [vmem:[%s7272 + $0xac] sm:$0xf]
        %v7317 = vld [vmem:[%s7272 + $0xb0] sm:$0xf]
        %v7318 = vld [vmem:[%s7272 + $0xb4] sm:$0xf]
        %v7319 = vld [vmem:[%s7272 + $0xb8] sm:$0xf]
        %v7320 = vld [vmem:[%s7272 + $0xbc] sm:$0xf]
        %v7321 = vld [vmem:[%s7272 + $0xc0] sm:$0xf]
        %v7322 = vld [vmem:[%s7272 + $0xc4] sm:$0xf]
        %v7323 = vld [vmem:[%s7272 + $0xc8] sm:$0xf]
        %v7324 = vld [vmem:[%s7272 + $0xcc] sm:$0xf]
        %v7325 = vld [vmem:[%s7272 + $0xd0] sm:$0xf]
        %v7326 = vld [vmem:[%s7272 + $0xd4] sm:$0xf]
        %v7327 = vld [vmem:[%s7272 + $0xd8] sm:$0xf]
        %v7328 = vld [vmem:[%s7272 + $0xdc] sm:$0xf]
        %v7329 = vld [vmem:[%s7272 + $0xe0] sm:$0xf]
        %v7330 = vld [vmem:[%s7272 + $0xe4] sm:$0xf]
        %v7331 = vld [vmem:[%s7272 + $0xe8] sm:$0xf]
        %v7332 = vld [vmem:[%s7272 + $0xec] sm:$0xf]
        %v7333 = vld [vmem:[%s7272 + $0xf0] sm:$0xf]
        %v7334 = vld [vmem:[%s7272 + $0xf4] sm:$0xf]
        %v7335 = vld [vmem:[%s7272 + $0xf8] sm:$0xf]
        %v7336 = vld [vmem:[%s7272 + $0xfc] sm:$0xf]
        %v7337 = vld [vmem:[%s7272 + $0x100] sm:$0xf]
        %v7338 = vld [vmem:[%s7272 + $0x104] sm:$0xf]
        %v7339 = vld [vmem:[%s7272 + $0x108] sm:$0xf]
        %v7340 = vld [vmem:[%s7272 + $0x10c] sm:$0xf]
        %v7341 = vld [vmem:[%s7272 + $0x110] sm:$0xf]
        %v7342 = vld [vmem:[%s7272 + $0x114] sm:$0xf]
        %v7343 = vld [vmem:[%s7272 + $0x118] sm:$0xf]
        %v7344 = vld [vmem:[%s7272 + $0x11c] sm:$0xf]
        %v7345 = vld [vmem:[%s7272 + $0x120] sm:$0xf]
        %v7346 = vld [vmem:[%s7272 + $0x124] sm:$0xf]
        %v7347 = vld [vmem:[%s7272 + $0x128] sm:$0xf]
        %v7348 = vld [vmem:[%s7272 + $0x12c] sm:$0xf]
        %v7349 = vld [vmem:[%s7272 + $0x130] sm:$0xf]
        %v7350 = vld [vmem:[%s7272 + $0x134] sm:$0xf]
        %v7351 = vld [vmem:[%s7272 + $0x138] sm:$0xf]
        %v7352 = vld [vmem:[%s7272 + $0x13c] sm:$0xf]
        %v7353 = vld [vmem:[%s7272 + $0x140] sm:$0xf]
        %v7354 = vld [vmem:[%s7272 + $0x144] sm:$0xf]
        %v7355 = vld [vmem:[%s7272 + $0x148] sm:$0xf]
        %v7356 = vld [vmem:[%s7272 + $0x14c] sm:$0xf]
        %v7357 = vld [vmem:[%s7272 + $0x150] sm:$0xf]
        %v7358 = vld [vmem:[%s7272 + $0x154] sm:$0xf]
        %v7359 = vld [vmem:[%s7272 + $0x158] sm:$0xf]
        %v7360 = vld [vmem:[%s7272 + $0x15c] sm:$0xf]
        %v7361 = vld [vmem:[%s7272 + $0x160] sm:$0xf]
        %v7362 = vld [vmem:[%s7272 + $0x164] sm:$0xf]
        %v7363 = vld [vmem:[%s7272 + $0x168] sm:$0xf]
        %v7364 = vld [vmem:[%s7272 + $0x16c] sm:$0xf]
        %v7365 = vld [vmem:[%s7272 + $0x170] sm:$0xf]
        %v7366 = vld [vmem:[%s7272 + $0x174] sm:$0xf]
        %v7367 = vld [vmem:[%s7272 + $0x178] sm:$0xf]
        %v7368 = vld [vmem:[%s7272 + $0x17c] sm:$0xf]
        %v7369 = vld [vmem:[%s7272 + $0x180] sm:$0xf]
        %v7370 = vld [vmem:[%s7272 + $0x184] sm:$0xf]
        %v7371 = vrot.slane %v6189, 2
        %v7372 = vrot.slane %v6196, 1
        %v7373 = vsel %vm1575, %v7372, %v7371
        %v7374 = vrot.slane %v6190, 2
        %v7375 = vrot.slane %v6197, 1
        %v7376 = vsel %vm1575, %v7375, %v7374
        %v7377 = vrot.slane %v6191, 2
        %v7378 = vrot.slane %v6198, 1
        %v7379 = vsel %vm1575, %v7378, %v7377
        %v7380 = vrot.slane %v6192, 2
        %v7381 = vrot.slane %v6199, 1
        %v7382 = vsel %vm1575, %v7381, %v7380
        %v7383 = vrot.slane %v6193, 2
        %v7384 = vrot.slane %v6200, 1
        %v7385 = vsel %vm1575, %v7384, %v7383
        %v7386 = vrot.slane %v6194, 2
        %v7387 = vrot.slane %v6201, 1
        %v7388 = vsel %vm1575, %v7387, %v7386
        %v7389 = vrot.slane %v6195, 2
        %v7390 = vrot.slane %v6202, 1
        %v7391 = vsel %vm1575, %v7390, %v7389
        %v7392 = vpack.c.b16 %v7373, %v7373
        %v7393 = vpack.c.b16 %v7376, %v7376
        %v7394 = vpack.c.b16 %v7379, %v7379
        %v7395 = vpack.c.b16 %v7382, %v7382
        %v7396 = vpack.c.b16 %v7385, %v7385
        %v7397 = vpack.c.b16 %v7388, %v7388
        %v7398 = vpack.c.b16 %v7391, %v7391
        %v7503 = vunpack.c.l.b16 %v7273
        %v7504 = vunpack.c.l.b16 %v7274
        %v7505 = vunpack.c.l.b16 %v7275
        %v7506 = vunpack.c.l.b16 %v7276
        %v7507 = vunpack.c.l.b16 %v7277
        %v7508 = vunpack.c.l.b16 %v7278
        %v7509 = vunpack.c.l.b16 %v7279
        %v7510 = vunpack.c.l.b16 %v7280
        %v7511 = vunpack.c.l.b16 %v7281
        %v7512 = vunpack.c.l.b16 %v7282
        %v7513 = vunpack.c.l.b16 %v7283
        %v7514 = vunpack.c.l.b16 %v7284
        %v7515 = vunpack.c.l.b16 %v7285
        %v7516 = vunpack.c.l.b16 %v7286
        %v7517 = vunpack.c.l.b16 %v7287
        %v7518 = vunpack.c.l.b16 %v7288
        %v7519 = vunpack.c.l.b16 %v7289
        %v7520 = vunpack.c.l.b16 %v7290
        %v7521 = vunpack.c.l.b16 %v7291
        %v7522 = vunpack.c.l.b16 %v7292
        %v7523 = vunpack.c.l.b16 %v7293
        %v7524 = vunpack.c.l.b16 %v7294
        %v7525 = vunpack.c.l.b16 %v7295
        %v7526 = vunpack.c.l.b16 %v7296
        %v7527 = vunpack.c.l.b16 %v7297
        %v7528 = vunpack.c.l.b16 %v7298
        %v7529 = vunpack.c.l.b16 %v7299
        %v7530 = vunpack.c.l.b16 %v7300
        %v7531 = vunpack.c.l.b16 %v7301
        %v7532 = vunpack.c.l.b16 %v7302
        %v7533 = vunpack.c.l.b16 %v7303
        %v7534 = vunpack.c.l.b16 %v7304
        %v7535 = vunpack.c.l.b16 %v7305
        %v7536 = vunpack.c.l.b16 %v7306
        %v7537 = vunpack.c.l.b16 %v7307
        %v7538 = vunpack.c.l.b16 %v7308
        %v7539 = vunpack.c.l.b16 %v7309
        %v7540 = vunpack.c.l.b16 %v7310
        %v7541 = vunpack.c.l.b16 %v7311
        %v7542 = vunpack.c.l.b16 %v7312
        %v7543 = vunpack.c.l.b16 %v7313
        %v7544 = vunpack.c.l.b16 %v7314
        %v7545 = vunpack.c.l.b16 %v7315
        %v7546 = vunpack.c.l.b16 %v7316
        %v7547 = vunpack.c.l.b16 %v7317
        %v7548 = vunpack.c.l.b16 %v7318
        %v7549 = vunpack.c.l.b16 %v7319
        %v7550 = vunpack.c.l.b16 %v7320
        %v7551 = vunpack.c.l.b16 %v7321
        %v7552 = vunpack.c.l.b16 %v7322
        %v7553 = vunpack.c.l.b16 %v7323
        %v7554 = vunpack.c.l.b16 %v7324
        %v7555 = vunpack.c.l.b16 %v7325
        %v7556 = vunpack.c.l.b16 %v7326
        %v7557 = vunpack.c.l.b16 %v7327
        %v7558 = vunpack.c.l.b16 %v7328
        %v7559 = vunpack.c.l.b16 %v7329
        %v7560 = vunpack.c.l.b16 %v7330
        %v7561 = vunpack.c.l.b16 %v7331
        %v7562 = vunpack.c.l.b16 %v7332
        %v7563 = vunpack.c.l.b16 %v7333
        %v7564 = vunpack.c.l.b16 %v7334
        %v7565 = vunpack.c.l.b16 %v7335
        %v7566 = vunpack.c.l.b16 %v7336
        %v7567 = vunpack.c.l.b16 %v7337
        %v7568 = vunpack.c.l.b16 %v7338
        %v7569 = vunpack.c.l.b16 %v7339
        %v7570 = vunpack.c.l.b16 %v7340
        %v7571 = vunpack.c.l.b16 %v7341
        %v7572 = vunpack.c.l.b16 %v7342
        %v7573 = vunpack.c.l.b16 %v7343
        %v7574 = vunpack.c.l.b16 %v7344
        %v7575 = vunpack.c.l.b16 %v7345
        %v7576 = vunpack.c.l.b16 %v7346
        %v7577 = vunpack.c.l.b16 %v7347
        %v7578 = vunpack.c.l.b16 %v7348
        %v7579 = vunpack.c.l.b16 %v7349
        %v7580 = vunpack.c.l.b16 %v7350
        %v7581 = vunpack.c.l.b16 %v7351
        %v7582 = vunpack.c.l.b16 %v7352
        %v7583 = vunpack.c.l.b16 %v7353
        %v7584 = vunpack.c.l.b16 %v7354
        %v7585 = vunpack.c.l.b16 %v7355
        %v7586 = vunpack.c.l.b16 %v7356
        %v7587 = vunpack.c.l.b16 %v7357
        %v7588 = vunpack.c.l.b16 %v7358
        %v7589 = vunpack.c.l.b16 %v7359
        %v7590 = vunpack.c.l.b16 %v7360
        %v7591 = vunpack.c.l.b16 %v7361
        %v7592 = vunpack.c.l.b16 %v7362
        %v7593 = vunpack.c.l.b16 %v7363
        %v7594 = vunpack.c.l.b16 %v7364
        %v7595 = vunpack.c.l.b16 %v7365
        %v7596 = vunpack.c.l.b16 %v7366
        %v7597 = vunpack.c.l.b16 %v7367
        %v7598 = vunpack.c.l.b16 %v7368
        %v7599 = vunpack.c.l.b16 %v7369
        %v7600 = vunpack.c.l.b16 %v7370
        %v7601 = vpack.c.b16 %v7504, %v7503
        %v7602 = vpack.c.b16 %v7506, %v7505
        %v7603 = vpack.c.b16 %v7508, %v7507
        %v7604 = vpack.c.b16 %v7510, %v7509
        %v7605 = vpack.c.b16 %v7512, %v7511
        %v7606 = vpack.c.b16 %v7514, %v7513
        %v7607 = vpack.c.b16 %v7516, %v7515
        %v7608 = vpack.c.b16 %v7518, %v7517
        %v7609 = vpack.c.b16 %v7520, %v7519
        %v7610 = vpack.c.b16 %v7522, %v7521
        %v7611 = vpack.c.b16 %v7524, %v7523
        %v7612 = vpack.c.b16 %v7526, %v7525
        %v7613 = vpack.c.b16 %v7528, %v7527
        %v7614 = vpack.c.b16 %v7530, %v7529
        %v7615 = vpack.c.b16 %v7532, %v7531
        %v7616 = vpack.c.b16 %v7534, %v7533
        %v7617 = vpack.c.b16 %v7536, %v7535
        %v7618 = vpack.c.b16 %v7538, %v7537
        %v7619 = vpack.c.b16 %v7540, %v7539
        %v7620 = vpack.c.b16 %v7542, %v7541
        %v7621 = vpack.c.b16 %v7544, %v7543
        %v7622 = vpack.c.b16 %v7546, %v7545
        %v7623 = vpack.c.b16 %v7548, %v7547
        %v7624 = vpack.c.b16 %v7550, %v7549
        %v7625 = vpack.c.b16 %v7552, %v7551
        %v7626 = vpack.c.b16 %v7554, %v7553
        %v7627 = vpack.c.b16 %v7556, %v7555
        %v7628 = vpack.c.b16 %v7558, %v7557
        %v7629 = vpack.c.b16 %v7560, %v7559
        %v7630 = vpack.c.b16 %v7562, %v7561
        %v7631 = vpack.c.b16 %v7564, %v7563
        %v7632 = vpack.c.b16 %v7566, %v7565
        %v7633 = vpack.c.b16 %v7568, %v7567
        %v7634 = vpack.c.b16 %v7570, %v7569
        %v7635 = vpack.c.b16 %v7572, %v7571
        %v7636 = vpack.c.b16 %v7574, %v7573
        %v7637 = vpack.c.b16 %v7576, %v7575
        %v7638 = vpack.c.b16 %v7578, %v7577
        %v7639 = vpack.c.b16 %v7580, %v7579
        %v7640 = vpack.c.b16 %v7582, %v7581
        %v7641 = vpack.c.b16 %v7584, %v7583
        %v7642 = vpack.c.b16 %v7586, %v7585
        %v7643 = vpack.c.b16 %v7588, %v7587
        %v7644 = vpack.c.b16 %v7590, %v7589
        %v7645 = vpack.c.b16 %v7592, %v7591
        %v7646 = vpack.c.b16 %v7594, %v7593
        %v7647 = vpack.c.b16 %v7596, %v7595
        %v7648 = vpack.c.b16 %v7598, %v7597
        %v7649 = vpack.c.b16 %v7600, %v7599
        %v7700 = vsel %vm1896, %v7398, 0
        %7702 = vmatprep.subr.bf16.mxu0 0
        %7703 = vmatpush1.bf16.msra.mxu0 %v7601
        %7704 = vmatprep.subr.bf16.mxu0 0
        %7705 = vmatpush1.bf16.msra.mxu0 %v7602
        %7706 = vmatprep.subr.bf16.mxu0 0
        %7707 = vmatpush1.bf16.msra.mxu0 %v7603
        %7708 = vmatprep.subr.bf16.mxu0 0
        %7709 = vmatpush1.bf16.msra.mxu0 %v7604
        %7710 = vmatprep.subr.bf16.mxu0 0
        %7711 = vmatpush1.bf16.msra.mxu0 %v7605
        %7712 = vmatprep.subr.bf16.mxu0 0
        %7713 = vmatpush1.bf16.msra.mxu0 %v7606
        %7714 = vmatprep.subr.bf16.mxu0 0
        %7715 = vmatpush1.bf16.msra.mxu0 %v7607
        %7716 = vmatprep.subr.bf16.mxu0 0
        %7717 = vmatpush1.bf16.msra.mxu0 %v7608
        %7718 = vmatprep.subr.bf16.mxu0 0
        %7719 = vmatpush1.bf16.msra.mxu0 %v7609
        %7720 = vmatprep.subr.bf16.mxu0 0
        %7721 = vmatpush1.bf16.msra.mxu0 %v7610
        %7722 = vmatprep.subr.bf16.mxu0 0
        %7723 = vmatpush1.bf16.msra.mxu0 %v7611
        %7724 = vmatprep.subr.bf16.mxu0 0
        %7725 = vmatpush1.bf16.msra.mxu0 %v7612
        %7726 = vmatprep.subr.bf16.mxu0 0
        %7727 = vmatpush1.bf16.msra.mxu0 %v7613
        %7728 = vmatprep.subr.bf16.mxu0 0
        %7729 = vmatpush1.bf16.msra.mxu0 %v7614
        %7730 = vmatprep.subr.bf16.mxu0 0
        %7731 = vmatpush1.bf16.msra.mxu0 %v7615
        %7732 = vmatprep.subr.bf16.mxu0 0
        %7733 = vmatpush1.bf16.msra.mxu0 %v7616
        %7734 = vmatprep.mubr.bf16.mxu0 %v7393
        %7735 = vmatmul.mubr.bf16.gmra.mrb[0].mxu0 %v7392
        %v7736 = vpop.f32.mrb[0].mxu0
        %v7737 = vadd.f32 0.0, %v7736
        %v7738 = vpop.f32.mrb[0].mxu0
        %v7739 = vpop.f32.mrb[0].mxu0
        %v7740 = vpop.f32.mrb[0].mxu0
        %7741 = vdwg.mxu0
        %7742 = vmatprep.subr.bf16.mxu0 0
        %7743 = vmatpush1.bf16.msra.mxu0 %v7617
        %7744 = vmatprep.subr.bf16.mxu0 0
        %7745 = vmatpush1.bf16.msra.mxu0 %v7618
        %7746 = vmatprep.subr.bf16.mxu0 0
        %7747 = vmatpush1.bf16.msra.mxu0 %v7619
        %7748 = vmatprep.subr.bf16.mxu0 0
        %7749 = vmatpush1.bf16.msra.mxu0 %v7620
        %7750 = vmatprep.subr.bf16.mxu0 0
        %7751 = vmatpush1.bf16.msra.mxu0 %v7621
        %7752 = vmatprep.subr.bf16.mxu0 0
        %7753 = vmatpush1.bf16.msra.mxu0 %v7622
        %7754 = vmatprep.subr.bf16.mxu0 0
        %7755 = vmatpush1.bf16.msra.mxu0 %v7623
        %7756 = vmatprep.subr.bf16.mxu0 0
        %7757 = vmatpush1.bf16.msra.mxu0 %v7624
        %7758 = vmatprep.subr.bf16.mxu0 0
        %7759 = vmatpush1.bf16.msra.mxu0 %v7625
        %7760 = vmatprep.subr.bf16.mxu0 0
        %7761 = vmatpush1.bf16.msra.mxu0 %v7626
        %7762 = vmatprep.subr.bf16.mxu0 0
        %7763 = vmatpush1.bf16.msra.mxu0 %v7627
        %7764 = vmatprep.subr.bf16.mxu0 0
        %7765 = vmatpush1.bf16.msra.mxu0 %v7628
        %7766 = vmatprep.subr.bf16.mxu0 0
        %7767 = vmatpush1.bf16.msra.mxu0 %v7629
        %7768 = vmatprep.subr.bf16.mxu0 0
        %7769 = vmatpush1.bf16.msra.mxu0 %v7630
        %7770 = vmatprep.subr.bf16.mxu0 0
        %7771 = vmatpush1.bf16.msra.mxu0 %v7631
        %7772 = vmatprep.subr.bf16.mxu0 0
        %7773 = vmatpush1.bf16.msra.mxu0 %v7632
        %7774 = vmatprep.mubr.bf16.mxu0 %v7395
        %7775 = vmatmul.mubr.bf16.gmra.mrb[0].mxu0 %v7394
        %v7776 = vpop.f32.mrb[0].mxu0
        %v7777 = vadd.f32 %v7737, %v7776
        %v7778 = vpop.f32.mrb[0].mxu0
        %v7779 = vpop.f32.mrb[0].mxu0
        %v7780 = vpop.f32.mrb[0].mxu0
        %7781 = vdwg.mxu0
        %7782 = vmatprep.subr.bf16.mxu0 0
        %7783 = vmatpush1.bf16.msra.mxu0 %v7633
        %7784 = vmatprep.subr.bf16.mxu0 0
        %7785 = vmatpush1.bf16.msra.mxu0 %v7634
        %7786 = vmatprep.subr.bf16.mxu0 0
        %7787 = vmatpush1.bf16.msra.mxu0 %v7635
        %7788 = vmatprep.subr.bf16.mxu0 0
        %7789 = vmatpush1.bf16.msra.mxu0 %v7636
        %7790 = vmatprep.subr.bf16.mxu0 0
        %7791 = vmatpush1.bf16.msra.mxu0 %v7637
        %7792 = vmatprep.subr.bf16.mxu0 0
        %7793 = vmatpush1.bf16.msra.mxu0 %v7638
        %7794 = vmatprep.subr.bf16.mxu0 0
        %7795 = vmatpush1.bf16.msra.mxu0 %v7639
        %7796 = vmatprep.subr.bf16.mxu0 0
        %7797 = vmatpush1.bf16.msra.mxu0 %v7640
        %7798 = vmatprep.subr.bf16.mxu0 0
        %7799 = vmatpush1.bf16.msra.mxu0 %v7641
        %7800 = vmatprep.subr.bf16.mxu0 0
        %7801 = vmatpush1.bf16.msra.mxu0 %v7642
        %7802 = vmatprep.subr.bf16.mxu0 0
        %7803 = vmatpush1.bf16.msra.mxu0 %v7643
        %7804 = vmatprep.subr.bf16.mxu0 0
        %7805 = vmatpush1.bf16.msra.mxu0 %v7644
        %7806 = vmatprep.subr.bf16.mxu0 0
        %7807 = vmatpush1.bf16.msra.mxu0 %v7645
        %7808 = vmatprep.subr.bf16.mxu0 0
        %7809 = vmatpush1.bf16.msra.mxu0 %v7646
        %7810 = vmatprep.subr.bf16.mxu0 0
        %7811 = vmatpush1.bf16.msra.mxu0 %v7647
        %7812 = vmatprep.subr.bf16.mxu0 0
        %7813 = vmatpush1.bf16.msra.mxu0 %v7648
        %7814 = vmatprep.mubr.bf16.mxu0 %v7397
        %7815 = vmatmul.mubr.bf16.gmra.mrb[0].mxu0 %v7396
        %v7816 = vpop.f32.mrb[0].mxu0
        %v7817 = vadd.f32 %v7777, %v7816
        %v7818 = vpop.f32.mrb[0].mxu0
        %v7819 = vpop.f32.mrb[0].mxu0
        %v7820 = vpop.f32.mrb[0].mxu0
        %7821 = vdwg.mxu0
        %7822 = vmatprep.subr.bf16.mxu0 0
        %7823 = vmatpush1.bf16.msra.mxu0 %v7649
        %7824 = vmatprep.subr.bf16.mxu0 0
        %7825 = vmatpush1.bf16.msra.mxu0 0
        %7826 = vmatprep.subr.bf16.mxu0 0
        %7827 = vmatpush1.bf16.msra.mxu0 0
        %7828 = vmatprep.subr.bf16.mxu0 0
        %7829 = vmatpush1.bf16.msra.mxu0 0
        %7830 = vmatprep.subr.bf16.mxu0 0
        %7831 = vmatpush1.bf16.msra.mxu0 0
        %7832 = vmatprep.subr.bf16.mxu0 0
        %7833 = vmatpush1.bf16.msra.mxu0 0
        %7834 = vmatprep.subr.bf16.mxu0 0
        %7835 = vmatpush1.bf16.msra.mxu0 0
        %7836 = vmatprep.subr.bf16.mxu0 0
        %7837 = vmatpush1.bf16.msra.mxu0 0
        %7838 = vmatprep.subr.bf16.mxu0 0
        %7839 = vmatpush1.bf16.msra.mxu0 0
        %7840 = vmatprep.subr.bf16.mxu0 0
        %7841 = vmatpush1.bf16.msra.mxu0 0
        %7842 = vmatprep.subr.bf16.mxu0 0
        %7843 = vmatpush1.bf16.msra.mxu0 0
        %7844 = vmatprep.subr.bf16.mxu0 0
        %7845 = vmatpush1.bf16.msra.mxu0 0
        %7846 = vmatprep.subr.bf16.mxu0 0
        %7847 = vmatpush1.bf16.msra.mxu0 0
        %7848 = vmatprep.subr.bf16.mxu0 0
        %7849 = vmatpush1.bf16.msra.mxu0 0
        %7850 = vmatprep.subr.bf16.mxu0 0
        %7851 = vmatpush1.bf16.msra.mxu0 0
        %7852 = vmatprep.subr.bf16.mxu0 0
        %7853 = vmatpush1.bf16.msra.mxu0 0
        %7854 = vmatprep.mubr.bf16.mxu0 0
        %7855 = vmatmul.mubr.bf16.gmra.mrb[0].mxu0 %v7700
        %v7856 = vpop.f32.mrb[0].mxu0
        %v7857 = vadd.f32 %v7817, %v7856
        %v7858 = vpop.f32.mrb[0].mxu0
        %v7859 = vpop.f32.mrb[0].mxu0
        %v7860 = vpop.f32.mrb[0].mxu0
        %7861 = vdwg.mxu0
        %v7862 = vadd.f32 %v7271, %v7857
        %s7863 = scalar_lea.vmem %s429, 4312 [#allocation7]
        %v7864 = vld [vmem:[%s7863] sm:$0xf]
        %v7865 = vld [vmem:[%s7863 + $0x4] sm:$0xf]
        %v7866 = vld [vmem:[%s7863 + $0x8] sm:$0xf]
        %v7867 = vld [vmem:[%s7863 + $0xc] sm:$0xf]
        %v7868 = vld [vmem:[%s7863 + $0x10] sm:$0xf]
        %v7869 = vld [vmem:[%s7863 + $0x14] sm:$0xf]
        %v7870 = vld [vmem:[%s7863 + $0x18] sm:$0xf]
        %v7871 = vld [vmem:[%s7863 + $0x1c] sm:$0xf]
        %v7872 = vld [vmem:[%s7863 + $0x20] sm:$0xf]
        %v7873 = vld [vmem:[%s7863 + $0x24] sm:$0xf]
        %v7874 = vld [vmem:[%s7863 + $0x28] sm:$0xf]
        %v7875 = vld [vmem:[%s7863 + $0x2c] sm:$0xf]
        %v7876 = vld [vmem:[%s7863 + $0x30] sm:$0xf]
        %v7877 = vld [vmem:[%s7863 + $0x34] sm:$0xf]
        %v7878 = vld [vmem:[%s7863 + $0x38] sm:$0xf]
        %v7879 = vld [vmem:[%s7863 + $0x3c] sm:$0xf]
        %v7880 = vld [vmem:[%s7863 + $0x40] sm:$0xf]
        %v7881 = vld [vmem:[%s7863 + $0x44] sm:$0xf]
        %v7882 = vld [vmem:[%s7863 + $0x48] sm:$0xf]
        %v7883 = vld [vmem:[%s7863 + $0x4c] sm:$0xf]
        %v7884 = vld [vmem:[%s7863 + $0x50] sm:$0xf]
        %v7885 = vld [vmem:[%s7863 + $0x54] sm:$0xf]
        %v7886 = vld [vmem:[%s7863 + $0x58] sm:$0xf]
        %v7887 = vld [vmem:[%s7863 + $0x5c] sm:$0xf]
        %v7888 = vld [vmem:[%s7863 + $0x60] sm:$0xf]
        %v7889 = vld [vmem:[%s7863 + $0x64] sm:$0xf]
        %v7890 = vld [vmem:[%s7863 + $0x68] sm:$0xf]
        %v7891 = vld [vmem:[%s7863 + $0x6c] sm:$0xf]
        %v7892 = vld [vmem:[%s7863 + $0x70] sm:$0xf]
        %v7893 = vld [vmem:[%s7863 + $0x74] sm:$0xf]
        %v7894 = vld [vmem:[%s7863 + $0x78] sm:$0xf]
        %v7895 = vld [vmem:[%s7863 + $0x7c] sm:$0xf]
        %v7896 = vld [vmem:[%s7863 + $0x80] sm:$0xf]
        %v7897 = vld [vmem:[%s7863 + $0x84] sm:$0xf]
        %v7898 = vld [vmem:[%s7863 + $0x88] sm:$0xf]
        %v7899 = vld [vmem:[%s7863 + $0x8c] sm:$0xf]
        %v7900 = vld [vmem:[%s7863 + $0x90] sm:$0xf]
        %v7901 = vld [vmem:[%s7863 + $0x94] sm:$0xf]
        %v7902 = vld [vmem:[%s7863 + $0x98] sm:$0xf]
        %v7903 = vld [vmem:[%s7863 + $0x9c] sm:$0xf]
        %v7904 = vld [vmem:[%s7863 + $0xa0] sm:$0xf]
        %v7905 = vld [vmem:[%s7863 + $0xa4] sm:$0xf]
        %v7906 = vld [vmem:[%s7863 + $0xa8] sm:$0xf]
        %v7907 = vld [vmem:[%s7863 + $0xac] sm:$0xf]
        %v7908 = vld [vmem:[%s7863 + $0xb0] sm:$0xf]
        %v7909 = vld [vmem:[%s7863 + $0xb4] sm:$0xf]
        %v7910 = vld [vmem:[%s7863 + $0xb8] sm:$0xf]
        %v7911 = vld [vmem:[%s7863 + $0xbc] sm:$0xf]
        %v7912 = vld [vmem:[%s7863 + $0xc0] sm:$0xf]
        %v7913 = vld [vmem:[%s7863 + $0xc4] sm:$0xf]
        %v7914 = vld [vmem:[%s7863 + $0xc8] sm:$0xf]
        %v7915 = vld [vmem:[%s7863 + $0xcc] sm:$0xf]
        %v7916 = vld [vmem:[%s7863 + $0xd0] sm:$0xf]
        %v7917 = vld [vmem:[%s7863 + $0xd4] sm:$0xf]
        %v7918 = vld [vmem:[%s7863 + $0xd8] sm:$0xf]
        %v7919 = vld [vmem:[%s7863 + $0xdc] sm:$0xf]
        %v7920 = vld [vmem:[%s7863 + $0xe0] sm:$0xf]
        %v7921 = vld [vmem:[%s7863 + $0xe4] sm:$0xf]
        %v7922 = vld [vmem:[%s7863 + $0xe8] sm:$0xf]
        %v7923 = vld [vmem:[%s7863 + $0xec] sm:$0xf]
        %v7924 = vld [vmem:[%s7863 + $0xf0] sm:$0xf]
        %v7925 = vld [vmem:[%s7863 + $0xf4] sm:$0xf]
        %v7926 = vld [vmem:[%s7863 + $0xf8] sm:$0xf]
        %v7927 = vld [vmem:[%s7863 + $0xfc] sm:$0xf]
        %v7928 = vld [vmem:[%s7863 + $0x100] sm:$0xf]
        %v7929 = vld [vmem:[%s7863 + $0x104] sm:$0xf]
        %v7930 = vld [vmem:[%s7863 + $0x108] sm:$0xf]
        %v7931 = vld [vmem:[%s7863 + $0x10c] sm:$0xf]
        %v7932 = vld [vmem:[%s7863 + $0x110] sm:$0xf]
        %v7933 = vld [vmem:[%s7863 + $0x114] sm:$0xf]
        %v7934 = vld [vmem:[%s7863 + $0x118] sm:$0xf]
        %v7935 = vld [vmem:[%s7863 + $0x11c] sm:$0xf]
        %v7936 = vld [vmem:[%s7863 + $0x120] sm:$0xf]
        %v7937 = vld [vmem:[%s7863 + $0x124] sm:$0xf]
        %v7938 = vld [vmem:[%s7863 + $0x128] sm:$0xf]
        %v7939 = vld [vmem:[%s7863 + $0x12c] sm:$0xf]
        %v7940 = vld [vmem:[%s7863 + $0x130] sm:$0xf]
        %v7941 = vld [vmem:[%s7863 + $0x134] sm:$0xf]
        %v7942 = vld [vmem:[%s7863 + $0x138] sm:$0xf]
        %v7943 = vld [vmem:[%s7863 + $0x13c] sm:$0xf]
        %v7944 = vld [vmem:[%s7863 + $0x140] sm:$0xf]
        %v7945 = vld [vmem:[%s7863 + $0x144] sm:$0xf]
        %v7946 = vld [vmem:[%s7863 + $0x148] sm:$0xf]
        %v7947 = vld [vmem:[%s7863 + $0x14c] sm:$0xf]
        %v7948 = vld [vmem:[%s7863 + $0x150] sm:$0xf]
        %v7949 = vld [vmem:[%s7863 + $0x154] sm:$0xf]
        %v7950 = vld [vmem:[%s7863 + $0x158] sm:$0xf]
        %v7951 = vld [vmem:[%s7863 + $0x15c] sm:$0xf]
        %v7952 = vld [vmem:[%s7863 + $0x160] sm:$0xf]
        %v7953 = vld [vmem:[%s7863 + $0x164] sm:$0xf]
        %v7954 = vld [vmem:[%s7863 + $0x168] sm:$0xf]
        %v7955 = vld [vmem:[%s7863 + $0x16c] sm:$0xf]
        %v7956 = vld [vmem:[%s7863 + $0x170] sm:$0xf]
        %v7957 = vld [vmem:[%s7863 + $0x174] sm:$0xf]
        %v7958 = vld [vmem:[%s7863 + $0x178] sm:$0xf]
        %v7959 = vld [vmem:[%s7863 + $0x17c] sm:$0xf]
        %v7960 = vld [vmem:[%s7863 + $0x180] sm:$0xf]
        %v7961 = vld [vmem:[%s7863 + $0x184] sm:$0xf]
        %v7962 = vrot.slane %v6189, 3
        %v7963 = vrot.slane %v6196, 2
        %v7964 = vsel %vm1575, %v7963, %v7962
        %v7965 = vrot.slane %v6190, 3
        %v7966 = vrot.slane %v6197, 2
        %v7967 = vsel %vm1575, %v7966, %v7965
        %v7968 = vrot.slane %v6191, 3
        %v7969 = vrot.slane %v6198, 2
        %v7970 = vsel %vm1575, %v7969, %v7968
        %v7971 = vrot.slane %v6192, 3
        %v7972 = vrot.slane %v6199, 2
        %v7973 = vsel %vm1575, %v7972, %v7971
        %v7974 = vrot.slane %v6193, 3
        %v7975 = vrot.slane %v6200, 2
        %v7976 = vsel %vm1575, %v7975, %v7974
        %v7977 = vrot.slane %v6194, 3
        %v7978 = vrot.slane %v6201, 2
        %v7979 = vsel %vm1575, %v7978, %v7977
        %v7980 = vrot.slane %v6195, 3
        %v7981 = vrot.slane %v6202, 2
        %v7982 = vsel %vm1575, %v7981, %v7980
        %v7983 = vpack.c.b16 %v7964, %v7964
        %v7984 = vpack.c.b16 %v7967, %v7967
        %v7985 = vpack.c.b16 %v7970, %v7970
        %v7986 = vpack.c.b16 %v7973, %v7973
        %v7987 = vpack.c.b16 %v7976, %v7976
        %v7988 = vpack.c.b16 %v7979, %v7979
        %v7989 = vpack.c.b16 %v7982, %v7982
        %v8094 = vunpack.c.l.b16 %v7864
        %v8095 = vunpack.c.l.b16 %v7865
        %v8096 = vunpack.c.l.b16 %v7866
        %v8097 = vunpack.c.l.b16 %v7867
        %v8098 = vunpack.c.l.b16 %v7868
        %v8099 = vunpack.c.l.b16 %v7869
        %v8100 = vunpack.c.l.b16 %v7870
        %v8101 = vunpack.c.l.b16 %v7871
        %v8102 = vunpack.c.l.b16 %v7872
        %v8103 = vunpack.c.l.b16 %v7873
        %v8104 = vunpack.c.l.b16 %v7874
        %v8105 = vunpack.c.l.b16 %v7875
        %v8106 = vunpack.c.l.b16 %v7876
        %v8107 = vunpack.c.l.b16 %v7877
        %v8108 = vunpack.c.l.b16 %v7878
        %v8109 = vunpack.c.l.b16 %v7879
        %v8110 = vunpack.c.l.b16 %v7880
        %v8111 = vunpack.c.l.b16 %v7881
        %v8112 = vunpack.c.l.b16 %v7882
        %v8113 = vunpack.c.l.b16 %v7883
        %v8114 = vunpack.c.l.b16 %v7884
        %v8115 = vunpack.c.l.b16 %v7885
        %v8116 = vunpack.c.l.b16 %v7886
        %v8117 = vunpack.c.l.b16 %v7887
        %v8118 = vunpack.c.l.b16 %v7888
        %v8119 = vunpack.c.l.b16 %v7889
        %v8120 = vunpack.c.l.b16 %v7890
        %v8121 = vunpack.c.l.b16 %v7891
        %v8122 = vunpack.c.l.b16 %v7892
        %v8123 = vunpack.c.l.b16 %v7893
        %v8124 = vunpack.c.l.b16 %v7894
        %v8125 = vunpack.c.l.b16 %v7895
        %v8126 = vunpack.c.l.b16 %v7896
        %v8127 = vunpack.c.l.b16 %v7897
        %v8128 = vunpack.c.l.b16 %v7898
        %v8129 = vunpack.c.l.b16 %v7899
        %v8130 = vunpack.c.l.b16 %v7900
        %v8131 = vunpack.c.l.b16 %v7901
        %v8132 = vunpack.c.l.b16 %v7902
        %v8133 = vunpack.c.l.b16 %v7903
        %v8134 = vunpack.c.l.b16 %v7904
        %v8135 = vunpack.c.l.b16 %v7905
        %v8136 = vunpack.c.l.b16 %v7906
        %v8137 = vunpack.c.l.b16 %v7907
        %v8138 = vunpack.c.l.b16 %v7908
        %v8139 = vunpack.c.l.b16 %v7909
        %v8140 = vunpack.c.l.b16 %v7910
        %v8141 = vunpack.c.l.b16 %v7911
        %v8142 = vunpack.c.l.b16 %v7912
        %v8143 = vunpack.c.l.b16 %v7913
        %v8144 = vunpack.c.l.b16 %v7914
        %v8145 = vunpack.c.l.b16 %v7915
        %v8146 = vunpack.c.l.b16 %v7916
        %v8147 = vunpack.c.l.b16 %v7917
        %v8148 = vunpack.c.l.b16 %v7918
        %v8149 = vunpack.c.l.b16 %v7919
        %v8150 = vunpack.c.l.b16 %v7920
        %v8151 = vunpack.c.l.b16 %v7921
        %v8152 = vunpack.c.l.b16 %v7922
        %v8153 = vunpack.c.l.b16 %v7923
        %v8154 = vunpack.c.l.b16 %v7924
        %v8155 = vunpack.c.l.b16 %v7925
        %v8156 = vunpack.c.l.b16 %v7926
        %v8157 = vunpack.c.l.b16 %v7927
        %v8158 = vunpack.c.l.b16 %v7928
        %v8159 = vunpack.c.l.b16 %v7929
        %v8160 = vunpack.c.l.b16 %v7930
        %v8161 = vunpack.c.l.b16 %v7931
        %v8162 = vunpack.c.l.b16 %v7932
        %v8163 = vunpack.c.l.b16 %v7933
        %v8164 = vunpack.c.l.b16 %v7934
        %v8165 = vunpack.c.l.b16 %v7935
        %v8166 = vunpack.c.l.b16 %v7936
        %v8167 = vunpack.c.l.b16 %v7937
        %v8168 = vunpack.c.l.b16 %v7938
        %v8169 = vunpack.c.l.b16 %v7939
        %v8170 = vunpack.c.l.b16 %v7940
        %v8171 = vunpack.c.l.b16 %v7941
        %v8172 = vunpack.c.l.b16 %v7942
        %v8173 = vunpack.c.l.b16 %v7943
        %v8174 = vunpack.c.l.b16 %v7944
        %v8175 = vunpack.c.l.b16 %v7945
        %v8176 = vunpack.c.l.b16 %v7946
        %v8177 = vunpack.c.l.b16 %v7947
        %v8178 = vunpack.c.l.b16 %v7948
        %v8179 = vunpack.c.l.b16 %v7949
        %v8180 = vunpack.c.l.b16 %v7950
        %v8181 = vunpack.c.l.b16 %v7951
        %v8182 = vunpack.c.l.b16 %v7952
        %v8183 = vunpack.c.l.b16 %v7953
        %v8184 = vunpack.c.l.b16 %v7954
        %v8185 = vunpack.c.l.b16 %v7955
        %v8186 = vunpack.c.l.b16 %v7956
        %v8187 = vunpack.c.l.b16 %v7957
        %v8188 = vunpack.c.l.b16 %v7958
        %v8189 = vunpack.c.l.b16 %v7959
        %v8190 = vunpack.c.l.b16 %v7960
        %v8191 = vunpack.c.l.b16 %v7961
        %v8192 = vpack.c.b16 %v8095, %v8094
        %v8193 = vpack.c.b16 %v8097, %v8096
        %v8194 = vpack.c.b16 %v8099, %v8098
        %v8195 = vpack.c.b16 %v8101, %v8100
        %v8196 = vpack.c.b16 %v8103, %v8102
        %v8197 = vpack.c.b16 %v8105, %v8104
        %v8198 = vpack.c.b16 %v8107, %v8106
        %v8199 = vpack.c.b16 %v8109, %v8108
        %v8200 = vpack.c.b16 %v8111, %v8110
        %v8201 = vpack.c.b16 %v8113, %v8112
        %v8202 = vpack.c.b16 %v8115, %v8114
        %v8203 = vpack.c.b16 %v8117, %v8116
        %v8204 = vpack.c.b16 %v8119, %v8118
        %v8205 = vpack.c.b16 %v8121, %v8120
        %v8206 = vpack.c.b16 %v8123, %v8122
        %v8207 = vpack.c.b16 %v8125, %v8124
        %v8208 = vpack.c.b16 %v8127, %v8126
        %v8209 = vpack.c.b16 %v8129, %v8128
        %v8210 = vpack.c.b16 %v8131, %v8130
        %v8211 = vpack.c.b16 %v8133, %v8132
        %v8212 = vpack.c.b16 %v8135, %v8134
        %v8213 = vpack.c.b16 %v8137, %v8136
        %v8214 = vpack.c.b16 %v8139, %v8138
        %v8215 = vpack.c.b16 %v8141, %v8140
        %v8216 = vpack.c.b16 %v8143, %v8142
        %v8217 = vpack.c.b16 %v8145, %v8144
        %v8218 = vpack.c.b16 %v8147, %v8146
        %v8219 = vpack.c.b16 %v8149, %v8148
        %v8220 = vpack.c.b16 %v8151, %v8150
        %v8221 = vpack.c.b16 %v8153, %v8152
        %v8222 = vpack.c.b16 %v8155, %v8154
        %v8223 = vpack.c.b16 %v8157, %v8156
        %v8224 = vpack.c.b16 %v8159, %v8158
        %v8225 = vpack.c.b16 %v8161, %v8160
        %v8226 = vpack.c.b16 %v8163, %v8162
        %v8227 = vpack.c.b16 %v8165, %v8164
        %v8228 = vpack.c.b16 %v8167, %v8166
        %v8229 = vpack.c.b16 %v8169, %v8168
        %v8230 = vpack.c.b16 %v8171, %v8170
        %v8231 = vpack.c.b16 %v8173, %v8172
        %v8232 = vpack.c.b16 %v8175, %v8174
        %v8233 = vpack.c.b16 %v8177, %v8176
        %v8234 = vpack.c.b16 %v8179, %v8178
        %v8235 = vpack.c.b16 %v8181, %v8180
        %v8236 = vpack.c.b16 %v8183, %v8182
        %v8237 = vpack.c.b16 %v8185, %v8184
        %v8238 = vpack.c.b16 %v8187, %v8186
        %v8239 = vpack.c.b16 %v8189, %v8188
        %v8240 = vpack.c.b16 %v8191, %v8190
        %v8291 = vsel %vm1896, %v7989, 0
        %8293 = vmatprep.subr.bf16.mxu0 0
        %8294 = vmatpush1.bf16.msra.mxu0 %v8192
        %8295 = vmatprep.subr.bf16.mxu0 0
        %8296 = vmatpush1.bf16.msra.mxu0 %v8193
        %8297 = vmatprep.subr.bf16.mxu0 0
        %8298 = vmatpush1.bf16.msra.mxu0 %v8194
        %8299 = vmatprep.subr.bf16.mxu0 0
        %8300 = vmatpush1.bf16.msra.mxu0 %v8195
        %8301 = vmatprep.subr.bf16.mxu0 0
        %8302 = vmatpush1.bf16.msra.mxu0 %v8196
        %8303 = vmatprep.subr.bf16.mxu0 0
        %8304 = vmatpush1.bf16.msra.mxu0 %v8197
        %8305 = vmatprep.subr.bf16.mxu0 0
        %8306 = vmatpush1.bf16.msra.mxu0 %v8198
        %8307 = vmatprep.subr.bf16.mxu0 0
        %8308 = vmatpush1.bf16.msra.mxu0 %v8199
        %8309 = vmatprep.subr.bf16.mxu0 0
        %8310 = vmatpush1.bf16.msra.mxu0 %v8200
        %8311 = vmatprep.subr.bf16.mxu0 0
        %8312 = vmatpush1.bf16.msra.mxu0 %v8201
        %8313 = vmatprep.subr.bf16.mxu0 0
        %8314 = vmatpush1.bf16.msra.mxu0 %v8202
        %8315 = vmatprep.subr.bf16.mxu0 0
        %8316 = vmatpush1.bf16.msra.mxu0 %v8203
        %8317 = vmatprep.subr.bf16.mxu0 0
        %8318 = vmatpush1.bf16.msra.mxu0 %v8204
        %8319 = vmatprep.subr.bf16.mxu0 0
        %8320 = vmatpush1.bf16.msra.mxu0 %v8205
        %8321 = vmatprep.subr.bf16.mxu0 0
        %8322 = vmatpush1.bf16.msra.mxu0 %v8206
        %8323 = vmatprep.subr.bf16.mxu0 0
        %8324 = vmatpush1.bf16.msra.mxu0 %v8207
        %8325 = vmatprep.mubr.bf16.mxu0 %v7984
        %8326 = vmatmul.mubr.bf16.gmra.mrb[0].mxu0 %v7983
        %v8327 = vpop.f32.mrb[0].mxu0
        %v8328 = vadd.f32 0.0, %v8327
        %v8329 = vpop.f32.mrb[0].mxu0
        %v8330 = vpop.f32.mrb[0].mxu0
        %v8331 = vpop.f32.mrb[0].mxu0
        %8332 = vdwg.mxu0
        %8333 = vmatprep.subr.bf16.mxu0 0
        %8334 = vmatpush1.bf16.msra.mxu0 %v8208
        %8335 = vmatprep.subr.bf16.mxu0 0
        %8336 = vmatpush1.bf16.msra.mxu0 %v8209
        %8337 = vmatprep.subr.bf16.mxu0 0
        %8338 = vmatpush1.bf16.msra.mxu0 %v8210
        %8339 = vmatprep.subr.bf16.mxu0 0
        %8340 = vmatpush1.bf16.msra.mxu0 %v8211
        %8341 = vmatprep.subr.bf16.mxu0 0
        %8342 = vmatpush1.bf16.msra.mxu0 %v8212
        %8343 = vmatprep.subr.bf16.mxu0 0
        %8344 = vmatpush1.bf16.msra.mxu0 %v8213
        %8345 = vmatprep.subr.bf16.mxu0 0
        %8346 = vmatpush1.bf16.msra.mxu0 %v8214
        %8347 = vmatprep.subr.bf16.mxu0 0
        %8348 = vmatpush1.bf16.msra.mxu0 %v8215
        %8349 = vmatprep.subr.bf16.mxu0 0
        %8350 = vmatpush1.bf16.msra.mxu0 %v8216
        %8351 = vmatprep.subr.bf16.mxu0 0
        %8352 = vmatpush1.bf16.msra.mxu0 %v8217
        %8353 = vmatprep.subr.bf16.mxu0 0
        %8354 = vmatpush1.bf16.msra.mxu0 %v8218
        %8355 = vmatprep.subr.bf16.mxu0 0
        %8356 = vmatpush1.bf16.msra.mxu0 %v8219
        %8357 = vmatprep.subr.bf16.mxu0 0
        %8358 = vmatpush1.bf16.msra.mxu0 %v8220
        %8359 = vmatprep.subr.bf16.mxu0 0
        %8360 = vmatpush1.bf16.msra.mxu0 %v8221
        %8361 = vmatprep.subr.bf16.mxu0 0
        %8362 = vmatpush1.bf16.msra.mxu0 %v8222
        %8363 = vmatprep.subr.bf16.mxu0 0
        %8364 = vmatpush1.bf16.msra.mxu0 %v8223
        %8365 = vmatprep.mubr.bf16.mxu0 %v7986
        %8366 = vmatmul.mubr.bf16.gmra.mrb[0].mxu0 %v7985
        %v8367 = vpop.f32.mrb[0].mxu0
        %v8368 = vadd.f32 %v8328, %v8367
        %v8369 = vpop.f32.mrb[0].mxu0
        %v8370 = vpop.f32.mrb[0].mxu0
        %v8371 = vpop.f32.mrb[0].mxu0
        %8372 = vdwg.mxu0
        %8373 = vmatprep.subr.bf16.mxu0 0
        %8374 = vmatpush1.bf16.msra.mxu0 %v8224
        %8375 = vmatprep.subr.bf16.mxu0 0
        %8376 = vmatpush1.bf16.msra.mxu0 %v8225
        %8377 = vmatprep.subr.bf16.mxu0 0
        %8378 = vmatpush1.bf16.msra.mxu0 %v8226
        %8379 = vmatprep.subr.bf16.mxu0 0
        %8380 = vmatpush1.bf16.msra.mxu0 %v8227
        %8381 = vmatprep.subr.bf16.mxu0 0
        %8382 = vmatpush1.bf16.msra.mxu0 %v8228
        %8383 = vmatprep.subr.bf16.mxu0 0
        %8384 = vmatpush1.bf16.msra.mxu0 %v8229
        %8385 = vmatprep.subr.bf16.mxu0 0
        %8386 = vmatpush1.bf16.msra.mxu0 %v8230
        %8387 = vmatprep.subr.bf16.mxu0 0
        %8388 = vmatpush1.bf16.msra.mxu0 %v8231
        %8389 = vmatprep.subr.bf16.mxu0 0
        %8390 = vmatpush1.bf16.msra.mxu0 %v8232
        %8391 = vmatprep.subr.bf16.mxu0 0
        %8392 = vmatpush1.bf16.msra.mxu0 %v8233
        %8393 = vmatprep.subr.bf16.mxu0 0
        %8394 = vmatpush1.bf16.msra.mxu0 %v8234
        %8395 = vmatprep.subr.bf16.mxu0 0
        %8396 = vmatpush1.bf16.msra.mxu0 %v8235
        %8397 = vmatprep.subr.bf16.mxu0 0
        %8398 = vmatpush1.bf16.msra.mxu0 %v8236
        %8399 = vmatprep.subr.bf16.mxu0 0
        %8400 = vmatpush1.bf16.msra.mxu0 %v8237
        %8401 = vmatprep.subr.bf16.mxu0 0
        %8402 = vmatpush1.bf16.msra.mxu0 %v8238
        %8403 = vmatprep.subr.bf16.mxu0 0
        %8404 = vmatpush1.bf16.msra.mxu0 %v8239
        %8405 = vmatprep.mubr.bf16.mxu0 %v7988
        %8406 = vmatmul.mubr.bf16.gmra.mrb[0].mxu0 %v7987
        %v8407 = vpop.f32.mrb[0].mxu0
        %v8408 = vadd.f32 %v8368, %v8407
        %v8409 = vpop.f32.mrb[0].mxu0
        %v8410 = vpop.f32.mrb[0].mxu0
        %v8411 = vpop.f32.mrb[0].mxu0
        %8412 = vdwg.mxu0
        %8413 = vmatprep.subr.bf16.mxu0 0
        %8414 = vmatpush1.bf16.msra.mxu0 %v8240
        %8415 = vmatprep.subr.bf16.mxu0 0
        %8416 = vmatpush1.bf16.msra.mxu0 0
        %8417 = vmatprep.subr.bf16.mxu0 0
        %8418 = vmatpush1.bf16.msra.mxu0 0
        %8419 = vmatprep.subr.bf16.mxu0 0
        %8420 = vmatpush1.bf16.msra.mxu0 0
        %8421 = vmatprep.subr.bf16.mxu0 0
        %8422 = vmatpush1.bf16.msra.mxu0 0
        %8423 = vmatprep.subr.bf16.mxu0 0
        %8424 = vmatpush1.bf16.msra.mxu0 0
        %8425 = vmatprep.subr.bf16.mxu0 0
        %8426 = vmatpush1.bf16.msra.mxu0 0
        %8427 = vmatprep.subr.bf16.mxu0 0
        %8428 = vmatpush1.bf16.msra.mxu0 0
        %8429 = vmatprep.subr.bf16.mxu0 0
        %8430 = vmatpush1.bf16.msra.mxu0 0
        %8431 = vmatprep.subr.bf16.mxu0 0
        %8432 = vmatpush1.bf16.msra.mxu0 0
        %8433 = vmatprep.subr.bf16.mxu0 0
        %8434 = vmatpush1.bf16.msra.mxu0 0
        %8435 = vmatprep.subr.bf16.mxu0 0
        %8436 = vmatpush1.bf16.msra.mxu0 0
        %8437 = vmatprep.subr.bf16.mxu0 0
        %8438 = vmatpush1.bf16.msra.mxu0 0
        %8439 = vmatprep.subr.bf16.mxu0 0
        %8440 = vmatpush1.bf16.msra.mxu0 0
        %8441 = vmatprep.subr.bf16.mxu0 0
        %8442 = vmatpush1.bf16.msra.mxu0 0
        %8443 = vmatprep.subr.bf16.mxu0 0
        %8444 = vmatpush1.bf16.msra.mxu0 0
        %8445 = vmatprep.mubr.bf16.mxu0 0
        %8446 = vmatmul.mubr.bf16.gmra.mrb[0].mxu0 %v8291
        %v8447 = vpop.f32.mrb[0].mxu0
        %v8448 = vadd.f32 %v8408, %v8447
        %v8449 = vpop.f32.mrb[0].mxu0
        %v8450 = vpop.f32.mrb[0].mxu0
        %v8451 = vpop.f32.mrb[0].mxu0
        %8452 = vdwg.mxu0
        %v8453 = vadd.f32 %v7862, %v8448
        %s8454 = scalar_lea.vmem %s429, 4704 [#allocation7]
        %v8455 = vld [vmem:[%s8454] sm:$0xf]
        %v8456 = vld [vmem:[%s8454 + $0x4] sm:$0xf]
        %v8457 = vld [vmem:[%s8454 + $0x8] sm:$0xf]
        %v8458 = vld [vmem:[%s8454 + $0xc] sm:$0xf]
        %v8459 = vld [vmem:[%s8454 + $0x10] sm:$0xf]
        %v8460 = vld [vmem:[%s8454 + $0x14] sm:$0xf]
        %v8461 = vld [vmem:[%s8454 + $0x18] sm:$0xf]
        %v8462 = vld [vmem:[%s8454 + $0x1c] sm:$0xf]
        %v8463 = vld [vmem:[%s8454 + $0x20] sm:$0xf]
        %v8464 = vld [vmem:[%s8454 + $0x24] sm:$0xf]
        %v8465 = vld [vmem:[%s8454 + $0x28] sm:$0xf]
        %v8466 = vld [vmem:[%s8454 + $0x2c] sm:$0xf]
        %v8467 = vld [vmem:[%s8454 + $0x30] sm:$0xf]
        %v8468 = vld [vmem:[%s8454 + $0x34] sm:$0xf]
        %v8469 = vld [vmem:[%s8454 + $0x38] sm:$0xf]
        %v8470 = vld [vmem:[%s8454 + $0x3c] sm:$0xf]
        %v8471 = vld [vmem:[%s8454 + $0x40] sm:$0xf]
        %v8472 = vld [vmem:[%s8454 + $0x44] sm:$0xf]
        %v8473 = vld [vmem:[%s8454 + $0x48] sm:$0xf]
        %v8474 = vld [vmem:[%s8454 + $0x4c] sm:$0xf]
        %v8475 = vld [vmem:[%s8454 + $0x50] sm:$0xf]
        %v8476 = vld [vmem:[%s8454 + $0x54] sm:$0xf]
        %v8477 = vld [vmem:[%s8454 + $0x58] sm:$0xf]
        %v8478 = vld [vmem:[%s8454 + $0x5c] sm:$0xf]
        %v8479 = vld [vmem:[%s8454 + $0x60] sm:$0xf]
        %v8480 = vld [vmem:[%s8454 + $0x64] sm:$0xf]
        %v8481 = vld [vmem:[%s8454 + $0x68] sm:$0xf]
        %v8482 = vld [vmem:[%s8454 + $0x6c] sm:$0xf]
        %v8483 = vld [vmem:[%s8454 + $0x70] sm:$0xf]
        %v8484 = vld [vmem:[%s8454 + $0x74] sm:$0xf]
        %v8485 = vld [vmem:[%s8454 + $0x78] sm:$0xf]
        %v8486 = vld [vmem:[%s8454 + $0x7c] sm:$0xf]
        %v8487 = vld [vmem:[%s8454 + $0x80] sm:$0xf]
        %v8488 = vld [vmem:[%s8454 + $0x84] sm:$0xf]
        %v8489 = vld [vmem:[%s8454 + $0x88] sm:$0xf]
        %v8490 = vld [vmem:[%s8454 + $0x8c] sm:$0xf]
        %v8491 = vld [vmem:[%s8454 + $0x90] sm:$0xf]
        %v8492 = vld [vmem:[%s8454 + $0x94] sm:$0xf]
        %v8493 = vld [vmem:[%s8454 + $0x98] sm:$0xf]
        %v8494 = vld [vmem:[%s8454 + $0x9c] sm:$0xf]
        %v8495 = vld [vmem:[%s8454 + $0xa0] sm:$0xf]
        %v8496 = vld [vmem:[%s8454 + $0xa4] sm:$0xf]
        %v8497 = vld [vmem:[%s8454 + $0xa8] sm:$0xf]
        %v8498 = vld [vmem:[%s8454 + $0xac] sm:$0xf]
        %v8499 = vld [vmem:[%s8454 + $0xb0] sm:$0xf]
        %v8500 = vld [vmem:[%s8454 + $0xb4] sm:$0xf]
        %v8501 = vld [vmem:[%s8454 + $0xb8] sm:$0xf]
        %v8502 = vld [vmem:[%s8454 + $0xbc] sm:$0xf]
        %v8503 = vld [vmem:[%s8454 + $0xc0] sm:$0xf]
        %v8504 = vld [vmem:[%s8454 + $0xc4] sm:$0xf]
        %v8505 = vld [vmem:[%s8454 + $0xc8] sm:$0xf]
        %v8506 = vld [vmem:[%s8454 + $0xcc] sm:$0xf]
        %v8507 = vld [vmem:[%s8454 + $0xd0] sm:$0xf]
        %v8508 = vld [vmem:[%s8454 + $0xd4] sm:$0xf]
        %v8509 = vld [vmem:[%s8454 + $0xd8] sm:$0xf]
        %v8510 = vld [vmem:[%s8454 + $0xdc] sm:$0xf]
        %v8511 = vld [vmem:[%s8454 + $0xe0] sm:$0xf]
        %v8512 = vld [vmem:[%s8454 + $0xe4] sm:$0xf]
        %v8513 = vld [vmem:[%s8454 + $0xe8] sm:$0xf]
        %v8514 = vld [vmem:[%s8454 + $0xec] sm:$0xf]
        %v8515 = vld [vmem:[%s8454 + $0xf0] sm:$0xf]
        %v8516 = vld [vmem:[%s8454 + $0xf4] sm:$0xf]
        %v8517 = vld [vmem:[%s8454 + $0xf8] sm:$0xf]
        %v8518 = vld [vmem:[%s8454 + $0xfc] sm:$0xf]
        %v8519 = vld [vmem:[%s8454 + $0x100] sm:$0xf]
        %v8520 = vld [vmem:[%s8454 + $0x104] sm:$0xf]
        %v8521 = vld [vmem:[%s8454 + $0x108] sm:$0xf]
        %v8522 = vld [vmem:[%s8454 + $0x10c] sm:$0xf]
        %v8523 = vld [vmem:[%s8454 + $0x110] sm:$0xf]
        %v8524 = vld [vmem:[%s8454 + $0x114] sm:$0xf]
        %v8525 = vld [vmem:[%s8454 + $0x118] sm:$0xf]
        %v8526 = vld [vmem:[%s8454 + $0x11c] sm:$0xf]
        %v8527 = vld [vmem:[%s8454 + $0x120] sm:$0xf]
        %v8528 = vld [vmem:[%s8454 + $0x124] sm:$0xf]
        %v8529 = vld [vmem:[%s8454 + $0x128] sm:$0xf]
        %v8530 = vld [vmem:[%s8454 + $0x12c] sm:$0xf]
        %v8531 = vld [vmem:[%s8454 + $0x130] sm:$0xf]
        %v8532 = vld [vmem:[%s8454 + $0x134] sm:$0xf]
        %v8533 = vld [vmem:[%s8454 + $0x138] sm:$0xf]
        %v8534 = vld [vmem:[%s8454 + $0x13c] sm:$0xf]
        %v8535 = vld [vmem:[%s8454 + $0x140] sm:$0xf]
        %v8536 = vld [vmem:[%s8454 + $0x144] sm:$0xf]
        %v8537 = vld [vmem:[%s8454 + $0x148] sm:$0xf]
        %v8538 = vld [vmem:[%s8454 + $0x14c] sm:$0xf]
        %v8539 = vld [vmem:[%s8454 + $0x150] sm:$0xf]
        %v8540 = vld [vmem:[%s8454 + $0x154] sm:$0xf]
        %v8541 = vld [vmem:[%s8454 + $0x158] sm:$0xf]
        %v8542 = vld [vmem:[%s8454 + $0x15c] sm:$0xf]
        %v8543 = vld [vmem:[%s8454 + $0x160] sm:$0xf]
        %v8544 = vld [vmem:[%s8454 + $0x164] sm:$0xf]
        %v8545 = vld [vmem:[%s8454 + $0x168] sm:$0xf]
        %v8546 = vld [vmem:[%s8454 + $0x16c] sm:$0xf]
        %v8547 = vld [vmem:[%s8454 + $0x170] sm:$0xf]
        %v8548 = vld [vmem:[%s8454 + $0x174] sm:$0xf]
        %v8549 = vld [vmem:[%s8454 + $0x178] sm:$0xf]
        %v8550 = vld [vmem:[%s8454 + $0x17c] sm:$0xf]
        %v8551 = vld [vmem:[%s8454 + $0x180] sm:$0xf]
        %v8552 = vld [vmem:[%s8454 + $0x184] sm:$0xf]
        %v8553 = vrot.slane %v6189, 4
        %v8554 = vrot.slane %v6196, 3
        %v8555 = vsel %vm1575, %v8554, %v8553
        %v8556 = vrot.slane %v6190, 4
        %v8557 = vrot.slane %v6197, 3
        %v8558 = vsel %vm1575, %v8557, %v8556
        %v8559 = vrot.slane %v6191, 4
        %v8560 = vrot.slane %v6198, 3
        %v8561 = vsel %vm1575, %v8560, %v8559
        %v8562 = vrot.slane %v6192, 4
        %v8563 = vrot.slane %v6199, 3
        %v8564 = vsel %vm1575, %v8563, %v8562
        %v8565 = vrot.slane %v6193, 4
        %v8566 = vrot.slane %v6200, 3
        %v8567 = vsel %vm1575, %v8566, %v8565
        %v8568 = vrot.slane %v6194, 4
        %v8569 = vrot.slane %v6201, 3
        %v8570 = vsel %vm1575, %v8569, %v8568
        %v8571 = vrot.slane %v6195, 4
        %v8572 = vrot.slane %v6202, 3
        %v8573 = vsel %vm1575, %v8572, %v8571
        %v8574 = vpack.c.b16 %v8555, %v8555
        %v8575 = vpack.c.b16 %v8558, %v8558
        %v8576 = vpack.c.b16 %v8561, %v8561
        %v8577 = vpack.c.b16 %v8564, %v8564
        %v8578 = vpack.c.b16 %v8567, %v8567
        %v8579 = vpack.c.b16 %v8570, %v8570
        %v8580 = vpack.c.b16 %v8573, %v8573
        %v8685 = vunpack.c.l.b16 %v8455
        %v8686 = vunpack.c.l.b16 %v8456
        %v8687 = vunpack.c.l.b16 %v8457
        %v8688 = vunpack.c.l.b16 %v8458
        %v8689 = vunpack.c.l.b16 %v8459
        %v8690 = vunpack.c.l.b16 %v8460
        %v8691 = vunpack.c.l.b16 %v8461
        %v8692 = vunpack.c.l.b16 %v8462
        %v8693 = vunpack.c.l.b16 %v8463
        %v8694 = vunpack.c.l.b16 %v8464
        %v8695 = vunpack.c.l.b16 %v8465
        %v8696 = vunpack.c.l.b16 %v8466
        %v8697 = vunpack.c.l.b16 %v8467
        %v8698 = vunpack.c.l.b16 %v8468
        %v8699 = vunpack.c.l.b16 %v8469
        %v8700 = vunpack.c.l.b16 %v8470
        %v8701 = vunpack.c.l.b16 %v8471
        %v8702 = vunpack.c.l.b16 %v8472
        %v8703 = vunpack.c.l.b16 %v8473
        %v8704 = vunpack.c.l.b16 %v8474
        %v8705 = vunpack.c.l.b16 %v8475
        %v8706 = vunpack.c.l.b16 %v8476
        %v8707 = vunpack.c.l.b16 %v8477
        %v8708 = vunpack.c.l.b16 %v8478
        %v8709 = vunpack.c.l.b16 %v8479
        %v8710 = vunpack.c.l.b16 %v8480
        %v8711 = vunpack.c.l.b16 %v8481
        %v8712 = vunpack.c.l.b16 %v8482
        %v8713 = vunpack.c.l.b16 %v8483
        %v8714 = vunpack.c.l.b16 %v8484
        %v8715 = vunpack.c.l.b16 %v8485
        %v8716 = vunpack.c.l.b16 %v8486
        %v8717 = vunpack.c.l.b16 %v8487
        %v8718 = vunpack.c.l.b16 %v8488
        %v8719 = vunpack.c.l.b16 %v8489
        %v8720 = vunpack.c.l.b16 %v8490
        %v8721 = vunpack.c.l.b16 %v8491
        %v8722 = vunpack.c.l.b16 %v8492
        %v8723 = vunpack.c.l.b16 %v8493
        %v8724 = vunpack.c.l.b16 %v8494
        %v8725 = vunpack.c.l.b16 %v8495
        %v8726 = vunpack.c.l.b16 %v8496
        %v8727 = vunpack.c.l.b16 %v8497
        %v8728 = vunpack.c.l.b16 %v8498
        %v8729 = vunpack.c.l.b16 %v8499
        %v8730 = vunpack.c.l.b16 %v8500
        %v8731 = vunpack.c.l.b16 %v8501
        %v8732 = vunpack.c.l.b16 %v8502
        %v8733 = vunpack.c.l.b16 %v8503
        %v8734 = vunpack.c.l.b16 %v8504
        %v8735 = vunpack.c.l.b16 %v8505
        %v8736 = vunpack.c.l.b16 %v8506
        %v8737 = vunpack.c.l.b16 %v8507
        %v8738 = vunpack.c.l.b16 %v8508
        %v8739 = vunpack.c.l.b16 %v8509
        %v8740 = vunpack.c.l.b16 %v8510
        %v8741 = vunpack.c.l.b16 %v8511
        %v8742 = vunpack.c.l.b16 %v8512
        %v8743 = vunpack.c.l.b16 %v8513
        %v8744 = vunpack.c.l.b16 %v8514
        %v8745 = vunpack.c.l.b16 %v8515
        %v8746 = vunpack.c.l.b16 %v8516
        %v8747 = vunpack.c.l.b16 %v8517
        %v8748 = vunpack.c.l.b16 %v8518
        %v8749 = vunpack.c.l.b16 %v8519
        %v8750 = vunpack.c.l.b16 %v8520
        %v8751 = vunpack.c.l.b16 %v8521
        %v8752 = vunpack.c.l.b16 %v8522
        %v8753 = vunpack.c.l.b16 %v8523
        %v8754 = vunpack.c.l.b16 %v8524
        %v8755 = vunpack.c.l.b16 %v8525
        %v8756 = vunpack.c.l.b16 %v8526
        %v8757 = vunpack.c.l.b16 %v8527
        %v8758 = vunpack.c.l.b16 %v8528
        %v8759 = vunpack.c.l.b16 %v8529
        %v8760 = vunpack.c.l.b16 %v8530
        %v8761 = vunpack.c.l.b16 %v8531
        %v8762 = vunpack.c.l.b16 %v8532
        %v8763 = vunpack.c.l.b16 %v8533
        %v8764 = vunpack.c.l.b16 %v8534
        %v8765 = vunpack.c.l.b16 %v8535
        %v8766 = vunpack.c.l.b16 %v8536
        %v8767 = vunpack.c.l.b16 %v8537
        %v8768 = vunpack.c.l.b16 %v8538
        %v8769 = vunpack.c.l.b16 %v8539
        %v8770 = vunpack.c.l.b16 %v8540
        %v8771 = vunpack.c.l.b16 %v8541
        %v8772 = vunpack.c.l.b16 %v8542
        %v8773 = vunpack.c.l.b16 %v8543
        %v8774 = vunpack.c.l.b16 %v8544
        %v8775 = vunpack.c.l.b16 %v8545
        %v8776 = vunpack.c.l.b16 %v8546
        %v8777 = vunpack.c.l.b16 %v8547
        %v8778 = vunpack.c.l.b16 %v8548
        %v8779 = vunpack.c.l.b16 %v8549
        %v8780 = vunpack.c.l.b16 %v8550
        %v8781 = vunpack.c.l.b16 %v8551
        %v8782 = vunpack.c.l.b16 %v8552
        %v8783 = vpack.c.b16 %v8686, %v8685
        %v8784 = vpack.c.b16 %v8688, %v8687
        %v8785 = vpack.c.b16 %v8690, %v8689
        %v8786 = vpack.c.b16 %v8692, %v8691
        %v8787 = vpack.c.b16 %v8694, %v8693
        %v8788 = vpack.c.b16 %v8696, %v8695
        %v8789 = vpack.c.b16 %v8698, %v8697
        %v8790 = vpack.c.b16 %v8700, %v8699
        %v8791 = vpack.c.b16 %v8702, %v8701
        %v8792 = vpack.c.b16 %v8704, %v8703
        %v8793 = vpack.c.b16 %v8706, %v8705
        %v8794 = vpack.c.b16 %v8708, %v8707
        %v8795 = vpack.c.b16 %v8710, %v8709
        %v8796 = vpack.c.b16 %v8712, %v8711
        %v8797 = vpack.c.b16 %v8714, %v8713
        %v8798 = vpack.c.b16 %v8716, %v8715
        %v8799 = vpack.c.b16 %v8718, %v8717
        %v8800 = vpack.c.b16 %v8720, %v8719
        %v8801 = vpack.c.b16 %v8722, %v8721
        %v8802 = vpack.c.b16 %v8724, %v8723
        %v8803 = vpack.c.b16 %v8726, %v8725
        %v8804 = vpack.c.b16 %v8728, %v8727
        %v8805 = vpack.c.b16 %v8730, %v8729
        %v8806 = vpack.c.b16 %v8732, %v8731
        %v8807 = vpack.c.b16 %v8734, %v8733
        %v8808 = vpack.c.b16 %v8736, %v8735
        %v8809 = vpack.c.b16 %v8738, %v8737
        %v8810 = vpack.c.b16 %v8740, %v8739
        %v8811 = vpack.c.b16 %v8742, %v8741
        %v8812 = vpack.c.b16 %v8744, %v8743
        %v8813 = vpack.c.b16 %v8746, %v8745
        %v8814 = vpack.c.b16 %v8748, %v8747
        %v8815 = vpack.c.b16 %v8750, %v8749
        %v8816 = vpack.c.b16 %v8752, %v8751
        %v8817 = vpack.c.b16 %v8754, %v8753
        %v8818 = vpack.c.b16 %v8756, %v8755
        %v8819 = vpack.c.b16 %v8758, %v8757
        %v8820 = vpack.c.b16 %v8760, %v8759
        %v8821 = vpack.c.b16 %v8762, %v8761
        %v8822 = vpack.c.b16 %v8764, %v8763
        %v8823 = vpack.c.b16 %v8766, %v8765
        %v8824 = vpack.c.b16 %v8768, %v8767
        %v8825 = vpack.c.b16 %v8770, %v8769
        %v8826 = vpack.c.b16 %v8772, %v8771
        %v8827 = vpack.c.b16 %v8774, %v8773
        %v8828 = vpack.c.b16 %v8776, %v8775
        %v8829 = vpack.c.b16 %v8778, %v8777
        %v8830 = vpack.c.b16 %v8780, %v8779
        %v8831 = vpack.c.b16 %v8782, %v8781
        %v8882 = vsel %vm1896, %v8580, 0
        %8884 = vmatprep.subr.bf16.mxu0 0
        %8885 = vmatpush1.bf16.msra.mxu0 %v8783
        %8886 = vmatprep.subr.bf16.mxu0 0
        %8887 = vmatpush1.bf16.msra.mxu0 %v8784
        %8888 = vmatprep.subr.bf16.mxu0 0
        %8889 = vmatpush1.bf16.msra.mxu0 %v8785
        %8890 = vmatprep.subr.bf16.mxu0 0
        %8891 = vmatpush1.bf16.msra.mxu0 %v8786
        %8892 = vmatprep.subr.bf16.mxu0 0
        %8893 = vmatpush1.bf16.msra.mxu0 %v8787
        %8894 = vmatprep.subr.bf16.mxu0 0
        %8895 = vmatpush1.bf16.msra.mxu0 %v8788
        %8896 = vmatprep.subr.bf16.mxu0 0
        %8897 = vmatpush1.bf16.msra.mxu0 %v8789
        %8898 = vmatprep.subr.bf16.mxu0 0
        %8899 = vmatpush1.bf16.msra.mxu0 %v8790
        %8900 = vmatprep.subr.bf16.mxu0 0
        %8901 = vmatpush1.bf16.msra.mxu0 %v8791
        %8902 = vmatprep.subr.bf16.mxu0 0
        %8903 = vmatpush1.bf16.msra.mxu0 %v8792
        %8904 = vmatprep.subr.bf16.mxu0 0
        %8905 = vmatpush1.bf16.msra.mxu0 %v8793
        %8906 = vmatprep.subr.bf16.mxu0 0
        %8907 = vmatpush1.bf16.msra.mxu0 %v8794
        %8908 = vmatprep.subr.bf16.mxu0 0
        %8909 = vmatpush1.bf16.msra.mxu0 %v8795
        %8910 = vmatprep.subr.bf16.mxu0 0
        %8911 = vmatpush1.bf16.msra.mxu0 %v8796
        %8912 = vmatprep.subr.bf16.mxu0 0
        %8913 = vmatpush1.bf16.msra.mxu0 %v8797
        %8914 = vmatprep.subr.bf16.mxu0 0
        %8915 = vmatpush1.bf16.msra.mxu0 %v8798
        %8916 = vmatprep.mubr.bf16.mxu0 %v8575
        %8917 = vmatmul.mubr.bf16.gmra.mrb[0].mxu0 %v8574
        %v8918 = vpop.f32.mrb[0].mxu0
        %v8919 = vadd.f32 0.0, %v8918
        %v8920 = vpop.f32.mrb[0].mxu0
        %v8921 = vpop.f32.mrb[0].mxu0
        %v8922 = vpop.f32.mrb[0].mxu0
        %8923 = vdwg.mxu0
        %8924 = vmatprep.subr.bf16.mxu0 0
        %8925 = vmatpush1.bf16.msra.mxu0 %v8799
        %8926 = vmatprep.subr.bf16.mxu0 0
        %8927 = vmatpush1.bf16.msra.mxu0 %v8800
        %8928 = vmatprep.subr.bf16.mxu0 0
        %8929 = vmatpush1.bf16.msra.mxu0 %v8801
        %8930 = vmatprep.subr.bf16.mxu0 0
        %8931 = vmatpush1.bf16.msra.mxu0 %v8802
        %8932 = vmatprep.subr.bf16.mxu0 0
        %8933 = vmatpush1.bf16.msra.mxu0 %v8803
        %8934 = vmatprep.subr.bf16.mxu0 0
        %8935 = vmatpush1.bf16.msra.mxu0 %v8804
        %8936 = vmatprep.subr.bf16.mxu0 0
        %8937 = vmatpush1.bf16.msra.mxu0 %v8805
        %8938 = vmatprep.subr.bf16.mxu0 0
        %8939 = vmatpush1.bf16.msra.mxu0 %v8806
        %8940 = vmatprep.subr.bf16.mxu0 0
        %8941 = vmatpush1.bf16.msra.mxu0 %v8807
        %8942 = vmatprep.subr.bf16.mxu0 0
        %8943 = vmatpush1.bf16.msra.mxu0 %v8808
        %8944 = vmatprep.subr.bf16.mxu0 0
        %8945 = vmatpush1.bf16.msra.mxu0 %v8809
        %8946 = vmatprep.subr.bf16.mxu0 0
        %8947 = vmatpush1.bf16.msra.mxu0 %v8810
        %8948 = vmatprep.subr.bf16.mxu0 0
        %8949 = vmatpush1.bf16.msra.mxu0 %v8811
        %8950 = vmatprep.subr.bf16.mxu0 0
        %8951 = vmatpush1.bf16.msra.mxu0 %v8812
        %8952 = vmatprep.subr.bf16.mxu0 0
        %8953 = vmatpush1.bf16.msra.mxu0 %v8813
        %8954 = vmatprep.subr.bf16.mxu0 0
        %8955 = vmatpush1.bf16.msra.mxu0 %v8814
        %8956 = vmatprep.mubr.bf16.mxu0 %v8577
        %8957 = vmatmul.mubr.bf16.gmra.mrb[0].mxu0 %v8576
        %v8958 = vpop.f32.mrb[0].mxu0
        %v8959 = vadd.f32 %v8919, %v8958
        %v8960 = vpop.f32.mrb[0].mxu0
        %v8961 = vpop.f32.mrb[0].mxu0
        %v8962 = vpop.f32.mrb[0].mxu0
        %8963 = vdwg.mxu0
        %8964 = vmatprep.subr.bf16.mxu0 0
        %8965 = vmatpush1.bf16.msra.mxu0 %v8815
        %8966 = vmatprep.subr.bf16.mxu0 0
        %8967 = vmatpush1.bf16.msra.mxu0 %v8816
        %8968 = vmatprep.subr.bf16.mxu0 0
        %8969 = vmatpush1.bf16.msra.mxu0 %v8817
        %8970 = vmatprep.subr.bf16.mxu0 0
        %8971 = vmatpush1.bf16.msra.mxu0 %v8818
        %8972 = vmatprep.subr.bf16.mxu0 0
        %8973 = vmatpush1.bf16.msra.mxu0 %v8819
        %8974 = vmatprep.subr.bf16.mxu0 0
        %8975 = vmatpush1.bf16.msra.mxu0 %v8820
        %8976 = vmatprep.subr.bf16.mxu0 0
        %8977 = vmatpush1.bf16.msra.mxu0 %v8821
        %8978 = vmatprep.subr.bf16.mxu0 0
        %8979 = vmatpush1.bf16.msra.mxu0 %v8822
        %8980 = vmatprep.subr.bf16.mxu0 0
        %8981 = vmatpush1.bf16.msra.mxu0 %v8823
        %8982 = vmatprep.subr.bf16.mxu0 0
        %8983 = vmatpush1.bf16.msra.mxu0 %v8824
        %8984 = vmatprep.subr.bf16.mxu0 0
        %8985 = vmatpush1.bf16.msra.mxu0 %v8825
        %8986 = vmatprep.subr.bf16.mxu0 0
        %8987 = vmatpush1.bf16.msra.mxu0 %v8826
        %8988 = vmatprep.subr.bf16.mxu0 0
        %8989 = vmatpush1.bf16.msra.mxu0 %v8827
        %8990 = vmatprep.subr.bf16.mxu0 0
        %8991 = vmatpush1.bf16.msra.mxu0 %v8828
        %8992 = vmatprep.subr.bf16.mxu0 0
        %8993 = vmatpush1.bf16.msra.mxu0 %v8829
        %8994 = vmatprep.subr.bf16.mxu0 0
        %8995 = vmatpush1.bf16.msra.mxu0 %v8830
        %8996 = vmatprep.mubr.bf16.mxu0 %v8579
        %8997 = vmatmul.mubr.bf16.gmra.mrb[0].mxu0 %v8578
        %v8998 = vpop.f32.mrb[0].mxu0
        %v8999 = vadd.f32 %v8959, %v8998
        %v9000 = vpop.f32.mrb[0].mxu0
        %v9001 = vpop.f32.mrb[0].mxu0
        %v9002 = vpop.f32.mrb[0].mxu0
        %9003 = vdwg.mxu0
        %9004 = vmatprep.subr.bf16.mxu0 0
        %9005 = vmatpush1.bf16.msra.mxu0 %v8831
        %9006 = vmatprep.subr.bf16.mxu0 0
        %9007 = vmatpush1.bf16.msra.mxu0 0
        %9008 = vmatprep.subr.bf16.mxu0 0
        %9009 = vmatpush1.bf16.msra.mxu0 0
        %9010 = vmatprep.subr.bf16.mxu0 0
        %9011 = vmatpush1.bf16.msra.mxu0 0
        %9012 = vmatprep.subr.bf16.mxu0 0
        %9013 = vmatpush1.bf16.msra.mxu0 0
        %9014 = vmatprep.subr.bf16.mxu0 0
        %9015 = vmatpush1.bf16.msra.mxu0 0
        %9016 = vmatprep.subr.bf16.mxu0 0
        %9017 = vmatpush1.bf16.msra.mxu0 0
        %9018 = vmatprep.subr.bf16.mxu0 0
        %9019 = vmatpush1.bf16.msra.mxu0 0
        %9020 = vmatprep.subr.bf16.mxu0 0
        %9021 = vmatpush1.bf16.msra.mxu0 0
        %9022 = vmatprep.subr.bf16.mxu0 0
        %9023 = vmatpush1.bf16.msra.mxu0 0
        %9024 = vmatprep.subr.bf16.mxu0 0
        %9025 = vmatpush1.bf16.msra.mxu0 0
        %9026 = vmatprep.subr.bf16.mxu0 0
        %9027 = vmatpush1.bf16.msra.mxu0 0
        %9028 = vmatprep.subr.bf16.mxu0 0
        %9029 = vmatpush1.bf16.msra.mxu0 0
        %9030 = vmatprep.subr.bf16.mxu0 0
        %9031 = vmatpush1.bf16.msra.mxu0 0
        %9032 = vmatprep.subr.bf16.mxu0 0
        %9033 = vmatpush1.bf16.msra.mxu0 0
        %9034 = vmatprep.subr.bf16.mxu0 0
        %9035 = vmatpush1.bf16.msra.mxu0 0
        %9036 = vmatprep.mubr.bf16.mxu0 0
        %9037 = vmatmul.mubr.bf16.gmra.mrb[0].mxu0 %v8882
        %v9038 = vpop.f32.mrb[0].mxu0
        %v9039 = vadd.f32 %v8999, %v9038
        %v9040 = vpop.f32.mrb[0].mxu0
        %v9041 = vpop.f32.mrb[0].mxu0
        %v9042 = vpop.f32.mrb[0].mxu0
        %9043 = vdwg.mxu0
        %v9044 = vadd.f32 %v8453, %v9039
        %s9045 = scalar_lea.vmem %s429, 5096 [#allocation7]
        %v9046 = vld [vmem:[%s9045] sm:$0xf]
        %v9047 = vld [vmem:[%s9045 + $0x4] sm:$0xf]
        %v9048 = vld [vmem:[%s9045 + $0x8] sm:$0xf]
        %v9049 = vld [vmem:[%s9045 + $0xc] sm:$0xf]
        %v9050 = vld [vmem:[%s9045 + $0x10] sm:$0xf]
        %v9051 = vld [vmem:[%s9045 + $0x14] sm:$0xf]
        %v9052 = vld [vmem:[%s9045 + $0x18] sm:$0xf]
        %v9053 = vld [vmem:[%s9045 + $0x1c] sm:$0xf]
        %v9054 = vld [vmem:[%s9045 + $0x20] sm:$0xf]
        %v9055 = vld [vmem:[%s9045 + $0x24] sm:$0xf]
        %v9056 = vld [vmem:[%s9045 + $0x28] sm:$0xf]
        %v9057 = vld [vmem:[%s9045 + $0x2c] sm:$0xf]
        %v9058 = vld [vmem:[%s9045 + $0x30] sm:$0xf]
        %v9059 = vld [vmem:[%s9045 + $0x34] sm:$0xf]
        %v9060 = vld [vmem:[%s9045 + $0x38] sm:$0xf]
        %v9061 = vld [vmem:[%s9045 + $0x3c] sm:$0xf]
        %v9062 = vld [vmem:[%s9045 + $0x40] sm:$0xf]
        %v9063 = vld [vmem:[%s9045 + $0x44] sm:$0xf]
        %v9064 = vld [vmem:[%s9045 + $0x48] sm:$0xf]
        %v9065 = vld [vmem:[%s9045 + $0x4c] sm:$0xf]
        %v9066 = vld [vmem:[%s9045 + $0x50] sm:$0xf]
        %v9067 = vld [vmem:[%s9045 + $0x54] sm:$0xf]
        %v9068 = vld [vmem:[%s9045 + $0x58] sm:$0xf]
        %v9069 = vld [vmem:[%s9045 + $0x5c] sm:$0xf]
        %v9070 = vld [vmem:[%s9045 + $0x60] sm:$0xf]
        %v9071 = vld [vmem:[%s9045 + $0x64] sm:$0xf]
        %v9072 = vld [vmem:[%s9045 + $0x68] sm:$0xf]
        %v9073 = vld [vmem:[%s9045 + $0x6c] sm:$0xf]
        %v9074 = vld [vmem:[%s9045 + $0x70] sm:$0xf]
        %v9075 = vld [vmem:[%s9045 + $0x74] sm:$0xf]
        %v9076 = vld [vmem:[%s9045 + $0x78] sm:$0xf]
        %v9077 = vld [vmem:[%s9045 + $0x7c] sm:$0xf]
        %v9078 = vld [vmem:[%s9045 + $0x80] sm:$0xf]
        %v9079 = vld [vmem:[%s9045 + $0x84] sm:$0xf]
        %v9080 = vld [vmem:[%s9045 + $0x88] sm:$0xf]
        %v9081 = vld [vmem:[%s9045 + $0x8c] sm:$0xf]
        %v9082 = vld [vmem:[%s9045 + $0x90] sm:$0xf]
        %v9083 = vld [vmem:[%s9045 + $0x94] sm:$0xf]
        %v9084 = vld [vmem:[%s9045 + $0x98] sm:$0xf]
        %v9085 = vld [vmem:[%s9045 + $0x9c] sm:$0xf]
        %v9086 = vld [vmem:[%s9045 + $0xa0] sm:$0xf]
        %v9087 = vld [vmem:[%s9045 + $0xa4] sm:$0xf]
        %v9088 = vld [vmem:[%s9045 + $0xa8] sm:$0xf]
        %v9089 = vld [vmem:[%s9045 + $0xac] sm:$0xf]
        %v9090 = vld [vmem:[%s9045 + $0xb0] sm:$0xf]
        %v9091 = vld [vmem:[%s9045 + $0xb4] sm:$0xf]
        %v9092 = vld [vmem:[%s9045 + $0xb8] sm:$0xf]
        %v9093 = vld [vmem:[%s9045 + $0xbc] sm:$0xf]
        %v9094 = vld [vmem:[%s9045 + $0xc0] sm:$0xf]
        %v9095 = vld [vmem:[%s9045 + $0xc4] sm:$0xf]
        %v9096 = vld [vmem:[%s9045 + $0xc8] sm:$0xf]
        %v9097 = vld [vmem:[%s9045 + $0xcc] sm:$0xf]
        %v9098 = vld [vmem:[%s9045 + $0xd0] sm:$0xf]
        %v9099 = vld [vmem:[%s9045 + $0xd4] sm:$0xf]
        %v9100 = vld [vmem:[%s9045 + $0xd8] sm:$0xf]
        %v9101 = vld [vmem:[%s9045 + $0xdc] sm:$0xf]
        %v9102 = vld [vmem:[%s9045 + $0xe0] sm:$0xf]
        %v9103 = vld [vmem:[%s9045 + $0xe4] sm:$0xf]
        %v9104 = vld [vmem:[%s9045 + $0xe8] sm:$0xf]
        %v9105 = vld [vmem:[%s9045 + $0xec] sm:$0xf]
        %v9106 = vld [vmem:[%s9045 + $0xf0] sm:$0xf]
        %v9107 = vld [vmem:[%s9045 + $0xf4] sm:$0xf]
        %v9108 = vld [vmem:[%s9045 + $0xf8] sm:$0xf]
        %v9109 = vld [vmem:[%s9045 + $0xfc] sm:$0xf]
        %v9110 = vld [vmem:[%s9045 + $0x100] sm:$0xf]
        %v9111 = vld [vmem:[%s9045 + $0x104] sm:$0xf]
        %v9112 = vld [vmem:[%s9045 + $0x108] sm:$0xf]
        %v9113 = vld [vmem:[%s9045 + $0x10c] sm:$0xf]
        %v9114 = vld [vmem:[%s9045 + $0x110] sm:$0xf]
        %v9115 = vld [vmem:[%s9045 + $0x114] sm:$0xf]
        %v9116 = vld [vmem:[%s9045 + $0x118] sm:$0xf]
        %v9117 = vld [vmem:[%s9045 + $0x11c] sm:$0xf]
        %v9118 = vld [vmem:[%s9045 + $0x120] sm:$0xf]
        %v9119 = vld [vmem:[%s9045 + $0x124] sm:$0xf]
        %v9120 = vld [vmem:[%s9045 + $0x128] sm:$0xf]
        %v9121 = vld [vmem:[%s9045 + $0x12c] sm:$0xf]
        %v9122 = vld [vmem:[%s9045 + $0x130] sm:$0xf]
        %v9123 = vld [vmem:[%s9045 + $0x134] sm:$0xf]
        %v9124 = vld [vmem:[%s9045 + $0x138] sm:$0xf]
        %v9125 = vld [vmem:[%s9045 + $0x13c] sm:$0xf]
        %v9126 = vld [vmem:[%s9045 + $0x140] sm:$0xf]
        %v9127 = vld [vmem:[%s9045 + $0x144] sm:$0xf]
        %v9128 = vld [vmem:[%s9045 + $0x148] sm:$0xf]
        %v9129 = vld [vmem:[%s9045 + $0x14c] sm:$0xf]
        %v9130 = vld [vmem:[%s9045 + $0x150] sm:$0xf]
        %v9131 = vld [vmem:[%s9045 + $0x154] sm:$0xf]
        %v9132 = vld [vmem:[%s9045 + $0x158] sm:$0xf]
        %v9133 = vld [vmem:[%s9045 + $0x15c] sm:$0xf]
        %v9134 = vld [vmem:[%s9045 + $0x160] sm:$0xf]
        %v9135 = vld [vmem:[%s9045 + $0x164] sm:$0xf]
        %v9136 = vld [vmem:[%s9045 + $0x168] sm:$0xf]
        %v9137 = vld [vmem:[%s9045 + $0x16c] sm:$0xf]
        %v9138 = vld [vmem:[%s9045 + $0x170] sm:$0xf]
        %v9139 = vld [vmem:[%s9045 + $0x174] sm:$0xf]
        %v9140 = vld [vmem:[%s9045 + $0x178] sm:$0xf]
        %v9141 = vld [vmem:[%s9045 + $0x17c] sm:$0xf]
        %v9142 = vld [vmem:[%s9045 + $0x180] sm:$0xf]
        %v9143 = vld [vmem:[%s9045 + $0x184] sm:$0xf]
        %v9144 = vrot.slane %v6189, 5
        %v9145 = vrot.slane %v6196, 4
        %v9146 = vsel %vm1575, %v9145, %v9144
        %v9147 = vrot.slane %v6190, 5
        %v9148 = vrot.slane %v6197, 4
        %v9149 = vsel %vm1575, %v9148, %v9147
        %v9150 = vrot.slane %v6191, 5
        %v9151 = vrot.slane %v6198, 4
        %v9152 = vsel %vm1575, %v9151, %v9150
        %v9153 = vrot.slane %v6192, 5
        %v9154 = vrot.slane %v6199, 4
        %v9155 = vsel %vm1575, %v9154, %v9153
        %v9156 = vrot.slane %v6193, 5
        %v9157 = vrot.slane %v6200, 4
        %v9158 = vsel %vm1575, %v9157, %v9156
        %v9159 = vrot.slane %v6194, 5
        %v9160 = vrot.slane %v6201, 4
        %v9161 = vsel %vm1575, %v9160, %v9159
        %v9162 = vrot.slane %v6195, 5
        %v9163 = vrot.slane %v6202, 4
        %v9164 = vsel %vm1575, %v9163, %v9162
        %v9165 = vpack.c.b16 %v9146, %v9146
        %v9166 = vpack.c.b16 %v9149, %v9149
        %v9167 = vpack.c.b16 %v9152, %v9152
        %v9168 = vpack.c.b16 %v9155, %v9155
        %v9169 = vpack.c.b16 %v9158, %v9158
        %v9170 = vpack.c.b16 %v9161, %v9161
        %v9171 = vpack.c.b16 %v9164, %v9164
        %v9276 = vunpack.c.l.b16 %v9046
        %v9277 = vunpack.c.l.b16 %v9047
        %v9278 = vunpack.c.l.b16 %v9048
        %v9279 = vunpack.c.l.b16 %v9049
        %v9280 = vunpack.c.l.b16 %v9050
        %v9281 = vunpack.c.l.b16 %v9051
        %v9282 = vunpack.c.l.b16 %v9052
        %v9283 = vunpack.c.l.b16 %v9053
        %v9284 = vunpack.c.l.b16 %v9054
        %v9285 = vunpack.c.l.b16 %v9055
        %v9286 = vunpack.c.l.b16 %v9056
        %v9287 = vunpack.c.l.b16 %v9057
        %v9288 = vunpack.c.l.b16 %v9058
        %v9289 = vunpack.c.l.b16 %v9059
        %v9290 = vunpack.c.l.b16 %v9060
        %v9291 = vunpack.c.l.b16 %v9061
        %v9292 = vunpack.c.l.b16 %v9062
        %v9293 = vunpack.c.l.b16 %v9063
        %v9294 = vunpack.c.l.b16 %v9064
        %v9295 = vunpack.c.l.b16 %v9065
        %v9296 = vunpack.c.l.b16 %v9066
        %v9297 = vunpack.c.l.b16 %v9067
        %v9298 = vunpack.c.l.b16 %v9068
        %v9299 = vunpack.c.l.b16 %v9069
        %v9300 = vunpack.c.l.b16 %v9070
        %v9301 = vunpack.c.l.b16 %v9071
        %v9302 = vunpack.c.l.b16 %v9072
        %v9303 = vunpack.c.l.b16 %v9073
        %v9304 = vunpack.c.l.b16 %v9074
        %v9305 = vunpack.c.l.b16 %v9075
        %v9306 = vunpack.c.l.b16 %v9076
        %v9307 = vunpack.c.l.b16 %v9077
        %v9308 = vunpack.c.l.b16 %v9078
        %v9309 = vunpack.c.l.b16 %v9079
        %v9310 = vunpack.c.l.b16 %v9080
        %v9311 = vunpack.c.l.b16 %v9081
        %v9312 = vunpack.c.l.b16 %v9082
        %v9313 = vunpack.c.l.b16 %v9083
        %v9314 = vunpack.c.l.b16 %v9084
        %v9315 = vunpack.c.l.b16 %v9085
        %v9316 = vunpack.c.l.b16 %v9086
        %v9317 = vunpack.c.l.b16 %v9087
        %v9318 = vunpack.c.l.b16 %v9088
        %v9319 = vunpack.c.l.b16 %v9089
        %v9320 = vunpack.c.l.b16 %v9090
        %v9321 = vunpack.c.l.b16 %v9091
        %v9322 = vunpack.c.l.b16 %v9092
        %v9323 = vunpack.c.l.b16 %v9093
        %v9324 = vunpack.c.l.b16 %v9094
        %v9325 = vunpack.c.l.b16 %v9095
        %v9326 = vunpack.c.l.b16 %v9096
        %v9327 = vunpack.c.l.b16 %v9097
        %v9328 = vunpack.c.l.b16 %v9098
        %v9329 = vunpack.c.l.b16 %v9099
        %v9330 = vunpack.c.l.b16 %v9100
        %v9331 = vunpack.c.l.b16 %v9101
        %v9332 = vunpack.c.l.b16 %v9102
        %v9333 = vunpack.c.l.b16 %v9103
        %v9334 = vunpack.c.l.b16 %v9104
        %v9335 = vunpack.c.l.b16 %v9105
        %v9336 = vunpack.c.l.b16 %v9106
        %v9337 = vunpack.c.l.b16 %v9107
        %v9338 = vunpack.c.l.b16 %v9108
        %v9339 = vunpack.c.l.b16 %v9109
        %v9340 = vunpack.c.l.b16 %v9110
        %v9341 = vunpack.c.l.b16 %v9111
        %v9342 = vunpack.c.l.b16 %v9112
        %v9343 = vunpack.c.l.b16 %v9113
        %v9344 = vunpack.c.l.b16 %v9114
        %v9345 = vunpack.c.l.b16 %v9115
        %v9346 = vunpack.c.l.b16 %v9116
        %v9347 = vunpack.c.l.b16 %v9117
        %v9348 = vunpack.c.l.b16 %v9118
        %v9349 = vunpack.c.l.b16 %v9119
        %v9350 = vunpack.c.l.b16 %v9120
        %v9351 = vunpack.c.l.b16 %v9121
        %v9352 = vunpack.c.l.b16 %v9122
        %v9353 = vunpack.c.l.b16 %v9123
        %v9354 = vunpack.c.l.b16 %v9124
        %v9355 = vunpack.c.l.b16 %v9125
        %v9356 = vunpack.c.l.b16 %v9126
        %v9357 = vunpack.c.l.b16 %v9127
        %v9358 = vunpack.c.l.b16 %v9128
        %v9359 = vunpack.c.l.b16 %v9129
        %v9360 = vunpack.c.l.b16 %v9130
        %v9361 = vunpack.c.l.b16 %v9131
        %v9362 = vunpack.c.l.b16 %v9132
        %v9363 = vunpack.c.l.b16 %v9133
        %v9364 = vunpack.c.l.b16 %v9134
        %v9365 = vunpack.c.l.b16 %v9135
        %v9366 = vunpack.c.l.b16 %v9136
        %v9367 = vunpack.c.l.b16 %v9137
        %v9368 = vunpack.c.l.b16 %v9138
        %v9369 = vunpack.c.l.b16 %v9139
        %v9370 = vunpack.c.l.b16 %v9140
        %v9371 = vunpack.c.l.b16 %v9141
        %v9372 = vunpack.c.l.b16 %v9142
        %v9373 = vunpack.c.l.b16 %v9143
        %v9374 = vpack.c.b16 %v9277, %v9276
        %v9375 = vpack.c.b16 %v9279, %v9278
        %v9376 = vpack.c.b16 %v9281, %v9280
        %v9377 = vpack.c.b16 %v9283, %v9282
        %v9378 = vpack.c.b16 %v9285, %v9284
        %v9379 = vpack.c.b16 %v9287, %v9286
        %v9380 = vpack.c.b16 %v9289, %v9288
        %v9381 = vpack.c.b16 %v9291, %v9290
        %v9382 = vpack.c.b16 %v9293, %v9292
        %v9383 = vpack.c.b16 %v9295, %v9294
        %v9384 = vpack.c.b16 %v9297, %v9296
        %v9385 = vpack.c.b16 %v9299, %v9298
        %v9386 = vpack.c.b16 %v9301, %v9300
        %v9387 = vpack.c.b16 %v9303, %v9302
        %v9388 = vpack.c.b16 %v9305, %v9304
        %v9389 = vpack.c.b16 %v9307, %v9306
        %v9390 = vpack.c.b16 %v9309, %v9308
        %v9391 = vpack.c.b16 %v9311, %v9310
        %v9392 = vpack.c.b16 %v9313, %v9312
        %v9393 = vpack.c.b16 %v9315, %v9314
        %v9394 = vpack.c.b16 %v9317, %v9316
        %v9395 = vpack.c.b16 %v9319, %v9318
        %v9396 = vpack.c.b16 %v9321, %v9320
        %v9397 = vpack.c.b16 %v9323, %v9322
        %v9398 = vpack.c.b16 %v9325, %v9324
        %v9399 = vpack.c.b16 %v9327, %v9326
        %v9400 = vpack.c.b16 %v9329, %v9328
        %v9401 = vpack.c.b16 %v9331, %v9330
        %v9402 = vpack.c.b16 %v9333, %v9332
        %v9403 = vpack.c.b16 %v9335, %v9334
        %v9404 = vpack.c.b16 %v9337, %v9336
        %v9405 = vpack.c.b16 %v9339, %v9338
        %v9406 = vpack.c.b16 %v9341, %v9340
        %v9407 = vpack.c.b16 %v9343, %v9342
        %v9408 = vpack.c.b16 %v9345, %v9344
        %v9409 = vpack.c.b16 %v9347, %v9346
        %v9410 = vpack.c.b16 %v9349, %v9348
        %v9411 = vpack.c.b16 %v9351, %v9350
        %v9412 = vpack.c.b16 %v9353, %v9352
        %v9413 = vpack.c.b16 %v9355, %v9354
        %v9414 = vpack.c.b16 %v9357, %v9356
        %v9415 = vpack.c.b16 %v9359, %v9358
        %v9416 = vpack.c.b16 %v9361, %v9360
        %v9417 = vpack.c.b16 %v9363, %v9362
        %v9418 = vpack.c.b16 %v9365, %v9364
        %v9419 = vpack.c.b16 %v9367, %v9366
        %v9420 = vpack.c.b16 %v9369, %v9368
        %v9421 = vpack.c.b16 %v9371, %v9370
        %v9422 = vpack.c.b16 %v9373, %v9372
        %v9473 = vsel %vm1896, %v9171, 0
        %9475 = vmatprep.subr.bf16.mxu0 0
        %9476 = vmatpush1.bf16.msra.mxu0 %v9374
        %9477 = vmatprep.subr.bf16.mxu0 0
        %9478 = vmatpush1.bf16.msra.mxu0 %v9375
        %9479 = vmatprep.subr.bf16.mxu0 0
        %9480 = vmatpush1.bf16.msra.mxu0 %v9376
        %9481 = vmatprep.subr.bf16.mxu0 0
        %9482 = vmatpush1.bf16.msra.mxu0 %v9377
        %9483 = vmatprep.subr.bf16.mxu0 0
        %9484 = vmatpush1.bf16.msra.mxu0 %v9378
        %9485 = vmatprep.subr.bf16.mxu0 0
        %9486 = vmatpush1.bf16.msra.mxu0 %v9379
        %9487 = vmatprep.subr.bf16.mxu0 0
        %9488 = vmatpush1.bf16.msra.mxu0 %v9380
        %9489 = vmatprep.subr.bf16.mxu0 0
        %9490 = vmatpush1.bf16.msra.mxu0 %v9381
        %9491 = vmatprep.subr.bf16.mxu0 0
        %9492 = vmatpush1.bf16.msra.mxu0 %v9382
        %9493 = vmatprep.subr.bf16.mxu0 0
        %9494 = vmatpush1.bf16.msra.mxu0 %v9383
        %9495 = vmatprep.subr.bf16.mxu0 0
        %9496 = vmatpush1.bf16.msra.mxu0 %v9384
        %9497 = vmatprep.subr.bf16.mxu0 0
        %9498 = vmatpush1.bf16.msra.mxu0 %v9385
        %9499 = vmatprep.subr.bf16.mxu0 0
        %9500 = vmatpush1.bf16.msra.mxu0 %v9386
        %9501 = vmatprep.subr.bf16.mxu0 0
        %9502 = vmatpush1.bf16.msra.mxu0 %v9387
        %9503 = vmatprep.subr.bf16.mxu0 0
        %9504 = vmatpush1.bf16.msra.mxu0 %v9388
        %9505 = vmatprep.subr.bf16.mxu0 0
        %9506 = vmatpush1.bf16.msra.mxu0 %v9389
        %9507 = vmatprep.mubr.bf16.mxu0 %v9166
        %9508 = vmatmul.mubr.bf16.gmra.mrb[0].mxu0 %v9165
        %v9509 = vpop.f32.mrb[0].mxu0
        %v9510 = vadd.f32 0.0, %v9509
        %v9511 = vpop.f32.mrb[0].mxu0
        %v9512 = vpop.f32.mrb[0].mxu0
        %v9513 = vpop.f32.mrb[0].mxu0
        %9514 = vdwg.mxu0
        %9515 = vmatprep.subr.bf16.mxu0 0
        %9516 = vmatpush1.bf16.msra.mxu0 %v9390
        %9517 = vmatprep.subr.bf16.mxu0 0
        %9518 = vmatpush1.bf16.msra.mxu0 %v9391
        %9519 = vmatprep.subr.bf16.mxu0 0
        %9520 = vmatpush1.bf16.msra.mxu0 %v9392
        %9521 = vmatprep.subr.bf16.mxu0 0
        %9522 = vmatpush1.bf16.msra.mxu0 %v9393
        %9523 = vmatprep.subr.bf16.mxu0 0
        %9524 = vmatpush1.bf16.msra.mxu0 %v9394
        %9525 = vmatprep.subr.bf16.mxu0 0
        %9526 = vmatpush1.bf16.msra.mxu0 %v9395
        %9527 = vmatprep.subr.bf16.mxu0 0
        %9528 = vmatpush1.bf16.msra.mxu0 %v9396
        %9529 = vmatprep.subr.bf16.mxu0 0
        %9530 = vmatpush1.bf16.msra.mxu0 %v9397
        %9531 = vmatprep.subr.bf16.mxu0 0
        %9532 = vmatpush1.bf16.msra.mxu0 %v9398
        %9533 = vmatprep.subr.bf16.mxu0 0
        %9534 = vmatpush1.bf16.msra.mxu0 %v9399
        %9535 = vmatprep.subr.bf16.mxu0 0
        %9536 = vmatpush1.bf16.msra.mxu0 %v9400
        %9537 = vmatprep.subr.bf16.mxu0 0
        %9538 = vmatpush1.bf16.msra.mxu0 %v9401
        %9539 = vmatprep.subr.bf16.mxu0 0
        %9540 = vmatpush1.bf16.msra.mxu0 %v9402
        %9541 = vmatprep.subr.bf16.mxu0 0
        %9542 = vmatpush1.bf16.msra.mxu0 %v9403
        %9543 = vmatprep.subr.bf16.mxu0 0
        %9544 = vmatpush1.bf16.msra.mxu0 %v9404
        %9545 = vmatprep.subr.bf16.mxu0 0
        %9546 = vmatpush1.bf16.msra.mxu0 %v9405
        %9547 = vmatprep.mubr.bf16.mxu0 %v9168
        %9548 = vmatmul.mubr.bf16.gmra.mrb[0].mxu0 %v9167
        %v9549 = vpop.f32.mrb[0].mxu0
        %v9550 = vadd.f32 %v9510, %v9549
        %v9551 = vpop.f32.mrb[0].mxu0
        %v9552 = vpop.f32.mrb[0].mxu0
        %v9553 = vpop.f32.mrb[0].mxu0
        %9554 = vdwg.mxu0
        %9555 = vmatprep.subr.bf16.mxu0 0
        %9556 = vmatpush1.bf16.msra.mxu0 %v9406
        %9557 = vmatprep.subr.bf16.mxu0 0
        %9558 = vmatpush1.bf16.msra.mxu0 %v9407
        %9559 = vmatprep.subr.bf16.mxu0 0
        %9560 = vmatpush1.bf16.msra.mxu0 %v9408
        %9561 = vmatprep.subr.bf16.mxu0 0
        %9562 = vmatpush1.bf16.msra.mxu0 %v9409
        %9563 = vmatprep.subr.bf16.mxu0 0
        %9564 = vmatpush1.bf16.msra.mxu0 %v9410
        %9565 = vmatprep.subr.bf16.mxu0 0
        %9566 = vmatpush1.bf16.msra.mxu0 %v9411
        %9567 = vmatprep.subr.bf16.mxu0 0
        %9568 = vmatpush1.bf16.msra.mxu0 %v9412
        %9569 = vmatprep.subr.bf16.mxu0 0
        %9570 = vmatpush1.bf16.msra.mxu0 %v9413
        %9571 = vmatprep.subr.bf16.mxu0 0
        %9572 = vmatpush1.bf16.msra.mxu0 %v9414
        %9573 = vmatprep.subr.bf16.mxu0 0
        %9574 = vmatpush1.bf16.msra.mxu0 %v9415
        %9575 = vmatprep.subr.bf16.mxu0 0
        %9576 = vmatpush1.bf16.msra.mxu0 %v9416
        %9577 = vmatprep.subr.bf16.mxu0 0
        %9578 = vmatpush1.bf16.msra.mxu0 %v9417
        %9579 = vmatprep.subr.bf16.mxu0 0
        %9580 = vmatpush1.bf16.msra.mxu0 %v9418
        %9581 = vmatprep.subr.bf16.mxu0 0
        %9582 = vmatpush1.bf16.msra.mxu0 %v9419
        %9583 = vmatprep.subr.bf16.mxu0 0
        %9584 = vmatpush1.bf16.msra.mxu0 %v9420
        %9585 = vmatprep.subr.bf16.mxu0 0
        %9586 = vmatpush1.bf16.msra.mxu0 %v9421
        %9587 = vmatprep.mubr.bf16.mxu0 %v9170
        %9588 = vmatmul.mubr.bf16.gmra.mrb[0].mxu0 %v9169
        %v9589 = vpop.f32.mrb[0].mxu0
        %v9590 = vadd.f32 %v9550, %v9589
        %v9591 = vpop.f32.mrb[0].mxu0
        %v9592 = vpop.f32.mrb[0].mxu0
        %v9593 = vpop.f32.mrb[0].mxu0
        %9594 = vdwg.mxu0
        %9595 = vmatprep.subr.bf16.mxu0 0
        %9596 = vmatpush1.bf16.msra.mxu0 %v9422
        %9597 = vmatprep.subr.bf16.mxu0 0
        %9598 = vmatpush1.bf16.msra.mxu0 0
        %9599 = vmatprep.subr.bf16.mxu0 0
        %9600 = vmatpush1.bf16.msra.mxu0 0
        %9601 = vmatprep.subr.bf16.mxu0 0
        %9602 = vmatpush1.bf16.msra.mxu0 0
        %9603 = vmatprep.subr.bf16.mxu0 0
        %9604 = vmatpush1.bf16.msra.mxu0 0
        %9605 = vmatprep.subr.bf16.mxu0 0
        %9606 = vmatpush1.bf16.msra.mxu0 0
        %9607 = vmatprep.subr.bf16.mxu0 0
        %9608 = vmatpush1.bf16.msra.mxu0 0
        %9609 = vmatprep.subr.bf16.mxu0 0
        %9610 = vmatpush1.bf16.msra.mxu0 0
        %9611 = vmatprep.subr.bf16.mxu0 0
        %9612 = vmatpush1.bf16.msra.mxu0 0
        %9613 = vmatprep.subr.bf16.mxu0 0
        %9614 = vmatpush1.bf16.msra.mxu0 0
        %9615 = vmatprep.subr.bf16.mxu0 0
        %9616 = vmatpush1.bf16.msra.mxu0 0
        %9617 = vmatprep.subr.bf16.mxu0 0
        %9618 = vmatpush1.bf16.msra.mxu0 0
        %9619 = vmatprep.subr.bf16.mxu0 0
        %9620 = vmatpush1.bf16.msra.mxu0 0
        %9621 = vmatprep.subr.bf16.mxu0 0
        %9622 = vmatpush1.bf16.msra.mxu0 0
        %9623 = vmatprep.subr.bf16.mxu0 0
        %9624 = vmatpush1.bf16.msra.mxu0 0
        %9625 = vmatprep.subr.bf16.mxu0 0
        %9626 = vmatpush1.bf16.msra.mxu0 0
        %9627 = vmatprep.mubr.bf16.mxu0 0
        %9628 = vmatmul.mubr.bf16.gmra.mrb[0].mxu0 %v9473
        %v9629 = vpop.f32.mrb[0].mxu0
        %v9630 = vadd.f32 %v9590, %v9629
        %v9631 = vpop.f32.mrb[0].mxu0
        %v9632 = vpop.f32.mrb[0].mxu0
        %v9633 = vpop.f32.mrb[0].mxu0
        %9634 = vdwg.mxu0
        %v9635 = vadd.f32 %v9044, %v9630
        %s9636 = scalar_lea.vmem %s429, 5488 [#allocation7]
        %v9637 = vld [vmem:[%s9636] sm:$0xf]
        %v9638 = vld [vmem:[%s9636 + $0x4] sm:$0xf]
        %v9639 = vld [vmem:[%s9636 + $0x8] sm:$0xf]
        %v9640 = vld [vmem:[%s9636 + $0xc] sm:$0xf]
        %v9641 = vld [vmem:[%s9636 + $0x10] sm:$0xf]
        %v9642 = vld [vmem:[%s9636 + $0x14] sm:$0xf]
        %v9643 = vld [vmem:[%s9636 + $0x18] sm:$0xf]
        %v9644 = vld [vmem:[%s9636 + $0x1c] sm:$0xf]
        %v9645 = vld [vmem:[%s9636 + $0x20] sm:$0xf]
        %v9646 = vld [vmem:[%s9636 + $0x24] sm:$0xf]
        %v9647 = vld [vmem:[%s9636 + $0x28] sm:$0xf]
        %v9648 = vld [vmem:[%s9636 + $0x2c] sm:$0xf]
        %v9649 = vld [vmem:[%s9636 + $0x30] sm:$0xf]
        %v9650 = vld [vmem:[%s9636 + $0x34] sm:$0xf]
        %v9651 = vld [vmem:[%s9636 + $0x38] sm:$0xf]
        %v9652 = vld [vmem:[%s9636 + $0x3c] sm:$0xf]
        %v9653 = vld [vmem:[%s9636 + $0x40] sm:$0xf]
        %v9654 = vld [vmem:[%s9636 + $0x44] sm:$0xf]
        %v9655 = vld [vmem:[%s9636 + $0x48] sm:$0xf]
        %v9656 = vld [vmem:[%s9636 + $0x4c] sm:$0xf]
        %v9657 = vld [vmem:[%s9636 + $0x50] sm:$0xf]
        %v9658 = vld [vmem:[%s9636 + $0x54] sm:$0xf]
        %v9659 = vld [vmem:[%s9636 + $0x58] sm:$0xf]
        %v9660 = vld [vmem:[%s9636 + $0x5c] sm:$0xf]
        %v9661 = vld [vmem:[%s9636 + $0x60] sm:$0xf]
        %v9662 = vld [vmem:[%s9636 + $0x64] sm:$0xf]
        %v9663 = vld [vmem:[%s9636 + $0x68] sm:$0xf]
        %v9664 = vld [vmem:[%s9636 + $0x6c] sm:$0xf]
        %v9665 = vld [vmem:[%s9636 + $0x70] sm:$0xf]
        %v9666 = vld [vmem:[%s9636 + $0x74] sm:$0xf]
        %v9667 = vld [vmem:[%s9636 + $0x78] sm:$0xf]
        %v9668 = vld [vmem:[%s9636 + $0x7c] sm:$0xf]
        %v9669 = vld [vmem:[%s9636 + $0x80] sm:$0xf]
        %v9670 = vld [vmem:[%s9636 + $0x84] sm:$0xf]
        %v9671 = vld [vmem:[%s9636 + $0x88] sm:$0xf]
        %v9672 = vld [vmem:[%s9636 + $0x8c] sm:$0xf]
        %v9673 = vld [vmem:[%s9636 + $0x90] sm:$0xf]
        %v9674 = vld [vmem:[%s9636 + $0x94] sm:$0xf]
        %v9675 = vld [vmem:[%s9636 + $0x98] sm:$0xf]
        %v9676 = vld [vmem:[%s9636 + $0x9c] sm:$0xf]
        %v9677 = vld [vmem:[%s9636 + $0xa0] sm:$0xf]
        %v9678 = vld [vmem:[%s9636 + $0xa4] sm:$0xf]
        %v9679 = vld [vmem:[%s9636 + $0xa8] sm:$0xf]
        %v9680 = vld [vmem:[%s9636 + $0xac] sm:$0xf]
        %v9681 = vld [vmem:[%s9636 + $0xb0] sm:$0xf]
        %v9682 = vld [vmem:[%s9636 + $0xb4] sm:$0xf]
        %v9683 = vld [vmem:[%s9636 + $0xb8] sm:$0xf]
        %v9684 = vld [vmem:[%s9636 + $0xbc] sm:$0xf]
        %v9685 = vld [vmem:[%s9636 + $0xc0] sm:$0xf]
        %v9686 = vld [vmem:[%s9636 + $0xc4] sm:$0xf]
        %v9687 = vld [vmem:[%s9636 + $0xc8] sm:$0xf]
        %v9688 = vld [vmem:[%s9636 + $0xcc] sm:$0xf]
        %v9689 = vld [vmem:[%s9636 + $0xd0] sm:$0xf]
        %v9690 = vld [vmem:[%s9636 + $0xd4] sm:$0xf]
        %v9691 = vld [vmem:[%s9636 + $0xd8] sm:$0xf]
        %v9692 = vld [vmem:[%s9636 + $0xdc] sm:$0xf]
        %v9693 = vld [vmem:[%s9636 + $0xe0] sm:$0xf]
        %v9694 = vld [vmem:[%s9636 + $0xe4] sm:$0xf]
        %v9695 = vld [vmem:[%s9636 + $0xe8] sm:$0xf]
        %v9696 = vld [vmem:[%s9636 + $0xec] sm:$0xf]
        %v9697 = vld [vmem:[%s9636 + $0xf0] sm:$0xf]
        %v9698 = vld [vmem:[%s9636 + $0xf4] sm:$0xf]
        %v9699 = vld [vmem:[%s9636 + $0xf8] sm:$0xf]
        %v9700 = vld [vmem:[%s9636 + $0xfc] sm:$0xf]
        %v9701 = vld [vmem:[%s9636 + $0x100] sm:$0xf]
        %v9702 = vld [vmem:[%s9636 + $0x104] sm:$0xf]
        %v9703 = vld [vmem:[%s9636 + $0x108] sm:$0xf]
        %v9704 = vld [vmem:[%s9636 + $0x10c] sm:$0xf]
        %v9705 = vld [vmem:[%s9636 + $0x110] sm:$0xf]
        %v9706 = vld [vmem:[%s9636 + $0x114] sm:$0xf]
        %v9707 = vld [vmem:[%s9636 + $0x118] sm:$0xf]
        %v9708 = vld [vmem:[%s9636 + $0x11c] sm:$0xf]
        %v9709 = vld [vmem:[%s9636 + $0x120] sm:$0xf]
        %v9710 = vld [vmem:[%s9636 + $0x124] sm:$0xf]
        %v9711 = vld [vmem:[%s9636 + $0x128] sm:$0xf]
        %v9712 = vld [vmem:[%s9636 + $0x12c] sm:$0xf]
        %v9713 = vld [vmem:[%s9636 + $0x130] sm:$0xf]
        %v9714 = vld [vmem:[%s9636 + $0x134] sm:$0xf]
        %v9715 = vld [vmem:[%s9636 + $0x138] sm:$0xf]
        %v9716 = vld [vmem:[%s9636 + $0x13c] sm:$0xf]
        %v9717 = vld [vmem:[%s9636 + $0x140] sm:$0xf]
        %v9718 = vld [vmem:[%s9636 + $0x144] sm:$0xf]
        %v9719 = vld [vmem:[%s9636 + $0x148] sm:$0xf]
        %v9720 = vld [vmem:[%s9636 + $0x14c] sm:$0xf]
        %v9721 = vld [vmem:[%s9636 + $0x150] sm:$0xf]
        %v9722 = vld [vmem:[%s9636 + $0x154] sm:$0xf]
        %v9723 = vld [vmem:[%s9636 + $0x158] sm:$0xf]
        %v9724 = vld [vmem:[%s9636 + $0x15c] sm:$0xf]
        %v9725 = vld [vmem:[%s9636 + $0x160] sm:$0xf]
        %v9726 = vld [vmem:[%s9636 + $0x164] sm:$0xf]
        %v9727 = vld [vmem:[%s9636 + $0x168] sm:$0xf]
        %v9728 = vld [vmem:[%s9636 + $0x16c] sm:$0xf]
        %v9729 = vld [vmem:[%s9636 + $0x170] sm:$0xf]
        %v9730 = vld [vmem:[%s9636 + $0x174] sm:$0xf]
        %v9731 = vld [vmem:[%s9636 + $0x178] sm:$0xf]
        %v9732 = vld [vmem:[%s9636 + $0x17c] sm:$0xf]
        %v9733 = vld [vmem:[%s9636 + $0x180] sm:$0xf]
        %v9734 = vld [vmem:[%s9636 + $0x184] sm:$0xf]
        %v9735 = vrot.slane %v6189, 6
        %v9736 = vrot.slane %v6196, 5
        %v9737 = vsel %vm1575, %v9736, %v9735
        %v9738 = vrot.slane %v6190, 6
        %v9739 = vrot.slane %v6197, 5
        %v9740 = vsel %vm1575, %v9739, %v9738
        %v9741 = vrot.slane %v6191, 6
        %v9742 = vrot.slane %v6198, 5
        %v9743 = vsel %vm1575, %v9742, %v9741
        %v9744 = vrot.slane %v6192, 6
        %v9745 = vrot.slane %v6199, 5
        %v9746 = vsel %vm1575, %v9745, %v9744
        %v9747 = vrot.slane %v6193, 6
        %v9748 = vrot.slane %v6200, 5
        %v9749 = vsel %vm1575, %v9748, %v9747
        %v9750 = vrot.slane %v6194, 6
        %v9751 = vrot.slane %v6201, 5
        %v9752 = vsel %vm1575, %v9751, %v9750
        %v9753 = vrot.slane %v6195, 6
        %v9754 = vrot.slane %v6202, 5
        %v9755 = vsel %vm1575, %v9754, %v9753
        %v9756 = vpack.c.b16 %v9737, %v9737
        %v9757 = vpack.c.b16 %v9740, %v9740
        %v9758 = vpack.c.b16 %v9743, %v9743
        %v9759 = vpack.c.b16 %v9746, %v9746
        %v9760 = vpack.c.b16 %v9749, %v9749
        %v9761 = vpack.c.b16 %v9752, %v9752
        %v9762 = vpack.c.b16 %v9755, %v9755
        %v9867 = vunpack.c.l.b16 %v9637
        %v9868 = vunpack.c.l.b16 %v9638
        %v9869 = vunpack.c.l.b16 %v9639
        %v9870 = vunpack.c.l.b16 %v9640
        %v9871 = vunpack.c.l.b16 %v9641
        %v9872 = vunpack.c.l.b16 %v9642
        %v9873 = vunpack.c.l.b16 %v9643
        %v9874 = vunpack.c.l.b16 %v9644
        %v9875 = vunpack.c.l.b16 %v9645
        %v9876 = vunpack.c.l.b16 %v9646
        %v9877 = vunpack.c.l.b16 %v9647
        %v9878 = vunpack.c.l.b16 %v9648
        %v9879 = vunpack.c.l.b16 %v9649
        %v9880 = vunpack.c.l.b16 %v9650
        %v9881 = vunpack.c.l.b16 %v9651
        %v9882 = vunpack.c.l.b16 %v9652
        %v9883 = vunpack.c.l.b16 %v9653
        %v9884 = vunpack.c.l.b16 %v9654
        %v9885 = vunpack.c.l.b16 %v9655
        %v9886 = vunpack.c.l.b16 %v9656
        %v9887 = vunpack.c.l.b16 %v9657
        %v9888 = vunpack.c.l.b16 %v9658
        %v9889 = vunpack.c.l.b16 %v9659
        %v9890 = vunpack.c.l.b16 %v9660
        %v9891 = vunpack.c.l.b16 %v9661
        %v9892 = vunpack.c.l.b16 %v9662
        %v9893 = vunpack.c.l.b16 %v9663
        %v9894 = vunpack.c.l.b16 %v9664
        %v9895 = vunpack.c.l.b16 %v9665
        %v9896 = vunpack.c.l.b16 %v9666
        %v9897 = vunpack.c.l.b16 %v9667
        %v9898 = vunpack.c.l.b16 %v9668
        %v9899 = vunpack.c.l.b16 %v9669
        %v9900 = vunpack.c.l.b16 %v9670
        %v9901 = vunpack.c.l.b16 %v9671
        %v9902 = vunpack.c.l.b16 %v9672
        %v9903 = vunpack.c.l.b16 %v9673
        %v9904 = vunpack.c.l.b16 %v9674
        %v9905 = vunpack.c.l.b16 %v9675
        %v9906 = vunpack.c.l.b16 %v9676
        %v9907 = vunpack.c.l.b16 %v9677
        %v9908 = vunpack.c.l.b16 %v9678
        %v9909 = vunpack.c.l.b16 %v9679
        %v9910 = vunpack.c.l.b16 %v9680
        %v9911 = vunpack.c.l.b16 %v9681
        %v9912 = vunpack.c.l.b16 %v9682
        %v9913 = vunpack.c.l.b16 %v9683
        %v9914 = vunpack.c.l.b16 %v9684
        %v9915 = vunpack.c.l.b16 %v9685
        %v9916 = vunpack.c.l.b16 %v9686
        %v9917 = vunpack.c.l.b16 %v9687
        %v9918 = vunpack.c.l.b16 %v9688
        %v9919 = vunpack.c.l.b16 %v9689
        %v9920 = vunpack.c.l.b16 %v9690
        %v9921 = vunpack.c.l.b16 %v9691
        %v9922 = vunpack.c.l.b16 %v9692
        %v9923 = vunpack.c.l.b16 %v9693
        %v9924 = vunpack.c.l.b16 %v9694
        %v9925 = vunpack.c.l.b16 %v9695
        %v9926 = vunpack.c.l.b16 %v9696
        %v9927 = vunpack.c.l.b16 %v9697
        %v9928 = vunpack.c.l.b16 %v9698
        %v9929 = vunpack.c.l.b16 %v9699
        %v9930 = vunpack.c.l.b16 %v9700
        %v9931 = vunpack.c.l.b16 %v9701
        %v9932 = vunpack.c.l.b16 %v9702
        %v9933 = vunpack.c.l.b16 %v9703
        %v9934 = vunpack.c.l.b16 %v9704
        %v9935 = vunpack.c.l.b16 %v9705
        %v9936 = vunpack.c.l.b16 %v9706
        %v9937 = vunpack.c.l.b16 %v9707
        %v9938 = vunpack.c.l.b16 %v9708
        %v9939 = vunpack.c.l.b16 %v9709
        %v9940 = vunpack.c.l.b16 %v9710
        %v9941 = vunpack.c.l.b16 %v9711
        %v9942 = vunpack.c.l.b16 %v9712
        %v9943 = vunpack.c.l.b16 %v9713
        %v9944 = vunpack.c.l.b16 %v9714
        %v9945 = vunpack.c.l.b16 %v9715
        %v9946 = vunpack.c.l.b16 %v9716
        %v9947 = vunpack.c.l.b16 %v9717
        %v9948 = vunpack.c.l.b16 %v9718
        %v9949 = vunpack.c.l.b16 %v9719
        %v9950 = vunpack.c.l.b16 %v9720
        %v9951 = vunpack.c.l.b16 %v9721
        %v9952 = vunpack.c.l.b16 %v9722
        %v9953 = vunpack.c.l.b16 %v9723
        %v9954 = vunpack.c.l.b16 %v9724
        %v9955 = vunpack.c.l.b16 %v9725
        %v9956 = vunpack.c.l.b16 %v9726
        %v9957 = vunpack.c.l.b16 %v9727
        %v9958 = vunpack.c.l.b16 %v9728
        %v9959 = vunpack.c.l.b16 %v9729
        %v9960 = vunpack.c.l.b16 %v9730
        %v9961 = vunpack.c.l.b16 %v9731
        %v9962 = vunpack.c.l.b16 %v9732
        %v9963 = vunpack.c.l.b16 %v9733
        %v9964 = vunpack.c.l.b16 %v9734
        %v9965 = vpack.c.b16 %v9868, %v9867
        %v9966 = vpack.c.b16 %v9870, %v9869
        %v9967 = vpack.c.b16 %v9872, %v9871
        %v9968 = vpack.c.b16 %v9874, %v9873
        %v9969 = vpack.c.b16 %v9876, %v9875
        %v9970 = vpack.c.b16 %v9878, %v9877
        %v9971 = vpack.c.b16 %v9880, %v9879
        %v9972 = vpack.c.b16 %v9882, %v9881
        %v9973 = vpack.c.b16 %v9884, %v9883
        %v9974 = vpack.c.b16 %v9886, %v9885
        %v9975 = vpack.c.b16 %v9888, %v9887
        %v9976 = vpack.c.b16 %v9890, %v9889
        %v9977 = vpack.c.b16 %v9892, %v9891
        %v9978 = vpack.c.b16 %v9894, %v9893
        %v9979 = vpack.c.b16 %v9896, %v9895
        %v9980 = vpack.c.b16 %v9898, %v9897
        %v9981 = vpack.c.b16 %v9900, %v9899
        %v9982 = vpack.c.b16 %v9902, %v9901
        %v9983 = vpack.c.b16 %v9904, %v9903
        %v9984 = vpack.c.b16 %v9906, %v9905
        %v9985 = vpack.c.b16 %v9908, %v9907
        %v9986 = vpack.c.b16 %v9910, %v9909
        %v9987 = vpack.c.b16 %v9912, %v9911
        %v9988 = vpack.c.b16 %v9914, %v9913
        %v9989 = vpack.c.b16 %v9916, %v9915
        %v9990 = vpack.c.b16 %v9918, %v9917
        %v9991 = vpack.c.b16 %v9920, %v9919
        %v9992 = vpack.c.b16 %v9922, %v9921
        %v9993 = vpack.c.b16 %v9924, %v9923
        %v9994 = vpack.c.b16 %v9926, %v9925
        %v9995 = vpack.c.b16 %v9928, %v9927
        %v9996 = vpack.c.b16 %v9930, %v9929
        %v9997 = vpack.c.b16 %v9932, %v9931
        %v9998 = vpack.c.b16 %v9934, %v9933
        %v9999 = vpack.c.b16 %v9936, %v9935
        %v10000 = vpack.c.b16 %v9938, %v9937
        %v10001 = vpack.c.b16 %v9940, %v9939
        %v10002 = vpack.c.b16 %v9942, %v9941
        %v10003 = vpack.c.b16 %v9944, %v9943
        %v10004 = vpack.c.b16 %v9946, %v9945
        %v10005 = vpack.c.b16 %v9948, %v9947
        %v10006 = vpack.c.b16 %v9950, %v9949
        %v10007 = vpack.c.b16 %v9952, %v9951
        %v10008 = vpack.c.b16 %v9954, %v9953
        %v10009 = vpack.c.b16 %v9956, %v9955
        %v10010 = vpack.c.b16 %v9958, %v9957
        %v10011 = vpack.c.b16 %v9960, %v9959
        %v10012 = vpack.c.b16 %v9962, %v9961
        %v10013 = vpack.c.b16 %v9964, %v9963
        %v10064 = vsel %vm1896, %v9762, 0
        %10066 = vmatprep.subr.bf16.mxu0 0
        %10067 = vmatpush1.bf16.msra.mxu0 %v9965
        %10068 = vmatprep.subr.bf16.mxu0 0
        %10069 = vmatpush1.bf16.msra.mxu0 %v9966
        %10070 = vmatprep.subr.bf16.mxu0 0
        %10071 = vmatpush1.bf16.msra.mxu0 %v9967
        %10072 = vmatprep.subr.bf16.mxu0 0
        %10073 = vmatpush1.bf16.msra.mxu0 %v9968
        %10074 = vmatprep.subr.bf16.mxu0 0
        %10075 = vmatpush1.bf16.msra.mxu0 %v9969
        %10076 = vmatprep.subr.bf16.mxu0 0
        %10077 = vmatpush1.bf16.msra.mxu0 %v9970
        %10078 = vmatprep.subr.bf16.mxu0 0
        %10079 = vmatpush1.bf16.msra.mxu0 %v9971
        %10080 = vmatprep.subr.bf16.mxu0 0
        %10081 = vmatpush1.bf16.msra.mxu0 %v9972
        %10082 = vmatprep.subr.bf16.mxu0 0
        %10083 = vmatpush1.bf16.msra.mxu0 %v9973
        %10084 = vmatprep.subr.bf16.mxu0 0
        %10085 = vmatpush1.bf16.msra.mxu0 %v9974
        %10086 = vmatprep.subr.bf16.mxu0 0
        %10087 = vmatpush1.bf16.msra.mxu0 %v9975
        %10088 = vmatprep.subr.bf16.mxu0 0
        %10089 = vmatpush1.bf16.msra.mxu0 %v9976
        %10090 = vmatprep.subr.bf16.mxu0 0
        %10091 = vmatpush1.bf16.msra.mxu0 %v9977
        %10092 = vmatprep.subr.bf16.mxu0 0
        %10093 = vmatpush1.bf16.msra.mxu0 %v9978
        %10094 = vmatprep.subr.bf16.mxu0 0
        %10095 = vmatpush1.bf16.msra.mxu0 %v9979
        %10096 = vmatprep.subr.bf16.mxu0 0
        %10097 = vmatpush1.bf16.msra.mxu0 %v9980
        %10098 = vmatprep.mubr.bf16.mxu0 %v9757
        %10099 = vmatmul.mubr.bf16.gmra.mrb[0].mxu0 %v9756
        %v10100 = vpop.f32.mrb[0].mxu0
        %v10101 = vadd.f32 0.0, %v10100
        %v10102 = vpop.f32.mrb[0].mxu0
        %v10103 = vpop.f32.mrb[0].mxu0
        %v10104 = vpop.f32.mrb[0].mxu0
        %10105 = vdwg.mxu0
        %10106 = vmatprep.subr.bf16.mxu0 0
        %10107 = vmatpush1.bf16.msra.mxu0 %v9981
        %10108 = vmatprep.subr.bf16.mxu0 0
        %10109 = vmatpush1.bf16.msra.mxu0 %v9982
        %10110 = vmatprep.subr.bf16.mxu0 0
        %10111 = vmatpush1.bf16.msra.mxu0 %v9983
        %10112 = vmatprep.subr.bf16.mxu0 0
        %10113 = vmatpush1.bf16.msra.mxu0 %v9984
        %10114 = vmatprep.subr.bf16.mxu0 0
        %10115 = vmatpush1.bf16.msra.mxu0 %v9985
        %10116 = vmatprep.subr.bf16.mxu0 0
        %10117 = vmatpush1.bf16.msra.mxu0 %v9986
        %10118 = vmatprep.subr.bf16.mxu0 0
        %10119 = vmatpush1.bf16.msra.mxu0 %v9987
        %10120 = vmatprep.subr.bf16.mxu0 0
        %10121 = vmatpush1.bf16.msra.mxu0 %v9988
        %10122 = vmatprep.subr.bf16.mxu0 0
        %10123 = vmatpush1.bf16.msra.mxu0 %v9989
        %10124 = vmatprep.subr.bf16.mxu0 0
        %10125 = vmatpush1.bf16.msra.mxu0 %v9990
        %10126 = vmatprep.subr.bf16.mxu0 0
        %10127 = vmatpush1.bf16.msra.mxu0 %v9991
        %10128 = vmatprep.subr.bf16.mxu0 0
        %10129 = vmatpush1.bf16.msra.mxu0 %v9992
        %10130 = vmatprep.subr.bf16.mxu0 0
        %10131 = vmatpush1.bf16.msra.mxu0 %v9993
        %10132 = vmatprep.subr.bf16.mxu0 0
        %10133 = vmatpush1.bf16.msra.mxu0 %v9994
        %10134 = vmatprep.subr.bf16.mxu0 0
        %10135 = vmatpush1.bf16.msra.mxu0 %v9995
        %10136 = vmatprep.subr.bf16.mxu0 0
        %10137 = vmatpush1.bf16.msra.mxu0 %v9996
        %10138 = vmatprep.mubr.bf16.mxu0 %v9759
        %10139 = vmatmul.mubr.bf16.gmra.mrb[0].mxu0 %v9758
        %v10140 = vpop.f32.mrb[0].mxu0
        %v10141 = vadd.f32 %v10101, %v10140
        %v10142 = vpop.f32.mrb[0].mxu0
        %v10143 = vpop.f32.mrb[0].mxu0
        %v10144 = vpop.f32.mrb[0].mxu0
        %10145 = vdwg.mxu0
        %10146 = vmatprep.subr.bf16.mxu0 0
        %10147 = vmatpush1.bf16.msra.mxu0 %v9997
        %10148 = vmatprep.subr.bf16.mxu0 0
        %10149 = vmatpush1.bf16.msra.mxu0 %v9998
        %10150 = vmatprep.subr.bf16.mxu0 0
        %10151 = vmatpush1.bf16.msra.mxu0 %v9999
        %10152 = vmatprep.subr.bf16.mxu0 0
        %10153 = vmatpush1.bf16.msra.mxu0 %v10000
        %10154 = vmatprep.subr.bf16.mxu0 0
        %10155 = vmatpush1.bf16.msra.mxu0 %v10001
        %10156 = vmatprep.subr.bf16.mxu0 0
        %10157 = vmatpush1.bf16.msra.mxu0 %v10002
        %10158 = vmatprep.subr.bf16.mxu0 0
        %10159 = vmatpush1.bf16.msra.mxu0 %v10003
        %10160 = vmatprep.subr.bf16.mxu0 0
        %10161 = vmatpush1.bf16.msra.mxu0 %v10004
        %10162 = vmatprep.subr.bf16.mxu0 0
        %10163 = vmatpush1.bf16.msra.mxu0 %v10005
        %10164 = vmatprep.subr.bf16.mxu0 0
        %10165 = vmatpush1.bf16.msra.mxu0 %v10006
        %10166 = vmatprep.subr.bf16.mxu0 0
        %10167 = vmatpush1.bf16.msra.mxu0 %v10007
        %10168 = vmatprep.subr.bf16.mxu0 0
        %10169 = vmatpush1.bf16.msra.mxu0 %v10008
        %10170 = vmatprep.subr.bf16.mxu0 0
        %10171 = vmatpush1.bf16.msra.mxu0 %v10009
        %10172 = vmatprep.subr.bf16.mxu0 0
        %10173 = vmatpush1.bf16.msra.mxu0 %v10010
        %10174 = vmatprep.subr.bf16.mxu0 0
        %10175 = vmatpush1.bf16.msra.mxu0 %v10011
        %10176 = vmatprep.subr.bf16.mxu0 0
        %10177 = vmatpush1.bf16.msra.mxu0 %v10012
        %10178 = vmatprep.mubr.bf16.mxu0 %v9761
        %10179 = vmatmul.mubr.bf16.gmra.mrb[0].mxu0 %v9760
        %v10180 = vpop.f32.mrb[0].mxu0
        %v10181 = vadd.f32 %v10141, %v10180
        %v10182 = vpop.f32.mrb[0].mxu0
        %v10183 = vpop.f32.mrb[0].mxu0
        %v10184 = vpop.f32.mrb[0].mxu0
        %10185 = vdwg.mxu0
        %10186 = vmatprep.subr.bf16.mxu0 0
        %10187 = vmatpush1.bf16.msra.mxu0 %v10013
        %10188 = vmatprep.subr.bf16.mxu0 0
        %10189 = vmatpush1.bf16.msra.mxu0 0
        %10190 = vmatprep.subr.bf16.mxu0 0
        %10191 = vmatpush1.bf16.msra.mxu0 0
        %10192 = vmatprep.subr.bf16.mxu0 0
        %10193 = vmatpush1.bf16.msra.mxu0 0
        %10194 = vmatprep.subr.bf16.mxu0 0
        %10195 = vmatpush1.bf16.msra.mxu0 0
        %10196 = vmatprep.subr.bf16.mxu0 0
        %10197 = vmatpush1.bf16.msra.mxu0 0
        %10198 = vmatprep.subr.bf16.mxu0 0
        %10199 = vmatpush1.bf16.msra.mxu0 0
        %10200 = vmatprep.subr.bf16.mxu0 0
        %10201 = vmatpush1.bf16.msra.mxu0 0
        %10202 = vmatprep.subr.bf16.mxu0 0
        %10203 = vmatpush1.bf16.msra.mxu0 0
        %10204 = vmatprep.subr.bf16.mxu0 0
        %10205 = vmatpush1.bf16.msra.mxu0 0
        %10206 = vmatprep.subr.bf16.mxu0 0
        %10207 = vmatpush1.bf16.msra.mxu0 0
        %10208 = vmatprep.subr.bf16.mxu0 0
        %10209 = vmatpush1.bf16.msra.mxu0 0
        %10210 = vmatprep.subr.bf16.mxu0 0
        %10211 = vmatpush1.bf16.msra.mxu0 0
        %10212 = vmatprep.subr.bf16.mxu0 0
        %10213 = vmatpush1.bf16.msra.mxu0 0
        %10214 = vmatprep.subr.bf16.mxu0 0
        %10215 = vmatpush1.bf16.msra.mxu0 0
        %10216 = vmatprep.subr.bf16.mxu0 0
        %10217 = vmatpush1.bf16.msra.mxu0 0
        %10218 = vmatprep.mubr.bf16.mxu0 0
        %10219 = vmatmul.mubr.bf16.gmra.mrb[0].mxu0 %v10064
        %v10220 = vpop.f32.mrb[0].mxu0
        %v10221 = vadd.f32 %v10181, %v10220
        %v10222 = vpop.f32.mrb[0].mxu0
        %v10223 = vpop.f32.mrb[0].mxu0
        %v10224 = vpop.f32.mrb[0].mxu0
        %10225 = vdwg.mxu0
        %v10226 = vadd.f32 %v9635, %v10221
        %s10227 = scalar_lea.vmem %s429, 5880 [#allocation7]
        %v10228 = vld [vmem:[%s10227] sm:$0xf]
        %v10229 = vld [vmem:[%s10227 + $0x4] sm:$0xf]
        %v10230 = vld [vmem:[%s10227 + $0x8] sm:$0xf]
        %v10231 = vld [vmem:[%s10227 + $0xc] sm:$0xf]
        %v10232 = vld [vmem:[%s10227 + $0x10] sm:$0xf]
        %v10233 = vld [vmem:[%s10227 + $0x14] sm:$0xf]
        %v10234 = vld [vmem:[%s10227 + $0x18] sm:$0xf]
        %v10235 = vld [vmem:[%s10227 + $0x1c] sm:$0xf]
        %v10236 = vld [vmem:[%s10227 + $0x20] sm:$0xf]
        %v10237 = vld [vmem:[%s10227 + $0x24] sm:$0xf]
        %v10238 = vld [vmem:[%s10227 + $0x28] sm:$0xf]
        %v10239 = vld [vmem:[%s10227 + $0x2c] sm:$0xf]
        %v10240 = vld [vmem:[%s10227 + $0x30] sm:$0xf]
        %v10241 = vld [vmem:[%s10227 + $0x34] sm:$0xf]
        %v10242 = vld [vmem:[%s10227 + $0x38] sm:$0xf]
        %v10243 = vld [vmem:[%s10227 + $0x3c] sm:$0xf]
        %v10244 = vld [vmem:[%s10227 + $0x40] sm:$0xf]
        %v10245 = vld [vmem:[%s10227 + $0x44] sm:$0xf]
        %v10246 = vld [vmem:[%s10227 + $0x48] sm:$0xf]
        %v10247 = vld [vmem:[%s10227 + $0x4c] sm:$0xf]
        %v10248 = vld [vmem:[%s10227 + $0x50] sm:$0xf]
        %v10249 = vld [vmem:[%s10227 + $0x54] sm:$0xf]
        %v10250 = vld [vmem:[%s10227 + $0x58] sm:$0xf]
        %v10251 = vld [vmem:[%s10227 + $0x5c] sm:$0xf]
        %v10252 = vld [vmem:[%s10227 + $0x60] sm:$0xf]
        %v10253 = vld [vmem:[%s10227 + $0x64] sm:$0xf]
        %v10254 = vld [vmem:[%s10227 + $0x68] sm:$0xf]
        %v10255 = vld [vmem:[%s10227 + $0x6c] sm:$0xf]
        %v10256 = vld [vmem:[%s10227 + $0x70] sm:$0xf]
        %v10257 = vld [vmem:[%s10227 + $0x74] sm:$0xf]
        %v10258 = vld [vmem:[%s10227 + $0x78] sm:$0xf]
        %v10259 = vld [vmem:[%s10227 + $0x7c] sm:$0xf]
        %v10260 = vld [vmem:[%s10227 + $0x80] sm:$0xf]
        %v10261 = vld [vmem:[%s10227 + $0x84] sm:$0xf]
        %v10262 = vld [vmem:[%s10227 + $0x88] sm:$0xf]
        %v10263 = vld [vmem:[%s10227 + $0x8c] sm:$0xf]
        %v10264 = vld [vmem:[%s10227 + $0x90] sm:$0xf]
        %v10265 = vld [vmem:[%s10227 + $0x94] sm:$0xf]
        %v10266 = vld [vmem:[%s10227 + $0x98] sm:$0xf]
        %v10267 = vld [vmem:[%s10227 + $0x9c] sm:$0xf]
        %v10268 = vld [vmem:[%s10227 + $0xa0] sm:$0xf]
        %v10269 = vld [vmem:[%s10227 + $0xa4] sm:$0xf]
        %v10270 = vld [vmem:[%s10227 + $0xa8] sm:$0xf]
        %v10271 = vld [vmem:[%s10227 + $0xac] sm:$0xf]
        %v10272 = vld [vmem:[%s10227 + $0xb0] sm:$0xf]
        %v10273 = vld [vmem:[%s10227 + $0xb4] sm:$0xf]
        %v10274 = vld [vmem:[%s10227 + $0xb8] sm:$0xf]
        %v10275 = vld [vmem:[%s10227 + $0xbc] sm:$0xf]
        %v10276 = vld [vmem:[%s10227 + $0xc0] sm:$0xf]
        %v10277 = vld [vmem:[%s10227 + $0xc4] sm:$0xf]
        %v10278 = vld [vmem:[%s10227 + $0xc8] sm:$0xf]
        %v10279 = vld [vmem:[%s10227 + $0xcc] sm:$0xf]
        %v10280 = vld [vmem:[%s10227 + $0xd0] sm:$0xf]
        %v10281 = vld [vmem:[%s10227 + $0xd4] sm:$0xf]
        %v10282 = vld [vmem:[%s10227 + $0xd8] sm:$0xf]
        %v10283 = vld [vmem:[%s10227 + $0xdc] sm:$0xf]
        %v10284 = vld [vmem:[%s10227 + $0xe0] sm:$0xf]
        %v10285 = vld [vmem:[%s10227 + $0xe4] sm:$0xf]
        %v10286 = vld [vmem:[%s10227 + $0xe8] sm:$0xf]
        %v10287 = vld [vmem:[%s10227 + $0xec] sm:$0xf]
        %v10288 = vld [vmem:[%s10227 + $0xf0] sm:$0xf]
        %v10289 = vld [vmem:[%s10227 + $0xf4] sm:$0xf]
        %v10290 = vld [vmem:[%s10227 + $0xf8] sm:$0xf]
        %v10291 = vld [vmem:[%s10227 + $0xfc] sm:$0xf]
        %v10292 = vld [vmem:[%s10227 + $0x100] sm:$0xf]
        %v10293 = vld [vmem:[%s10227 + $0x104] sm:$0xf]
        %v10294 = vld [vmem:[%s10227 + $0x108] sm:$0xf]
        %v10295 = vld [vmem:[%s10227 + $0x10c] sm:$0xf]
        %v10296 = vld [vmem:[%s10227 + $0x110] sm:$0xf]
        %v10297 = vld [vmem:[%s10227 + $0x114] sm:$0xf]
        %v10298 = vld [vmem:[%s10227 + $0x118] sm:$0xf]
        %v10299 = vld [vmem:[%s10227 + $0x11c] sm:$0xf]
        %v10300 = vld [vmem:[%s10227 + $0x120] sm:$0xf]
        %v10301 = vld [vmem:[%s10227 + $0x124] sm:$0xf]
        %v10302 = vld [vmem:[%s10227 + $0x128] sm:$0xf]
        %v10303 = vld [vmem:[%s10227 + $0x12c] sm:$0xf]
        %v10304 = vld [vmem:[%s10227 + $0x130] sm:$0xf]
        %v10305 = vld [vmem:[%s10227 + $0x134] sm:$0xf]
        %v10306 = vld [vmem:[%s10227 + $0x138] sm:$0xf]
        %v10307 = vld [vmem:[%s10227 + $0x13c] sm:$0xf]
        %v10308 = vld [vmem:[%s10227 + $0x140] sm:$0xf]
        %v10309 = vld [vmem:[%s10227 + $0x144] sm:$0xf]
        %v10310 = vld [vmem:[%s10227 + $0x148] sm:$0xf]
        %v10311 = vld [vmem:[%s10227 + $0x14c] sm:$0xf]
        %v10312 = vld [vmem:[%s10227 + $0x150] sm:$0xf]
        %v10313 = vld [vmem:[%s10227 + $0x154] sm:$0xf]
        %v10314 = vld [vmem:[%s10227 + $0x158] sm:$0xf]
        %v10315 = vld [vmem:[%s10227 + $0x15c] sm:$0xf]
        %v10316 = vld [vmem:[%s10227 + $0x160] sm:$0xf]
        %v10317 = vld [vmem:[%s10227 + $0x164] sm:$0xf]
        %v10318 = vld [vmem:[%s10227 + $0x168] sm:$0xf]
        %v10319 = vld [vmem:[%s10227 + $0x16c] sm:$0xf]
        %v10320 = vld [vmem:[%s10227 + $0x170] sm:$0xf]
        %v10321 = vld [vmem:[%s10227 + $0x174] sm:$0xf]
        %v10322 = vld [vmem:[%s10227 + $0x178] sm:$0xf]
        %v10323 = vld [vmem:[%s10227 + $0x17c] sm:$0xf]
        %v10324 = vld [vmem:[%s10227 + $0x180] sm:$0xf]
        %v10325 = vld [vmem:[%s10227 + $0x184] sm:$0xf]
        %v10326 = vrot.slane %v6189, 7
        %v10327 = vrot.slane %v6196, 6
        %v10328 = vsel %vm1575, %v10327, %v10326
        %v10329 = vrot.slane %v6190, 7
        %v10330 = vrot.slane %v6197, 6
        %v10331 = vsel %vm1575, %v10330, %v10329
        %v10332 = vrot.slane %v6191, 7
        %v10333 = vrot.slane %v6198, 6
        %v10334 = vsel %vm1575, %v10333, %v10332
        %v10335 = vrot.slane %v6192, 7
        %v10336 = vrot.slane %v6199, 6
        %v10337 = vsel %vm1575, %v10336, %v10335
        %v10338 = vrot.slane %v6193, 7
        %v10339 = vrot.slane %v6200, 6
        %v10340 = vsel %vm1575, %v10339, %v10338
        %v10341 = vrot.slane %v6194, 7
        %v10342 = vrot.slane %v6201, 6
        %v10343 = vsel %vm1575, %v10342, %v10341
        %v10344 = vrot.slane %v6195, 7
        %v10345 = vrot.slane %v6202, 6
        %v10346 = vsel %vm1575, %v10345, %v10344
        %v10347 = vpack.c.b16 %v10328, %v10328
        %v10348 = vpack.c.b16 %v10331, %v10331
        %v10349 = vpack.c.b16 %v10334, %v10334
        %v10350 = vpack.c.b16 %v10337, %v10337
        %v10351 = vpack.c.b16 %v10340, %v10340
        %v10352 = vpack.c.b16 %v10343, %v10343
        %v10353 = vpack.c.b16 %v10346, %v10346
        %v10458 = vunpack.c.l.b16 %v10228
        %v10459 = vunpack.c.l.b16 %v10229
        %v10460 = vunpack.c.l.b16 %v10230
        %v10461 = vunpack.c.l.b16 %v10231
        %v10462 = vunpack.c.l.b16 %v10232
        %v10463 = vunpack.c.l.b16 %v10233
        %v10464 = vunpack.c.l.b16 %v10234
        %v10465 = vunpack.c.l.b16 %v10235
        %v10466 = vunpack.c.l.b16 %v10236
        %v10467 = vunpack.c.l.b16 %v10237
        %v10468 = vunpack.c.l.b16 %v10238
        %v10469 = vunpack.c.l.b16 %v10239
        %v10470 = vunpack.c.l.b16 %v10240
        %v10471 = vunpack.c.l.b16 %v10241
        %v10472 = vunpack.c.l.b16 %v10242
        %v10473 = vunpack.c.l.b16 %v10243
        %v10474 = vunpack.c.l.b16 %v10244
        %v10475 = vunpack.c.l.b16 %v10245
        %v10476 = vunpack.c.l.b16 %v10246
        %v10477 = vunpack.c.l.b16 %v10247
        %v10478 = vunpack.c.l.b16 %v10248
        %v10479 = vunpack.c.l.b16 %v10249
        %v10480 = vunpack.c.l.b16 %v10250
        %v10481 = vunpack.c.l.b16 %v10251
        %v10482 = vunpack.c.l.b16 %v10252
        %v10483 = vunpack.c.l.b16 %v10253
        %v10484 = vunpack.c.l.b16 %v10254
        %v10485 = vunpack.c.l.b16 %v10255
        %v10486 = vunpack.c.l.b16 %v10256
        %v10487 = vunpack.c.l.b16 %v10257
        %v10488 = vunpack.c.l.b16 %v10258
        %v10489 = vunpack.c.l.b16 %v10259
        %v10490 = vunpack.c.l.b16 %v10260
        %v10491 = vunpack.c.l.b16 %v10261
        %v10492 = vunpack.c.l.b16 %v10262
        %v10493 = vunpack.c.l.b16 %v10263
        %v10494 = vunpack.c.l.b16 %v10264
        %v10495 = vunpack.c.l.b16 %v10265
        %v10496 = vunpack.c.l.b16 %v10266
        %v10497 = vunpack.c.l.b16 %v10267
        %v10498 = vunpack.c.l.b16 %v10268
        %v10499 = vunpack.c.l.b16 %v10269
        %v10500 = vunpack.c.l.b16 %v10270
        %v10501 = vunpack.c.l.b16 %v10271
        %v10502 = vunpack.c.l.b16 %v10272
        %v10503 = vunpack.c.l.b16 %v10273
        %v10504 = vunpack.c.l.b16 %v10274
        %v10505 = vunpack.c.l.b16 %v10275
        %v10506 = vunpack.c.l.b16 %v10276
        %v10507 = vunpack.c.l.b16 %v10277
        %v10508 = vunpack.c.l.b16 %v10278
        %v10509 = vunpack.c.l.b16 %v10279
        %v10510 = vunpack.c.l.b16 %v10280
        %v10511 = vunpack.c.l.b16 %v10281
        %v10512 = vunpack.c.l.b16 %v10282
        %v10513 = vunpack.c.l.b16 %v10283
        %v10514 = vunpack.c.l.b16 %v10284
        %v10515 = vunpack.c.l.b16 %v10285
        %v10516 = vunpack.c.l.b16 %v10286
        %v10517 = vunpack.c.l.b16 %v10287
        %v10518 = vunpack.c.l.b16 %v10288
        %v10519 = vunpack.c.l.b16 %v10289
        %v10520 = vunpack.c.l.b16 %v10290
        %v10521 = vunpack.c.l.b16 %v10291
        %v10522 = vunpack.c.l.b16 %v10292
        %v10523 = vunpack.c.l.b16 %v10293
        %v10524 = vunpack.c.l.b16 %v10294
        %v10525 = vunpack.c.l.b16 %v10295
        %v10526 = vunpack.c.l.b16 %v10296
        %v10527 = vunpack.c.l.b16 %v10297
        %v10528 = vunpack.c.l.b16 %v10298
        %v10529 = vunpack.c.l.b16 %v10299
        %v10530 = vunpack.c.l.b16 %v10300
        %v10531 = vunpack.c.l.b16 %v10301
        %v10532 = vunpack.c.l.b16 %v10302
        %v10533 = vunpack.c.l.b16 %v10303
        %v10534 = vunpack.c.l.b16 %v10304
        %v10535 = vunpack.c.l.b16 %v10305
        %v10536 = vunpack.c.l.b16 %v10306
        %v10537 = vunpack.c.l.b16 %v10307
        %v10538 = vunpack.c.l.b16 %v10308
        %v10539 = vunpack.c.l.b16 %v10309
        %v10540 = vunpack.c.l.b16 %v10310
        %v10541 = vunpack.c.l.b16 %v10311
        %v10542 = vunpack.c.l.b16 %v10312
        %v10543 = vunpack.c.l.b16 %v10313
        %v10544 = vunpack.c.l.b16 %v10314
        %v10545 = vunpack.c.l.b16 %v10315
        %v10546 = vunpack.c.l.b16 %v10316
        %v10547 = vunpack.c.l.b16 %v10317
        %v10548 = vunpack.c.l.b16 %v10318
        %v10549 = vunpack.c.l.b16 %v10319
        %v10550 = vunpack.c.l.b16 %v10320
        %v10551 = vunpack.c.l.b16 %v10321
        %v10552 = vunpack.c.l.b16 %v10322
        %v10553 = vunpack.c.l.b16 %v10323
        %v10554 = vunpack.c.l.b16 %v10324
        %v10555 = vunpack.c.l.b16 %v10325
        %v10556 = vpack.c.b16 %v10459, %v10458
        %v10557 = vpack.c.b16 %v10461, %v10460
        %v10558 = vpack.c.b16 %v10463, %v10462
        %v10559 = vpack.c.b16 %v10465, %v10464
        %v10560 = vpack.c.b16 %v10467, %v10466
        %v10561 = vpack.c.b16 %v10469, %v10468
        %v10562 = vpack.c.b16 %v10471, %v10470
        %v10563 = vpack.c.b16 %v10473, %v10472
        %v10564 = vpack.c.b16 %v10475, %v10474
        %v10565 = vpack.c.b16 %v10477, %v10476
        %v10566 = vpack.c.b16 %v10479, %v10478
        %v10567 = vpack.c.b16 %v10481, %v10480
        %v10568 = vpack.c.b16 %v10483, %v10482
        %v10569 = vpack.c.b16 %v10485, %v10484
        %v10570 = vpack.c.b16 %v10487, %v10486
        %v10571 = vpack.c.b16 %v10489, %v10488
        %v10572 = vpack.c.b16 %v10491, %v10490
        %v10573 = vpack.c.b16 %v10493, %v10492
        %v10574 = vpack.c.b16 %v10495, %v10494
        %v10575 = vpack.c.b16 %v10497, %v10496
        %v10576 = vpack.c.b16 %v10499, %v10498
        %v10577 = vpack.c.b16 %v10501, %v10500
        %v10578 = vpack.c.b16 %v10503, %v10502
        %v10579 = vpack.c.b16 %v10505, %v10504
        %v10580 = vpack.c.b16 %v10507, %v10506
        %v10581 = vpack.c.b16 %v10509, %v10508
        %v10582 = vpack.c.b16 %v10511, %v10510
        %v10583 = vpack.c.b16 %v10513, %v10512
        %v10584 = vpack.c.b16 %v10515, %v10514
        %v10585 = vpack.c.b16 %v10517, %v10516
        %v10586 = vpack.c.b16 %v10519, %v10518
        %v10587 = vpack.c.b16 %v10521, %v10520
        %v10588 = vpack.c.b16 %v10523, %v10522
        %v10589 = vpack.c.b16 %v10525, %v10524
        %v10590 = vpack.c.b16 %v10527, %v10526
        %v10591 = vpack.c.b16 %v10529, %v10528
        %v10592 = vpack.c.b16 %v10531, %v10530
        %v10593 = vpack.c.b16 %v10533, %v10532
        %v10594 = vpack.c.b16 %v10535, %v10534
        %v10595 = vpack.c.b16 %v10537, %v10536
        %v10596 = vpack.c.b16 %v10539, %v10538
        %v10597 = vpack.c.b16 %v10541, %v10540
        %v10598 = vpack.c.b16 %v10543, %v10542
        %v10599 = vpack.c.b16 %v10545, %v10544
        %v10600 = vpack.c.b16 %v10547, %v10546
        %v10601 = vpack.c.b16 %v10549, %v10548
        %v10602 = vpack.c.b16 %v10551, %v10550
        %v10603 = vpack.c.b16 %v10553, %v10552
        %v10604 = vpack.c.b16 %v10555, %v10554
        %v10655 = vsel %vm1896, %v10353, 0
        %10657 = vmatprep.subr.bf16.mxu0 0
        %10658 = vmatpush1.bf16.msra.mxu0 %v10556
        %10659 = vmatprep.subr.bf16.mxu0 0
        %10660 = vmatpush1.bf16.msra.mxu0 %v10557
        %10661 = vmatprep.subr.bf16.mxu0 0
        %10662 = vmatpush1.bf16.msra.mxu0 %v10558
        %10663 = vmatprep.subr.bf16.mxu0 0
        %10664 = vmatpush1.bf16.msra.mxu0 %v10559
        %10665 = vmatprep.subr.bf16.mxu0 0
        %10666 = vmatpush1.bf16.msra.mxu0 %v10560
        %10667 = vmatprep.subr.bf16.mxu0 0
        %10668 = vmatpush1.bf16.msra.mxu0 %v10561
        %10669 = vmatprep.subr.bf16.mxu0 0
        %10670 = vmatpush1.bf16.msra.mxu0 %v10562
        %10671 = vmatprep.subr.bf16.mxu0 0
        %10672 = vmatpush1.bf16.msra.mxu0 %v10563
        %10673 = vmatprep.subr.bf16.mxu0 0
        %10674 = vmatpush1.bf16.msra.mxu0 %v10564
        %10675 = vmatprep.subr.bf16.mxu0 0
        %10676 = vmatpush1.bf16.msra.mxu0 %v10565
        %10677 = vmatprep.subr.bf16.mxu0 0
        %10678 = vmatpush1.bf16.msra.mxu0 %v10566
        %10679 = vmatprep.subr.bf16.mxu0 0
        %10680 = vmatpush1.bf16.msra.mxu0 %v10567
        %10681 = vmatprep.subr.bf16.mxu0 0
        %10682 = vmatpush1.bf16.msra.mxu0 %v10568
        %10683 = vmatprep.subr.bf16.mxu0 0
        %10684 = vmatpush1.bf16.msra.mxu0 %v10569
        %10685 = vmatprep.subr.bf16.mxu0 0
        %10686 = vmatpush1.bf16.msra.mxu0 %v10570
        %10687 = vmatprep.subr.bf16.mxu0 0
        %10688 = vmatpush1.bf16.msra.mxu0 %v10571
        %10689 = vmatprep.mubr.bf16.mxu0 %v10348
        %10690 = vmatmul.mubr.bf16.gmra.mrb[0].mxu0 %v10347
        %v10691 = vpop.f32.mrb[0].mxu0
        %v10692 = vadd.f32 0.0, %v10691
        %v10693 = vpop.f32.mrb[0].mxu0
        %v10694 = vpop.f32.mrb[0].mxu0
        %v10695 = vpop.f32.mrb[0].mxu0
        %10696 = vdwg.mxu0
        %10697 = vmatprep.subr.bf16.mxu0 0
        %10698 = vmatpush1.bf16.msra.mxu0 %v10572
        %10699 = vmatprep.subr.bf16.mxu0 0
        %10700 = vmatpush1.bf16.msra.mxu0 %v10573
        %10701 = vmatprep.subr.bf16.mxu0 0
        %10702 = vmatpush1.bf16.msra.mxu0 %v10574
        %10703 = vmatprep.subr.bf16.mxu0 0
        %10704 = vmatpush1.bf16.msra.mxu0 %v10575
        %10705 = vmatprep.subr.bf16.mxu0 0
        %10706 = vmatpush1.bf16.msra.mxu0 %v10576
        %10707 = vmatprep.subr.bf16.mxu0 0
        %10708 = vmatpush1.bf16.msra.mxu0 %v10577
        %10709 = vmatprep.subr.bf16.mxu0 0
        %10710 = vmatpush1.bf16.msra.mxu0 %v10578
        %10711 = vmatprep.subr.bf16.mxu0 0
        %10712 = vmatpush1.bf16.msra.mxu0 %v10579
        %10713 = vmatprep.subr.bf16.mxu0 0
        %10714 = vmatpush1.bf16.msra.mxu0 %v10580
        %10715 = vmatprep.subr.bf16.mxu0 0
        %10716 = vmatpush1.bf16.msra.mxu0 %v10581
        %10717 = vmatprep.subr.bf16.mxu0 0
        %10718 = vmatpush1.bf16.msra.mxu0 %v10582
        %10719 = vmatprep.subr.bf16.mxu0 0
        %10720 = vmatpush1.bf16.msra.mxu0 %v10583
        %10721 = vmatprep.subr.bf16.mxu0 0
        %10722 = vmatpush1.bf16.msra.mxu0 %v10584
        %10723 = vmatprep.subr.bf16.mxu0 0
        %10724 = vmatpush1.bf16.msra.mxu0 %v10585
        %10725 = vmatprep.subr.bf16.mxu0 0
        %10726 = vmatpush1.bf16.msra.mxu0 %v10586
        %10727 = vmatprep.subr.bf16.mxu0 0
        %10728 = vmatpush1.bf16.msra.mxu0 %v10587
        %10729 = vmatprep.mubr.bf16.mxu0 %v10350
        %10730 = vmatmul.mubr.bf16.gmra.mrb[0].mxu0 %v10349
        %v10731 = vpop.f32.mrb[0].mxu0
        %v10732 = vadd.f32 %v10692, %v10731
        %v10733 = vpop.f32.mrb[0].mxu0
        %v10734 = vpop.f32.mrb[0].mxu0
        %v10735 = vpop.f32.mrb[0].mxu0
        %10736 = vdwg.mxu0
        %10737 = vmatprep.subr.bf16.mxu0 0
        %10738 = vmatpush1.bf16.msra.mxu0 %v10588
        %10739 = vmatprep.subr.bf16.mxu0 0
        %10740 = vmatpush1.bf16.msra.mxu0 %v10589
        %10741 = vmatprep.subr.bf16.mxu0 0
        %10742 = vmatpush1.bf16.msra.mxu0 %v10590
        %10743 = vmatprep.subr.bf16.mxu0 0
        %10744 = vmatpush1.bf16.msra.mxu0 %v10591
        %10745 = vmatprep.subr.bf16.mxu0 0
        %10746 = vmatpush1.bf16.msra.mxu0 %v10592
        %10747 = vmatprep.subr.bf16.mxu0 0
        %10748 = vmatpush1.bf16.msra.mxu0 %v10593
        %10749 = vmatprep.subr.bf16.mxu0 0
        %10750 = vmatpush1.bf16.msra.mxu0 %v10594
        %10751 = vmatprep.subr.bf16.mxu0 0
        %10752 = vmatpush1.bf16.msra.mxu0 %v10595
        %10753 = vmatprep.subr.bf16.mxu0 0
        %10754 = vmatpush1.bf16.msra.mxu0 %v10596
        %10755 = vmatprep.subr.bf16.mxu0 0
        %10756 = vmatpush1.bf16.msra.mxu0 %v10597
        %10757 = vmatprep.subr.bf16.mxu0 0
        %10758 = vmatpush1.bf16.msra.mxu0 %v10598
        %10759 = vmatprep.subr.bf16.mxu0 0
        %10760 = vmatpush1.bf16.msra.mxu0 %v10599
        %10761 = vmatprep.subr.bf16.mxu0 0
        %10762 = vmatpush1.bf16.msra.mxu0 %v10600
        %10763 = vmatprep.subr.bf16.mxu0 0
        %10764 = vmatpush1.bf16.msra.mxu0 %v10601
        %10765 = vmatprep.subr.bf16.mxu0 0
        %10766 = vmatpush1.bf16.msra.mxu0 %v10602
        %10767 = vmatprep.subr.bf16.mxu0 0
        %10768 = vmatpush1.bf16.msra.mxu0 %v10603
        %10769 = vmatprep.mubr.bf16.mxu0 %v10352
        %10770 = vmatmul.mubr.bf16.gmra.mrb[0].mxu0 %v10351
        %v10771 = vpop.f32.mrb[0].mxu0
        %v10772 = vadd.f32 %v10732, %v10771
        %v10773 = vpop.f32.mrb[0].mxu0
        %v10774 = vpop.f32.mrb[0].mxu0
        %v10775 = vpop.f32.mrb[0].mxu0
        %10776 = vdwg.mxu0
        %10777 = vmatprep.subr.bf16.mxu0 0
        %10778 = vmatpush1.bf16.msra.mxu0 %v10604
        %10779 = vmatprep.subr.bf16.mxu0 0
        %10780 = vmatpush1.bf16.msra.mxu0 0
        %10781 = vmatprep.subr.bf16.mxu0 0
        %10782 = vmatpush1.bf16.msra.mxu0 0
        %10783 = vmatprep.subr.bf16.mxu0 0
        %10784 = vmatpush1.bf16.msra.mxu0 0
        %10785 = vmatprep.subr.bf16.mxu0 0
        %10786 = vmatpush1.bf16.msra.mxu0 0
        %10787 = vmatprep.subr.bf16.mxu0 0
        %10788 = vmatpush1.bf16.msra.mxu0 0
        %10789 = vmatprep.subr.bf16.mxu0 0
        %10790 = vmatpush1.bf16.msra.mxu0 0
        %10791 = vmatprep.subr.bf16.mxu0 0
        %10792 = vmatpush1.bf16.msra.mxu0 0
        %10793 = vmatprep.subr.bf16.mxu0 0
        %10794 = vmatpush1.bf16.msra.mxu0 0
        %10795 = vmatprep.subr.bf16.mxu0 0
        %10796 = vmatpush1.bf16.msra.mxu0 0
        %10797 = vmatprep.subr.bf16.mxu0 0
        %10798 = vmatpush1.bf16.msra.mxu0 0
        %10799 = vmatprep.subr.bf16.mxu0 0
        %10800 = vmatpush1.bf16.msra.mxu0 0
        %10801 = vmatprep.subr.bf16.mxu0 0
        %10802 = vmatpush1.bf16.msra.mxu0 0
        %10803 = vmatprep.subr.bf16.mxu0 0
        %10804 = vmatpush1.bf16.msra.mxu0 0
        %10805 = vmatprep.subr.bf16.mxu0 0
        %10806 = vmatpush1.bf16.msra.mxu0 0
        %10807 = vmatprep.subr.bf16.mxu0 0
        %10808 = vmatpush1.bf16.msra.mxu0 0
        %10809 = vmatprep.mubr.bf16.mxu0 0
        %10810 = vmatmul.mubr.bf16.gmra.mrb[0].mxu0 %v10655
        %v10811 = vpop.f32.mrb[0].mxu0
        %v10812 = vadd.f32 %v10772, %v10811
        %v10813 = vpop.f32.mrb[0].mxu0
        %v10814 = vpop.f32.mrb[0].mxu0
        %v10815 = vpop.f32.mrb[0].mxu0
        %10816 = vdwg.mxu0
        %v10817 = vadd.f32 %v10226, %v10812
        %v10818 = vld [vmem:[%s437] sm:$0x1]
        %v10820 = vlaneseq
        %v10821 = vshrl.u32 %v10820, 7
        %v10822 = vsub.s32 0, %v10821
        %v10823 = vrot.slane %v10818, %v10822
        %v10825 = vadd.f32 %v10817, %v10823
        %vm10826 = vcmp.gt.f32.partialorder %v10825, 1.0
        %v10827 = vsel %vm10826, 1, 0
        %v10828 = vcvt.s32.f32 %v10827
        %s10829 = smul.u32 %s29, 2
        %s10830 = scalar_lea.vmem [#allocation3], %s10829
        %10831 = vst [vmem:[%s10830] sm:$0x3] %v10828
        %p10832 = scmp.eq.s32.totalorder %s29, 1
        // Predicated region
        $region97: #{mamba_spike_forward.1} parent=63 // pred_check
          %p10833 = pneg %p10832
        $region98: #{mamba_spike_forward.1} parent=63 // pred_check_branch
          %10835 = sbr.rel (%p10833) target = $region100
        $region99: #{mamba_spike_forward.1} parent=63 // pred_region
          %v10836 = vld [vmem:[#allocation3] sm:$0x3]
          %v10837 = vld [vmem:[%s5] sm:$0xff]
          %v10838 = vld [vmem:[%s5 + $0x8] sm:$0xff]
          %v10839 = vld [vmem:[%s5 + $0x10] sm:$0xff]
          %v10840 = vld [vmem:[%s5 + $0x18] sm:$0xff]
          %v10841 = vld [vmem:[%s5 + $0x20] sm:$0xff]
          %v10842 = vld [vmem:[%s5 + $0x28] sm:$0xff]
          %v10843 = vld [vmem:[%s5 + $0x30] sm:$0xff]
          %v10844 = vld [vmem:[%s5 + $0x38] sm:$0xff]
          %v10845 = vld [vmem:[%s5 + $0x40] sm:$0xff]
          %v10846 = vld [vmem:[%s5 + $0x48] sm:$0xff]
          %v10847 = vld [vmem:[%s5 + $0x50] sm:$0xff]
          %v10848 = vld [vmem:[%s5 + $0x58] sm:$0xff]
          %v10849 = vld [vmem:[%s5 + $0x60] sm:$0xff]
          %v10850 = vld [vmem:[%s5 + $0x68] sm:$0xff]
          %v10851 = vld [vmem:[%s5 + $0x70] sm:$0xff]
          %v10852 = vld [vmem:[%s5 + $0x78] sm:$0xff]
          %s10853 = scalar_lea.vmem [#allocation3], 2
          %v10854 = vld [vmem:[%s10853] sm:$0x3]
          %s10855 = scalar_lea.vmem %s5, 128
          %v10856 = vld [vmem:[%s10855] sm:$0xff]
          %v10857 = vld [vmem:[%s10855 + $0x8] sm:$0xff]
          %v10858 = vld [vmem:[%s10855 + $0x10] sm:$0xff]
          %v10859 = vld [vmem:[%s10855 + $0x18] sm:$0xff]
          %v10860 = vld [vmem:[%s10855 + $0x20] sm:$0xff]
          %v10861 = vld [vmem:[%s10855 + $0x28] sm:$0xff]
          %v10862 = vld [vmem:[%s10855 + $0x30] sm:$0xff]
          %v10863 = vld [vmem:[%s10855 + $0x38] sm:$0xff]
          %v10864 = vld [vmem:[%s10855 + $0x40] sm:$0xff]
          %v10865 = vld [vmem:[%s10855 + $0x48] sm:$0xff]
          %v10866 = vld [vmem:[%s10855 + $0x50] sm:$0xff]
          %v10867 = vld [vmem:[%s10855 + $0x58] sm:$0xff]
          %v10868 = vld [vmem:[%s10855 + $0x60] sm:$0xff]
          %v10869 = vld [vmem:[%s10855 + $0x68] sm:$0xff]
          %v10870 = vld [vmem:[%s10855 + $0x70] sm:$0xff]
          %v10871 = vld [vmem:[%s10855 + $0x78] sm:$0xff]
          %10872 = vmatprep.subr.mxu0 0.0
          %10873 = vmatpush1.msra.mxu0 %v10856
          %10874 = vmatprep.subr.mxu0 0.0
          %10875 = vmatpush1.msra.mxu0 %v10857
          %10876 = vmatprep.subr.mxu0 0.0
          %10877 = vmatpush1.msra.mxu0 %v10858
          %10878 = vmatprep.subr.mxu0 0.0
          %10879 = vmatpush1.msra.mxu0 %v10859
          %10880 = vmatprep.subr.mxu0 0.0
          %10881 = vmatpush1.msra.mxu0 %v10860
          %10882 = vmatprep.subr.mxu0 0.0
          %10883 = vmatpush1.msra.mxu0 %v10861
          %10884 = vmatprep.subr.mxu0 0.0
          %10885 = vmatpush1.msra.mxu0 %v10862
          %10886 = vmatprep.subr.mxu0 0.0
          %10887 = vmatpush1.msra.mxu0 %v10863
          %10888 = vmatprep.subr.mxu0 0.0
          %10889 = vmatpush1.msra.mxu0 %v10864
          %10890 = vmatprep.subr.mxu0 0.0
          %10891 = vmatpush1.msra.mxu0 %v10865
          %10892 = vmatprep.subr.mxu0 0.0
          %10893 = vmatpush1.msra.mxu0 %v10866
          %10894 = vmatprep.subr.mxu0 0.0
          %10895 = vmatpush1.msra.mxu0 %v10867
          %10896 = vmatprep.subr.mxu0 0.0
          %10897 = vmatpush1.msra.mxu0 %v10868
          %10898 = vmatprep.subr.mxu0 0.0
          %10899 = vmatpush1.msra.mxu0 %v10869
          %10900 = vmatprep.subr.mxu0 0.0
          %10901 = vmatpush1.msra.mxu0 %v10870
          %10902 = vmatprep.subr.mxu0 0.0
          %10903 = vmatpush1.msra.mxu0 %v10871
          %10904 = vmatprep.subr.mxu0 0.0
          %10905 = vmatpush1.msra.mxu0 0.0
          %10906 = vmatprep.subr.mxu0 0.0
          %10907 = vmatpush1.msra.mxu0 0.0
          %10908 = vmatprep.subr.mxu0 0.0
          %10909 = vmatpush1.msra.mxu0 0.0
          %10910 = vmatprep.subr.mxu0 0.0
          %10911 = vmatpush1.msra.mxu0 0.0
          %10912 = vmatprep.subr.mxu0 0.0
          %10913 = vmatpush1.msra.mxu0 0.0
          %10914 = vmatprep.subr.mxu0 0.0
          %10915 = vmatpush1.msra.mxu0 0.0
          %10916 = vmatprep.subr.mxu0 0.0
          %10917 = vmatpush1.msra.mxu0 0.0
          %10918 = vmatprep.subr.mxu0 0.0
          %10919 = vmatpush1.msra.mxu0 0.0
          %10920 = vmatprep.subr.mxu0 0.0
          %10921 = vmatpush1.msra.mxu0 0.0
          %10922 = vmatprep.subr.mxu0 0.0
          %10923 = vmatpush1.msra.mxu0 0.0
          %10924 = vmatprep.subr.mxu0 0.0
          %10925 = vmatpush1.msra.mxu0 0.0
          %10926 = vmatprep.subr.mxu0 0.0
          %10927 = vmatpush1.msra.mxu0 0.0
          %10928 = vmatprep.subr.mxu0 0.0
          %10929 = vmatpush1.msra.mxu0 0.0
          %10930 = vmatprep.subr.mxu0 0.0
          %10931 = vmatpush1.msra.mxu0 0.0
          %10932 = vmatprep.subr.mxu0 0.0
          %10933 = vmatpush1.msra.mxu0 0.0
          %10934 = vmatprep.subr.mxu0 0.0
          %10935 = vmatpush1.msra.mxu0 0.0
          %10936 = vmatprep.mubr.f32.mxu0 0.0
          %10937 = vmatmul.mubr.f32.gmra.mrb[0].mxu0 %v10854
          %v10938 = vpop.f32.mrb[0].mxu0
          %v10939 = vadd.f32 0.0, %v10938
          %v10940 = vpop.f32.mrb[0].mxu0
          %10941 = vdwg.mxu0
          %10942 = vmatprep.subr.mxu0 0.0
          %10943 = vmatpush1.msra.mxu0 %v10837
          %10944 = vmatprep.subr.mxu0 0.0
          %10945 = vmatpush1.msra.mxu0 %v10838
          %10946 = vmatprep.subr.mxu0 0.0
          %10947 = vmatpush1.msra.mxu0 %v10839
          %10948 = vmatprep.subr.mxu0 0.0
          %10949 = vmatpush1.msra.mxu0 %v10840
          %10950 = vmatprep.subr.mxu0 0.0
          %10951 = vmatpush1.msra.mxu0 %v10841
          %10952 = vmatprep.subr.mxu0 0.0
          %10953 = vmatpush1.msra.mxu0 %v10842
          %10954 = vmatprep.subr.mxu0 0.0
          %10955 = vmatpush1.msra.mxu0 %v10843
          %10956 = vmatprep.subr.mxu0 0.0
          %10957 = vmatpush1.msra.mxu0 %v10844
          %10958 = vmatprep.subr.mxu0 0.0
          %10959 = vmatpush1.msra.mxu0 %v10845
          %10960 = vmatprep.subr.mxu0 0.0
          %10961 = vmatpush1.msra.mxu0 %v10846
          %10962 = vmatprep.subr.mxu0 0.0
          %10963 = vmatpush1.msra.mxu0 %v10847
          %10964 = vmatprep.subr.mxu0 0.0
          %10965 = vmatpush1.msra.mxu0 %v10848
          %10966 = vmatprep.subr.mxu0 0.0
          %10967 = vmatpush1.msra.mxu0 %v10849
          %10968 = vmatprep.subr.mxu0 0.0
          %10969 = vmatpush1.msra.mxu0 %v10850
          %10970 = vmatprep.subr.mxu0 0.0
          %10971 = vmatpush1.msra.mxu0 %v10851
          %10972 = vmatprep.subr.mxu0 0.0
          %10973 = vmatpush1.msra.mxu0 %v10852
          %10974 = vmatprep.subr.mxu0 0.0
          %10975 = vmatpush1.msra.mxu0 0.0
          %10976 = vmatprep.subr.mxu0 0.0
          %10977 = vmatpush1.msra.mxu0 0.0
          %10978 = vmatprep.subr.mxu0 0.0
          %10979 = vmatpush1.msra.mxu0 0.0
          %10980 = vmatprep.subr.mxu0 0.0
          %10981 = vmatpush1.msra.mxu0 0.0
          %10982 = vmatprep.subr.mxu0 0.0
          %10983 = vmatpush1.msra.mxu0 0.0
          %10984 = vmatprep.subr.mxu0 0.0
          %10985 = vmatpush1.msra.mxu0 0.0
          %10986 = vmatprep.subr.mxu0 0.0
          %10987 = vmatpush1.msra.mxu0 0.0
          %10988 = vmatprep.subr.mxu0 0.0
          %10989 = vmatpush1.msra.mxu0 0.0
          %10990 = vmatprep.subr.mxu0 0.0
          %10991 = vmatpush1.msra.mxu0 0.0
          %10992 = vmatprep.subr.mxu0 0.0
          %10993 = vmatpush1.msra.mxu0 0.0
          %10994 = vmatprep.subr.mxu0 0.0
          %10995 = vmatpush1.msra.mxu0 0.0
          %10996 = vmatprep.subr.mxu0 0.0
          %10997 = vmatpush1.msra.mxu0 0.0
          %10998 = vmatprep.subr.mxu0 0.0
          %10999 = vmatpush1.msra.mxu0 0.0
          %11000 = vmatprep.subr.mxu0 0.0
          %11001 = vmatpush1.msra.mxu0 0.0
          %11002 = vmatprep.subr.mxu0 0.0
          %11003 = vmatpush1.msra.mxu0 0.0
          %11004 = vmatprep.subr.mxu0 0.0
          %11005 = vmatpush1.msra.mxu0 0.0
          %11006 = vmatprep.mubr.f32.mxu0 0.0
          %11007 = vmatmul.mubr.f32.gmra.mrb[0].mxu0 %v10836
          %v11008 = vpop.f32.mrb[0].mxu0
          %v11009 = vadd.f32 %v10939, %v11008
          %v11010 = vpop.f32.mrb[0].mxu0
          %11011 = vdwg.mxu0
          %v11012 = vld [vmem:[#allocation10] sm:$0x1]
          %v11014 = vlaneseq
          %v11015 = vshrl.u32 %v11014, 7
          %v11016 = vsub.s32 0, %v11015
          %v11017 = vrot.slane %v11012, %v11016
          %v11019 = vadd.f32 %v11009, %v11017
          %v11020 = vld [vmem:[#allocation12] sm:$0xff]
          %v11021 = vld [vmem:[#allocation12 + $0x8] sm:$0xff]
          %v11022 = vld [vmem:[#allocation12 + $0x10] sm:$0xff]
          %v11023 = vld [vmem:[#allocation12 + $0x18] sm:$0xff]
          %v11024 = vld [vmem:[#allocation13] sm:$0x1]
          %v11026 = vlaneseq
          %v11027 = vshrl.u32 %v11026, 7
          %v11028 = vsub.s32 0, %v11027
          %v11029 = vrot.slane %v11024, %v11028
          %vm11031 = vcmask 261120
          %v11033 = vsel %vm11031, %v11019, 0
          %11035 = vmatprep.subr.mxu0 0.0
          %11036 = vmatpush1.msra.mxu0 %v11020
          %11037 = vmatprep.subr.mxu0 0.0
          %11038 = vmatpush1.msra.mxu0 %v11021
          %11039 = vmatprep.subr.mxu0 0.0
          %11040 = vmatpush1.msra.mxu0 %v11022
          %11041 = vmatprep.subr.mxu0 0.0
          %11042 = vmatpush1.msra.mxu0 %v11023
          %11043 = vmatprep.subr.mxu0 0.0
          %11044 = vmatpush1.msra.mxu0 0.0
          %11045 = vmatprep.subr.mxu0 0.0
          %11046 = vmatpush1.msra.mxu0 0.0
          %11047 = vmatprep.subr.mxu0 0.0
          %11048 = vmatpush1.msra.mxu0 0.0
          %11049 = vmatprep.subr.mxu0 0.0
          %11050 = vmatpush1.msra.mxu0 0.0
          %11051 = vmatprep.subr.mxu0 0.0
          %11052 = vmatpush1.msra.mxu0 0.0
          %11053 = vmatprep.subr.mxu0 0.0
          %11054 = vmatpush1.msra.mxu0 0.0
          %11055 = vmatprep.subr.mxu0 0.0
          %11056 = vmatpush1.msra.mxu0 0.0
          %11057 = vmatprep.subr.mxu0 0.0
          %11058 = vmatpush1.msra.mxu0 0.0
          %11059 = vmatprep.subr.mxu0 0.0
          %11060 = vmatpush1.msra.mxu0 0.0
          %11061 = vmatprep.subr.mxu0 0.0
          %11062 = vmatpush1.msra.mxu0 0.0
          %11063 = vmatprep.subr.mxu0 0.0
          %11064 = vmatpush1.msra.mxu0 0.0
          %11065 = vmatprep.subr.mxu0 0.0
          %11066 = vmatpush1.msra.mxu0 0.0
          %11067 = vmatprep.subr.mxu0 0.0
          %11068 = vmatpush1.msra.mxu0 0.0
          %11069 = vmatprep.subr.mxu0 0.0
          %11070 = vmatpush1.msra.mxu0 0.0
          %11071 = vmatprep.subr.mxu0 0.0
          %11072 = vmatpush1.msra.mxu0 0.0
          %11073 = vmatprep.subr.mxu0 0.0
          %11074 = vmatpush1.msra.mxu0 0.0
          %11075 = vmatprep.subr.mxu0 0.0
          %11076 = vmatpush1.msra.mxu0 0.0
          %11077 = vmatprep.subr.mxu0 0.0
          %11078 = vmatpush1.msra.mxu0 0.0
          %11079 = vmatprep.subr.mxu0 0.0
          %11080 = vmatpush1.msra.mxu0 0.0
          %11081 = vmatprep.subr.mxu0 0.0
          %11082 = vmatpush1.msra.mxu0 0.0
          %11083 = vmatprep.subr.mxu0 0.0
          %11084 = vmatpush1.msra.mxu0 0.0
          %11085 = vmatprep.subr.mxu0 0.0
          %11086 = vmatpush1.msra.mxu0 0.0
          %11087 = vmatprep.subr.mxu0 0.0
          %11088 = vmatpush1.msra.mxu0 0.0
          %11089 = vmatprep.subr.mxu0 0.0
          %11090 = vmatpush1.msra.mxu0 0.0
          %11091 = vmatprep.subr.mxu0 0.0
          %11092 = vmatpush1.msra.mxu0 0.0
          %11093 = vmatprep.subr.mxu0 0.0
          %11094 = vmatpush1.msra.mxu0 0.0
          %11095 = vmatprep.subr.mxu0 0.0
          %11096 = vmatpush1.msra.mxu0 0.0
          %11097 = vmatprep.subr.mxu0 0.0
          %11098 = vmatpush1.msra.mxu0 0.0
          %11099 = vmatprep.mubr.f32.mxu0 0.0
          %11100 = vmatmul.mubr.f32.gmra.mrb[0].mxu0 %v11033
          %v11101 = vpop.f32.mrb[0].mxu0
          %v11102 = vadd.f32 %v11029, %v11101
          %v11103 = vpop.f32.mrb[0].mxu0
          %11104 = vdwg.mxu0
          %v11105 = vxor.u32 %v11102, 2147483648
          %v11106 = vmul.f32 %v11105, 1.442695
          %v11107 = vpow.pop %v11106
          %v11108 = vadd.f32 %v11107, 1.0
          %v11109 = vrcp.pop %v11108
          %v11110 = vmul.f32 1.0, %v11109
          %v11111 = vmul.f32 %v11102, %v11110
          %v11112 = vld [vmem:[%s9] sm:$0xff]
          %v11113 = vld [vmem:[%s9 + $0x8] sm:$0xff]
          %v11114 = vld [vmem:[%s9 + $0x10] sm:$0xff]
          %v11115 = vld [vmem:[%s9 + $0x18] sm:$0xff]
          %v11116 = vld [vmem:[#allocation15] sm:$0x1]
          %v11118 = vlaneseq
          %v11119 = vshrl.u32 %v11118, 7
          %v11120 = vsub.s32 0, %v11119
          %v11121 = vrot.slane %v11116, %v11120
          %v11124 = vsel %vm11031, %v11111, 0
          %11126 = vmatprep.subr.mxu0 0.0
          %11127 = vmatpush1.msra.mxu0 %v11112
          %11128 = vmatprep.subr.mxu0 0.0
          %11129 = vmatpush1.msra.mxu0 %v11113
          %11130 = vmatprep.subr.mxu0 0.0
          %11131 = vmatpush1.msra.mxu0 %v11114
          %11132 = vmatprep.subr.mxu0 0.0
          %11133 = vmatpush1.msra.mxu0 %v11115
          %11134 = vmatprep.subr.mxu0 0.0
          %11135 = vmatpush1.msra.mxu0 0.0
          %11136 = vmatprep.subr.mxu0 0.0
          %11137 = vmatpush1.msra.mxu0 0.0
          %11138 = vmatprep.subr.mxu0 0.0
          %11139 = vmatpush1.msra.mxu0 0.0
          %11140 = vmatprep.subr.mxu0 0.0
          %11141 = vmatpush1.msra.mxu0 0.0
          %11142 = vmatprep.subr.mxu0 0.0
          %11143 = vmatpush1.msra.mxu0 0.0
          %11144 = vmatprep.subr.mxu0 0.0
          %11145 = vmatpush1.msra.mxu0 0.0
          %11146 = vmatprep.subr.mxu0 0.0
          %11147 = vmatpush1.msra.mxu0 0.0
          %11148 = vmatprep.subr.mxu0 0.0
          %11149 = vmatpush1.msra.mxu0 0.0
          %11150 = vmatprep.subr.mxu0 0.0
          %11151 = vmatpush1.msra.mxu0 0.0
          %11152 = vmatprep.subr.mxu0 0.0
          %11153 = vmatpush1.msra.mxu0 0.0
          %11154 = vmatprep.subr.mxu0 0.0
          %11155 = vmatpush1.msra.mxu0 0.0
          %11156 = vmatprep.subr.mxu0 0.0
          %11157 = vmatpush1.msra.mxu0 0.0
          %11158 = vmatprep.subr.mxu0 0.0
          %11159 = vmatpush1.msra.mxu0 0.0
          %11160 = vmatprep.subr.mxu0 0.0
          %11161 = vmatpush1.msra.mxu0 0.0
          %11162 = vmatprep.subr.mxu0 0.0
          %11163 = vmatpush1.msra.mxu0 0.0
          %11164 = vmatprep.subr.mxu0 0.0
          %11165 = vmatpush1.msra.mxu0 0.0
          %11166 = vmatprep.subr.mxu0 0.0
          %11167 = vmatpush1.msra.mxu0 0.0
          %11168 = vmatprep.subr.mxu0 0.0
          %11169 = vmatpush1.msra.mxu0 0.0
          %11170 = vmatprep.subr.mxu0 0.0
          %11171 = vmatpush1.msra.mxu0 0.0
          %11172 = vmatprep.subr.mxu0 0.0
          %11173 = vmatpush1.msra.mxu0 0.0
          %11174 = vmatprep.subr.mxu0 0.0
          %11175 = vmatpush1.msra.mxu0 0.0
          %11176 = vmatprep.subr.mxu0 0.0
          %11177 = vmatpush1.msra.mxu0 0.0
          %11178 = vmatprep.subr.mxu0 0.0
          %11179 = vmatpush1.msra.mxu0 0.0
          %11180 = vmatprep.subr.mxu0 0.0
          %11181 = vmatpush1.msra.mxu0 0.0
          %11182 = vmatprep.subr.mxu0 0.0
          %11183 = vmatpush1.msra.mxu0 0.0
          %11184 = vmatprep.subr.mxu0 0.0
          %11185 = vmatpush1.msra.mxu0 0.0
          %11186 = vmatprep.subr.mxu0 0.0
          %11187 = vmatpush1.msra.mxu0 0.0
          %11188 = vmatprep.subr.mxu0 0.0
          %11189 = vmatpush1.msra.mxu0 0.0
          %11190 = vmatprep.mubr.f32.mxu0 0.0
          %11191 = vmatmul.mubr.f32.gmra.mrb[0].mxu0 %v11124
          %v11192 = vpop.f32.mrb[0].mxu0
          %v11193 = vadd.f32 %v11121, %v11192
          %v11194 = vpop.f32.mrb[0].mxu0
          %11195 = vdwg.mxu0
          %vm11196 = vcmp.gt.f32.partialorder %v11193, 0.0
          %v11197 = vsel %vm11196, 1, 0
          %v11198 = vcvt.s32.f32 %v11197
          %vm11199 = vcmask 74752
          %11200 = vst.msk [vmem:[#allocation16] sm:$0x3] %vm11199, %v11198
        $region100: #{mamba_spike_forward.1} parent=63 // pred_fallthru
          _
        // Predicated region
        $region101: #{mamba_spike_forward.1} parent=63 // pred_check
          %p11201 = pneg %p283
        $region102: #{mamba_spike_forward.1} parent=63 // pred_check_branch
          %11203 = sbr.rel (%p11201) target = $region104
        $region103: #{mamba_spike_forward.1} parent=63 // pred_region
          %s11205 = ssub.s32 32, 32
          %11206 = vsyncadd [#allocation6], %s11205
          %s11208 = sshll.u32 [#allocation16], 4
          %s11209 = int_to_ptr.vmem [resolvable:$true] %s11208
          %11211 = dma.vmem_to_hbm [thread:$0]  %s11209, 32, %s11, [#allocation6]
        $region104: #{mamba_spike_forward.1} parent=63 // pred_fallthru
          _
        // Predicated region
        $region105: #{mamba_spike_forward.1} parent=63 // pred_check
          %p11212 = pneg %p283
        $region106: #{mamba_spike_forward.1} parent=63 // pred_check_branch
          %11214 = sbr.rel (%p11212) target = $region108
        $region107: #{mamba_spike_forward.1} parent=63 // pred_region
          %11215 = dma.done [#allocation6], 32
        $region108: #{mamba_spike_forward.1} parent=63 // pred_fallthru
          _
      $region64: #{mamba_spike_forward.1} parent=5 // pred_fallthru
        _
      %p11216 = scmp.le.s32.totalorder 2, %s24
      // Predicated region
      $region109: #{mamba_spike_forward.1} parent=5 // pred_check
        %p11217 = pneg %p11216
      $region110: #{mamba_spike_forward.1} parent=5 // pred_check_branch
        %11219 = sbr.rel (%p11217) target = $region112
      $region111: #{mamba_spike_forward.1} parent=5 // pred_region
        %s11220 = ssub.s32 %s24, 2
      $region112: #{mamba_spike_forward.1} parent=5 // pred_fallthru
        _
    $region6: #{mamba_spike_forward.1} parent=1 // loop_footer
      %s28 = sadd.s32 1, %s24
    $region7: #{mamba_spike_forward.1} parent=1 // loop_footer_branch
      %23 = sbr.rel target = $region3
    $region8: #{mamba_spike_forward.1} parent=1 // loop_exit
      _
    %11221 = vsyncpa [#allocation5], 1
    %s11222 = scalar_lea.sflag [#allocation5], 1
    %11223 = vsyncpa %s11222, 1
    %11224 = vsyncpa [#allocation8], 1
    %s11225 = scalar_lea.sflag [#allocation8], 1
    %11226 = vsyncpa %s11225, 1
    %11227 = vsyncpa [#allocation11], 1
    %11228 = vsyncpa [#allocation14], 1
    %11229 = vsyncpa [#allocation6], 1
    %s11230 = scalar_lea.sflag [#allocation6], 1
    %11231 = vsyncpa %s11230, 1

</llo_original>
